<compile_context>
chip_gen: v5e
topology: v5e:2x2
jax: 0.10.0
libtpu: 0.0.40
codegen_flags: <defaults>
</compile_context>

<pallas_src>
import functools

import jax
import jax.numpy as jnp
from jax.experimental import pallas as pl
from jax.experimental.pallas import tpu as pltpu


# ----------------------------------------------------------------------------
# Fused kernel:  relu( conv17( relu( conv16(x) ) ) )  for one tile of output rows
# ----------------------------------------------------------------------------
def _fused_conv6_2_kernel(xc_ref, mk_ref, w16_ref, b16_ref, w17_ref, b17_ref, o_ref):
    """Shapes (per grid step):
        xc_ref : (9, tm, Cin)    bf16  input patches, tap-major (p = kh*3+kw)
        mk_ref : (9, tm, 1)      f32   0/1 padding mask per tap
        w16_ref: (Cin, Cmid)     bf16
        b16_ref: (1, Cmid)       f32
        w17_ref: (9, Cmid, Cout) bf16  w17[p] = W17[:, :, kh, kw].T
        b17_ref: (1, Cout)       f32
        o_ref  : (tm, Cout)      f32
    """
    w16 = w16_ref[...]
    b16 = b16_ref[...]
    b17 = b17_ref[...]

    acc = jnp.zeros(o_ref.shape, jnp.float32)
    for p in range(9):  # static, unrolled: the 9 taps of the 3x3 stride-2 conv
        # conv16 (1x1) + ReLU on this tap; mask zeroes taps that hit the padding
        x1 = jnp.dot(xc_ref[p], w16, preferred_element_type=jnp.float32)
        x1 = jnp.maximum(x1 + b16, 0.0) * mk_ref[p]
        # conv17 contribution of this tap
        acc = acc + jnp.dot(x1.astype(jnp.bfloat16), w17_ref[p],
                            preferred_element_type=jnp.float32)
    o_ref[...] = jnp.maximum(acc + b17, 0.0).astype(o_ref.dtype)


def _pick_row_tile(m):
    """Pick the output-row tile: big tiles for big problems, else aim for
    exactly 2 'parallel' grid steps so a v7x megacore keeps both cores busy."""
    if m >= 256:
        return 128
    half = -(-m // 2)                     # ceil(m / 2)
    return max(8, -(-half // 8) * 8)      # round up to a multiple of 8


# ----------------------------------------------------------------------------
# Forward pass (NHWC core + NCHW wrapper matching the PyTorch module)
# ----------------------------------------------------------------------------
def extra_conv6_2_forward_nhwc(x_nhwc, params):
    """x_nhwc: (N, H, W, Cin=1024) f32.  Returns (N, Ho, Wo, 512) f32."""
    w16, b16, w17, b17 = params["w16"], params["b16"], params["w17"], params["b17"]
    N, H, W, Cin = x_nhwc.shape
    Cmid = w16.shape[0]            # 256
    Cout = w17.shape[0]            # 512
    Ho = (H + 2 - 3) // 2 + 1
    Wo = (W + 2 - 3) // 2 + 1

    # --- im2col of the INPUT (valid because conv16 is pointwise) -------------
    x = x_nhwc.astype(jnp.bfloat16)
    xp = jnp.pad(x, ((0, 0), (1, 1), (1, 1), (0, 0)))
    vp = jnp.pad(jnp.ones((N, H, W, 1), jnp.float32), ((0, 0), (1, 1), (1, 1), (0, 0)))

    xc_taps, mk_taps = [], []
    for kh in range(3):
        for kw in range(3):
            xc_taps.append(xp[:, kh:kh + 2 * Ho:2, kw:kw + 2 * Wo:2, :])
            mk_taps.append(vp[:, kh:kh + 2 * Ho:2, kw:kw + 2 * Wo:2, :])
    M = N * Ho * Wo
    xc = jnp.stack(xc_taps, 0).reshape(9, M, Cin)       # (9, M, Cin)  bf16
    mk = jnp.stack(mk_taps, 0).reshape(9, M, 1)         # (9, M, 1)    f32

    tm = _pick_row_tile(M)
    Mp = -(-M // tm) * tm
    if Mp != M:                                          # pad rows; masked to zero
        xc = jnp.pad(xc, ((0, 0), (0, Mp - M), (0, 0)))
        mk = jnp.pad(mk, ((0, 0), (0, Mp - M), (0, 0)))

    # --- weights in matmul layout (bf16), biases in f32 ----------------------
    w16m = jnp.transpose(w16.reshape(Cmid, Cin), (1, 0)).astype(jnp.bfloat16)   # (Cin, Cmid)
    w17m = jnp.transpose(w17, (2, 3, 1, 0)).reshape(9, Cmid, Cout).astype(jnp.bfloat16)
    b16m = b16.reshape(1, Cmid).astype(jnp.float32)
    b17m = b17.reshape(1, Cout).astype(jnp.float32)

    grid = (Mp // tm,)
    out = pl.pallas_call(
        _fused_conv6_2_kernel,
        out_shape=jax.ShapeDtypeStruct((Mp, Cout), jnp.float32),
        grid_spec=pltpu.PrefetchScalarGridSpec(
            num_scalar_prefetch=0,
            grid=grid,
            in_specs=[
                pl.BlockSpec((9, tm, Cin), lambda i: (0, i, 0)),
                pl.BlockSpec((9, tm, 1), lambda i: (0, i, 0)),
                pl.BlockSpec((Cin, Cmid), lambda i: (0, 0)),
                pl.BlockSpec((1, Cmid), lambda i: (0, 0)),
                pl.BlockSpec((9, Cmid, Cout), lambda i: (0, 0, 0)),
                pl.BlockSpec((1, Cout), lambda i: (0, 0)),
            ],
            out_specs=pl.BlockSpec((tm, Cout), lambda i: (i, 0)),
        ),
        compiler_params=pltpu.CompilerParams(
            dimension_semantics=("parallel",),
            vmem_limit_bytes=32 * 1024 * 1024,
        ),
    )(xc, mk, w16m, b16m, w17m, b17m)

    return out[:M].reshape(N, Ho, Wo, Cout)


def extra_conv6_2_forward(x_nchw, params):
    """NCHW wrapper matching the PyTorch module's layout."""
    # If this layer sits inside a longer NHWC pipeline, call the *_nhwc entry
    # point directly and skip both transposes.
    x = jnp.transpose(x_nchw, (0, 2, 3, 1))
    y = extra_conv6_2_forward_nhwc(x, params)
    return jnp.transpose(y, (0, 3, 1, 2))


# ----------------------------------------------------------------------------
# Reference (pure XLA, f32) and deterministic parameter init
# ----------------------------------------------------------------------------
def _reference_forward(x_nchw, params):
    dn = ("NCHW", "OIHW", "NCHW")
    hi = jax.lax.Precision.HIGHEST
    y = jax.lax.conv_general_dilated(x_nchw, params["w16"], (1, 1),
                                     [(0, 0), (0, 0)], dimension_numbers=dn,
                                     precision=hi)
    y = jnp.maximum(y + params["b16"].reshape(1, -1, 1, 1), 0.0)
    y = jax.lax.conv_general_dilated(y, params["w17"], (2, 2),
                                     [(1, 1), (1, 1)], dimension_numbers=dn,
                                     precision=hi)
    y = jnp.maximum(y + params["b17"].reshape(1, -1, 1, 1), 0.0)
    return y


def init_params(key):
    k1, k2, k3, k4 = jax.random.split(key, 4)
    c_in, c_mid, c_out = 1024, 256, 512
    return {
        "w16": jax.random.normal(k1, (c_mid, c_in, 1, 1), jnp.float32) * 0.02,
        "b16": jax.random.normal(k2, (c_mid,), jnp.float32) * 0.02,
        "w17": jax.random.normal(k3, (c_out, c_mid, 3, 3), jnp.float32) * 0.02,
        "b17": jax.random.normal(k4, (c_out,), jnp.float32) * 0.02,
    }


# TODO(synk): the module's quantize_* / freeze paths (QConv2d / QReLU) are a
# separate int8 inference flow and are not implemented here.

if __name__ == "__main__":
    key = jax.random.PRNGKey(0)
    pkey, xkey = jax.random.split(key)
    params = init_params(pkey)

    # Small spatial size (SSD conv6_2 operates on small feature maps anyway).
    x = jax.random.normal(xkey, (2, 1024, 8, 8), jnp.float32)   # NCHW

    fwd = jax.jit(functools.partial(extra_conv6_2_forward, params=params))
    out = jax.block_until_ready(fwd(x))

    assert out.shape == (2, 512, 4, 4), out.shape
    assert bool(jnp.all(out >= 0.0))                            # ReLU output

    ref = jax.block_until_ready(_reference_forward(x, params))
    max_err = float(jnp.max(jnp.abs(out - ref)))
    assert max_err < 5e-2, f"max abs err vs f32 reference: {max_err}"

    print("KERNEL_OK")
</pallas_src>

<mosaic_0001>
module attributes {stable_mosaic.version = 11 : i64} {
  func.func @_fused_conv6_2_kernel(%arg0: i32, %arg1: memref<9x16x1024xbf16, #tpu.memory_space<vmem>>, %arg2: memref<9x16x1xf32, #tpu.memory_space<vmem>>, %arg3: memref<1024x256xbf16, #tpu.memory_space<vmem>>, %arg4: memref<1x256xf32, #tpu.memory_space<vmem>>, %arg5: memref<9x256x512xbf16, #tpu.memory_space<vmem>>, %arg6: memref<1x512xf32, #tpu.memory_space<vmem>>, %arg7: memref<16x512xf32, #tpu.memory_space<vmem>>) attributes {dimension_semantics = [#tpu.dimension_semantics<parallel>], iteration_bounds = array<i64: 2>, scalar_prefetch = 0 : i64, scratch_operands = 0 : i64, tpu.core_type = #tpu.core_type<tc>, window_params = [{transform_indices = @transform_0, window_bounds = array<i64: 9, 16, 1024>}, {transform_indices = @transform_1, window_bounds = array<i64: 9, 16, 1>}, {pipeline_mode = #tpu.pipeline_mode<synchronous>, transform_indices = @transform_2, window_bounds = array<i64: 1024, 256>}, {pipeline_mode = #tpu.pipeline_mode<synchronous>, transform_indices = @transform_3, window_bounds = array<i64: 1, 256>}, {pipeline_mode = #tpu.pipeline_mode<synchronous>, transform_indices = @transform_4, window_bounds = array<i64: 9, 256, 512>}, {pipeline_mode = #tpu.pipeline_mode<synchronous>, transform_indices = @transform_5, window_bounds = array<i64: 1, 512>}, {transform_indices = @transform_6, window_bounds = array<i64: 16, 512>}]} {
    %c0 = arith.constant 0 : index
    %c0_0 = arith.constant 0 : index
    %0 = vector.load %arg3[%c0, %c0_0] : memref<1024x256xbf16, #tpu.memory_space<vmem>>, vector<1024x256xbf16>
    %c0_1 = arith.constant 0 : index
    %c0_2 = arith.constant 0 : index
    %1 = vector.load %arg4[%c0_1, %c0_2] : memref<1x256xf32, #tpu.memory_space<vmem>>, vector<1x256xf32>
    %c0_3 = arith.constant 0 : index
    %c0_4 = arith.constant 0 : index
    %2 = vector.load %arg6[%c0_3, %c0_4] : memref<1x512xf32, #tpu.memory_space<vmem>>, vector<1x512xf32>
    %cst = arith.constant 0.000000e+00 : f32
    %3 = vector.broadcast %cst : f32 to vector<16x512xf32>
    %c0_5 = arith.constant 0 : index
    %c0_6 = arith.constant 0 : index
    %c0_7 = arith.constant 0 : index
    %4 = vector.load %arg1[%c0_5, %c0_6, %c0_7] : memref<9x16x1024xbf16, #tpu.memory_space<vmem>>, vector<1x16x1024xbf16>
    %5 = vector.shape_cast %4 : vector<1x16x1024xbf16> to vector<16x1024xbf16>
    %cst_8 = arith.constant dense<0.000000e+00> : vector<16x256xf32>
    %6 = tpu.matmul %5, %0, %cst_8 {dimension_numbers = #tpu.dot_dimension_numbers<[1], [0], [0], [1], [0, 0, 1, 1], [], []>} : vector<16x1024xbf16>, vector<1024x256xbf16>, vector<16x256xf32> -> vector<16x256xf32>
    %7 = vector.broadcast %1 : vector<1x256xf32> to vector<16x256xf32>
    %8 = arith.addf %6, %7 : vector<16x256xf32>
    %cst_9 = arith.constant 0.000000e+00 : f32
    %9 = vector.broadcast %cst_9 : f32 to vector<16x256xf32>
    %10 = arith.maximumf %8, %9 : vector<16x256xf32>
    %c0_10 = arith.constant 0 : index
    %c0_11 = arith.constant 0 : index
    %c0_12 = arith.constant 0 : index
    %11 = vector.load %arg2[%c0_10, %c0_11, %c0_12] : memref<9x16x1xf32, #tpu.memory_space<vmem>>, vector<1x16x1xf32>
    %12 = vector.shape_cast %11 : vector<1x16x1xf32> to vector<16x1xf32>
    %13 = vector.broadcast %12 : vector<16x1xf32> to vector<16x256xf32>
    %14 = arith.mulf %10, %13 : vector<16x256xf32>
    %15 = arith.truncf %14 : vector<16x256xf32> to vector<16x256xbf16>
    %c0_13 = arith.constant 0 : index
    %c0_14 = arith.constant 0 : index
    %c0_15 = arith.constant 0 : index
    %16 = vector.load %arg5[%c0_13, %c0_14, %c0_15] : memref<9x256x512xbf16, #tpu.memory_space<vmem>>, vector<1x256x512xbf16>
    %17 = vector.shape_cast %16 : vector<1x256x512xbf16> to vector<256x512xbf16>
    %cst_16 = arith.constant dense<0.000000e+00> : vector<16x512xf32>
    %18 = tpu.matmul %15, %17, %cst_16 {dimension_numbers = #tpu.dot_dimension_numbers<[1], [0], [0], [1], [0, 0, 1, 1], [], []>} : vector<16x256xbf16>, vector<256x512xbf16>, vector<16x512xf32> -> vector<16x512xf32>
    %19 = arith.addf %3, %18 : vector<16x512xf32>
    %c1 = arith.constant 1 : index
    %c0_17 = arith.constant 0 : index
    %c0_18 = arith.constant 0 : index
    %20 = vector.load %arg1[%c1, %c0_17, %c0_18] : memref<9x16x1024xbf16, #tpu.memory_space<vmem>>, vector<1x16x1024xbf16>
    %21 = vector.shape_cast %20 : vector<1x16x1024xbf16> to vector<16x1024xbf16>
    %cst_19 = arith.constant dense<0.000000e+00> : vector<16x256xf32>
    %22 = tpu.matmul %21, %0, %cst_19 {dimension_numbers = #tpu.dot_dimension_numbers<[1], [0], [0], [1], [0, 0, 1, 1], [], []>} : vector<16x1024xbf16>, vector<1024x256xbf16>, vector<16x256xf32> -> vector<16x256xf32>
    %23 = vector.broadcast %1 : vector<1x256xf32> to vector<16x256xf32>
    %24 = arith.addf %22, %23 : vector<16x256xf32>
    %cst_20 = arith.constant 0.000000e+00 : f32
    %25 = vector.broadcast %cst_20 : f32 to vector<16x256xf32>
    %26 = arith.maximumf %24, %25 : vector<16x256xf32>
    %c1_21 = arith.constant 1 : index
    %c0_22 = arith.constant 0 : index
    %c0_23 = arith.constant 0 : index
    %27 = vector.load %arg2[%c1_21, %c0_22, %c0_23] : memref<9x16x1xf32, #tpu.memory_space<vmem>>, vector<1x16x1xf32>
    %28 = vector.shape_cast %27 : vector<1x16x1xf32> to vector<16x1xf32>
    %29 = vector.broadcast %28 : vector<16x1xf32> to vector<16x256xf32>
    %30 = arith.mulf %26, %29 : vector<16x256xf32>
    %31 = arith.truncf %30 : vector<16x256xf32> to vector<16x256xbf16>
    %c1_24 = arith.constant 1 : index
    %c0_25 = arith.constant 0 : index
    %c0_26 = arith.constant 0 : index
    %32 = vector.load %arg5[%c1_24, %c0_25, %c0_26] : memref<9x256x512xbf16, #tpu.memory_space<vmem>>, vector<1x256x512xbf16>
    %33 = vector.shape_cast %32 : vector<1x256x512xbf16> to vector<256x512xbf16>
    %cst_27 = arith.constant dense<0.000000e+00> : vector<16x512xf32>
    %34 = tpu.matmul %31, %33, %cst_27 {dimension_numbers = #tpu.dot_dimension_numbers<[1], [0], [0], [1], [0, 0, 1, 1], [], []>} : vector<16x256xbf16>, vector<256x512xbf16>, vector<16x512xf32> -> vector<16x512xf32>
    %35 = arith.addf %19, %34 : vector<16x512xf32>
    %c2 = arith.constant 2 : index
    %c0_28 = arith.constant 0 : index
    %c0_29 = arith.constant 0 : index
    %36 = vector.load %arg1[%c2, %c0_28, %c0_29] : memref<9x16x1024xbf16, #tpu.memory_space<vmem>>, vector<1x16x1024xbf16>
    %37 = vector.shape_cast %36 : vector<1x16x1024xbf16> to vector<16x1024xbf16>
    %cst_30 = arith.constant dense<0.000000e+00> : vector<16x256xf32>
    %38 = tpu.matmul %37, %0, %cst_30 {dimension_numbers = #tpu.dot_dimension_numbers<[1], [0], [0], [1], [0, 0, 1, 1], [], []>} : vector<16x1024xbf16>, vector<1024x256xbf16>, vector<16x256xf32> -> vector<16x256xf32>
    %39 = vector.broadcast %1 : vector<1x256xf32> to vector<16x256xf32>
    %40 = arith.addf %38, %39 : vector<16x256xf32>
    %cst_31 = arith.constant 0.000000e+00 : f32
    %41 = vector.broadcast %cst_31 : f32 to vector<16x256xf32>
    %42 = arith.maximumf %40, %41 : vector<16x256xf32>
    %c2_32 = arith.constant 2 : index
    %c0_33 = arith.constant 0 : index
    %c0_34 = arith.constant 0 : index
    %43 = vector.load %arg2[%c2_32, %c0_33, %c0_34] : memref<9x16x1xf32, #tpu.memory_space<vmem>>, vector<1x16x1xf32>
    %44 = vector.shape_cast %43 : vector<1x16x1xf32> to vector<16x1xf32>
    %45 = vector.broadcast %44 : vector<16x1xf32> to vector<16x256xf32>
    %46 = arith.mulf %42, %45 : vector<16x256xf32>
    %47 = arith.truncf %46 : vector<16x256xf32> to vector<16x256xbf16>
    %c2_35 = arith.constant 2 : index
    %c0_36 = arith.constant 0 : index
    %c0_37 = arith.constant 0 : index
    %48 = vector.load %arg5[%c2_35, %c0_36, %c0_37] : memref<9x256x512xbf16, #tpu.memory_space<vmem>>, vector<1x256x512xbf16>
    %49 = vector.shape_cast %48 : vector<1x256x512xbf16> to vector<256x512xbf16>
    %cst_38 = arith.constant dense<0.000000e+00> : vector<16x512xf32>
    %50 = tpu.matmul %47, %49, %cst_38 {dimension_numbers = #tpu.dot_dimension_numbers<[1], [0], [0], [1], [0, 0, 1, 1], [], []>} : vector<16x256xbf16>, vector<256x512xbf16>, vector<16x512xf32> -> vector<16x512xf32>
    %51 = arith.addf %35, %50 : vector<16x512xf32>
    %c3 = arith.constant 3 : index
    %c0_39 = arith.constant 0 : index
    %c0_40 = arith.constant 0 : index
    %52 = vector.load %arg1[%c3, %c0_39, %c0_40] : memref<9x16x1024xbf16, #tpu.memory_space<vmem>>, vector<1x16x1024xbf16>
    %53 = vector.shape_cast %52 : vector<1x16x1024xbf16> to vector<16x1024xbf16>
    %cst_41 = arith.constant dense<0.000000e+00> : vector<16x256xf32>
    %54 = tpu.matmul %53, %0, %cst_41 {dimension_numbers = #tpu.dot_dimension_numbers<[1], [0], [0], [1], [0, 0, 1, 1], [], []>} : vector<16x1024xbf16>, vector<1024x256xbf16>, vector<16x256xf32> -> vector<16x256xf32>
    %55 = vector.broadcast %1 : vector<1x256xf32> to vector<16x256xf32>
    %56 = arith.addf %54, %55 : vector<16x256xf32>
    %cst_42 = arith.constant 0.000000e+00 : f32
    %57 = vector.broadcast %cst_42 : f32 to vector<16x256xf32>
    %58 = arith.maximumf %56, %57 : vector<16x256xf32>
    %c3_43 = arith.constant 3 : index
    %c0_44 = arith.constant 0 : index
    %c0_45 = arith.constant 0 : index
    %59 = vector.load %arg2[%c3_43, %c0_44, %c0_45] : memref<9x16x1xf32, #tpu.memory_space<vmem>>, vector<1x16x1xf32>
    %60 = vector.shape_cast %59 : vector<1x16x1xf32> to vector<16x1xf32>
    %61 = vector.broadcast %60 : vector<16x1xf32> to vector<16x256xf32>
    %62 = arith.mulf %58, %61 : vector<16x256xf32>
    %63 = arith.truncf %62 : vector<16x256xf32> to vector<16x256xbf16>
    %c3_46 = arith.constant 3 : index
    %c0_47 = arith.constant 0 : index
    %c0_48 = arith.constant 0 : index
    %64 = vector.load %arg5[%c3_46, %c0_47, %c0_48] : memref<9x256x512xbf16, #tpu.memory_space<vmem>>, vector<1x256x512xbf16>
    %65 = vector.shape_cast %64 : vector<1x256x512xbf16> to vector<256x512xbf16>
    %cst_49 = arith.constant dense<0.000000e+00> : vector<16x512xf32>
    %66 = tpu.matmul %63, %65, %cst_49 {dimension_numbers = #tpu.dot_dimension_numbers<[1], [0], [0], [1], [0, 0, 1, 1], [], []>} : vector<16x256xbf16>, vector<256x512xbf16>, vector<16x512xf32> -> vector<16x512xf32>
    %67 = arith.addf %51, %66 : vector<16x512xf32>
    %c4 = arith.constant 4 : index
    %c0_50 = arith.constant 0 : index
    %c0_51 = arith.constant 0 : index
    %68 = vector.load %arg1[%c4, %c0_50, %c0_51] : memref<9x16x1024xbf16, #tpu.memory_space<vmem>>, vector<1x16x1024xbf16>
    %69 = vector.shape_cast %68 : vector<1x16x1024xbf16> to vector<16x1024xbf16>
    %cst_52 = arith.constant dense<0.000000e+00> : vector<16x256xf32>
    %70 = tpu.matmul %69, %0, %cst_52 {dimension_numbers = #tpu.dot_dimension_numbers<[1], [0], [0], [1], [0, 0, 1, 1], [], []>} : vector<16x1024xbf16>, vector<1024x256xbf16>, vector<16x256xf32> -> vector<16x256xf32>
    %71 = vector.broadcast %1 : vector<1x256xf32> to vector<16x256xf32>
    %72 = arith.addf %70, %71 : vector<16x256xf32>
    %cst_53 = arith.constant 0.000000e+00 : f32
    %73 = vector.broadcast %cst_53 : f32 to vector<16x256xf32>
    %74 = arith.maximumf %72, %73 : vector<16x256xf32>
    %c4_54 = arith.constant 4 : index
    %c0_55 = arith.constant 0 : index
    %c0_56 = arith.constant 0 : index
    %75 = vector.load %arg2[%c4_54, %c0_55, %c0_56] : memref<9x16x1xf32, #tpu.memory_space<vmem>>, vector<1x16x1xf32>
    %76 = vector.shape_cast %75 : vector<1x16x1xf32> to vector<16x1xf32>
    %77 = vector.broadcast %76 : vector<16x1xf32> to vector<16x256xf32>
    %78 = arith.mulf %74, %77 : vector<16x256xf32>
    %79 = arith.truncf %78 : vector<16x256xf32> to vector<16x256xbf16>
    %c4_57 = arith.constant 4 : index
    %c0_58 = arith.constant 0 : index
    %c0_59 = arith.constant 0 : index
    %80 = vector.load %arg5[%c4_57, %c0_58, %c0_59] : memref<9x256x512xbf16, #tpu.memory_space<vmem>>, vector<1x256x512xbf16>
    %81 = vector.shape_cast %80 : vector<1x256x512xbf16> to vector<256x512xbf16>
    %cst_60 = arith.constant dense<0.000000e+00> : vector<16x512xf32>
    %82 = tpu.matmul %79, %81, %cst_60 {dimension_numbers = #tpu.dot_dimension_numbers<[1], [0], [0], [1], [0, 0, 1, 1], [], []>} : vector<16x256xbf16>, vector<256x512xbf16>, vector<16x512xf32> -> vector<16x512xf32>
    %83 = arith.addf %67, %82 : vector<16x512xf32>
    %c5 = arith.constant 5 : index
    %c0_61 = arith.constant 0 : index
    %c0_62 = arith.constant 0 : index
    %84 = vector.load %arg1[%c5, %c0_61, %c0_62] : memref<9x16x1024xbf16, #tpu.memory_space<vmem>>, vector<1x16x1024xbf16>
    %85 = vector.shape_cast %84 : vector<1x16x1024xbf16> to vector<16x1024xbf16>
    %cst_63 = arith.constant dense<0.000000e+00> : vector<16x256xf32>
    %86 = tpu.matmul %85, %0, %cst_63 {dimension_numbers = #tpu.dot_dimension_numbers<[1], [0], [0], [1], [0, 0, 1, 1], [], []>} : vector<16x1024xbf16>, vector<1024x256xbf16>, vector<16x256xf32> -> vector<16x256xf32>
    %87 = vector.broadcast %1 : vector<1x256xf32> to vector<16x256xf32>
    %88 = arith.addf %86, %87 : vector<16x256xf32>
    %cst_64 = arith.constant 0.000000e+00 : f32
    %89 = vector.broadcast %cst_64 : f32 to vector<16x256xf32>
    %90 = arith.maximumf %88, %89 : vector<16x256xf32>
    %c5_65 = arith.constant 5 : index
    %c0_66 = arith.constant 0 : index
    %c0_67 = arith.constant 0 : index
    %91 = vector.load %arg2[%c5_65, %c0_66, %c0_67] : memref<9x16x1xf32, #tpu.memory_space<vmem>>, vector<1x16x1xf32>
    %92 = vector.shape_cast %91 : vector<1x16x1xf32> to vector<16x1xf32>
    %93 = vector.broadcast %92 : vector<16x1xf32> to vector<16x256xf32>
    %94 = arith.mulf %90, %93 : vector<16x256xf32>
    %95 = arith.truncf %94 : vector<16x256xf32> to vector<16x256xbf16>
    %c5_68 = arith.constant 5 : index
    %c0_69 = arith.constant 0 : index
    %c0_70 = arith.constant 0 : index
    %96 = vector.load %arg5[%c5_68, %c0_69, %c0_70] : memref<9x256x512xbf16, #tpu.memory_space<vmem>>, vector<1x256x512xbf16>
    %97 = vector.shape_cast %96 : vector<1x256x512xbf16> to vector<256x512xbf16>
    %cst_71 = arith.constant dense<0.000000e+00> : vector<16x512xf32>
    %98 = tpu.matmul %95, %97, %cst_71 {dimension_numbers = #tpu.dot_dimension_numbers<[1], [0], [0], [1], [0, 0, 1, 1], [], []>} : vector<16x256xbf16>, vector<256x512xbf16>, vector<16x512xf32> -> vector<16x512xf32>
    %99 = arith.addf %83, %98 : vector<16x512xf32>
    %c6 = arith.constant 6 : index
    %c0_72 = arith.constant 0 : index
    %c0_73 = arith.constant 0 : index
    %100 = vector.load %arg1[%c6, %c0_72, %c0_73] : memref<9x16x1024xbf16, #tpu.memory_space<vmem>>, vector<1x16x1024xbf16>
    %101 = vector.shape_cast %100 : vector<1x16x1024xbf16> to vector<16x1024xbf16>
    %cst_74 = arith.constant dense<0.000000e+00> : vector<16x256xf32>
    %102 = tpu.matmul %101, %0, %cst_74 {dimension_numbers = #tpu.dot_dimension_numbers<[1], [0], [0], [1], [0, 0, 1, 1], [], []>} : vector<16x1024xbf16>, vector<1024x256xbf16>, vector<16x256xf32> -> vector<16x256xf32>
    %103 = vector.broadcast %1 : vector<1x256xf32> to vector<16x256xf32>
    %104 = arith.addf %102, %103 : vector<16x256xf32>
    %cst_75 = arith.constant 0.000000e+00 : f32
    %105 = vector.broadcast %cst_75 : f32 to vector<16x256xf32>
    %106 = arith.maximumf %104, %105 : vector<16x256xf32>
    %c6_76 = arith.constant 6 : index
    %c0_77 = arith.constant 0 : index
    %c0_78 = arith.constant 0 : index
    %107 = vector.load %arg2[%c6_76, %c0_77, %c0_78] : memref<9x16x1xf32, #tpu.memory_space<vmem>>, vector<1x16x1xf32>
    %108 = vector.shape_cast %107 : vector<1x16x1xf32> to vector<16x1xf32>
    %109 = vector.broadcast %108 : vector<16x1xf32> to vector<16x256xf32>
    %110 = arith.mulf %106, %109 : vector<16x256xf32>
    %111 = arith.truncf %110 : vector<16x256xf32> to vector<16x256xbf16>
    %c6_79 = arith.constant 6 : index
    %c0_80 = arith.constant 0 : index
    %c0_81 = arith.constant 0 : index
    %112 = vector.load %arg5[%c6_79, %c0_80, %c0_81] : memref<9x256x512xbf16, #tpu.memory_space<vmem>>, vector<1x256x512xbf16>
    %113 = vector.shape_cast %112 : vector<1x256x512xbf16> to vector<256x512xbf16>
    %cst_82 = arith.constant dense<0.000000e+00> : vector<16x512xf32>
    %114 = tpu.matmul %111, %113, %cst_82 {dimension_numbers = #tpu.dot_dimension_numbers<[1], [0], [0], [1], [0, 0, 1, 1], [], []>} : vector<16x256xbf16>, vector<256x512xbf16>, vector<16x512xf32> -> vector<16x512xf32>
    %115 = arith.addf %99, %114 : vector<16x512xf32>
    %c7 = arith.constant 7 : index
    %c0_83 = arith.constant 0 : index
    %c0_84 = arith.constant 0 : index
    %116 = vector.load %arg1[%c7, %c0_83, %c0_84] : memref<9x16x1024xbf16, #tpu.memory_space<vmem>>, vector<1x16x1024xbf16>
    %117 = vector.shape_cast %116 : vector<1x16x1024xbf16> to vector<16x1024xbf16>
    %cst_85 = arith.constant dense<0.000000e+00> : vector<16x256xf32>
    %118 = tpu.matmul %117, %0, %cst_85 {dimension_numbers = #tpu.dot_dimension_numbers<[1], [0], [0], [1], [0, 0, 1, 1], [], []>} : vector<16x1024xbf16>, vector<1024x256xbf16>, vector<16x256xf32> -> vector<16x256xf32>
    %119 = vector.broadcast %1 : vector<1x256xf32> to vector<16x256xf32>
    %120 = arith.addf %118, %119 : vector<16x256xf32>
    %cst_86 = arith.constant 0.000000e+00 : f32
    %121 = vector.broadcast %cst_86 : f32 to vector<16x256xf32>
    %122 = arith.maximumf %120, %121 : vector<16x256xf32>
    %c7_87 = arith.constant 7 : index
    %c0_88 = arith.constant 0 : index
    %c0_89 = arith.constant 0 : index
    %123 = vector.load %arg2[%c7_87, %c0_88, %c0_89] : memref<9x16x1xf32, #tpu.memory_space<vmem>>, vector<1x16x1xf32>
    %124 = vector.shape_cast %123 : vector<1x16x1xf32> to vector<16x1xf32>
    %125 = vector.broadcast %124 : vector<16x1xf32> to vector<16x256xf32>
    %126 = arith.mulf %122, %125 : vector<16x256xf32>
    %127 = arith.truncf %126 : vector<16x256xf32> to vector<16x256xbf16>
    %c7_90 = arith.constant 7 : index
    %c0_91 = arith.constant 0 : index
    %c0_92 = arith.constant 0 : index
    %128 = vector.load %arg5[%c7_90, %c0_91, %c0_92] : memref<9x256x512xbf16, #tpu.memory_space<vmem>>, vector<1x256x512xbf16>
    %129 = vector.shape_cast %128 : vector<1x256x512xbf16> to vector<256x512xbf16>
    %cst_93 = arith.constant dense<0.000000e+00> : vector<16x512xf32>
    %130 = tpu.matmul %127, %129, %cst_93 {dimension_numbers = #tpu.dot_dimension_numbers<[1], [0], [0], [1], [0, 0, 1, 1], [], []>} : vector<16x256xbf16>, vector<256x512xbf16>, vector<16x512xf32> -> vector<16x512xf32>
    %131 = arith.addf %115, %130 : vector<16x512xf32>
    %c8 = arith.constant 8 : index
    %c0_94 = arith.constant 0 : index
    %c0_95 = arith.constant 0 : index
    %132 = vector.load %arg1[%c8, %c0_94, %c0_95] : memref<9x16x1024xbf16, #tpu.memory_space<vmem>>, vector<1x16x1024xbf16>
    %133 = vector.shape_cast %132 : vector<1x16x1024xbf16> to vector<16x1024xbf16>
    %cst_96 = arith.constant dense<0.000000e+00> : vector<16x256xf32>
    %134 = tpu.matmul %133, %0, %cst_96 {dimension_numbers = #tpu.dot_dimension_numbers<[1], [0], [0], [1], [0, 0, 1, 1], [], []>} : vector<16x1024xbf16>, vector<1024x256xbf16>, vector<16x256xf32> -> vector<16x256xf32>
    %135 = vector.broadcast %1 : vector<1x256xf32> to vector<16x256xf32>
    %136 = arith.addf %134, %135 : vector<16x256xf32>
    %cst_97 = arith.constant 0.000000e+00 : f32
    %137 = vector.broadcast %cst_97 : f32 to vector<16x256xf32>
    %138 = arith.maximumf %136, %137 : vector<16x256xf32>
    %c8_98 = arith.constant 8 : index
    %c0_99 = arith.constant 0 : index
    %c0_100 = arith.constant 0 : index
    %139 = vector.load %arg2[%c8_98, %c0_99, %c0_100] : memref<9x16x1xf32, #tpu.memory_space<vmem>>, vector<1x16x1xf32>
    %140 = vector.shape_cast %139 : vector<1x16x1xf32> to vector<16x1xf32>
    %141 = vector.broadcast %140 : vector<16x1xf32> to vector<16x256xf32>
    %142 = arith.mulf %138, %141 : vector<16x256xf32>
    %143 = arith.truncf %142 : vector<16x256xf32> to vector<16x256xbf16>
    %c8_101 = arith.constant 8 : index
    %c0_102 = arith.constant 0 : index
    %c0_103 = arith.constant 0 : index
    %144 = vector.load %arg5[%c8_101, %c0_102, %c0_103] : memref<9x256x512xbf16, #tpu.memory_space<vmem>>, vector<1x256x512xbf16>
    %145 = vector.shape_cast %144 : vector<1x256x512xbf16> to vector<256x512xbf16>
    %cst_104 = arith.constant dense<0.000000e+00> : vector<16x512xf32>
    %146 = tpu.matmul %143, %145, %cst_104 {dimension_numbers = #tpu.dot_dimension_numbers<[1], [0], [0], [1], [0, 0, 1, 1], [], []>} : vector<16x256xbf16>, vector<256x512xbf16>, vector<16x512xf32> -> vector<16x512xf32>
    %147 = arith.addf %131, %146 : vector<16x512xf32>
    %148 = vector.broadcast %2 : vector<1x512xf32> to vector<16x512xf32>
    %149 = arith.addf %147, %148 : vector<16x512xf32>
    %cst_105 = arith.constant 0.000000e+00 : f32
    %150 = vector.broadcast %cst_105 : f32 to vector<16x512xf32>
    %151 = arith.maximumf %149, %150 : vector<16x512xf32>
    %c0_106 = arith.constant 0 : index
    %c0_107 = arith.constant 0 : index
    %152 = vector.load %arg7[%c0_106, %c0_107] : memref<16x512xf32, #tpu.memory_space<vmem>>, vector<16x512xf32>
    tpu.vector_store %arg7[%c0_106, %c0_107], %151 {strides = array<i32>} : memref<16x512xf32, #tpu.memory_space<vmem>>, vector<16x512xf32>,
    return
  }
  func.func @transform_0(%arg0: i32) -> (i32, i32, i32) {
    %c0_i32 = arith.constant 0 : i32
    %c0_i32_0 = arith.constant 0 : i32
    %c0_i32_1 = arith.constant 0 : i32
    return %c0_i32, %arg0, %c0_i32_0 : i32, i32, i32
  }
  func.func @transform_1(%arg0: i32) -> (i32, i32, i32) {
    %c0_i32 = arith.constant 0 : i32
    %c0_i32_0 = arith.constant 0 : i32
    %c0_i32_1 = arith.constant 0 : i32
    return %c0_i32, %arg0, %c0_i32_0 : i32, i32, i32
  }
  func.func @transform_2(%arg0: i32) -> (i32, i32) {
    %c0_i32 = arith.constant 0 : i32
    %c0_i32_0 = arith.constant 0 : i32
    %c0_i32_1 = arith.constant 0 : i32
    return %c0_i32, %c0_i32_0 : i32, i32
  }
  func.func @transform_3(%arg0: i32) -> (i32, i32) {
    %c0_i32 = arith.constant 0 : i32
    %c0_i32_0 = arith.constant 0 : i32
    %c0_i32_1 = arith.constant 0 : i32
    return %c0_i32, %c0_i32_0 : i32, i32
  }
  func.func @transform_4(%arg0: i32) -> (i32, i32, i32) {
    %c0_i32 = arith.constant 0 : i32
    %c0_i32_0 = arith.constant 0 : i32
    %c0_i32_1 = arith.constant 0 : i32
    %c0_i32_2 = arith.constant 0 : i32
    return %c0_i32, %c0_i32_0, %c0_i32_1 : i32, i32, i32
  }
  func.func @transform_5(%arg0: i32) -> (i32, i32) {
    %c0_i32 = arith.constant 0 : i32
    %c0_i32_0 = arith.constant 0 : i32
    %c0_i32_1 = arith.constant 0 : i32
    return %c0_i32, %c0_i32_0 : i32, i32
  }
  func.func @transform_6(%arg0: i32) -> (i32, i32) {
    %c0_i32 = arith.constant 0 : i32
    %c0_i32_0 = arith.constant 0 : i32
    return %arg0, %c0_i32 : i32, i32
  }
}

</mosaic_0001>

<llo_original>
// kernel: extra_conv6_2_forward.1
$region0: #{extra_conv6_2_forward.1}
  #allocation0 [shape = 'u32[]', space=smem, size = 0x4, offset = 0x4, fixed_abs, tag = 'smem constant byte address 0x4 - core index']
  #allocation1 [shape = 'u32[72,128]{1,0:T(1,128)}', space=vmem, size = 0x9000, scoped, tag = 'internal scratch']
  %s0 = inlined_call_operand.vmem [shape: bf16[9,32,1024], index: 0, kind: input, shape index: {}]
  %s1 = inlined_call_operand.vmem [shape: f32[9,32,1], index: 1, kind: input, shape index: {}]
  %s2 = inlined_call_operand.vmem [shape: bf16[1024,256], index: 2, kind: input, shape index: {}]
  %s3 = inlined_call_operand.vmem [shape: f32[1,256], index: 3, kind: input, shape index: {}]
  %s4 = inlined_call_operand.vmem [shape: bf16[9,256,512], index: 4, kind: input, shape index: {}]
  %s5 = inlined_call_operand.vmem [shape: f32[1,512], index: 5, kind: input, shape index: {}]
  %s6 = inlined_call_operand.vmem [shape: f32[32,512], index: 6, kind: output, shape index: {}]
  %s7 = sld [smem:[#allocation0]]
  $region118: #{extra_conv6_2_forward.1} parent=0
    _
  %s9 = ssub.s32 1, %s7
  %s10 = scalar_select 0, %s9, %s7
  $region1: #{extra_conv6_2_forward.1} parent=0
    #allocation2 [shape = 'u8[589824]{0}', space=vmem, size = 0x90000, scoped, tag = 'input window, operand 0']
    #allocation3 [shape = 'u8[147456]{0}', space=vmem, size = 0x24000, scoped, tag = 'input window, operand 1']
    loop: start=0, step=1, limit=4
    $region2: #{extra_conv6_2_forward.1} parent=1 // loop_pre_header
      _
    $region3: #{extra_conv6_2_forward.1} parent=1 // loop_header
      %s12 = sphi 0, %s16
      %p13 = scmp.ge.s32.totalorder %s12, 4
      %s22 = sphi 0, %s24
      %s25 = sphi 0, %s22
      %s26 = sphi 0, %s25
      %s42 = sphi 0, %s26
      %s48 = sphi 0, %s50
      %s51 = sphi 0, %s48
      %s52 = sphi 0, %s51
      %s68 = sphi 0, %s52
      %s72 = sphi 0, %s72
      %s74 = sphi 0, %s72
      %s75 = sphi 0, %s74
      %s89 = sphi 0, %s75
      %s93 = sphi 0, %s93
      %s95 = sphi 0, %s93
      %s96 = sphi 0, %s95
      %s110 = sphi 0, %s96
      %s114 = sphi 0, %s114
      %s116 = sphi 0, %s114
      %s117 = sphi 0, %s116
      %s131 = sphi 0, %s117
      %s135 = sphi 0, %s135
      %s137 = sphi 0, %s135
      %s138 = sphi 0, %s137
      %s152 = sphi 0, %s138
      %s158 = sphi 0, %s160
      %s161 = sphi 0, %s158
      %s162 = sphi 0, %s161
      %s178 = sphi 0, %s162
    $region4: #{extra_conv6_2_forward.1} parent=1 // loop_header_branch
      %15 = sbr.rel (%p13) target = $region8
    $region5: #{extra_conv6_2_forward.1} parent=1 // loop_body
      %s17 = ssub.s32 %s12, 1
      %s18 = ssub.s32 %s12, 2
      %s19 = sadd.s32 %s12, 1
      %s20 = ssub.s32 %s12, %s19
      %p21 = scmp.eq.s32.totalorder %s20, 0
      %s23 = sadd.s32 %s22, 1
      %s24 = scalar_select %p21, %s22, %s23
      %p27 = pneg %p21
      %p28 = scmp.eq.s32.totalorder %s12, 1
      %p29 = por %p27, %p28
      %p30 = scmp.ne.s32.totalorder %s22, %s25
      %p31 = scmp.eq.s32.totalorder %s12, 0
      %p32 = por %p30, %p31
      %p33 = scmp.ne.s32.totalorder %s22, %s25
      %p34 = scmp.eq.s32.totalorder %s17, 1
      %p35 = por %p33, %p34
      %p36 = scmp.ne.s32.totalorder %s25, %s26
      %p37 = scmp.eq.s32.totalorder %s17, 0
      %p38 = por %p36, %p37
      %p39 = scmp.ne.s32.totalorder %s25, %s26
      %p40 = scmp.eq.s32.totalorder %s18, 1
      %p41 = por %p39, %p40
      %p43 = scmp.ne.s32.totalorder %s26, %s42
      %p44 = scmp.eq.s32.totalorder %s18, 0
      %p45 = por %p43, %p44
      %s46 = ssub.s32 %s12, %s19
      %p47 = scmp.eq.s32.totalorder %s46, 0
      %s49 = sadd.s32 %s48, 1
      %s50 = scalar_select %p47, %s48, %s49
      %p53 = pneg %p47
      %p54 = scmp.eq.s32.totalorder %s12, 1
      %p55 = por %p53, %p54
      %p56 = scmp.ne.s32.totalorder %s48, %s51
      %p57 = scmp.eq.s32.totalorder %s12, 0
      %p58 = por %p56, %p57
      %p59 = scmp.ne.s32.totalorder %s48, %s51
      %p60 = scmp.eq.s32.totalorder %s17, 1
      %p61 = por %p59, %p60
      %p62 = scmp.ne.s32.totalorder %s51, %s52
      %p63 = scmp.eq.s32.totalorder %s17, 0
      %p64 = por %p62, %p63
      %p65 = scmp.ne.s32.totalorder %s51, %s52
      %p66 = scmp.eq.s32.totalorder %s18, 1
      %p67 = por %p65, %p66
      %p69 = scmp.ne.s32.totalorder %s52, %s68
      %p70 = scmp.eq.s32.totalorder %s18, 0
      %p71 = por %p69, %p70
      %s73 = sadd.s32 %s72, 1
      %p76 = scmp.eq.s32.totalorder %s12, 1
      %p77 = scmp.ne.s32.totalorder %s72, %s74
      %p78 = scmp.eq.s32.totalorder %s12, 0
      %p79 = por %p77, %p78
      %p80 = scmp.ne.s32.totalorder %s72, %s74
      %p81 = scmp.eq.s32.totalorder %s17, 1
      %p82 = por %p80, %p81
      %p83 = scmp.ne.s32.totalorder %s74, %s75
      %p84 = scmp.eq.s32.totalorder %s17, 0
      %p85 = por %p83, %p84
      %p86 = scmp.ne.s32.totalorder %s74, %s75
      %p87 = scmp.eq.s32.totalorder %s18, 1
      %p88 = por %p86, %p87
      %p90 = scmp.ne.s32.totalorder %s75, %s89
      %p91 = scmp.eq.s32.totalorder %s18, 0
      %p92 = por %p90, %p91
      %s94 = sadd.s32 %s93, 1
      %p97 = scmp.eq.s32.totalorder %s12, 1
      %p98 = scmp.ne.s32.totalorder %s93, %s95
      %p99 = scmp.eq.s32.totalorder %s12, 0
      %p100 = por %p98, %p99
      %p101 = scmp.ne.s32.totalorder %s93, %s95
      %p102 = scmp.eq.s32.totalorder %s17, 1
      %p103 = por %p101, %p102
      %p104 = scmp.ne.s32.totalorder %s95, %s96
      %p105 = scmp.eq.s32.totalorder %s17, 0
      %p106 = por %p104, %p105
      %p107 = scmp.ne.s32.totalorder %s95, %s96
      %p108 = scmp.eq.s32.totalorder %s18, 1
      %p109 = por %p107, %p108
      %p111 = scmp.ne.s32.totalorder %s96, %s110
      %p112 = scmp.eq.s32.totalorder %s18, 0
      %p113 = por %p111, %p112
      %s115 = sadd.s32 %s114, 1
      %p118 = scmp.eq.s32.totalorder %s12, 1
      %p119 = scmp.ne.s32.totalorder %s114, %s116
      %p120 = scmp.eq.s32.totalorder %s12, 0
      %p121 = por %p119, %p120
      %p122 = scmp.ne.s32.totalorder %s114, %s116
      %p123 = scmp.eq.s32.totalorder %s17, 1
      %p124 = por %p122, %p123
      %p125 = scmp.ne.s32.totalorder %s116, %s117
      %p126 = scmp.eq.s32.totalorder %s17, 0
      %p127 = por %p125, %p126
      %p128 = scmp.ne.s32.totalorder %s116, %s117
      %p129 = scmp.eq.s32.totalorder %s18, 1
      %p130 = por %p128, %p129
      %p132 = scmp.ne.s32.totalorder %s117, %s131
      %p133 = scmp.eq.s32.totalorder %s18, 0
      %p134 = por %p132, %p133
      %s136 = sadd.s32 %s135, 1
      %p139 = scmp.eq.s32.totalorder %s12, 1
      %p140 = scmp.ne.s32.totalorder %s135, %s137
      %p141 = scmp.eq.s32.totalorder %s12, 0
      %p142 = por %p140, %p141
      %p143 = scmp.ne.s32.totalorder %s135, %s137
      %p144 = scmp.eq.s32.totalorder %s17, 1
      %p145 = por %p143, %p144
      %p146 = scmp.ne.s32.totalorder %s137, %s138
      %p147 = scmp.eq.s32.totalorder %s17, 0
      %p148 = por %p146, %p147
      %p149 = scmp.ne.s32.totalorder %s137, %s138
      %p150 = scmp.eq.s32.totalorder %s18, 1
      %p151 = por %p149, %p150
      %p153 = scmp.ne.s32.totalorder %s138, %s152
      %p154 = scmp.eq.s32.totalorder %s18, 0
      %p155 = por %p153, %p154
      %s156 = ssub.s32 %s12, %s19
      %p157 = scmp.eq.s32.totalorder %s156, 0
      %s159 = sadd.s32 %s158, 1
      %s160 = scalar_select %p157, %s158, %s159
      %p163 = pneg %p157
      %p164 = scmp.eq.s32.totalorder %s12, 1
      %p165 = por %p163, %p164
      %p166 = scmp.ne.s32.totalorder %s158, %s161
      %p167 = scmp.eq.s32.totalorder %s12, 0
      %p168 = por %p166, %p167
      %p169 = scmp.ne.s32.totalorder %s158, %s161
      %p170 = scmp.eq.s32.totalorder %s17, 1
      %p171 = por %p169, %p170
      %p172 = scmp.ne.s32.totalorder %s161, %s162
      %p173 = scmp.eq.s32.totalorder %s17, 0
      %p174 = por %p172, %p173
      %p175 = scmp.ne.s32.totalorder %s161, %s162
      %p176 = scmp.eq.s32.totalorder %s18, 1
      %p177 = por %p175, %p176
      %p179 = scmp.ne.s32.totalorder %s162, %s178
      %p180 = scmp.eq.s32.totalorder %s18, 0
      %p181 = por %p179, %p180
      %p182 = scmp.le.s32.totalorder 1, %s12
      %p183 = scmp.lt.s32.totalorder %s12, 3
      %p184 = pnand %p182, %p183
      %p185 = pneg %p184
      // Predicated region
      $region9: #{extra_conv6_2_forward.1} parent=5 // pred_check
        _
      $region10: #{extra_conv6_2_forward.1} parent=5 // pred_check_branch
        %187 = sbr.rel (%p184) target = $region12
      $region11: #{extra_conv6_2_forward.1} parent=5 // pred_region
        %s188 = ssub.s32 %s12, 1
        // Predicated region
        $region13: #{extra_conv6_2_forward.1} parent=11 // pred_check
          %p189 = pneg %p85
        $region14: #{extra_conv6_2_forward.1} parent=11 // pred_check_branch
          %191 = sbr.rel (%p189) target = $region16
        $region15: #{extra_conv6_2_forward.1} parent=11 // pred_region
          _
        $region16: #{extra_conv6_2_forward.1} parent=11 // pred_fallthru
          _
        // Predicated region
        $region17: #{extra_conv6_2_forward.1} parent=11 // pred_check
          %p192 = pneg %p106
        $region18: #{extra_conv6_2_forward.1} parent=11 // pred_check_branch
          %194 = sbr.rel (%p192) target = $region20
        $region19: #{extra_conv6_2_forward.1} parent=11 // pred_region
          _
        $region20: #{extra_conv6_2_forward.1} parent=11 // pred_fallthru
          _
        // Predicated region
        $region21: #{extra_conv6_2_forward.1} parent=11 // pred_check
          %p195 = pneg %p127
        $region22: #{extra_conv6_2_forward.1} parent=11 // pred_check_branch
          %197 = sbr.rel (%p195) target = $region24
        $region23: #{extra_conv6_2_forward.1} parent=11 // pred_region
          _
        $region24: #{extra_conv6_2_forward.1} parent=11 // pred_fallthru
          _
        // Predicated region
        $region25: #{extra_conv6_2_forward.1} parent=11 // pred_check
          %p198 = pneg %p148
        $region26: #{extra_conv6_2_forward.1} parent=11 // pred_check_branch
          %200 = sbr.rel (%p198) target = $region28
        $region27: #{extra_conv6_2_forward.1} parent=11 // pred_region
          _
        $region28: #{extra_conv6_2_forward.1} parent=11 // pred_fallthru
          _
      $region12: #{extra_conv6_2_forward.1} parent=5 // pred_fallthru
        _
      %p201 = scmp.lt.s32.totalorder %s12, 2
      // Predicated region
      $region29: #{extra_conv6_2_forward.1} parent=5 // pred_check
        %p202 = pneg %p201
      $region30: #{extra_conv6_2_forward.1} parent=5 // pred_check_branch
        %204 = sbr.rel (%p202) target = $region32
      $region31: #{extra_conv6_2_forward.1} parent=5 // pred_region
        // Predicated region
        $region33: #{extra_conv6_2_forward.1} parent=31 // pred_check
          %p205 = pneg %p32
        $region34: #{extra_conv6_2_forward.1} parent=31 // pred_check_branch
          %207 = sbr.rel (%p205) target = $region36
        $region35: #{extra_conv6_2_forward.1} parent=31 // pred_region
          %s208 = sand.u32 %s22, 1
          %s209 = sand.u32 %s22, 1
          %s210 = smul.addr %s209, 576
          %s211 = scalar_lea.vmem [#allocation2], %s210
          %s212 = smul.u32 2, %s12
          %s213 = smul.addr %s212, 8
          %s214 = smul.addr %s213, 4
          %s215 = scalar_lea.vmem %s0, %s214
          // Predicated region
          $region37: #{extra_conv6_2_forward.1} parent=35 // pred_check
            _
          $region38: #{extra_conv6_2_forward.1} parent=35 // pred_check_branch
            %217 = sbr.rel (0) target = $region40
          $region39: #{extra_conv6_2_forward.1} parent=35 // pred_region
            // Predicated region
            $region41: #{extra_conv6_2_forward.1} parent=39 // pred_check
              _
            $region42: #{extra_conv6_2_forward.1} parent=39 // pred_check_branch
              %219 = sbr.rel (0) target = $region44
            $region43: #{extra_conv6_2_forward.1} parent=39 // pred_region
              loop: start=0, step=1, limit=1
              $region45: #{extra_conv6_2_forward.1} parent=43 // loop_pre_header
                _
              $region46: #{extra_conv6_2_forward.1} parent=43 // loop_header
                %s221 = sphi 0, %s225
                %p222 = scmp.ge.s32.totalorder %s221, 1
                %s226 = sphi %s215, %s215
                %s227 = sphi %s211, %s211
              $region47: #{extra_conv6_2_forward.1} parent=43 // loop_header_branch
                %224 = sbr.rel (%p222) target = $region51
              $region48: #{extra_conv6_2_forward.1} parent=43 // loop_body
                %v228 = vld [vmem:[%s226] sm:$0xff]
                %229 = vst [vmem:[%s227] sm:$0xff] %v228
                %v230 = vld [vmem:[%s226 + $0x8] sm:$0xff]
                %231 = vst [vmem:[%s227 + $0x8] sm:$0xff] %v230
                %v232 = vld [vmem:[%s226 + $0x10] sm:$0xff]
                %233 = vst [vmem:[%s227 + $0x10] sm:$0xff] %v232
                %v234 = vld [vmem:[%s226 + $0x18] sm:$0xff]
                %235 = vst [vmem:[%s227 + $0x18] sm:$0xff] %v234
                %v236 = vld [vmem:[%s226 + $0x20] sm:$0xff]
                %237 = vst [vmem:[%s227 + $0x20] sm:$0xff] %v236
                %v238 = vld [vmem:[%s226 + $0x28] sm:$0xff]
                %239 = vst [vmem:[%s227 + $0x28] sm:$0xff] %v238
                %v240 = vld [vmem:[%s226 + $0x30] sm:$0xff]
                %241 = vst [vmem:[%s227 + $0x30] sm:$0xff] %v240
                %v242 = vld [vmem:[%s226 + $0x38] sm:$0xff]
                %243 = vst [vmem:[%s227 + $0x38] sm:$0xff] %v242
                %v244 = vld [vmem:[%s226 + $0x80] sm:$0xff]
                %245 = vst [vmem:[%s227 + $0x40] sm:$0xff] %v244
                %v246 = vld [vmem:[%s226 + $0x88] sm:$0xff]
                %247 = vst [vmem:[%s227 + $0x48] sm:$0xff] %v246
                %v248 = vld [vmem:[%s226 + $0x90] sm:$0xff]
                %249 = vst [vmem:[%s227 + $0x50] sm:$0xff] %v248
                %v250 = vld [vmem:[%s226 + $0x98] sm:$0xff]
                %251 = vst [vmem:[%s227 + $0x58] sm:$0xff] %v250
                %v252 = vld [vmem:[%s226 + $0xa0] sm:$0xff]
                %253 = vst [vmem:[%s227 + $0x60] sm:$0xff] %v252
                %v254 = vld [vmem:[%s226 + $0xa8] sm:$0xff]
                %255 = vst [vmem:[%s227 + $0x68] sm:$0xff] %v254
                %v256 = vld [vmem:[%s226 + $0xb0] sm:$0xff]
                %257 = vst [vmem:[%s227 + $0x70] sm:$0xff] %v256
                %v258 = vld [vmem:[%s226 + $0xb8] sm:$0xff]
                %259 = vst [vmem:[%s227 + $0x78] sm:$0xff] %v258
                %v260 = vld [vmem:[%s226 + $0x100] sm:$0xff]
                %261 = vst [vmem:[%s227 + $0x80] sm:$0xff] %v260
                %v262 = vld [vmem:[%s226 + $0x108] sm:$0xff]
                %263 = vst [vmem:[%s227 + $0x88] sm:$0xff] %v262
                %v264 = vld [vmem:[%s226 + $0x110] sm:$0xff]
                %265 = vst [vmem:[%s227 + $0x90] sm:$0xff] %v264
                %v266 = vld [vmem:[%s226 + $0x118] sm:$0xff]
                %267 = vst [vmem:[%s227 + $0x98] sm:$0xff] %v266
                %v268 = vld [vmem:[%s226 + $0x120] sm:$0xff]
                %269 = vst [vmem:[%s227 + $0xa0] sm:$0xff] %v268
                %v270 = vld [vmem:[%s226 + $0x128] sm:$0xff]
                %271 = vst [vmem:[%s227 + $0xa8] sm:$0xff] %v270
                %v272 = vld [vmem:[%s226 + $0x130] sm:$0xff]
                %273 = vst [vmem:[%s227 + $0xb0] sm:$0xff] %v272
                %v274 = vld [vmem:[%s226 + $0x138] sm:$0xff]
                %275 = vst [vmem:[%s227 + $0xb8] sm:$0xff] %v274
                %v276 = vld [vmem:[%s226 + $0x180] sm:$0xff]
                %277 = vst [vmem:[%s227 + $0xc0] sm:$0xff] %v276
                %v278 = vld [vmem:[%s226 + $0x188] sm:$0xff]
                %279 = vst [vmem:[%s227 + $0xc8] sm:$0xff] %v278
                %v280 = vld [vmem:[%s226 + $0x190] sm:$0xff]
                %281 = vst [vmem:[%s227 + $0xd0] sm:$0xff] %v280
                %v282 = vld [vmem:[%s226 + $0x198] sm:$0xff]
                %283 = vst [vmem:[%s227 + $0xd8] sm:$0xff] %v282
                %v284 = vld [vmem:[%s226 + $0x1a0] sm:$0xff]
                %285 = vst [vmem:[%s227 + $0xe0] sm:$0xff] %v284
                %v286 = vld [vmem:[%s226 + $0x1a8] sm:$0xff]
                %287 = vst [vmem:[%s227 + $0xe8] sm:$0xff] %v286
                %v288 = vld [vmem:[%s226 + $0x1b0] sm:$0xff]
                %289 = vst [vmem:[%s227 + $0xf0] sm:$0xff] %v288
                %v290 = vld [vmem:[%s226 + $0x1b8] sm:$0xff]
                %291 = vst [vmem:[%s227 + $0xf8] sm:$0xff] %v290
                %v292 = vld [vmem:[%s226 + $0x200] sm:$0xff]
                %293 = vst [vmem:[%s227 + $0x100] sm:$0xff] %v292
                %v294 = vld [vmem:[%s226 + $0x208] sm:$0xff]
                %295 = vst [vmem:[%s227 + $0x108] sm:$0xff] %v294
                %v296 = vld [vmem:[%s226 + $0x210] sm:$0xff]
                %297 = vst [vmem:[%s227 + $0x110] sm:$0xff] %v296
                %v298 = vld [vmem:[%s226 + $0x218] sm:$0xff]
                %299 = vst [vmem:[%s227 + $0x118] sm:$0xff] %v298
                %v300 = vld [vmem:[%s226 + $0x220] sm:$0xff]
                %301 = vst [vmem:[%s227 + $0x120] sm:$0xff] %v300
                %v302 = vld [vmem:[%s226 + $0x228] sm:$0xff]
                %303 = vst [vmem:[%s227 + $0x128] sm:$0xff] %v302
                %v304 = vld [vmem:[%s226 + $0x230] sm:$0xff]
                %305 = vst [vmem:[%s227 + $0x130] sm:$0xff] %v304
                %v306 = vld [vmem:[%s226 + $0x238] sm:$0xff]
                %307 = vst [vmem:[%s227 + $0x138] sm:$0xff] %v306
                %v308 = vld [vmem:[%s226 + $0x280] sm:$0xff]
                %309 = vst [vmem:[%s227 + $0x140] sm:$0xff] %v308
                %v310 = vld [vmem:[%s226 + $0x288] sm:$0xff]
                %311 = vst [vmem:[%s227 + $0x148] sm:$0xff] %v310
                %v312 = vld [vmem:[%s226 + $0x290] sm:$0xff]
                %313 = vst [vmem:[%s227 + $0x150] sm:$0xff] %v312
                %v314 = vld [vmem:[%s226 + $0x298] sm:$0xff]
                %315 = vst [vmem:[%s227 + $0x158] sm:$0xff] %v314
                %v316 = vld [vmem:[%s226 + $0x2a0] sm:$0xff]
                %317 = vst [vmem:[%s227 + $0x160] sm:$0xff] %v316
                %v318 = vld [vmem:[%s226 + $0x2a8] sm:$0xff]
                %319 = vst [vmem:[%s227 + $0x168] sm:$0xff] %v318
                %v320 = vld [vmem:[%s226 + $0x2b0] sm:$0xff]
                %321 = vst [vmem:[%s227 + $0x170] sm:$0xff] %v320
                %v322 = vld [vmem:[%s226 + $0x2b8] sm:$0xff]
                %323 = vst [vmem:[%s227 + $0x178] sm:$0xff] %v322
                %v324 = vld [vmem:[%s226 + $0x300] sm:$0xff]
                %325 = vst [vmem:[%s227 + $0x180] sm:$0xff] %v324
                %v326 = vld [vmem:[%s226 + $0x308] sm:$0xff]
                %327 = vst [vmem:[%s227 + $0x188] sm:$0xff] %v326
                %v328 = vld [vmem:[%s226 + $0x310] sm:$0xff]
                %329 = vst [vmem:[%s227 + $0x190] sm:$0xff] %v328
                %v330 = vld [vmem:[%s226 + $0x318] sm:$0xff]
                %331 = vst [vmem:[%s227 + $0x198] sm:$0xff] %v330
                %v332 = vld [vmem:[%s226 + $0x320] sm:$0xff]
                %333 = vst [vmem:[%s227 + $0x1a0] sm:$0xff] %v332
                %v334 = vld [vmem:[%s226 + $0x328] sm:$0xff]
                %335 = vst [vmem:[%s227 + $0x1a8] sm:$0xff] %v334
                %v336 = vld [vmem:[%s226 + $0x330] sm:$0xff]
                %337 = vst [vmem:[%s227 + $0x1b0] sm:$0xff] %v336
                %v338 = vld [vmem:[%s226 + $0x338] sm:$0xff]
                %339 = vst [vmem:[%s227 + $0x1b8] sm:$0xff] %v338
                %v340 = vld [vmem:[%s226 + $0x380] sm:$0xff]
                %341 = vst [vmem:[%s227 + $0x1c0] sm:$0xff] %v340
                %v342 = vld [vmem:[%s226 + $0x388] sm:$0xff]
                %343 = vst [vmem:[%s227 + $0x1c8] sm:$0xff] %v342
                %v344 = vld [vmem:[%s226 + $0x390] sm:$0xff]
                %345 = vst [vmem:[%s227 + $0x1d0] sm:$0xff] %v344
                %v346 = vld [vmem:[%s226 + $0x398] sm:$0xff]
                %347 = vst [vmem:[%s227 + $0x1d8] sm:$0xff] %v346
                %v348 = vld [vmem:[%s226 + $0x3a0] sm:$0xff]
                %349 = vst [vmem:[%s227 + $0x1e0] sm:$0xff] %v348
                %v350 = vld [vmem:[%s226 + $0x3a8] sm:$0xff]
                %351 = vst [vmem:[%s227 + $0x1e8] sm:$0xff] %v350
                %v352 = vld [vmem:[%s226 + $0x3b0] sm:$0xff]
                %353 = vst [vmem:[%s227 + $0x1f0] sm:$0xff] %v352
                %v354 = vld [vmem:[%s226 + $0x3b8] sm:$0xff]
                %355 = vst [vmem:[%s227 + $0x1f8] sm:$0xff] %v354
                %v356 = vld [vmem:[%s226 + $0x400] sm:$0xff]
                %357 = vst [vmem:[%s227 + $0x200] sm:$0xff] %v356
                %v358 = vld [vmem:[%s226 + $0x408] sm:$0xff]
                %359 = vst [vmem:[%s227 + $0x208] sm:$0xff] %v358
                %v360 = vld [vmem:[%s226 + $0x410] sm:$0xff]
                %361 = vst [vmem:[%s227 + $0x210] sm:$0xff] %v360
                %v362 = vld [vmem:[%s226 + $0x418] sm:$0xff]
                %363 = vst [vmem:[%s227 + $0x218] sm:$0xff] %v362
                %v364 = vld [vmem:[%s226 + $0x420] sm:$0xff]
                %365 = vst [vmem:[%s227 + $0x220] sm:$0xff] %v364
                %v366 = vld [vmem:[%s226 + $0x428] sm:$0xff]
                %367 = vst [vmem:[%s227 + $0x228] sm:$0xff] %v366
                %v368 = vld [vmem:[%s226 + $0x430] sm:$0xff]
                %369 = vst [vmem:[%s227 + $0x230] sm:$0xff] %v368
                %v370 = vld [vmem:[%s226 + $0x438] sm:$0xff]
                %371 = vst [vmem:[%s227 + $0x238] sm:$0xff] %v370
              $region49: #{extra_conv6_2_forward.1} parent=43 // loop_footer
                %s225 = sadd.s32 1, %s221
              $region50: #{extra_conv6_2_forward.1} parent=43 // loop_footer_branch
                %220 = sbr.rel target = $region46
              $region51: #{extra_conv6_2_forward.1} parent=43 // loop_exit
                _
            $region44: #{extra_conv6_2_forward.1} parent=39 // pred_fallthru
              _
            // Predicated region
            $region52: #{extra_conv6_2_forward.1} parent=39 // pred_check
              _
            $region53: #{extra_conv6_2_forward.1} parent=39 // pred_check_branch
              %373 = sbr.rel target = $region55
            $region54: #{extra_conv6_2_forward.1} parent=39 // pred_region
              _
            $region55: #{extra_conv6_2_forward.1} parent=39 // pred_fallthru
              _
          $region40: #{extra_conv6_2_forward.1} parent=35 // pred_fallthru
            _
          %374 = vnop
        $region36: #{extra_conv6_2_forward.1} parent=31 // pred_fallthru
          _
        // Predicated region
        $region56: #{extra_conv6_2_forward.1} parent=31 // pred_check
          %p375 = pneg %p58
        $region57: #{extra_conv6_2_forward.1} parent=31 // pred_check_branch
          %377 = sbr.rel (%p375) target = $region59
        $region58: #{extra_conv6_2_forward.1} parent=31 // pred_region
          %s378 = sand.u32 %s48, 1
          %s379 = sand.u32 %s48, 1
          %s380 = smul.addr %s379, 144
          %s381 = scalar_lea.vmem [#allocation3], %s380
          %s382 = smul.u32 2, %s12
          %s383 = smul.addr %s382, 8
          %s384 = scalar_lea.vmem %s1, %s383
          // Predicated region
          $region60: #{extra_conv6_2_forward.1} parent=58 // pred_check
            _
          $region61: #{extra_conv6_2_forward.1} parent=58 // pred_check_branch
            %386 = sbr.rel (0) target = $region63
          $region62: #{extra_conv6_2_forward.1} parent=58 // pred_region
            // Predicated region
            $region64: #{extra_conv6_2_forward.1} parent=62 // pred_check
              _
            $region65: #{extra_conv6_2_forward.1} parent=62 // pred_check_branch
              %388 = sbr.rel (0) target = $region67
            $region66: #{extra_conv6_2_forward.1} parent=62 // pred_region
              // Predicated region
              $region79: #{extra_conv6_2_forward.1} parent=66 // pred_check
                _
              $region80: #{extra_conv6_2_forward.1} parent=66 // pred_check_branch
                %438 = sbr.rel (0) target = $region82
              $region81: #{extra_conv6_2_forward.1} parent=66 // pred_region
                loop: start=0, step=1, limit=1
                $region83: #{extra_conv6_2_forward.1} parent=81 // loop_pre_header
                  _
                $region84: #{extra_conv6_2_forward.1} parent=81 // loop_header
                  %s440 = sphi 0, %s444
                  %p441 = scmp.ge.s32.totalorder %s440, 1
                  %s445 = sphi %s384, %s384
                  %s446 = sphi %s381, %s381
                $region85: #{extra_conv6_2_forward.1} parent=81 // loop_header_branch
                  %443 = sbr.rel (%p441) target = $region89
                $region86: #{extra_conv6_2_forward.1} parent=81 // loop_body
                  %v447 = vld [vmem:[%s445] sm:$0xff]
                  %448 = vst [vmem:[%s446] sm:$0xff] %v447
                  %v449 = vld [vmem:[%s445 + $0x8] sm:$0xff]
                  %450 = vst [vmem:[%s446 + $0x8] sm:$0xff] %v449
                  %v451 = vld [vmem:[%s445 + $0x20] sm:$0xff]
                  %452 = vst [vmem:[%s446 + $0x10] sm:$0xff] %v451
                  %v453 = vld [vmem:[%s445 + $0x28] sm:$0xff]
                  %454 = vst [vmem:[%s446 + $0x18] sm:$0xff] %v453
                  %v455 = vld [vmem:[%s445 + $0x40] sm:$0xff]
                  %456 = vst [vmem:[%s446 + $0x20] sm:$0xff] %v455
                  %v457 = vld [vmem:[%s445 + $0x48] sm:$0xff]
                  %458 = vst [vmem:[%s446 + $0x28] sm:$0xff] %v457
                  %v459 = vld [vmem:[%s445 + $0x60] sm:$0xff]
                  %460 = vst [vmem:[%s446 + $0x30] sm:$0xff] %v459
                  %v461 = vld [vmem:[%s445 + $0x68] sm:$0xff]
                  %462 = vst [vmem:[%s446 + $0x38] sm:$0xff] %v461
                  %v463 = vld [vmem:[%s445 + $0x80] sm:$0xff]
                  %464 = vst [vmem:[%s446 + $0x40] sm:$0xff] %v463
                  %v465 = vld [vmem:[%s445 + $0x88] sm:$0xff]
                  %466 = vst [vmem:[%s446 + $0x48] sm:$0xff] %v465
                  %v467 = vld [vmem:[%s445 + $0xa0] sm:$0xff]
                  %468 = vst [vmem:[%s446 + $0x50] sm:$0xff] %v467
                  %v469 = vld [vmem:[%s445 + $0xa8] sm:$0xff]
                  %470 = vst [vmem:[%s446 + $0x58] sm:$0xff] %v469
                  %v471 = vld [vmem:[%s445 + $0xc0] sm:$0xff]
                  %472 = vst [vmem:[%s446 + $0x60] sm:$0xff] %v471
                  %v473 = vld [vmem:[%s445 + $0xc8] sm:$0xff]
                  %474 = vst [vmem:[%s446 + $0x68] sm:$0xff] %v473
                  %v475 = vld [vmem:[%s445 + $0xe0] sm:$0xff]
                  %476 = vst [vmem:[%s446 + $0x70] sm:$0xff] %v475
                  %v477 = vld [vmem:[%s445 + $0xe8] sm:$0xff]
                  %478 = vst [vmem:[%s446 + $0x78] sm:$0xff] %v477
                  %v479 = vld [vmem:[%s445 + $0x100] sm:$0xff]
                  %480 = vst [vmem:[%s446 + $0x80] sm:$0xff] %v479
                  %v481 = vld [vmem:[%s445 + $0x108] sm:$0xff]
                  %482 = vst [vmem:[%s446 + $0x88] sm:$0xff] %v481
                $region87: #{extra_conv6_2_forward.1} parent=81 // loop_footer
                  %s444 = sadd.s32 1, %s440
                $region88: #{extra_conv6_2_forward.1} parent=81 // loop_footer_branch
                  %439 = sbr.rel target = $region84
                $region89: #{extra_conv6_2_forward.1} parent=81 // loop_exit
                  _
              $region82: #{extra_conv6_2_forward.1} parent=66 // pred_fallthru
                _
              // Predicated region
              $region90: #{extra_conv6_2_forward.1} parent=66 // pred_check
                _
              $region91: #{extra_conv6_2_forward.1} parent=66 // pred_check_branch
                %484 = sbr.rel target = $region93
              $region92: #{extra_conv6_2_forward.1} parent=66 // pred_region
                _
              $region93: #{extra_conv6_2_forward.1} parent=66 // pred_fallthru
                _
            $region67: #{extra_conv6_2_forward.1} parent=62 // pred_fallthru
              _
            // Predicated region
            $region68: #{extra_conv6_2_forward.1} parent=62 // pred_check
              _
            $region69: #{extra_conv6_2_forward.1} parent=62 // pred_check_branch
              %390 = sbr.rel target = $region71
            $region70: #{extra_conv6_2_forward.1} parent=62 // pred_region
              %s392 = ssub.s32 256, 1
              loop: start=0, step=1, limit=1
              $region72: #{extra_conv6_2_forward.1} parent=70 // loop_pre_header
                _
              $region73: #{extra_conv6_2_forward.1} parent=70 // loop_header
                %s394 = sphi 0, %s398
                %p395 = scmp.ge.s32.totalorder %s394, 1
                %s399 = sphi %s384, %s384
                %s400 = sphi %s381, %s381
              $region74: #{extra_conv6_2_forward.1} parent=70 // loop_header_branch
                %397 = sbr.rel (%p395) target = $region78
              $region75: #{extra_conv6_2_forward.1} parent=70 // loop_body
                %v401 = vld [vmem:[%s399] sm:%s392]
                %402 = vst [vmem:[%s400] sm:%s392] %v401
                %v403 = vld [vmem:[%s399 + $0x8] sm:%s392]
                %404 = vst [vmem:[%s400 + $0x8] sm:%s392] %v403
                %v405 = vld [vmem:[%s399 + $0x20] sm:%s392]
                %406 = vst [vmem:[%s400 + $0x10] sm:%s392] %v405
                %v407 = vld [vmem:[%s399 + $0x28] sm:%s392]
                %408 = vst [vmem:[%s400 + $0x18] sm:%s392] %v407
                %v409 = vld [vmem:[%s399 + $0x40] sm:%s392]
                %410 = vst [vmem:[%s400 + $0x20] sm:%s392] %v409
                %v411 = vld [vmem:[%s399 + $0x48] sm:%s392]
                %412 = vst [vmem:[%s400 + $0x28] sm:%s392] %v411
                %v413 = vld [vmem:[%s399 + $0x60] sm:%s392]
                %414 = vst [vmem:[%s400 + $0x30] sm:%s392] %v413
                %v415 = vld [vmem:[%s399 + $0x68] sm:%s392]
                %416 = vst [vmem:[%s400 + $0x38] sm:%s392] %v415
                %v417 = vld [vmem:[%s399 + $0x80] sm:%s392]
                %418 = vst [vmem:[%s400 + $0x40] sm:%s392] %v417
                %v419 = vld [vmem:[%s399 + $0x88] sm:%s392]
                %420 = vst [vmem:[%s400 + $0x48] sm:%s392] %v419
                %v421 = vld [vmem:[%s399 + $0xa0] sm:%s392]
                %422 = vst [vmem:[%s400 + $0x50] sm:%s392] %v421
                %v423 = vld [vmem:[%s399 + $0xa8] sm:%s392]
                %424 = vst [vmem:[%s400 + $0x58] sm:%s392] %v423
                %v425 = vld [vmem:[%s399 + $0xc0] sm:%s392]
                %426 = vst [vmem:[%s400 + $0x60] sm:%s392] %v425
                %v427 = vld [vmem:[%s399 + $0xc8] sm:%s392]
                %428 = vst [vmem:[%s400 + $0x68] sm:%s392] %v427
                %v429 = vld [vmem:[%s399 + $0xe0] sm:%s392]
                %430 = vst [vmem:[%s400 + $0x70] sm:%s392] %v429
                %v431 = vld [vmem:[%s399 + $0xe8] sm:%s392]
                %432 = vst [vmem:[%s400 + $0x78] sm:%s392] %v431
                %v433 = vld [vmem:[%s399 + $0x100] sm:%s392]
                %434 = vst [vmem:[%s400 + $0x80] sm:%s392] %v433
                %v435 = vld [vmem:[%s399 + $0x108] sm:%s392]
                %436 = vst [vmem:[%s400 + $0x88] sm:%s392] %v435
              $region76: #{extra_conv6_2_forward.1} parent=70 // loop_footer
                %s398 = sadd.s32 1, %s394
              $region77: #{extra_conv6_2_forward.1} parent=70 // loop_footer_branch
                %393 = sbr.rel target = $region73
              $region78: #{extra_conv6_2_forward.1} parent=70 // loop_exit
                _
            $region71: #{extra_conv6_2_forward.1} parent=62 // pred_fallthru
              _
          $region63: #{extra_conv6_2_forward.1} parent=58 // pred_fallthru
            _
          %485 = vnop
        $region59: #{extra_conv6_2_forward.1} parent=31 // pred_fallthru
          _
      $region32: #{extra_conv6_2_forward.1} parent=5 // pred_fallthru
        _
      %p486 = scmp.le.s32.totalorder 1, %s12
      %p487 = scmp.lt.s32.totalorder %s12, 3
      %p488 = pnand %p486, %p487
      %p489 = pneg %p488
      // Predicated region
      $region94: #{extra_conv6_2_forward.1} parent=5 // pred_check
        _
      $region95: #{extra_conv6_2_forward.1} parent=5 // pred_check_branch
        %491 = sbr.rel (%p488) target = $region97
      $region96: #{extra_conv6_2_forward.1} parent=5 // pred_region
        %s492 = ssub.s32 %s12, 1
        %s493 = sand.u32 %s25, 1
        %s494 = sand.u32 %s25, 1
        %s495 = smul.addr %s494, 576
        %s496 = scalar_lea.vmem [#allocation2], %s495
        // Predicated region
        $region98: #{extra_conv6_2_forward.1} parent=96 // pred_check
          %p497 = pneg %p38
        $region99: #{extra_conv6_2_forward.1} parent=96 // pred_check_branch
          %499 = sbr.rel (%p497) target = $region101
        $region100: #{extra_conv6_2_forward.1} parent=96 // pred_region
          _
        $region101: #{extra_conv6_2_forward.1} parent=96 // pred_fallthru
          _
        %s500 = sand.u32 %s51, 1
        %s501 = sand.u32 %s51, 1
        %s502 = smul.addr %s501, 144
        %s503 = scalar_lea.vmem [#allocation3], %s502
        // Predicated region
        $region102: #{extra_conv6_2_forward.1} parent=96 // pred_check
          %p504 = pneg %p64
        $region103: #{extra_conv6_2_forward.1} parent=96 // pred_check_branch
          %506 = sbr.rel (%p504) target = $region105
        $region104: #{extra_conv6_2_forward.1} parent=96 // pred_region
          _
        $region105: #{extra_conv6_2_forward.1} parent=96 // pred_fallthru
          _
        %s507 = sand.u32 %s25, 1
        %s508 = sand.u32 %s25, 1
        %s509 = smul.addr %s508, 576
        %s510 = scalar_lea.vmem [#allocation2], %s509
        %p511 = pneg %p38
        %p512 = pneg %p35
        %s513 = sand.u32 %s51, 1
        %s514 = sand.u32 %s51, 1
        %s515 = smul.addr %s514, 144
        %s516 = scalar_lea.vmem [#allocation3], %s515
        %p517 = pneg %p64
        %p518 = pneg %p61
        %p519 = pneg %p85
        %p520 = pneg %p82
        %p521 = pneg %p106
        %p522 = pneg %p103
        %p523 = pneg %p127
        %p524 = pneg %p124
        %p525 = pneg %p148
        %p526 = pneg %p145
        %p527 = pneg %p174
        %p528 = pneg %p171
        %s529 = smul.u32 2, %s17
        %p530 = scmp.lt.s32.totalorder %s529, 3
        %s531 = scalar_select %p530, %s529, 3
        %s532 = smul.addr %s531, 4
        %s533 = smul.addr %s532, 8
        %s534 = scalar_lea.vmem %s6, %s533
        %s535 = smul.u32 2, %s17
        %s536 = smul.u32 2, %s17
        %s537 = smul.u32 2, %s17
        %p538 = scmp.lt.s32.totalorder %s537, 3
        %s539 = scalar_select %p538, %s537, 3
        %s540 = smul.addr %s539, 4
        %s541 = smul.addr %s540, 8
        %s542 = scalar_lea.vmem %s6, %s541
        %s543 = smul.u32 2, %s17
        %v544 = vld [vmem:[%s2] sm:$0xff]
        %v545 = vld [vmem:[%s2 + $0x8] sm:$0xff]
        %v546 = vld [vmem:[%s2 + $0x10] sm:$0xff]
        %v547 = vld [vmem:[%s2 + $0x18] sm:$0xff]
        %v548 = vld [vmem:[%s2 + $0x20] sm:$0xff]
        %v549 = vld [vmem:[%s2 + $0x28] sm:$0xff]
        %v550 = vld [vmem:[%s2 + $0x30] sm:$0xff]
        %v551 = vld [vmem:[%s2 + $0x38] sm:$0xff]
        %v552 = vld [vmem:[%s2 + $0x40] sm:$0xff]
        %v553 = vld [vmem:[%s2 + $0x48] sm:$0xff]
        %v554 = vld [vmem:[%s2 + $0x50] sm:$0xff]
        %v555 = vld [vmem:[%s2 + $0x58] sm:$0xff]
        %v556 = vld [vmem:[%s2 + $0x60] sm:$0xff]
        %v557 = vld [vmem:[%s2 + $0x68] sm:$0xff]
        %v558 = vld [vmem:[%s2 + $0x70] sm:$0xff]
        %v559 = vld [vmem:[%s2 + $0x78] sm:$0xff]
        %v560 = vld [vmem:[%s2 + $0x80] sm:$0xff]
        %v561 = vld [vmem:[%s2 + $0x88] sm:$0xff]
        %v562 = vld [vmem:[%s2 + $0x90] sm:$0xff]
        %v563 = vld [vmem:[%s2 + $0x98] sm:$0xff]
        %v564 = vld [vmem:[%s2 + $0xa0] sm:$0xff]
        %v565 = vld [vmem:[%s2 + $0xa8] sm:$0xff]
        %v566 = vld [vmem:[%s2 + $0xb0] sm:$0xff]
        %v567 = vld [vmem:[%s2 + $0xb8] sm:$0xff]
        %v568 = vld [vmem:[%s2 + $0xc0] sm:$0xff]
        %v569 = vld [vmem:[%s2 + $0xc8] sm:$0xff]
        %v570 = vld [vmem:[%s2 + $0xd0] sm:$0xff]
        %v571 = vld [vmem:[%s2 + $0xd8] sm:$0xff]
        %v572 = vld [vmem:[%s2 + $0xe0] sm:$0xff]
        %v573 = vld [vmem:[%s2 + $0xe8] sm:$0xff]
        %v574 = vld [vmem:[%s2 + $0xf0] sm:$0xff]
        %v575 = vld [vmem:[%s2 + $0xf8] sm:$0xff]
        %v576 = vld [vmem:[%s2 + $0x100] sm:$0xff]
        %v577 = vld [vmem:[%s2 + $0x108] sm:$0xff]
        %v578 = vld [vmem:[%s2 + $0x110] sm:$0xff]
        %v579 = vld [vmem:[%s2 + $0x118] sm:$0xff]
        %v580 = vld [vmem:[%s2 + $0x120] sm:$0xff]
        %v581 = vld [vmem:[%s2 + $0x128] sm:$0xff]
        %v582 = vld [vmem:[%s2 + $0x130] sm:$0xff]
        %v583 = vld [vmem:[%s2 + $0x138] sm:$0xff]
        %v584 = vld [vmem:[%s2 + $0x140] sm:$0xff]
        %v585 = vld [vmem:[%s2 + $0x148] sm:$0xff]
        %v586 = vld [vmem:[%s2 + $0x150] sm:$0xff]
        %v587 = vld [vmem:[%s2 + $0x158] sm:$0xff]
        %v588 = vld [vmem:[%s2 + $0x160] sm:$0xff]
        %v589 = vld [vmem:[%s2 + $0x168] sm:$0xff]
        %v590 = vld [vmem:[%s2 + $0x170] sm:$0xff]
        %v591 = vld [vmem:[%s2 + $0x178] sm:$0xff]
        %v592 = vld [vmem:[%s2 + $0x180] sm:$0xff]
        %v593 = vld [vmem:[%s2 + $0x188] sm:$0xff]
        %v594 = vld [vmem:[%s2 + $0x190] sm:$0xff]
        %v595 = vld [vmem:[%s2 + $0x198] sm:$0xff]
        %v596 = vld [vmem:[%s2 + $0x1a0] sm:$0xff]
        %v597 = vld [vmem:[%s2 + $0x1a8] sm:$0xff]
        %v598 = vld [vmem:[%s2 + $0x1b0] sm:$0xff]
        %v599 = vld [vmem:[%s2 + $0x1b8] sm:$0xff]
        %v600 = vld [vmem:[%s2 + $0x1c0] sm:$0xff]
        %v601 = vld [vmem:[%s2 + $0x1c8] sm:$0xff]
        %v602 = vld [vmem:[%s2 + $0x1d0] sm:$0xff]
        %v603 = vld [vmem:[%s2 + $0x1d8] sm:$0xff]
        %v604 = vld [vmem:[%s2 + $0x1e0] sm:$0xff]
        %v605 = vld [vmem:[%s2 + $0x1e8] sm:$0xff]
        %v606 = vld [vmem:[%s2 + $0x1f0] sm:$0xff]
        %v607 = vld [vmem:[%s2 + $0x1f8] sm:$0xff]
        %v608 = vld [vmem:[%s2 + $0x200] sm:$0xff]
        %v609 = vld [vmem:[%s2 + $0x208] sm:$0xff]
        %v610 = vld [vmem:[%s2 + $0x210] sm:$0xff]
        %v611 = vld [vmem:[%s2 + $0x218] sm:$0xff]
        %v612 = vld [vmem:[%s2 + $0x220] sm:$0xff]
        %v613 = vld [vmem:[%s2 + $0x228] sm:$0xff]
        %v614 = vld [vmem:[%s2 + $0x230] sm:$0xff]
        %v615 = vld [vmem:[%s2 + $0x238] sm:$0xff]
        %v616 = vld [vmem:[%s2 + $0x240] sm:$0xff]
        %v617 = vld [vmem:[%s2 + $0x248] sm:$0xff]
        %v618 = vld [vmem:[%s2 + $0x250] sm:$0xff]
        %v619 = vld [vmem:[%s2 + $0x258] sm:$0xff]
        %v620 = vld [vmem:[%s2 + $0x260] sm:$0xff]
        %v621 = vld [vmem:[%s2 + $0x268] sm:$0xff]
        %v622 = vld [vmem:[%s2 + $0x270] sm:$0xff]
        %v623 = vld [vmem:[%s2 + $0x278] sm:$0xff]
        %v624 = vld [vmem:[%s2 + $0x280] sm:$0xff]
        %v625 = vld [vmem:[%s2 + $0x288] sm:$0xff]
        %v626 = vld [vmem:[%s2 + $0x290] sm:$0xff]
        %v627 = vld [vmem:[%s2 + $0x298] sm:$0xff]
        %v628 = vld [vmem:[%s2 + $0x2a0] sm:$0xff]
        %v629 = vld [vmem:[%s2 + $0x2a8] sm:$0xff]
        %v630 = vld [vmem:[%s2 + $0x2b0] sm:$0xff]
        %v631 = vld [vmem:[%s2 + $0x2b8] sm:$0xff]
        %v632 = vld [vmem:[%s2 + $0x2c0] sm:$0xff]
        %v633 = vld [vmem:[%s2 + $0x2c8] sm:$0xff]
        %v634 = vld [vmem:[%s2 + $0x2d0] sm:$0xff]
        %v635 = vld [vmem:[%s2 + $0x2d8] sm:$0xff]
        %v636 = vld [vmem:[%s2 + $0x2e0] sm:$0xff]
        %v637 = vld [vmem:[%s2 + $0x2e8] sm:$0xff]
        %v638 = vld [vmem:[%s2 + $0x2f0] sm:$0xff]
        %v639 = vld [vmem:[%s2 + $0x2f8] sm:$0xff]
        %v640 = vld [vmem:[%s2 + $0x300] sm:$0xff]
        %v641 = vld [vmem:[%s2 + $0x308] sm:$0xff]
        %v642 = vld [vmem:[%s2 + $0x310] sm:$0xff]
        %v643 = vld [vmem:[%s2 + $0x318] sm:$0xff]
        %v644 = vld [vmem:[%s2 + $0x320] sm:$0xff]
        %v645 = vld [vmem:[%s2 + $0x328] sm:$0xff]
        %v646 = vld [vmem:[%s2 + $0x330] sm:$0xff]
        %v647 = vld [vmem:[%s2 + $0x338] sm:$0xff]
        %v648 = vld [vmem:[%s2 + $0x340] sm:$0xff]
        %v649 = vld [vmem:[%s2 + $0x348] sm:$0xff]
        %v650 = vld [vmem:[%s2 + $0x350] sm:$0xff]
        %v651 = vld [vmem:[%s2 + $0x358] sm:$0xff]
        %v652 = vld [vmem:[%s2 + $0x360] sm:$0xff]
        %v653 = vld [vmem:[%s2 + $0x368] sm:$0xff]
        %v654 = vld [vmem:[%s2 + $0x370] sm:$0xff]
        %v655 = vld [vmem:[%s2 + $0x378] sm:$0xff]
        %v656 = vld [vmem:[%s2 + $0x380] sm:$0xff]
        %v657 = vld [vmem:[%s2 + $0x388] sm:$0xff]
        %v658 = vld [vmem:[%s2 + $0x390] sm:$0xff]
        %v659 = vld [vmem:[%s2 + $0x398] sm:$0xff]
        %v660 = vld [vmem:[%s2 + $0x3a0] sm:$0xff]
        %v661 = vld [vmem:[%s2 + $0x3a8] sm:$0xff]
        %v662 = vld [vmem:[%s2 + $0x3b0] sm:$0xff]
        %v663 = vld [vmem:[%s2 + $0x3b8] sm:$0xff]
        %v664 = vld [vmem:[%s2 + $0x3c0] sm:$0xff]
        %v665 = vld [vmem:[%s2 + $0x3c8] sm:$0xff]
        %v666 = vld [vmem:[%s2 + $0x3d0] sm:$0xff]
        %v667 = vld [vmem:[%s2 + $0x3d8] sm:$0xff]
        %v668 = vld [vmem:[%s2 + $0x3e0] sm:$0xff]
        %v669 = vld [vmem:[%s2 + $0x3e8] sm:$0xff]
        %v670 = vld [vmem:[%s2 + $0x3f0] sm:$0xff]
        %v671 = vld [vmem:[%s2 + $0x3f8] sm:$0xff]
        %v672 = vld [vmem:[%s3] sm:$0x3]
        %v673 = vld [vmem:[%s5] sm:$0xf]
        %v674 = vld [vmem:[%s496] sm:$0xff]
        %v675 = vld [vmem:[%s496 + $0x8] sm:$0xff]
        %v676 = vld [vmem:[%s496 + $0x10] sm:$0xff]
        %v677 = vld [vmem:[%s496 + $0x18] sm:$0xff]
        %v678 = vld [vmem:[%s496 + $0x20] sm:$0xff]
        %v679 = vld [vmem:[%s496 + $0x28] sm:$0xff]
        %v680 = vld [vmem:[%s496 + $0x30] sm:$0xff]
        %v681 = vld [vmem:[%s496 + $0x38] sm:$0xff]
        %v683 = vperm.slane %v672, 0
        %v684 = vperm.slane %v672, 1
        %v695 = vunpack.c.l.b16 %v674
        %v696 = vunpack.c.h.b16 %v674
        %v697 = vunpack.c.l.b16 %v675
        %v698 = vunpack.c.h.b16 %v675
        %v699 = vunpack.c.l.b16 %v676
        %v700 = vunpack.c.h.b16 %v676
        %v701 = vunpack.c.l.b16 %v677
        %v702 = vunpack.c.h.b16 %v677
        %v703 = vunpack.c.l.b16 %v678
        %v704 = vunpack.c.h.b16 %v678
        %v705 = vunpack.c.l.b16 %v679
        %v706 = vunpack.c.h.b16 %v679
        %v707 = vunpack.c.l.b16 %v680
        %v708 = vunpack.c.h.b16 %v680
        %v709 = vunpack.c.l.b16 %v681
        %v710 = vunpack.c.h.b16 %v681
        %v711 = vpack.c.b16 %v703, %v695
        %v712 = vpack.c.b16 %v704, %v696
        %v713 = vpack.c.b16 %v705, %v697
        %v714 = vpack.c.b16 %v706, %v698
        %v715 = vpack.c.b16 %v707, %v699
        %v716 = vpack.c.b16 %v708, %v700
        %v717 = vpack.c.b16 %v709, %v701
        %v718 = vpack.c.b16 %v710, %v702
        %v855 = vunpack.c.l.b16 %v544
        %v856 = vunpack.c.h.b16 %v544
        %v857 = vunpack.c.l.b16 %v545
        %v858 = vunpack.c.h.b16 %v545
        %v859 = vunpack.c.l.b16 %v546
        %v860 = vunpack.c.h.b16 %v546
        %v861 = vunpack.c.l.b16 %v547
        %v862 = vunpack.c.h.b16 %v547
        %v863 = vunpack.c.l.b16 %v548
        %v864 = vunpack.c.h.b16 %v548
        %v865 = vunpack.c.l.b16 %v549
        %v866 = vunpack.c.h.b16 %v549
        %v867 = vunpack.c.l.b16 %v550
        %v868 = vunpack.c.h.b16 %v550
        %v869 = vunpack.c.l.b16 %v551
        %v870 = vunpack.c.h.b16 %v551
        %v871 = vunpack.c.l.b16 %v552
        %v872 = vunpack.c.h.b16 %v552
        %v873 = vunpack.c.l.b16 %v553
        %v874 = vunpack.c.h.b16 %v553
        %v875 = vunpack.c.l.b16 %v554
        %v876 = vunpack.c.h.b16 %v554
        %v877 = vunpack.c.l.b16 %v555
        %v878 = vunpack.c.h.b16 %v555
        %v879 = vunpack.c.l.b16 %v556
        %v880 = vunpack.c.h.b16 %v556
        %v881 = vunpack.c.l.b16 %v557
        %v882 = vunpack.c.h.b16 %v557
        %v883 = vunpack.c.l.b16 %v558
        %v884 = vunpack.c.h.b16 %v558
        %v885 = vunpack.c.l.b16 %v559
        %v886 = vunpack.c.h.b16 %v559
        %v887 = vunpack.c.l.b16 %v560
        %v888 = vunpack.c.h.b16 %v560
        %v889 = vunpack.c.l.b16 %v561
        %v890 = vunpack.c.h.b16 %v561
        %v891 = vunpack.c.l.b16 %v562
        %v892 = vunpack.c.h.b16 %v562
        %v893 = vunpack.c.l.b16 %v563
        %v894 = vunpack.c.h.b16 %v563
        %v895 = vunpack.c.l.b16 %v564
        %v896 = vunpack.c.h.b16 %v564
        %v897 = vunpack.c.l.b16 %v565
        %v898 = vunpack.c.h.b16 %v565
        %v899 = vunpack.c.l.b16 %v566
        %v900 = vunpack.c.h.b16 %v566
        %v901 = vunpack.c.l.b16 %v567
        %v902 = vunpack.c.h.b16 %v567
        %v903 = vunpack.c.l.b16 %v568
        %v904 = vunpack.c.h.b16 %v568
        %v905 = vunpack.c.l.b16 %v569
        %v906 = vunpack.c.h.b16 %v569
        %v907 = vunpack.c.l.b16 %v570
        %v908 = vunpack.c.h.b16 %v570
        %v909 = vunpack.c.l.b16 %v571
        %v910 = vunpack.c.h.b16 %v571
        %v911 = vunpack.c.l.b16 %v572
        %v912 = vunpack.c.h.b16 %v572
        %v913 = vunpack.c.l.b16 %v573
        %v914 = vunpack.c.h.b16 %v573
        %v915 = vunpack.c.l.b16 %v574
        %v916 = vunpack.c.h.b16 %v574
        %v917 = vunpack.c.l.b16 %v575
        %v918 = vunpack.c.h.b16 %v575
        %v919 = vunpack.c.l.b16 %v576
        %v920 = vunpack.c.h.b16 %v576
        %v921 = vunpack.c.l.b16 %v577
        %v922 = vunpack.c.h.b16 %v577
        %v923 = vunpack.c.l.b16 %v578
        %v924 = vunpack.c.h.b16 %v578
        %v925 = vunpack.c.l.b16 %v579
        %v926 = vunpack.c.h.b16 %v579
        %v927 = vunpack.c.l.b16 %v580
        %v928 = vunpack.c.h.b16 %v580
        %v929 = vunpack.c.l.b16 %v581
        %v930 = vunpack.c.h.b16 %v581
        %v931 = vunpack.c.l.b16 %v582
        %v932 = vunpack.c.h.b16 %v582
        %v933 = vunpack.c.l.b16 %v583
        %v934 = vunpack.c.h.b16 %v583
        %v935 = vunpack.c.l.b16 %v584
        %v936 = vunpack.c.h.b16 %v584
        %v937 = vunpack.c.l.b16 %v585
        %v938 = vunpack.c.h.b16 %v585
        %v939 = vunpack.c.l.b16 %v586
        %v940 = vunpack.c.h.b16 %v586
        %v941 = vunpack.c.l.b16 %v587
        %v942 = vunpack.c.h.b16 %v587
        %v943 = vunpack.c.l.b16 %v588
        %v944 = vunpack.c.h.b16 %v588
        %v945 = vunpack.c.l.b16 %v589
        %v946 = vunpack.c.h.b16 %v589
        %v947 = vunpack.c.l.b16 %v590
        %v948 = vunpack.c.h.b16 %v590
        %v949 = vunpack.c.l.b16 %v591
        %v950 = vunpack.c.h.b16 %v591
        %v951 = vunpack.c.l.b16 %v592
        %v952 = vunpack.c.h.b16 %v592
        %v953 = vunpack.c.l.b16 %v593
        %v954 = vunpack.c.h.b16 %v593
        %v955 = vunpack.c.l.b16 %v594
        %v956 = vunpack.c.h.b16 %v594
        %v957 = vunpack.c.l.b16 %v595
        %v958 = vunpack.c.h.b16 %v595
        %v959 = vunpack.c.l.b16 %v596
        %v960 = vunpack.c.h.b16 %v596
        %v961 = vunpack.c.l.b16 %v597
        %v962 = vunpack.c.h.b16 %v597
        %v963 = vunpack.c.l.b16 %v598
        %v964 = vunpack.c.h.b16 %v598
        %v965 = vunpack.c.l.b16 %v599
        %v966 = vunpack.c.h.b16 %v599
        %v967 = vunpack.c.l.b16 %v600
        %v968 = vunpack.c.h.b16 %v600
        %v969 = vunpack.c.l.b16 %v601
        %v970 = vunpack.c.h.b16 %v601
        %v971 = vunpack.c.l.b16 %v602
        %v972 = vunpack.c.h.b16 %v602
        %v973 = vunpack.c.l.b16 %v603
        %v974 = vunpack.c.h.b16 %v603
        %v975 = vunpack.c.l.b16 %v604
        %v976 = vunpack.c.h.b16 %v604
        %v977 = vunpack.c.l.b16 %v605
        %v978 = vunpack.c.h.b16 %v605
        %v979 = vunpack.c.l.b16 %v606
        %v980 = vunpack.c.h.b16 %v606
        %v981 = vunpack.c.l.b16 %v607
        %v982 = vunpack.c.h.b16 %v607
        %v983 = vunpack.c.l.b16 %v608
        %v984 = vunpack.c.h.b16 %v608
        %v985 = vunpack.c.l.b16 %v609
        %v986 = vunpack.c.h.b16 %v609
        %v987 = vunpack.c.l.b16 %v610
        %v988 = vunpack.c.h.b16 %v610
        %v989 = vunpack.c.l.b16 %v611
        %v990 = vunpack.c.h.b16 %v611
        %v991 = vunpack.c.l.b16 %v612
        %v992 = vunpack.c.h.b16 %v612
        %v993 = vunpack.c.l.b16 %v613
        %v994 = vunpack.c.h.b16 %v613
        %v995 = vunpack.c.l.b16 %v614
        %v996 = vunpack.c.h.b16 %v614
        %v997 = vunpack.c.l.b16 %v615
        %v998 = vunpack.c.h.b16 %v615
        %v999 = vunpack.c.l.b16 %v616
        %v1000 = vunpack.c.h.b16 %v616
        %v1001 = vunpack.c.l.b16 %v617
        %v1002 = vunpack.c.h.b16 %v617
        %v1003 = vunpack.c.l.b16 %v618
        %v1004 = vunpack.c.h.b16 %v618
        %v1005 = vunpack.c.l.b16 %v619
        %v1006 = vunpack.c.h.b16 %v619
        %v1007 = vunpack.c.l.b16 %v620
        %v1008 = vunpack.c.h.b16 %v620
        %v1009 = vunpack.c.l.b16 %v621
        %v1010 = vunpack.c.h.b16 %v621
        %v1011 = vunpack.c.l.b16 %v622
        %v1012 = vunpack.c.h.b16 %v622
        %v1013 = vunpack.c.l.b16 %v623
        %v1014 = vunpack.c.h.b16 %v623
        %v1015 = vunpack.c.l.b16 %v624
        %v1016 = vunpack.c.h.b16 %v624
        %v1017 = vunpack.c.l.b16 %v625
        %v1018 = vunpack.c.h.b16 %v625
        %v1019 = vunpack.c.l.b16 %v626
        %v1020 = vunpack.c.h.b16 %v626
        %v1021 = vunpack.c.l.b16 %v627
        %v1022 = vunpack.c.h.b16 %v627
        %v1023 = vunpack.c.l.b16 %v628
        %v1024 = vunpack.c.h.b16 %v628
        %v1025 = vunpack.c.l.b16 %v629
        %v1026 = vunpack.c.h.b16 %v629
        %v1027 = vunpack.c.l.b16 %v630
        %v1028 = vunpack.c.h.b16 %v630
        %v1029 = vunpack.c.l.b16 %v631
        %v1030 = vunpack.c.h.b16 %v631
        %v1031 = vunpack.c.l.b16 %v632
        %v1032 = vunpack.c.h.b16 %v632
        %v1033 = vunpack.c.l.b16 %v633
        %v1034 = vunpack.c.h.b16 %v633
        %v1035 = vunpack.c.l.b16 %v634
        %v1036 = vunpack.c.h.b16 %v634
        %v1037 = vunpack.c.l.b16 %v635
        %v1038 = vunpack.c.h.b16 %v635
        %v1039 = vunpack.c.l.b16 %v636
        %v1040 = vunpack.c.h.b16 %v636
        %v1041 = vunpack.c.l.b16 %v637
        %v1042 = vunpack.c.h.b16 %v637
        %v1043 = vunpack.c.l.b16 %v638
        %v1044 = vunpack.c.h.b16 %v638
        %v1045 = vunpack.c.l.b16 %v639
        %v1046 = vunpack.c.h.b16 %v639
        %v1047 = vunpack.c.l.b16 %v640
        %v1048 = vunpack.c.h.b16 %v640
        %v1049 = vunpack.c.l.b16 %v641
        %v1050 = vunpack.c.h.b16 %v641
        %v1051 = vunpack.c.l.b16 %v642
        %v1052 = vunpack.c.h.b16 %v642
        %v1053 = vunpack.c.l.b16 %v643
        %v1054 = vunpack.c.h.b16 %v643
        %v1055 = vunpack.c.l.b16 %v644
        %v1056 = vunpack.c.h.b16 %v644
        %v1057 = vunpack.c.l.b16 %v645
        %v1058 = vunpack.c.h.b16 %v645
        %v1059 = vunpack.c.l.b16 %v646
        %v1060 = vunpack.c.h.b16 %v646
        %v1061 = vunpack.c.l.b16 %v647
        %v1062 = vunpack.c.h.b16 %v647
        %v1063 = vunpack.c.l.b16 %v648
        %v1064 = vunpack.c.h.b16 %v648
        %v1065 = vunpack.c.l.b16 %v649
        %v1066 = vunpack.c.h.b16 %v649
        %v1067 = vunpack.c.l.b16 %v650
        %v1068 = vunpack.c.h.b16 %v650
        %v1069 = vunpack.c.l.b16 %v651
        %v1070 = vunpack.c.h.b16 %v651
        %v1071 = vunpack.c.l.b16 %v652
        %v1072 = vunpack.c.h.b16 %v652
        %v1073 = vunpack.c.l.b16 %v653
        %v1074 = vunpack.c.h.b16 %v653
        %v1075 = vunpack.c.l.b16 %v654
        %v1076 = vunpack.c.h.b16 %v654
        %v1077 = vunpack.c.l.b16 %v655
        %v1078 = vunpack.c.h.b16 %v655
        %v1079 = vunpack.c.l.b16 %v656
        %v1080 = vunpack.c.h.b16 %v656
        %v1081 = vunpack.c.l.b16 %v657
        %v1082 = vunpack.c.h.b16 %v657
        %v1083 = vunpack.c.l.b16 %v658
        %v1084 = vunpack.c.h.b16 %v658
        %v1085 = vunpack.c.l.b16 %v659
        %v1086 = vunpack.c.h.b16 %v659
        %v1087 = vunpack.c.l.b16 %v660
        %v1088 = vunpack.c.h.b16 %v660
        %v1089 = vunpack.c.l.b16 %v661
        %v1090 = vunpack.c.h.b16 %v661
        %v1091 = vunpack.c.l.b16 %v662
        %v1092 = vunpack.c.h.b16 %v662
        %v1093 = vunpack.c.l.b16 %v663
        %v1094 = vunpack.c.h.b16 %v663
        %v1095 = vunpack.c.l.b16 %v664
        %v1096 = vunpack.c.h.b16 %v664
        %v1097 = vunpack.c.l.b16 %v665
        %v1098 = vunpack.c.h.b16 %v665
        %v1099 = vunpack.c.l.b16 %v666
        %v1100 = vunpack.c.h.b16 %v666
        %v1101 = vunpack.c.l.b16 %v667
        %v1102 = vunpack.c.h.b16 %v667
        %v1103 = vunpack.c.l.b16 %v668
        %v1104 = vunpack.c.h.b16 %v668
        %v1105 = vunpack.c.l.b16 %v669
        %v1106 = vunpack.c.h.b16 %v669
        %v1107 = vunpack.c.l.b16 %v670
        %v1108 = vunpack.c.h.b16 %v670
        %v1109 = vunpack.c.l.b16 %v671
        %v1110 = vunpack.c.h.b16 %v671
        %v1111 = vpack.c.b16 %v857, %v855
        %v1112 = vpack.c.b16 %v858, %v856
        %v1113 = vpack.c.b16 %v861, %v859
        %v1114 = vpack.c.b16 %v862, %v860
        %v1115 = vpack.c.b16 %v865, %v863
        %v1116 = vpack.c.b16 %v866, %v864
        %v1117 = vpack.c.b16 %v869, %v867
        %v1118 = vpack.c.b16 %v870, %v868
        %v1119 = vpack.c.b16 %v873, %v871
        %v1120 = vpack.c.b16 %v874, %v872
        %v1121 = vpack.c.b16 %v877, %v875
        %v1122 = vpack.c.b16 %v878, %v876
        %v1123 = vpack.c.b16 %v881, %v879
        %v1124 = vpack.c.b16 %v882, %v880
        %v1125 = vpack.c.b16 %v885, %v883
        %v1126 = vpack.c.b16 %v886, %v884
        %v1127 = vpack.c.b16 %v889, %v887
        %v1128 = vpack.c.b16 %v890, %v888
        %v1129 = vpack.c.b16 %v893, %v891
        %v1130 = vpack.c.b16 %v894, %v892
        %v1131 = vpack.c.b16 %v897, %v895
        %v1132 = vpack.c.b16 %v898, %v896
        %v1133 = vpack.c.b16 %v901, %v899
        %v1134 = vpack.c.b16 %v902, %v900
        %v1135 = vpack.c.b16 %v905, %v903
        %v1136 = vpack.c.b16 %v906, %v904
        %v1137 = vpack.c.b16 %v909, %v907
        %v1138 = vpack.c.b16 %v910, %v908
        %v1139 = vpack.c.b16 %v913, %v911
        %v1140 = vpack.c.b16 %v914, %v912
        %v1141 = vpack.c.b16 %v917, %v915
        %v1142 = vpack.c.b16 %v918, %v916
        %v1143 = vpack.c.b16 %v921, %v919
        %v1144 = vpack.c.b16 %v922, %v920
        %v1145 = vpack.c.b16 %v925, %v923
        %v1146 = vpack.c.b16 %v926, %v924
        %v1147 = vpack.c.b16 %v929, %v927
        %v1148 = vpack.c.b16 %v930, %v928
        %v1149 = vpack.c.b16 %v933, %v931
        %v1150 = vpack.c.b16 %v934, %v932
        %v1151 = vpack.c.b16 %v937, %v935
        %v1152 = vpack.c.b16 %v938, %v936
        %v1153 = vpack.c.b16 %v941, %v939
        %v1154 = vpack.c.b16 %v942, %v940
        %v1155 = vpack.c.b16 %v945, %v943
        %v1156 = vpack.c.b16 %v946, %v944
        %v1157 = vpack.c.b16 %v949, %v947
        %v1158 = vpack.c.b16 %v950, %v948
        %v1159 = vpack.c.b16 %v953, %v951
        %v1160 = vpack.c.b16 %v954, %v952
        %v1161 = vpack.c.b16 %v957, %v955
        %v1162 = vpack.c.b16 %v958, %v956
        %v1163 = vpack.c.b16 %v961, %v959
        %v1164 = vpack.c.b16 %v962, %v960
        %v1165 = vpack.c.b16 %v965, %v963
        %v1166 = vpack.c.b16 %v966, %v964
        %v1167 = vpack.c.b16 %v969, %v967
        %v1168 = vpack.c.b16 %v970, %v968
        %v1169 = vpack.c.b16 %v973, %v971
        %v1170 = vpack.c.b16 %v974, %v972
        %v1171 = vpack.c.b16 %v977, %v975
        %v1172 = vpack.c.b16 %v978, %v976
        %v1173 = vpack.c.b16 %v981, %v979
        %v1174 = vpack.c.b16 %v982, %v980
        %v1175 = vpack.c.b16 %v985, %v983
        %v1176 = vpack.c.b16 %v986, %v984
        %v1177 = vpack.c.b16 %v989, %v987
        %v1178 = vpack.c.b16 %v990, %v988
        %v1179 = vpack.c.b16 %v993, %v991
        %v1180 = vpack.c.b16 %v994, %v992
        %v1181 = vpack.c.b16 %v997, %v995
        %v1182 = vpack.c.b16 %v998, %v996
        %v1183 = vpack.c.b16 %v1001, %v999
        %v1184 = vpack.c.b16 %v1002, %v1000
        %v1185 = vpack.c.b16 %v1005, %v1003
        %v1186 = vpack.c.b16 %v1006, %v1004
        %v1187 = vpack.c.b16 %v1009, %v1007
        %v1188 = vpack.c.b16 %v1010, %v1008
        %v1189 = vpack.c.b16 %v1013, %v1011
        %v1190 = vpack.c.b16 %v1014, %v1012
        %v1191 = vpack.c.b16 %v1017, %v1015
        %v1192 = vpack.c.b16 %v1018, %v1016
        %v1193 = vpack.c.b16 %v1021, %v1019
        %v1194 = vpack.c.b16 %v1022, %v1020
        %v1195 = vpack.c.b16 %v1025, %v1023
        %v1196 = vpack.c.b16 %v1026, %v1024
        %v1197 = vpack.c.b16 %v1029, %v1027
        %v1198 = vpack.c.b16 %v1030, %v1028
        %v1199 = vpack.c.b16 %v1033, %v1031
        %v1200 = vpack.c.b16 %v1034, %v1032
        %v1201 = vpack.c.b16 %v1037, %v1035
        %v1202 = vpack.c.b16 %v1038, %v1036
        %v1203 = vpack.c.b16 %v1041, %v1039
        %v1204 = vpack.c.b16 %v1042, %v1040
        %v1205 = vpack.c.b16 %v1045, %v1043
        %v1206 = vpack.c.b16 %v1046, %v1044
        %v1207 = vpack.c.b16 %v1049, %v1047
        %v1208 = vpack.c.b16 %v1050, %v1048
        %v1209 = vpack.c.b16 %v1053, %v1051
        %v1210 = vpack.c.b16 %v1054, %v1052
        %v1211 = vpack.c.b16 %v1057, %v1055
        %v1212 = vpack.c.b16 %v1058, %v1056
        %v1213 = vpack.c.b16 %v1061, %v1059
        %v1214 = vpack.c.b16 %v1062, %v1060
        %v1215 = vpack.c.b16 %v1065, %v1063
        %v1216 = vpack.c.b16 %v1066, %v1064
        %v1217 = vpack.c.b16 %v1069, %v1067
        %v1218 = vpack.c.b16 %v1070, %v1068
        %v1219 = vpack.c.b16 %v1073, %v1071
        %v1220 = vpack.c.b16 %v1074, %v1072
        %v1221 = vpack.c.b16 %v1077, %v1075
        %v1222 = vpack.c.b16 %v1078, %v1076
        %v1223 = vpack.c.b16 %v1081, %v1079
        %v1224 = vpack.c.b16 %v1082, %v1080
        %v1225 = vpack.c.b16 %v1085, %v1083
        %v1226 = vpack.c.b16 %v1086, %v1084
        %v1227 = vpack.c.b16 %v1089, %v1087
        %v1228 = vpack.c.b16 %v1090, %v1088
        %v1229 = vpack.c.b16 %v1093, %v1091
        %v1230 = vpack.c.b16 %v1094, %v1092
        %v1231 = vpack.c.b16 %v1097, %v1095
        %v1232 = vpack.c.b16 %v1098, %v1096
        %v1233 = vpack.c.b16 %v1101, %v1099
        %v1234 = vpack.c.b16 %v1102, %v1100
        %v1235 = vpack.c.b16 %v1105, %v1103
        %v1236 = vpack.c.b16 %v1106, %v1104
        %v1237 = vpack.c.b16 %v1109, %v1107
        %v1238 = vpack.c.b16 %v1110, %v1108
        %1367 = vmatpush.bf16.msra.mxu0 %v1125
        %1368 = vmatpush.bf16.msra.mxu0 %v1123
        %1369 = vmatpush.bf16.msra.mxu0 %v1121
        %1370 = vmatpush.bf16.msra.mxu0 %v1119
        %1371 = vmatpush.bf16.msra.mxu0 %v1117
        %1372 = vmatpush.bf16.msra.mxu0 %v1115
        %1373 = vmatpush.bf16.msra.mxu0 %v1113
        %1374 = vmatpush.bf16.msra.mxu0 %v1111
        %1375 = vmatmul.bf16.gmra.mxu0 %v711
        %v1376 = vpop.f32.mrf.mxu0
        %v1377 = vadd.f32 %v683, %v1376
        %v1378 = vpop.f32.mrf.mxu0
        %v1379 = vadd.f32 %v683, %v1378
        %1380 = vdwg.mxu0
        %1381 = vmatpush.bf16.msra.mxu0 %v1141
        %1382 = vmatpush.bf16.msra.mxu0 %v1139
        %1383 = vmatpush.bf16.msra.mxu0 %v1137
        %1384 = vmatpush.bf16.msra.mxu0 %v1135
        %1385 = vmatpush.bf16.msra.mxu0 %v1133
        %1386 = vmatpush.bf16.msra.mxu0 %v1131
        %1387 = vmatpush.bf16.msra.mxu0 %v1129
        %1388 = vmatpush.bf16.msra.mxu0 %v1127
        %1389 = vmatmul.bf16.gmra.mxu0 %v712
        %v1390 = vpop.f32.mrf.mxu0
        %v1391 = vadd.f32 %v1377, %v1390
        %v1392 = vpop.f32.mrf.mxu0
        %v1393 = vadd.f32 %v1379, %v1392
        %1394 = vdwg.mxu0
        %1395 = vmatpush.bf16.msra.mxu0 %v1157
        %1396 = vmatpush.bf16.msra.mxu0 %v1155
        %1397 = vmatpush.bf16.msra.mxu0 %v1153
        %1398 = vmatpush.bf16.msra.mxu0 %v1151
        %1399 = vmatpush.bf16.msra.mxu0 %v1149
        %1400 = vmatpush.bf16.msra.mxu0 %v1147
        %1401 = vmatpush.bf16.msra.mxu0 %v1145
        %1402 = vmatpush.bf16.msra.mxu0 %v1143
        %1403 = vmatmul.bf16.gmra.mxu0 %v713
        %v1404 = vpop.f32.mrf.mxu0
        %v1405 = vadd.f32 %v1391, %v1404
        %v1406 = vpop.f32.mrf.mxu0
        %v1407 = vadd.f32 %v1393, %v1406
        %1408 = vdwg.mxu0
        %1409 = vmatpush.bf16.msra.mxu0 %v1173
        %1410 = vmatpush.bf16.msra.mxu0 %v1171
        %1411 = vmatpush.bf16.msra.mxu0 %v1169
        %1412 = vmatpush.bf16.msra.mxu0 %v1167
        %1413 = vmatpush.bf16.msra.mxu0 %v1165
        %1414 = vmatpush.bf16.msra.mxu0 %v1163
        %1415 = vmatpush.bf16.msra.mxu0 %v1161
        %1416 = vmatpush.bf16.msra.mxu0 %v1159
        %1417 = vmatmul.bf16.gmra.mxu0 %v714
        %v1418 = vpop.f32.mrf.mxu0
        %v1419 = vadd.f32 %v1405, %v1418
        %v1420 = vpop.f32.mrf.mxu0
        %v1421 = vadd.f32 %v1407, %v1420
        %1422 = vdwg.mxu0
        %1423 = vmatpush.bf16.msra.mxu0 %v1189
        %1424 = vmatpush.bf16.msra.mxu0 %v1187
        %1425 = vmatpush.bf16.msra.mxu0 %v1185
        %1426 = vmatpush.bf16.msra.mxu0 %v1183
        %1427 = vmatpush.bf16.msra.mxu0 %v1181
        %1428 = vmatpush.bf16.msra.mxu0 %v1179
        %1429 = vmatpush.bf16.msra.mxu0 %v1177
        %1430 = vmatpush.bf16.msra.mxu0 %v1175
        %1431 = vmatmul.bf16.gmra.mxu0 %v715
        %v1432 = vpop.f32.mrf.mxu0
        %v1433 = vadd.f32 %v1419, %v1432
        %v1434 = vpop.f32.mrf.mxu0
        %v1435 = vadd.f32 %v1421, %v1434
        %1436 = vdwg.mxu0
        %1437 = vmatpush.bf16.msra.mxu0 %v1205
        %1438 = vmatpush.bf16.msra.mxu0 %v1203
        %1439 = vmatpush.bf16.msra.mxu0 %v1201
        %1440 = vmatpush.bf16.msra.mxu0 %v1199
        %1441 = vmatpush.bf16.msra.mxu0 %v1197
        %1442 = vmatpush.bf16.msra.mxu0 %v1195
        %1443 = vmatpush.bf16.msra.mxu0 %v1193
        %1444 = vmatpush.bf16.msra.mxu0 %v1191
        %1445 = vmatmul.bf16.gmra.mxu0 %v716
        %v1446 = vpop.f32.mrf.mxu0
        %v1447 = vadd.f32 %v1433, %v1446
        %v1448 = vpop.f32.mrf.mxu0
        %v1449 = vadd.f32 %v1435, %v1448
        %1450 = vdwg.mxu0
        %1451 = vmatpush.bf16.msra.mxu0 %v1221
        %1452 = vmatpush.bf16.msra.mxu0 %v1219
        %1453 = vmatpush.bf16.msra.mxu0 %v1217
        %1454 = vmatpush.bf16.msra.mxu0 %v1215
        %1455 = vmatpush.bf16.msra.mxu0 %v1213
        %1456 = vmatpush.bf16.msra.mxu0 %v1211
        %1457 = vmatpush.bf16.msra.mxu0 %v1209
        %1458 = vmatpush.bf16.msra.mxu0 %v1207
        %1459 = vmatmul.bf16.gmra.mxu0 %v717
        %v1460 = vpop.f32.mrf.mxu0
        %v1461 = vadd.f32 %v1447, %v1460
        %v1462 = vpop.f32.mrf.mxu0
        %v1463 = vadd.f32 %v1449, %v1462
        %1464 = vdwg.mxu0
        %1465 = vmatpush.bf16.msra.mxu0 %v1237
        %1466 = vmatpush.bf16.msra.mxu0 %v1235
        %1467 = vmatpush.bf16.msra.mxu0 %v1233
        %1468 = vmatpush.bf16.msra.mxu0 %v1231
        %1469 = vmatpush.bf16.msra.mxu0 %v1229
        %1470 = vmatpush.bf16.msra.mxu0 %v1227
        %1471 = vmatpush.bf16.msra.mxu0 %v1225
        %1472 = vmatpush.bf16.msra.mxu0 %v1223
        %1473 = vmatmul.bf16.gmra.mxu0 %v718
        %v1474 = vpop.f32.mrf.mxu0
        %v1475 = vadd.f32 %v1461, %v1474
        %v1476 = vpop.f32.mrf.mxu0
        %v1477 = vadd.f32 %v1463, %v1476
        %1478 = vdwg.mxu0
        %1479 = vmatpush.bf16.msra.mxu0 %v1126
        %1480 = vmatpush.bf16.msra.mxu0 %v1124
        %1481 = vmatpush.bf16.msra.mxu0 %v1122
        %1482 = vmatpush.bf16.msra.mxu0 %v1120
        %1483 = vmatpush.bf16.msra.mxu0 %v1118
        %1484 = vmatpush.bf16.msra.mxu0 %v1116
        %1485 = vmatpush.bf16.msra.mxu0 %v1114
        %1486 = vmatpush.bf16.msra.mxu0 %v1112
        %1487 = vmatmul.bf16.gmra.mxu0 %v711
        %v1488 = vpop.f32.mrf.mxu0
        %v1489 = vadd.f32 %v684, %v1488
        %v1490 = vpop.f32.mrf.mxu0
        %v1491 = vadd.f32 %v684, %v1490
        %1492 = vdwg.mxu0
        %1493 = vmatpush.bf16.msra.mxu0 %v1142
        %1494 = vmatpush.bf16.msra.mxu0 %v1140
        %1495 = vmatpush.bf16.msra.mxu0 %v1138
        %1496 = vmatpush.bf16.msra.mxu0 %v1136
        %1497 = vmatpush.bf16.msra.mxu0 %v1134
        %1498 = vmatpush.bf16.msra.mxu0 %v1132
        %1499 = vmatpush.bf16.msra.mxu0 %v1130
        %1500 = vmatpush.bf16.msra.mxu0 %v1128
        %1501 = vmatmul.bf16.gmra.mxu0 %v712
        %v1502 = vpop.f32.mrf.mxu0
        %v1503 = vadd.f32 %v1489, %v1502
        %v1504 = vpop.f32.mrf.mxu0
        %v1505 = vadd.f32 %v1491, %v1504
        %1506 = vdwg.mxu0
        %1507 = vmatpush.bf16.msra.mxu0 %v1158
        %1508 = vmatpush.bf16.msra.mxu0 %v1156
        %1509 = vmatpush.bf16.msra.mxu0 %v1154
        %1510 = vmatpush.bf16.msra.mxu0 %v1152
        %1511 = vmatpush.bf16.msra.mxu0 %v1150
        %1512 = vmatpush.bf16.msra.mxu0 %v1148
        %1513 = vmatpush.bf16.msra.mxu0 %v1146
        %1514 = vmatpush.bf16.msra.mxu0 %v1144
        %1515 = vmatmul.bf16.gmra.mxu0 %v713
        %v1516 = vpop.f32.mrf.mxu0
        %v1517 = vadd.f32 %v1503, %v1516
        %v1518 = vpop.f32.mrf.mxu0
        %v1519 = vadd.f32 %v1505, %v1518
        %1520 = vdwg.mxu0
        %1521 = vmatpush.bf16.msra.mxu0 %v1174
        %1522 = vmatpush.bf16.msra.mxu0 %v1172
        %1523 = vmatpush.bf16.msra.mxu0 %v1170
        %1524 = vmatpush.bf16.msra.mxu0 %v1168
        %1525 = vmatpush.bf16.msra.mxu0 %v1166
        %1526 = vmatpush.bf16.msra.mxu0 %v1164
        %1527 = vmatpush.bf16.msra.mxu0 %v1162
        %1528 = vmatpush.bf16.msra.mxu0 %v1160
        %1529 = vmatmul.bf16.gmra.mxu0 %v714
        %v1530 = vpop.f32.mrf.mxu0
        %v1531 = vadd.f32 %v1517, %v1530
        %v1532 = vpop.f32.mrf.mxu0
        %v1533 = vadd.f32 %v1519, %v1532
        %1534 = vdwg.mxu0
        %1535 = vmatpush.bf16.msra.mxu0 %v1190
        %1536 = vmatpush.bf16.msra.mxu0 %v1188
        %1537 = vmatpush.bf16.msra.mxu0 %v1186
        %1538 = vmatpush.bf16.msra.mxu0 %v1184
        %1539 = vmatpush.bf16.msra.mxu0 %v1182
        %1540 = vmatpush.bf16.msra.mxu0 %v1180
        %1541 = vmatpush.bf16.msra.mxu0 %v1178
        %1542 = vmatpush.bf16.msra.mxu0 %v1176
        %1543 = vmatmul.bf16.gmra.mxu0 %v715
        %v1544 = vpop.f32.mrf.mxu0
        %v1545 = vadd.f32 %v1531, %v1544
        %v1546 = vpop.f32.mrf.mxu0
        %v1547 = vadd.f32 %v1533, %v1546
        %1548 = vdwg.mxu0
        %1549 = vmatpush.bf16.msra.mxu0 %v1206
        %1550 = vmatpush.bf16.msra.mxu0 %v1204
        %1551 = vmatpush.bf16.msra.mxu0 %v1202
        %1552 = vmatpush.bf16.msra.mxu0 %v1200
        %1553 = vmatpush.bf16.msra.mxu0 %v1198
        %1554 = vmatpush.bf16.msra.mxu0 %v1196
        %1555 = vmatpush.bf16.msra.mxu0 %v1194
        %1556 = vmatpush.bf16.msra.mxu0 %v1192
        %1557 = vmatmul.bf16.gmra.mxu0 %v716
        %v1558 = vpop.f32.mrf.mxu0
        %v1559 = vadd.f32 %v1545, %v1558
        %v1560 = vpop.f32.mrf.mxu0
        %v1561 = vadd.f32 %v1547, %v1560
        %1562 = vdwg.mxu0
        %1563 = vmatpush.bf16.msra.mxu0 %v1222
        %1564 = vmatpush.bf16.msra.mxu0 %v1220
        %1565 = vmatpush.bf16.msra.mxu0 %v1218
        %1566 = vmatpush.bf16.msra.mxu0 %v1216
        %1567 = vmatpush.bf16.msra.mxu0 %v1214
        %1568 = vmatpush.bf16.msra.mxu0 %v1212
        %1569 = vmatpush.bf16.msra.mxu0 %v1210
        %1570 = vmatpush.bf16.msra.mxu0 %v1208
        %1571 = vmatmul.bf16.gmra.mxu0 %v717
        %v1572 = vpop.f32.mrf.mxu0
        %v1573 = vadd.f32 %v1559, %v1572
        %v1574 = vpop.f32.mrf.mxu0
        %v1575 = vadd.f32 %v1561, %v1574
        %1576 = vdwg.mxu0
        %1577 = vmatpush.bf16.msra.mxu0 %v1238
        %1578 = vmatpush.bf16.msra.mxu0 %v1236
        %1579 = vmatpush.bf16.msra.mxu0 %v1234
        %1580 = vmatpush.bf16.msra.mxu0 %v1232
        %1581 = vmatpush.bf16.msra.mxu0 %v1230
        %1582 = vmatpush.bf16.msra.mxu0 %v1228
        %1583 = vmatpush.bf16.msra.mxu0 %v1226
        %1584 = vmatpush.bf16.msra.mxu0 %v1224
        %1585 = vmatmul.bf16.gmra.mxu0 %v718
        %v1586 = vpop.f32.mrf.mxu0
        %v1587 = vadd.f32 %v1573, %v1586
        %v1588 = vpop.f32.mrf.mxu0
        %v1589 = vadd.f32 %v1575, %v1588
        %1590 = vdwg.mxu0
        %v1591 = vmax.f32 %v1475, 0.0
        %v1592 = vmax.f32 %v1587, 0.0
        %v1593 = vmax.f32 %v1477, 0.0
        %v1594 = vmax.f32 %v1589, 0.0
        %v1595 = vld [vmem:[%s503] sm:$0xff]
        %v1596 = vld [vmem:[%s503 + $0x8] sm:$0xff]
        %1598 = vset.pattern.permute.xlu0 0
        %1599 = vperm.xlu0 %1598, %v1595
        %v1600 = vpop.permute.xlu0 %1599
        %1603 = vset.pattern.permute.xlu0 0
        %1604 = vperm.xlu0 %1603, %v1596
        %v1605 = vpop.permute.xlu0 %1604
        %v1607 = vmul.f32 %v1591, %v1600
        %v1608 = vmul.f32 %v1592, %v1600
        %v1609 = vmul.f32 %v1593, %v1605
        %v1610 = vmul.f32 %v1594, %v1605
        %v1611 = vpack.c.bf16 %v1609, %v1607
        %v1612 = vpack.c.bf16 %v1610, %v1608
        %v1613 = vld [vmem:[%s4] sm:$0xff]
        %v1614 = vld [vmem:[%s4 + $0x8] sm:$0xff]
        %v1615 = vld [vmem:[%s4 + $0x10] sm:$0xff]
        %v1616 = vld [vmem:[%s4 + $0x18] sm:$0xff]
        %v1617 = vld [vmem:[%s4 + $0x20] sm:$0xff]
        %v1618 = vld [vmem:[%s4 + $0x28] sm:$0xff]
        %v1619 = vld [vmem:[%s4 + $0x30] sm:$0xff]
        %v1620 = vld [vmem:[%s4 + $0x38] sm:$0xff]
        %v1621 = vld [vmem:[%s4 + $0x40] sm:$0xff]
        %v1622 = vld [vmem:[%s4 + $0x48] sm:$0xff]
        %v1623 = vld [vmem:[%s4 + $0x50] sm:$0xff]
        %v1624 = vld [vmem:[%s4 + $0x58] sm:$0xff]
        %v1625 = vld [vmem:[%s4 + $0x60] sm:$0xff]
        %v1626 = vld [vmem:[%s4 + $0x68] sm:$0xff]
        %v1627 = vld [vmem:[%s4 + $0x70] sm:$0xff]
        %v1628 = vld [vmem:[%s4 + $0x78] sm:$0xff]
        %v1629 = vld [vmem:[%s4 + $0x80] sm:$0xff]
        %v1630 = vld [vmem:[%s4 + $0x88] sm:$0xff]
        %v1631 = vld [vmem:[%s4 + $0x90] sm:$0xff]
        %v1632 = vld [vmem:[%s4 + $0x98] sm:$0xff]
        %v1633 = vld [vmem:[%s4 + $0xa0] sm:$0xff]
        %v1634 = vld [vmem:[%s4 + $0xa8] sm:$0xff]
        %v1635 = vld [vmem:[%s4 + $0xb0] sm:$0xff]
        %v1636 = vld [vmem:[%s4 + $0xb8] sm:$0xff]
        %v1637 = vld [vmem:[%s4 + $0xc0] sm:$0xff]
        %v1638 = vld [vmem:[%s4 + $0xc8] sm:$0xff]
        %v1639 = vld [vmem:[%s4 + $0xd0] sm:$0xff]
        %v1640 = vld [vmem:[%s4 + $0xd8] sm:$0xff]
        %v1641 = vld [vmem:[%s4 + $0xe0] sm:$0xff]
        %v1642 = vld [vmem:[%s4 + $0xe8] sm:$0xff]
        %v1643 = vld [vmem:[%s4 + $0xf0] sm:$0xff]
        %v1644 = vld [vmem:[%s4 + $0xf8] sm:$0xff]
        %v1645 = vld [vmem:[%s4 + $0x100] sm:$0xff]
        %v1646 = vld [vmem:[%s4 + $0x108] sm:$0xff]
        %v1647 = vld [vmem:[%s4 + $0x110] sm:$0xff]
        %v1648 = vld [vmem:[%s4 + $0x118] sm:$0xff]
        %v1649 = vld [vmem:[%s4 + $0x120] sm:$0xff]
        %v1650 = vld [vmem:[%s4 + $0x128] sm:$0xff]
        %v1651 = vld [vmem:[%s4 + $0x130] sm:$0xff]
        %v1652 = vld [vmem:[%s4 + $0x138] sm:$0xff]
        %v1653 = vld [vmem:[%s4 + $0x140] sm:$0xff]
        %v1654 = vld [vmem:[%s4 + $0x148] sm:$0xff]
        %v1655 = vld [vmem:[%s4 + $0x150] sm:$0xff]
        %v1656 = vld [vmem:[%s4 + $0x158] sm:$0xff]
        %v1657 = vld [vmem:[%s4 + $0x160] sm:$0xff]
        %v1658 = vld [vmem:[%s4 + $0x168] sm:$0xff]
        %v1659 = vld [vmem:[%s4 + $0x170] sm:$0xff]
        %v1660 = vld [vmem:[%s4 + $0x178] sm:$0xff]
        %v1661 = vld [vmem:[%s4 + $0x180] sm:$0xff]
        %v1662 = vld [vmem:[%s4 + $0x188] sm:$0xff]
        %v1663 = vld [vmem:[%s4 + $0x190] sm:$0xff]
        %v1664 = vld [vmem:[%s4 + $0x198] sm:$0xff]
        %v1665 = vld [vmem:[%s4 + $0x1a0] sm:$0xff]
        %v1666 = vld [vmem:[%s4 + $0x1a8] sm:$0xff]
        %v1667 = vld [vmem:[%s4 + $0x1b0] sm:$0xff]
        %v1668 = vld [vmem:[%s4 + $0x1b8] sm:$0xff]
        %v1669 = vld [vmem:[%s4 + $0x1c0] sm:$0xff]
        %v1670 = vld [vmem:[%s4 + $0x1c8] sm:$0xff]
        %v1671 = vld [vmem:[%s4 + $0x1d0] sm:$0xff]
        %v1672 = vld [vmem:[%s4 + $0x1d8] sm:$0xff]
        %v1673 = vld [vmem:[%s4 + $0x1e0] sm:$0xff]
        %v1674 = vld [vmem:[%s4 + $0x1e8] sm:$0xff]
        %v1675 = vld [vmem:[%s4 + $0x1f0] sm:$0xff]
        %v1676 = vld [vmem:[%s4 + $0x1f8] sm:$0xff]
        %s1677 = scalar_lea.vmem %s496, 64 [#allocation2]
        %v1678 = vld [vmem:[%s1677] sm:$0xff]
        %v1679 = vld [vmem:[%s1677 + $0x8] sm:$0xff]
        %v1680 = vld [vmem:[%s1677 + $0x10] sm:$0xff]
        %v1681 = vld [vmem:[%s1677 + $0x18] sm:$0xff]
        %v1682 = vld [vmem:[%s1677 + $0x20] sm:$0xff]
        %v1683 = vld [vmem:[%s1677 + $0x28] sm:$0xff]
        %v1684 = vld [vmem:[%s1677 + $0x30] sm:$0xff]
        %v1685 = vld [vmem:[%s1677 + $0x38] sm:$0xff]
        %v1694 = vunpack.c.l.b16 %v1678
        %v1695 = vunpack.c.h.b16 %v1678
        %v1696 = vunpack.c.l.b16 %v1679
        %v1697 = vunpack.c.h.b16 %v1679
        %v1698 = vunpack.c.l.b16 %v1680
        %v1699 = vunpack.c.h.b16 %v1680
        %v1700 = vunpack.c.l.b16 %v1681
        %v1701 = vunpack.c.h.b16 %v1681
        %v1702 = vunpack.c.l.b16 %v1682
        %v1703 = vunpack.c.h.b16 %v1682
        %v1704 = vunpack.c.l.b16 %v1683
        %v1705 = vunpack.c.h.b16 %v1683
        %v1706 = vunpack.c.l.b16 %v1684
        %v1707 = vunpack.c.h.b16 %v1684
        %v1708 = vunpack.c.l.b16 %v1685
        %v1709 = vunpack.c.h.b16 %v1685
        %v1710 = vpack.c.b16 %v1702, %v1694
        %v1711 = vpack.c.b16 %v1703, %v1695
        %v1712 = vpack.c.b16 %v1704, %v1696
        %v1713 = vpack.c.b16 %v1705, %v1697
        %v1714 = vpack.c.b16 %v1706, %v1698
        %v1715 = vpack.c.b16 %v1707, %v1699
        %v1716 = vpack.c.b16 %v1708, %v1700
        %v1717 = vpack.c.b16 %v1709, %v1701
        %1726 = vmatpush.bf16.msra.mxu0 %v1125
        %1727 = vmatpush.bf16.msra.mxu0 %v1123
        %1728 = vmatpush.bf16.msra.mxu0 %v1121
        %1729 = vmatpush.bf16.msra.mxu0 %v1119
        %1730 = vmatpush.bf16.msra.mxu0 %v1117
        %1731 = vmatpush.bf16.msra.mxu0 %v1115
        %1732 = vmatpush.bf16.msra.mxu0 %v1113
        %1733 = vmatpush.bf16.msra.mxu0 %v1111
        %1734 = vmatmul.bf16.gmra.mxu0 %v1710
        %v1735 = vpop.f32.mrf.mxu0
        %v1736 = vadd.f32 %v683, %v1735
        %v1737 = vpop.f32.mrf.mxu0
        %v1738 = vadd.f32 %v683, %v1737
        %1739 = vdwg.mxu0
        %1740 = vmatpush.bf16.msra.mxu0 %v1141
        %1741 = vmatpush.bf16.msra.mxu0 %v1139
        %1742 = vmatpush.bf16.msra.mxu0 %v1137
        %1743 = vmatpush.bf16.msra.mxu0 %v1135
        %1744 = vmatpush.bf16.msra.mxu0 %v1133
        %1745 = vmatpush.bf16.msra.mxu0 %v1131
        %1746 = vmatpush.bf16.msra.mxu0 %v1129
        %1747 = vmatpush.bf16.msra.mxu0 %v1127
        %1748 = vmatmul.bf16.gmra.mxu0 %v1711
        %v1749 = vpop.f32.mrf.mxu0
        %v1750 = vadd.f32 %v1736, %v1749
        %v1751 = vpop.f32.mrf.mxu0
        %v1752 = vadd.f32 %v1738, %v1751
        %1753 = vdwg.mxu0
        %1754 = vmatpush.bf16.msra.mxu0 %v1157
        %1755 = vmatpush.bf16.msra.mxu0 %v1155
        %1756 = vmatpush.bf16.msra.mxu0 %v1153
        %1757 = vmatpush.bf16.msra.mxu0 %v1151
        %1758 = vmatpush.bf16.msra.mxu0 %v1149
        %1759 = vmatpush.bf16.msra.mxu0 %v1147
        %1760 = vmatpush.bf16.msra.mxu0 %v1145
        %1761 = vmatpush.bf16.msra.mxu0 %v1143
        %1762 = vmatmul.bf16.gmra.mxu0 %v1712
        %v1763 = vpop.f32.mrf.mxu0
        %v1764 = vadd.f32 %v1750, %v1763
        %v1765 = vpop.f32.mrf.mxu0
        %v1766 = vadd.f32 %v1752, %v1765
        %1767 = vdwg.mxu0
        %1768 = vmatpush.bf16.msra.mxu0 %v1173
        %1769 = vmatpush.bf16.msra.mxu0 %v1171
        %1770 = vmatpush.bf16.msra.mxu0 %v1169
        %1771 = vmatpush.bf16.msra.mxu0 %v1167
        %1772 = vmatpush.bf16.msra.mxu0 %v1165
        %1773 = vmatpush.bf16.msra.mxu0 %v1163
        %1774 = vmatpush.bf16.msra.mxu0 %v1161
        %1775 = vmatpush.bf16.msra.mxu0 %v1159
        %1776 = vmatmul.bf16.gmra.mxu0 %v1713
        %v1777 = vpop.f32.mrf.mxu0
        %v1778 = vadd.f32 %v1764, %v1777
        %v1779 = vpop.f32.mrf.mxu0
        %v1780 = vadd.f32 %v1766, %v1779
        %1781 = vdwg.mxu0
        %1782 = vmatpush.bf16.msra.mxu0 %v1189
        %1783 = vmatpush.bf16.msra.mxu0 %v1187
        %1784 = vmatpush.bf16.msra.mxu0 %v1185
        %1785 = vmatpush.bf16.msra.mxu0 %v1183
        %1786 = vmatpush.bf16.msra.mxu0 %v1181
        %1787 = vmatpush.bf16.msra.mxu0 %v1179
        %1788 = vmatpush.bf16.msra.mxu0 %v1177
        %1789 = vmatpush.bf16.msra.mxu0 %v1175
        %1790 = vmatmul.bf16.gmra.mxu0 %v1714
        %v1791 = vpop.f32.mrf.mxu0
        %v1792 = vadd.f32 %v1778, %v1791
        %v1793 = vpop.f32.mrf.mxu0
        %v1794 = vadd.f32 %v1780, %v1793
        %1795 = vdwg.mxu0
        %1796 = vmatpush.bf16.msra.mxu0 %v1205
        %1797 = vmatpush.bf16.msra.mxu0 %v1203
        %1798 = vmatpush.bf16.msra.mxu0 %v1201
        %1799 = vmatpush.bf16.msra.mxu0 %v1199
        %1800 = vmatpush.bf16.msra.mxu0 %v1197
        %1801 = vmatpush.bf16.msra.mxu0 %v1195
        %1802 = vmatpush.bf16.msra.mxu0 %v1193
        %1803 = vmatpush.bf16.msra.mxu0 %v1191
        %1804 = vmatmul.bf16.gmra.mxu0 %v1715
        %v1805 = vpop.f32.mrf.mxu0
        %v1806 = vadd.f32 %v1792, %v1805
        %v1807 = vpop.f32.mrf.mxu0
        %v1808 = vadd.f32 %v1794, %v1807
        %1809 = vdwg.mxu0
        %1810 = vmatpush.bf16.msra.mxu0 %v1221
        %1811 = vmatpush.bf16.msra.mxu0 %v1219
        %1812 = vmatpush.bf16.msra.mxu0 %v1217
        %1813 = vmatpush.bf16.msra.mxu0 %v1215
        %1814 = vmatpush.bf16.msra.mxu0 %v1213
        %1815 = vmatpush.bf16.msra.mxu0 %v1211
        %1816 = vmatpush.bf16.msra.mxu0 %v1209
        %1817 = vmatpush.bf16.msra.mxu0 %v1207
        %1818 = vmatmul.bf16.gmra.mxu0 %v1716
        %v1819 = vpop.f32.mrf.mxu0
        %v1820 = vadd.f32 %v1806, %v1819
        %v1821 = vpop.f32.mrf.mxu0
        %v1822 = vadd.f32 %v1808, %v1821
        %1823 = vdwg.mxu0
        %1824 = vmatpush.bf16.msra.mxu0 %v1237
        %1825 = vmatpush.bf16.msra.mxu0 %v1235
        %1826 = vmatpush.bf16.msra.mxu0 %v1233
        %1827 = vmatpush.bf16.msra.mxu0 %v1231
        %1828 = vmatpush.bf16.msra.mxu0 %v1229
        %1829 = vmatpush.bf16.msra.mxu0 %v1227
        %1830 = vmatpush.bf16.msra.mxu0 %v1225
        %1831 = vmatpush.bf16.msra.mxu0 %v1223
        %1832 = vmatmul.bf16.gmra.mxu0 %v1717
        %v1833 = vpop.f32.mrf.mxu0
        %v1834 = vadd.f32 %v1820, %v1833
        %v1835 = vpop.f32.mrf.mxu0
        %v1836 = vadd.f32 %v1822, %v1835
        %1837 = vdwg.mxu0
        %1838 = vmatpush.bf16.msra.mxu0 %v1126
        %1839 = vmatpush.bf16.msra.mxu0 %v1124
        %1840 = vmatpush.bf16.msra.mxu0 %v1122
        %1841 = vmatpush.bf16.msra.mxu0 %v1120
        %1842 = vmatpush.bf16.msra.mxu0 %v1118
        %1843 = vmatpush.bf16.msra.mxu0 %v1116
        %1844 = vmatpush.bf16.msra.mxu0 %v1114
        %1845 = vmatpush.bf16.msra.mxu0 %v1112
        %1846 = vmatmul.bf16.gmra.mxu0 %v1710
        %v1847 = vpop.f32.mrf.mxu0
        %v1848 = vadd.f32 %v684, %v1847
        %v1849 = vpop.f32.mrf.mxu0
        %v1850 = vadd.f32 %v684, %v1849
        %1851 = vdwg.mxu0
        %1852 = vmatpush.bf16.msra.mxu0 %v1142
        %1853 = vmatpush.bf16.msra.mxu0 %v1140
        %1854 = vmatpush.bf16.msra.mxu0 %v1138
        %1855 = vmatpush.bf16.msra.mxu0 %v1136
        %1856 = vmatpush.bf16.msra.mxu0 %v1134
        %1857 = vmatpush.bf16.msra.mxu0 %v1132
        %1858 = vmatpush.bf16.msra.mxu0 %v1130
        %1859 = vmatpush.bf16.msra.mxu0 %v1128
        %1860 = vmatmul.bf16.gmra.mxu0 %v1711
        %v1861 = vpop.f32.mrf.mxu0
        %v1862 = vadd.f32 %v1848, %v1861
        %v1863 = vpop.f32.mrf.mxu0
        %v1864 = vadd.f32 %v1850, %v1863
        %1865 = vdwg.mxu0
        %1866 = vmatpush.bf16.msra.mxu0 %v1158
        %1867 = vmatpush.bf16.msra.mxu0 %v1156
        %1868 = vmatpush.bf16.msra.mxu0 %v1154
        %1869 = vmatpush.bf16.msra.mxu0 %v1152
        %1870 = vmatpush.bf16.msra.mxu0 %v1150
        %1871 = vmatpush.bf16.msra.mxu0 %v1148
        %1872 = vmatpush.bf16.msra.mxu0 %v1146
        %1873 = vmatpush.bf16.msra.mxu0 %v1144
        %1874 = vmatmul.bf16.gmra.mxu0 %v1712
        %v1875 = vpop.f32.mrf.mxu0
        %v1876 = vadd.f32 %v1862, %v1875
        %v1877 = vpop.f32.mrf.mxu0
        %v1878 = vadd.f32 %v1864, %v1877
        %1879 = vdwg.mxu0
        %1880 = vmatpush.bf16.msra.mxu0 %v1174
        %1881 = vmatpush.bf16.msra.mxu0 %v1172
        %1882 = vmatpush.bf16.msra.mxu0 %v1170
        %1883 = vmatpush.bf16.msra.mxu0 %v1168
        %1884 = vmatpush.bf16.msra.mxu0 %v1166
        %1885 = vmatpush.bf16.msra.mxu0 %v1164
        %1886 = vmatpush.bf16.msra.mxu0 %v1162
        %1887 = vmatpush.bf16.msra.mxu0 %v1160
        %1888 = vmatmul.bf16.gmra.mxu0 %v1713
        %v1889 = vpop.f32.mrf.mxu0
        %v1890 = vadd.f32 %v1876, %v1889
        %v1891 = vpop.f32.mrf.mxu0
        %v1892 = vadd.f32 %v1878, %v1891
        %1893 = vdwg.mxu0
        %1894 = vmatpush.bf16.msra.mxu0 %v1190
        %1895 = vmatpush.bf16.msra.mxu0 %v1188
        %1896 = vmatpush.bf16.msra.mxu0 %v1186
        %1897 = vmatpush.bf16.msra.mxu0 %v1184
        %1898 = vmatpush.bf16.msra.mxu0 %v1182
        %1899 = vmatpush.bf16.msra.mxu0 %v1180
        %1900 = vmatpush.bf16.msra.mxu0 %v1178
        %1901 = vmatpush.bf16.msra.mxu0 %v1176
        %1902 = vmatmul.bf16.gmra.mxu0 %v1714
        %v1903 = vpop.f32.mrf.mxu0
        %v1904 = vadd.f32 %v1890, %v1903
        %v1905 = vpop.f32.mrf.mxu0
        %v1906 = vadd.f32 %v1892, %v1905
        %1907 = vdwg.mxu0
        %1908 = vmatpush.bf16.msra.mxu0 %v1206
        %1909 = vmatpush.bf16.msra.mxu0 %v1204
        %1910 = vmatpush.bf16.msra.mxu0 %v1202
        %1911 = vmatpush.bf16.msra.mxu0 %v1200
        %1912 = vmatpush.bf16.msra.mxu0 %v1198
        %1913 = vmatpush.bf16.msra.mxu0 %v1196
        %1914 = vmatpush.bf16.msra.mxu0 %v1194
        %1915 = vmatpush.bf16.msra.mxu0 %v1192
        %1916 = vmatmul.bf16.gmra.mxu0 %v1715
        %v1917 = vpop.f32.mrf.mxu0
        %v1918 = vadd.f32 %v1904, %v1917
        %v1919 = vpop.f32.mrf.mxu0
        %v1920 = vadd.f32 %v1906, %v1919
        %1921 = vdwg.mxu0
        %1922 = vmatpush.bf16.msra.mxu0 %v1222
        %1923 = vmatpush.bf16.msra.mxu0 %v1220
        %1924 = vmatpush.bf16.msra.mxu0 %v1218
        %1925 = vmatpush.bf16.msra.mxu0 %v1216
        %1926 = vmatpush.bf16.msra.mxu0 %v1214
        %1927 = vmatpush.bf16.msra.mxu0 %v1212
        %1928 = vmatpush.bf16.msra.mxu0 %v1210
        %1929 = vmatpush.bf16.msra.mxu0 %v1208
        %1930 = vmatmul.bf16.gmra.mxu0 %v1716
        %v1931 = vpop.f32.mrf.mxu0
        %v1932 = vadd.f32 %v1918, %v1931
        %v1933 = vpop.f32.mrf.mxu0
        %v1934 = vadd.f32 %v1920, %v1933
        %1935 = vdwg.mxu0
        %1936 = vmatpush.bf16.msra.mxu0 %v1238
        %1937 = vmatpush.bf16.msra.mxu0 %v1236
        %1938 = vmatpush.bf16.msra.mxu0 %v1234
        %1939 = vmatpush.bf16.msra.mxu0 %v1232
        %1940 = vmatpush.bf16.msra.mxu0 %v1230
        %1941 = vmatpush.bf16.msra.mxu0 %v1228
        %1942 = vmatpush.bf16.msra.mxu0 %v1226
        %1943 = vmatpush.bf16.msra.mxu0 %v1224
        %1944 = vmatmul.bf16.gmra.mxu0 %v1717
        %v1945 = vpop.f32.mrf.mxu0
        %v1946 = vadd.f32 %v1932, %v1945
        %v1947 = vpop.f32.mrf.mxu0
        %v1948 = vadd.f32 %v1934, %v1947
        %1949 = vdwg.mxu0
        %v1950 = vmax.f32 %v1834, 0.0
        %v1951 = vmax.f32 %v1946, 0.0
        %v1952 = vmax.f32 %v1836, 0.0
        %v1953 = vmax.f32 %v1948, 0.0
        %s1954 = scalar_lea.vmem %s503, 16 [#allocation3]
        %v1955 = vld [vmem:[%s1954] sm:$0xff]
        %v1956 = vld [vmem:[%s1954 + $0x8] sm:$0xff]
        %1958 = vset.pattern.permute.xlu0 0
        %1959 = vperm.xlu0 %1958, %v1955
        %v1960 = vpop.permute.xlu0 %1959
        %1963 = vset.pattern.permute.xlu0 0
        %1964 = vperm.xlu0 %1963, %v1956
        %v1965 = vpop.permute.xlu0 %1964
        %v1967 = vmul.f32 %v1950, %v1960
        %v1968 = vmul.f32 %v1951, %v1960
        %v1969 = vmul.f32 %v1952, %v1965
        %v1970 = vmul.f32 %v1953, %v1965
        %v1971 = vpack.c.bf16 %v1969, %v1967
        %v1972 = vpack.c.bf16 %v1970, %v1968
        %s1973 = scalar_lea.vmem %s4, 512
        %v1974 = vld [vmem:[%s1973] sm:$0xff]
        %v1975 = vld [vmem:[%s1973 + $0x8] sm:$0xff]
        %v1976 = vld [vmem:[%s1973 + $0x10] sm:$0xff]
        %v1977 = vld [vmem:[%s1973 + $0x18] sm:$0xff]
        %v1978 = vld [vmem:[%s1973 + $0x20] sm:$0xff]
        %v1979 = vld [vmem:[%s1973 + $0x28] sm:$0xff]
        %v1980 = vld [vmem:[%s1973 + $0x30] sm:$0xff]
        %v1981 = vld [vmem:[%s1973 + $0x38] sm:$0xff]
        %v1982 = vld [vmem:[%s1973 + $0x40] sm:$0xff]
        %v1983 = vld [vmem:[%s1973 + $0x48] sm:$0xff]
        %v1984 = vld [vmem:[%s1973 + $0x50] sm:$0xff]
        %v1985 = vld [vmem:[%s1973 + $0x58] sm:$0xff]
        %v1986 = vld [vmem:[%s1973 + $0x60] sm:$0xff]
        %v1987 = vld [vmem:[%s1973 + $0x68] sm:$0xff]
        %v1988 = vld [vmem:[%s1973 + $0x70] sm:$0xff]
        %v1989 = vld [vmem:[%s1973 + $0x78] sm:$0xff]
        %v1990 = vld [vmem:[%s1973 + $0x80] sm:$0xff]
        %v1991 = vld [vmem:[%s1973 + $0x88] sm:$0xff]
        %v1992 = vld [vmem:[%s1973 + $0x90] sm:$0xff]
        %v1993 = vld [vmem:[%s1973 + $0x98] sm:$0xff]
        %v1994 = vld [vmem:[%s1973 + $0xa0] sm:$0xff]
        %v1995 = vld [vmem:[%s1973 + $0xa8] sm:$0xff]
        %v1996 = vld [vmem:[%s1973 + $0xb0] sm:$0xff]
        %v1997 = vld [vmem:[%s1973 + $0xb8] sm:$0xff]
        %v1998 = vld [vmem:[%s1973 + $0xc0] sm:$0xff]
        %v1999 = vld [vmem:[%s1973 + $0xc8] sm:$0xff]
        %v2000 = vld [vmem:[%s1973 + $0xd0] sm:$0xff]
        %v2001 = vld [vmem:[%s1973 + $0xd8] sm:$0xff]
        %v2002 = vld [vmem:[%s1973 + $0xe0] sm:$0xff]
        %v2003 = vld [vmem:[%s1973 + $0xe8] sm:$0xff]
        %v2004 = vld [vmem:[%s1973 + $0xf0] sm:$0xff]
        %v2005 = vld [vmem:[%s1973 + $0xf8] sm:$0xff]
        %v2006 = vld [vmem:[%s1973 + $0x100] sm:$0xff]
        %v2007 = vld [vmem:[%s1973 + $0x108] sm:$0xff]
        %v2008 = vld [vmem:[%s1973 + $0x110] sm:$0xff]
        %v2009 = vld [vmem:[%s1973 + $0x118] sm:$0xff]
        %v2010 = vld [vmem:[%s1973 + $0x120] sm:$0xff]
        %v2011 = vld [vmem:[%s1973 + $0x128] sm:$0xff]
        %v2012 = vld [vmem:[%s1973 + $0x130] sm:$0xff]
        %v2013 = vld [vmem:[%s1973 + $0x138] sm:$0xff]
        %v2014 = vld [vmem:[%s1973 + $0x140] sm:$0xff]
        %v2015 = vld [vmem:[%s1973 + $0x148] sm:$0xff]
        %v2016 = vld [vmem:[%s1973 + $0x150] sm:$0xff]
        %v2017 = vld [vmem:[%s1973 + $0x158] sm:$0xff]
        %v2018 = vld [vmem:[%s1973 + $0x160] sm:$0xff]
        %v2019 = vld [vmem:[%s1973 + $0x168] sm:$0xff]
        %v2020 = vld [vmem:[%s1973 + $0x170] sm:$0xff]
        %v2021 = vld [vmem:[%s1973 + $0x178] sm:$0xff]
        %v2022 = vld [vmem:[%s1973 + $0x180] sm:$0xff]
        %v2023 = vld [vmem:[%s1973 + $0x188] sm:$0xff]
        %v2024 = vld [vmem:[%s1973 + $0x190] sm:$0xff]
        %v2025 = vld [vmem:[%s1973 + $0x198] sm:$0xff]
        %v2026 = vld [vmem:[%s1973 + $0x1a0] sm:$0xff]
        %v2027 = vld [vmem:[%s1973 + $0x1a8] sm:$0xff]
        %v2028 = vld [vmem:[%s1973 + $0x1b0] sm:$0xff]
        %v2029 = vld [vmem:[%s1973 + $0x1b8] sm:$0xff]
        %v2030 = vld [vmem:[%s1973 + $0x1c0] sm:$0xff]
        %v2031 = vld [vmem:[%s1973 + $0x1c8] sm:$0xff]
        %v2032 = vld [vmem:[%s1973 + $0x1d0] sm:$0xff]
        %v2033 = vld [vmem:[%s1973 + $0x1d8] sm:$0xff]
        %v2034 = vld [vmem:[%s1973 + $0x1e0] sm:$0xff]
        %v2035 = vld [vmem:[%s1973 + $0x1e8] sm:$0xff]
        %v2036 = vld [vmem:[%s1973 + $0x1f0] sm:$0xff]
        %v2037 = vld [vmem:[%s1973 + $0x1f8] sm:$0xff]
        %v2102 = vunpack.c.l.b16 %v1974
        %v2103 = vunpack.c.h.b16 %v1974
        %v2104 = vunpack.c.l.b16 %v1975
        %v2105 = vunpack.c.h.b16 %v1975
        %v2106 = vunpack.c.l.b16 %v1976
        %v2107 = vunpack.c.h.b16 %v1976
        %v2108 = vunpack.c.l.b16 %v1977
        %v2109 = vunpack.c.h.b16 %v1977
        %v2110 = vunpack.c.l.b16 %v1978
        %v2111 = vunpack.c.h.b16 %v1978
        %v2112 = vunpack.c.l.b16 %v1979
        %v2113 = vunpack.c.h.b16 %v1979
        %v2114 = vunpack.c.l.b16 %v1980
        %v2115 = vunpack.c.h.b16 %v1980
        %v2116 = vunpack.c.l.b16 %v1981
        %v2117 = vunpack.c.h.b16 %v1981
        %v2118 = vunpack.c.l.b16 %v1982
        %v2119 = vunpack.c.h.b16 %v1982
        %v2120 = vunpack.c.l.b16 %v1983
        %v2121 = vunpack.c.h.b16 %v1983
        %v2122 = vunpack.c.l.b16 %v1984
        %v2123 = vunpack.c.h.b16 %v1984
        %v2124 = vunpack.c.l.b16 %v1985
        %v2125 = vunpack.c.h.b16 %v1985
        %v2126 = vunpack.c.l.b16 %v1986
        %v2127 = vunpack.c.h.b16 %v1986
        %v2128 = vunpack.c.l.b16 %v1987
        %v2129 = vunpack.c.h.b16 %v1987
        %v2130 = vunpack.c.l.b16 %v1988
        %v2131 = vunpack.c.h.b16 %v1988
        %v2132 = vunpack.c.l.b16 %v1989
        %v2133 = vunpack.c.h.b16 %v1989
        %v2134 = vunpack.c.l.b16 %v1990
        %v2135 = vunpack.c.h.b16 %v1990
        %v2136 = vunpack.c.l.b16 %v1991
        %v2137 = vunpack.c.h.b16 %v1991
        %v2138 = vunpack.c.l.b16 %v1992
        %v2139 = vunpack.c.h.b16 %v1992
        %v2140 = vunpack.c.l.b16 %v1993
        %v2141 = vunpack.c.h.b16 %v1993
        %v2142 = vunpack.c.l.b16 %v1994
        %v2143 = vunpack.c.h.b16 %v1994
        %v2144 = vunpack.c.l.b16 %v1995
        %v2145 = vunpack.c.h.b16 %v1995
        %v2146 = vunpack.c.l.b16 %v1996
        %v2147 = vunpack.c.h.b16 %v1996
        %v2148 = vunpack.c.l.b16 %v1997
        %v2149 = vunpack.c.h.b16 %v1997
        %v2150 = vunpack.c.l.b16 %v1998
        %v2151 = vunpack.c.h.b16 %v1998
        %v2152 = vunpack.c.l.b16 %v1999
        %v2153 = vunpack.c.h.b16 %v1999
        %v2154 = vunpack.c.l.b16 %v2000
        %v2155 = vunpack.c.h.b16 %v2000
        %v2156 = vunpack.c.l.b16 %v2001
        %v2157 = vunpack.c.h.b16 %v2001
        %v2158 = vunpack.c.l.b16 %v2002
        %v2159 = vunpack.c.h.b16 %v2002
        %v2160 = vunpack.c.l.b16 %v2003
        %v2161 = vunpack.c.h.b16 %v2003
        %v2162 = vunpack.c.l.b16 %v2004
        %v2163 = vunpack.c.h.b16 %v2004
        %v2164 = vunpack.c.l.b16 %v2005
        %v2165 = vunpack.c.h.b16 %v2005
        %v2166 = vunpack.c.l.b16 %v2006
        %v2167 = vunpack.c.h.b16 %v2006
        %v2168 = vunpack.c.l.b16 %v2007
        %v2169 = vunpack.c.h.b16 %v2007
        %v2170 = vunpack.c.l.b16 %v2008
        %v2171 = vunpack.c.h.b16 %v2008
        %v2172 = vunpack.c.l.b16 %v2009
        %v2173 = vunpack.c.h.b16 %v2009
        %v2174 = vunpack.c.l.b16 %v2010
        %v2175 = vunpack.c.h.b16 %v2010
        %v2176 = vunpack.c.l.b16 %v2011
        %v2177 = vunpack.c.h.b16 %v2011
        %v2178 = vunpack.c.l.b16 %v2012
        %v2179 = vunpack.c.h.b16 %v2012
        %v2180 = vunpack.c.l.b16 %v2013
        %v2181 = vunpack.c.h.b16 %v2013
        %v2182 = vunpack.c.l.b16 %v2014
        %v2183 = vunpack.c.h.b16 %v2014
        %v2184 = vunpack.c.l.b16 %v2015
        %v2185 = vunpack.c.h.b16 %v2015
        %v2186 = vunpack.c.l.b16 %v2016
        %v2187 = vunpack.c.h.b16 %v2016
        %v2188 = vunpack.c.l.b16 %v2017
        %v2189 = vunpack.c.h.b16 %v2017
        %v2190 = vunpack.c.l.b16 %v2018
        %v2191 = vunpack.c.h.b16 %v2018
        %v2192 = vunpack.c.l.b16 %v2019
        %v2193 = vunpack.c.h.b16 %v2019
        %v2194 = vunpack.c.l.b16 %v2020
        %v2195 = vunpack.c.h.b16 %v2020
        %v2196 = vunpack.c.l.b16 %v2021
        %v2197 = vunpack.c.h.b16 %v2021
        %v2198 = vunpack.c.l.b16 %v2022
        %v2199 = vunpack.c.h.b16 %v2022
        %v2200 = vunpack.c.l.b16 %v2023
        %v2201 = vunpack.c.h.b16 %v2023
        %v2202 = vunpack.c.l.b16 %v2024
        %v2203 = vunpack.c.h.b16 %v2024
        %v2204 = vunpack.c.l.b16 %v2025
        %v2205 = vunpack.c.h.b16 %v2025
        %v2206 = vunpack.c.l.b16 %v2026
        %v2207 = vunpack.c.h.b16 %v2026
        %v2208 = vunpack.c.l.b16 %v2027
        %v2209 = vunpack.c.h.b16 %v2027
        %v2210 = vunpack.c.l.b16 %v2028
        %v2211 = vunpack.c.h.b16 %v2028
        %v2212 = vunpack.c.l.b16 %v2029
        %v2213 = vunpack.c.h.b16 %v2029
        %v2214 = vunpack.c.l.b16 %v2030
        %v2215 = vunpack.c.h.b16 %v2030
        %v2216 = vunpack.c.l.b16 %v2031
        %v2217 = vunpack.c.h.b16 %v2031
        %v2218 = vunpack.c.l.b16 %v2032
        %v2219 = vunpack.c.h.b16 %v2032
        %v2220 = vunpack.c.l.b16 %v2033
        %v2221 = vunpack.c.h.b16 %v2033
        %v2222 = vunpack.c.l.b16 %v2034
        %v2223 = vunpack.c.h.b16 %v2034
        %v2224 = vunpack.c.l.b16 %v2035
        %v2225 = vunpack.c.h.b16 %v2035
        %v2226 = vunpack.c.l.b16 %v2036
        %v2227 = vunpack.c.h.b16 %v2036
        %v2228 = vunpack.c.l.b16 %v2037
        %v2229 = vunpack.c.h.b16 %v2037
        %v2230 = vpack.c.b16 %v2106, %v2102
        %v2231 = vpack.c.b16 %v2107, %v2103
        %v2232 = vpack.c.b16 %v2108, %v2104
        %v2233 = vpack.c.b16 %v2109, %v2105
        %v2234 = vpack.c.b16 %v2114, %v2110
        %v2235 = vpack.c.b16 %v2115, %v2111
        %v2236 = vpack.c.b16 %v2116, %v2112
        %v2237 = vpack.c.b16 %v2117, %v2113
        %v2238 = vpack.c.b16 %v2122, %v2118
        %v2239 = vpack.c.b16 %v2123, %v2119
        %v2240 = vpack.c.b16 %v2124, %v2120
        %v2241 = vpack.c.b16 %v2125, %v2121
        %v2242 = vpack.c.b16 %v2130, %v2126
        %v2243 = vpack.c.b16 %v2131, %v2127
        %v2244 = vpack.c.b16 %v2132, %v2128
        %v2245 = vpack.c.b16 %v2133, %v2129
        %v2246 = vpack.c.b16 %v2138, %v2134
        %v2247 = vpack.c.b16 %v2139, %v2135
        %v2248 = vpack.c.b16 %v2140, %v2136
        %v2249 = vpack.c.b16 %v2141, %v2137
        %v2250 = vpack.c.b16 %v2146, %v2142
        %v2251 = vpack.c.b16 %v2147, %v2143
        %v2252 = vpack.c.b16 %v2148, %v2144
        %v2253 = vpack.c.b16 %v2149, %v2145
        %v2254 = vpack.c.b16 %v2154, %v2150
        %v2255 = vpack.c.b16 %v2155, %v2151
        %v2256 = vpack.c.b16 %v2156, %v2152
        %v2257 = vpack.c.b16 %v2157, %v2153
        %v2258 = vpack.c.b16 %v2162, %v2158
        %v2259 = vpack.c.b16 %v2163, %v2159
        %v2260 = vpack.c.b16 %v2164, %v2160
        %v2261 = vpack.c.b16 %v2165, %v2161
        %v2262 = vpack.c.b16 %v2170, %v2166
        %v2263 = vpack.c.b16 %v2171, %v2167
        %v2264 = vpack.c.b16 %v2172, %v2168
        %v2265 = vpack.c.b16 %v2173, %v2169
        %v2266 = vpack.c.b16 %v2178, %v2174
        %v2267 = vpack.c.b16 %v2179, %v2175
        %v2268 = vpack.c.b16 %v2180, %v2176
        %v2269 = vpack.c.b16 %v2181, %v2177
        %v2270 = vpack.c.b16 %v2186, %v2182
        %v2271 = vpack.c.b16 %v2187, %v2183
        %v2272 = vpack.c.b16 %v2188, %v2184
        %v2273 = vpack.c.b16 %v2189, %v2185
        %v2274 = vpack.c.b16 %v2194, %v2190
        %v2275 = vpack.c.b16 %v2195, %v2191
        %v2276 = vpack.c.b16 %v2196, %v2192
        %v2277 = vpack.c.b16 %v2197, %v2193
        %v2278 = vpack.c.b16 %v2202, %v2198
        %v2279 = vpack.c.b16 %v2203, %v2199
        %v2280 = vpack.c.b16 %v2204, %v2200
        %v2281 = vpack.c.b16 %v2205, %v2201
        %v2282 = vpack.c.b16 %v2210, %v2206
        %v2283 = vpack.c.b16 %v2211, %v2207
        %v2284 = vpack.c.b16 %v2212, %v2208
        %v2285 = vpack.c.b16 %v2213, %v2209
        %v2286 = vpack.c.b16 %v2218, %v2214
        %v2287 = vpack.c.b16 %v2219, %v2215
        %v2288 = vpack.c.b16 %v2220, %v2216
        %v2289 = vpack.c.b16 %v2221, %v2217
        %v2290 = vpack.c.b16 %v2226, %v2222
        %v2291 = vpack.c.b16 %v2227, %v2223
        %v2292 = vpack.c.b16 %v2228, %v2224
        %v2293 = vpack.c.b16 %v2229, %v2225
        %2358 = vmatpush.bf16.msra.mxu0 %v2258
        %2359 = vmatpush.bf16.msra.mxu0 %v2254
        %2360 = vmatpush.bf16.msra.mxu0 %v2250
        %2361 = vmatpush.bf16.msra.mxu0 %v2246
        %2362 = vmatpush.bf16.msra.mxu0 %v2242
        %2363 = vmatpush.bf16.msra.mxu0 %v2238
        %2364 = vmatpush.bf16.msra.mxu0 %v2234
        %2365 = vmatpush.bf16.msra.mxu0 %v2230
        %2366 = vmatmul.bf16.gmra.mxu0 %v1971
        %v2367 = vpop.f32.mrf.mxu0
        %v2368 = vadd.f32 0.0, %v2367
        %v2369 = vpop.f32.mrf.mxu0
        %v2370 = vadd.f32 0.0, %v2369
        %2371 = vdwg.mxu0
        %2372 = vmatpush.bf16.msra.mxu0 %v2290
        %2373 = vmatpush.bf16.msra.mxu0 %v2286
        %2374 = vmatpush.bf16.msra.mxu0 %v2282
        %2375 = vmatpush.bf16.msra.mxu0 %v2278
        %2376 = vmatpush.bf16.msra.mxu0 %v2274
        %2377 = vmatpush.bf16.msra.mxu0 %v2270
        %2378 = vmatpush.bf16.msra.mxu0 %v2266
        %2379 = vmatpush.bf16.msra.mxu0 %v2262
        %2380 = vmatmul.bf16.gmra.mxu0 %v1972
        %v2381 = vpop.f32.mrf.mxu0
        %v2382 = vadd.f32 %v2368, %v2381
        %v2383 = vpop.f32.mrf.mxu0
        %v2384 = vadd.f32 %v2370, %v2383
        %2385 = vdwg.mxu0
        %2386 = vmatpush.bf16.msra.mxu0 %v2259
        %2387 = vmatpush.bf16.msra.mxu0 %v2255
        %2388 = vmatpush.bf16.msra.mxu0 %v2251
        %2389 = vmatpush.bf16.msra.mxu0 %v2247
        %2390 = vmatpush.bf16.msra.mxu0 %v2243
        %2391 = vmatpush.bf16.msra.mxu0 %v2239
        %2392 = vmatpush.bf16.msra.mxu0 %v2235
        %2393 = vmatpush.bf16.msra.mxu0 %v2231
        %2394 = vmatmul.bf16.gmra.mxu0 %v1971
        %v2395 = vpop.f32.mrf.mxu0
        %v2396 = vadd.f32 0.0, %v2395
        %v2397 = vpop.f32.mrf.mxu0
        %v2398 = vadd.f32 0.0, %v2397
        %2399 = vdwg.mxu0
        %2400 = vmatpush.bf16.msra.mxu0 %v2291
        %2401 = vmatpush.bf16.msra.mxu0 %v2287
        %2402 = vmatpush.bf16.msra.mxu0 %v2283
        %2403 = vmatpush.bf16.msra.mxu0 %v2279
        %2404 = vmatpush.bf16.msra.mxu0 %v2275
        %2405 = vmatpush.bf16.msra.mxu0 %v2271
        %2406 = vmatpush.bf16.msra.mxu0 %v2267
        %2407 = vmatpush.bf16.msra.mxu0 %v2263
        %2408 = vmatmul.bf16.gmra.mxu0 %v1972
        %v2409 = vpop.f32.mrf.mxu0
        %v2410 = vadd.f32 %v2396, %v2409
        %v2411 = vpop.f32.mrf.mxu0
        %v2412 = vadd.f32 %v2398, %v2411
        %2413 = vdwg.mxu0
        %2414 = vmatpush.bf16.msra.mxu0 %v2260
        %2415 = vmatpush.bf16.msra.mxu0 %v2256
        %2416 = vmatpush.bf16.msra.mxu0 %v2252
        %2417 = vmatpush.bf16.msra.mxu0 %v2248
        %2418 = vmatpush.bf16.msra.mxu0 %v2244
        %2419 = vmatpush.bf16.msra.mxu0 %v2240
        %2420 = vmatpush.bf16.msra.mxu0 %v2236
        %2421 = vmatpush.bf16.msra.mxu0 %v2232
        %2422 = vmatmul.bf16.gmra.mxu0 %v1971
        %v2423 = vpop.f32.mrf.mxu0
        %v2424 = vadd.f32 0.0, %v2423
        %v2425 = vpop.f32.mrf.mxu0
        %v2426 = vadd.f32 0.0, %v2425
        %2427 = vdwg.mxu0
        %2428 = vmatpush.bf16.msra.mxu0 %v2292
        %2429 = vmatpush.bf16.msra.mxu0 %v2288
        %2430 = vmatpush.bf16.msra.mxu0 %v2284
        %2431 = vmatpush.bf16.msra.mxu0 %v2280
        %2432 = vmatpush.bf16.msra.mxu0 %v2276
        %2433 = vmatpush.bf16.msra.mxu0 %v2272
        %2434 = vmatpush.bf16.msra.mxu0 %v2268
        %2435 = vmatpush.bf16.msra.mxu0 %v2264
        %2436 = vmatmul.bf16.gmra.mxu0 %v1972
        %v2437 = vpop.f32.mrf.mxu0
        %v2438 = vadd.f32 %v2424, %v2437
        %v2439 = vpop.f32.mrf.mxu0
        %v2440 = vadd.f32 %v2426, %v2439
        %2441 = vdwg.mxu0
        %2442 = vmatpush.bf16.msra.mxu0 %v2261
        %2443 = vmatpush.bf16.msra.mxu0 %v2257
        %2444 = vmatpush.bf16.msra.mxu0 %v2253
        %2445 = vmatpush.bf16.msra.mxu0 %v2249
        %2446 = vmatpush.bf16.msra.mxu0 %v2245
        %2447 = vmatpush.bf16.msra.mxu0 %v2241
        %2448 = vmatpush.bf16.msra.mxu0 %v2237
        %2449 = vmatpush.bf16.msra.mxu0 %v2233
        %2450 = vmatmul.bf16.gmra.mxu0 %v1971
        %v2451 = vpop.f32.mrf.mxu0
        %v2452 = vadd.f32 0.0, %v2451
        %v2453 = vpop.f32.mrf.mxu0
        %v2454 = vadd.f32 0.0, %v2453
        %2455 = vdwg.mxu0
        %2456 = vmatpush.bf16.msra.mxu0 %v2293
        %2457 = vmatpush.bf16.msra.mxu0 %v2289
        %2458 = vmatpush.bf16.msra.mxu0 %v2285
        %2459 = vmatpush.bf16.msra.mxu0 %v2281
        %2460 = vmatpush.bf16.msra.mxu0 %v2277
        %2461 = vmatpush.bf16.msra.mxu0 %v2273
        %2462 = vmatpush.bf16.msra.mxu0 %v2269
        %2463 = vmatpush.bf16.msra.mxu0 %v2265
        %2464 = vmatmul.bf16.gmra.mxu0 %v1972
        %v2465 = vpop.f32.mrf.mxu0
        %v2466 = vadd.f32 %v2452, %v2465
        %v2467 = vpop.f32.mrf.mxu0
        %v2468 = vadd.f32 %v2454, %v2467
        %2469 = vdwg.mxu0
        %v2534 = vunpack.c.l.b16 %v1613
        %v2535 = vunpack.c.h.b16 %v1613
        %v2536 = vunpack.c.l.b16 %v1614
        %v2537 = vunpack.c.h.b16 %v1614
        %v2538 = vunpack.c.l.b16 %v1615
        %v2539 = vunpack.c.h.b16 %v1615
        %v2540 = vunpack.c.l.b16 %v1616
        %v2541 = vunpack.c.h.b16 %v1616
        %v2542 = vunpack.c.l.b16 %v1617
        %v2543 = vunpack.c.h.b16 %v1617
        %v2544 = vunpack.c.l.b16 %v1618
        %v2545 = vunpack.c.h.b16 %v1618
        %v2546 = vunpack.c.l.b16 %v1619
        %v2547 = vunpack.c.h.b16 %v1619
        %v2548 = vunpack.c.l.b16 %v1620
        %v2549 = vunpack.c.h.b16 %v1620
        %v2550 = vunpack.c.l.b16 %v1621
        %v2551 = vunpack.c.h.b16 %v1621
        %v2552 = vunpack.c.l.b16 %v1622
        %v2553 = vunpack.c.h.b16 %v1622
        %v2554 = vunpack.c.l.b16 %v1623
        %v2555 = vunpack.c.h.b16 %v1623
        %v2556 = vunpack.c.l.b16 %v1624
        %v2557 = vunpack.c.h.b16 %v1624
        %v2558 = vunpack.c.l.b16 %v1625
        %v2559 = vunpack.c.h.b16 %v1625
        %v2560 = vunpack.c.l.b16 %v1626
        %v2561 = vunpack.c.h.b16 %v1626
        %v2562 = vunpack.c.l.b16 %v1627
        %v2563 = vunpack.c.h.b16 %v1627
        %v2564 = vunpack.c.l.b16 %v1628
        %v2565 = vunpack.c.h.b16 %v1628
        %v2566 = vunpack.c.l.b16 %v1629
        %v2567 = vunpack.c.h.b16 %v1629
        %v2568 = vunpack.c.l.b16 %v1630
        %v2569 = vunpack.c.h.b16 %v1630
        %v2570 = vunpack.c.l.b16 %v1631
        %v2571 = vunpack.c.h.b16 %v1631
        %v2572 = vunpack.c.l.b16 %v1632
        %v2573 = vunpack.c.h.b16 %v1632
        %v2574 = vunpack.c.l.b16 %v1633
        %v2575 = vunpack.c.h.b16 %v1633
        %v2576 = vunpack.c.l.b16 %v1634
        %v2577 = vunpack.c.h.b16 %v1634
        %v2578 = vunpack.c.l.b16 %v1635
        %v2579 = vunpack.c.h.b16 %v1635
        %v2580 = vunpack.c.l.b16 %v1636
        %v2581 = vunpack.c.h.b16 %v1636
        %v2582 = vunpack.c.l.b16 %v1637
        %v2583 = vunpack.c.h.b16 %v1637
        %v2584 = vunpack.c.l.b16 %v1638
        %v2585 = vunpack.c.h.b16 %v1638
        %v2586 = vunpack.c.l.b16 %v1639
        %v2587 = vunpack.c.h.b16 %v1639
        %v2588 = vunpack.c.l.b16 %v1640
        %v2589 = vunpack.c.h.b16 %v1640
        %v2590 = vunpack.c.l.b16 %v1641
        %v2591 = vunpack.c.h.b16 %v1641
        %v2592 = vunpack.c.l.b16 %v1642
        %v2593 = vunpack.c.h.b16 %v1642
        %v2594 = vunpack.c.l.b16 %v1643
        %v2595 = vunpack.c.h.b16 %v1643
        %v2596 = vunpack.c.l.b16 %v1644
        %v2597 = vunpack.c.h.b16 %v1644
        %v2598 = vunpack.c.l.b16 %v1645
        %v2599 = vunpack.c.h.b16 %v1645
        %v2600 = vunpack.c.l.b16 %v1646
        %v2601 = vunpack.c.h.b16 %v1646
        %v2602 = vunpack.c.l.b16 %v1647
        %v2603 = vunpack.c.h.b16 %v1647
        %v2604 = vunpack.c.l.b16 %v1648
        %v2605 = vunpack.c.h.b16 %v1648
        %v2606 = vunpack.c.l.b16 %v1649
        %v2607 = vunpack.c.h.b16 %v1649
        %v2608 = vunpack.c.l.b16 %v1650
        %v2609 = vunpack.c.h.b16 %v1650
        %v2610 = vunpack.c.l.b16 %v1651
        %v2611 = vunpack.c.h.b16 %v1651
        %v2612 = vunpack.c.l.b16 %v1652
        %v2613 = vunpack.c.h.b16 %v1652
        %v2614 = vunpack.c.l.b16 %v1653
        %v2615 = vunpack.c.h.b16 %v1653
        %v2616 = vunpack.c.l.b16 %v1654
        %v2617 = vunpack.c.h.b16 %v1654
        %v2618 = vunpack.c.l.b16 %v1655
        %v2619 = vunpack.c.h.b16 %v1655
        %v2620 = vunpack.c.l.b16 %v1656
        %v2621 = vunpack.c.h.b16 %v1656
        %v2622 = vunpack.c.l.b16 %v1657
        %v2623 = vunpack.c.h.b16 %v1657
        %v2624 = vunpack.c.l.b16 %v1658
        %v2625 = vunpack.c.h.b16 %v1658
        %v2626 = vunpack.c.l.b16 %v1659
        %v2627 = vunpack.c.h.b16 %v1659
        %v2628 = vunpack.c.l.b16 %v1660
        %v2629 = vunpack.c.h.b16 %v1660
        %v2630 = vunpack.c.l.b16 %v1661
        %v2631 = vunpack.c.h.b16 %v1661
        %v2632 = vunpack.c.l.b16 %v1662
        %v2633 = vunpack.c.h.b16 %v1662
        %v2634 = vunpack.c.l.b16 %v1663
        %v2635 = vunpack.c.h.b16 %v1663
        %v2636 = vunpack.c.l.b16 %v1664
        %v2637 = vunpack.c.h.b16 %v1664
        %v2638 = vunpack.c.l.b16 %v1665
        %v2639 = vunpack.c.h.b16 %v1665
        %v2640 = vunpack.c.l.b16 %v1666
        %v2641 = vunpack.c.h.b16 %v1666
        %v2642 = vunpack.c.l.b16 %v1667
        %v2643 = vunpack.c.h.b16 %v1667
        %v2644 = vunpack.c.l.b16 %v1668
        %v2645 = vunpack.c.h.b16 %v1668
        %v2646 = vunpack.c.l.b16 %v1669
        %v2647 = vunpack.c.h.b16 %v1669
        %v2648 = vunpack.c.l.b16 %v1670
        %v2649 = vunpack.c.h.b16 %v1670
        %v2650 = vunpack.c.l.b16 %v1671
        %v2651 = vunpack.c.h.b16 %v1671
        %v2652 = vunpack.c.l.b16 %v1672
        %v2653 = vunpack.c.h.b16 %v1672
        %v2654 = vunpack.c.l.b16 %v1673
        %v2655 = vunpack.c.h.b16 %v1673
        %v2656 = vunpack.c.l.b16 %v1674
        %v2657 = vunpack.c.h.b16 %v1674
        %v2658 = vunpack.c.l.b16 %v1675
        %v2659 = vunpack.c.h.b16 %v1675
        %v2660 = vunpack.c.l.b16 %v1676
        %v2661 = vunpack.c.h.b16 %v1676
        %v2662 = vpack.c.b16 %v2538, %v2534
        %v2663 = vpack.c.b16 %v2539, %v2535
        %v2664 = vpack.c.b16 %v2540, %v2536
        %v2665 = vpack.c.b16 %v2541, %v2537
        %v2666 = vpack.c.b16 %v2546, %v2542
        %v2667 = vpack.c.b16 %v2547, %v2543
        %v2668 = vpack.c.b16 %v2548, %v2544
        %v2669 = vpack.c.b16 %v2549, %v2545
        %v2670 = vpack.c.b16 %v2554, %v2550
        %v2671 = vpack.c.b16 %v2555, %v2551
        %v2672 = vpack.c.b16 %v2556, %v2552
        %v2673 = vpack.c.b16 %v2557, %v2553
        %v2674 = vpack.c.b16 %v2562, %v2558
        %v2675 = vpack.c.b16 %v2563, %v2559
        %v2676 = vpack.c.b16 %v2564, %v2560
        %v2677 = vpack.c.b16 %v2565, %v2561
        %v2678 = vpack.c.b16 %v2570, %v2566
        %v2679 = vpack.c.b16 %v2571, %v2567
        %v2680 = vpack.c.b16 %v2572, %v2568
        %v2681 = vpack.c.b16 %v2573, %v2569
        %v2682 = vpack.c.b16 %v2578, %v2574
        %v2683 = vpack.c.b16 %v2579, %v2575
        %v2684 = vpack.c.b16 %v2580, %v2576
        %v2685 = vpack.c.b16 %v2581, %v2577
        %v2686 = vpack.c.b16 %v2586, %v2582
        %v2687 = vpack.c.b16 %v2587, %v2583
        %v2688 = vpack.c.b16 %v2588, %v2584
        %v2689 = vpack.c.b16 %v2589, %v2585
        %v2690 = vpack.c.b16 %v2594, %v2590
        %v2691 = vpack.c.b16 %v2595, %v2591
        %v2692 = vpack.c.b16 %v2596, %v2592
        %v2693 = vpack.c.b16 %v2597, %v2593
        %v2694 = vpack.c.b16 %v2602, %v2598
        %v2695 = vpack.c.b16 %v2603, %v2599
        %v2696 = vpack.c.b16 %v2604, %v2600
        %v2697 = vpack.c.b16 %v2605, %v2601
        %v2698 = vpack.c.b16 %v2610, %v2606
        %v2699 = vpack.c.b16 %v2611, %v2607
        %v2700 = vpack.c.b16 %v2612, %v2608
        %v2701 = vpack.c.b16 %v2613, %v2609
        %v2702 = vpack.c.b16 %v2618, %v2614
        %v2703 = vpack.c.b16 %v2619, %v2615
        %v2704 = vpack.c.b16 %v2620, %v2616
        %v2705 = vpack.c.b16 %v2621, %v2617
        %v2706 = vpack.c.b16 %v2626, %v2622
        %v2707 = vpack.c.b16 %v2627, %v2623
        %v2708 = vpack.c.b16 %v2628, %v2624
        %v2709 = vpack.c.b16 %v2629, %v2625
        %v2710 = vpack.c.b16 %v2634, %v2630
        %v2711 = vpack.c.b16 %v2635, %v2631
        %v2712 = vpack.c.b16 %v2636, %v2632
        %v2713 = vpack.c.b16 %v2637, %v2633
        %v2714 = vpack.c.b16 %v2642, %v2638
        %v2715 = vpack.c.b16 %v2643, %v2639
        %v2716 = vpack.c.b16 %v2644, %v2640
        %v2717 = vpack.c.b16 %v2645, %v2641
        %v2718 = vpack.c.b16 %v2650, %v2646
        %v2719 = vpack.c.b16 %v2651, %v2647
        %v2720 = vpack.c.b16 %v2652, %v2648
        %v2721 = vpack.c.b16 %v2653, %v2649
        %v2722 = vpack.c.b16 %v2658, %v2654
        %v2723 = vpack.c.b16 %v2659, %v2655
        %v2724 = vpack.c.b16 %v2660, %v2656
        %v2725 = vpack.c.b16 %v2661, %v2657
        %2790 = vmatpush.bf16.msra.mxu0 %v2690
        %2791 = vmatpush.bf16.msra.mxu0 %v2686
        %2792 = vmatpush.bf16.msra.mxu0 %v2682
        %2793 = vmatpush.bf16.msra.mxu0 %v2678
        %2794 = vmatpush.bf16.msra.mxu0 %v2674
        %2795 = vmatpush.bf16.msra.mxu0 %v2670
        %2796 = vmatpush.bf16.msra.mxu0 %v2666
        %2797 = vmatpush.bf16.msra.mxu0 %v2662
        %2798 = vmatmul.bf16.gmra.mxu0 %v1611
        %v2799 = vpop.f32.mrf.mxu0
        %v2800 = vadd.f32 %v2382, %v2799
        %v2801 = vpop.f32.mrf.mxu0
        %v2802 = vadd.f32 %v2384, %v2801
        %2803 = vdwg.mxu0
        %2804 = vmatpush.bf16.msra.mxu0 %v2722
        %2805 = vmatpush.bf16.msra.mxu0 %v2718
        %2806 = vmatpush.bf16.msra.mxu0 %v2714
        %2807 = vmatpush.bf16.msra.mxu0 %v2710
        %2808 = vmatpush.bf16.msra.mxu0 %v2706
        %2809 = vmatpush.bf16.msra.mxu0 %v2702
        %2810 = vmatpush.bf16.msra.mxu0 %v2698
        %2811 = vmatpush.bf16.msra.mxu0 %v2694
        %2812 = vmatmul.bf16.gmra.mxu0 %v1612
        %v2813 = vpop.f32.mrf.mxu0
        %v2814 = vadd.f32 %v2800, %v2813
        %v2815 = vpop.f32.mrf.mxu0
        %v2816 = vadd.f32 %v2802, %v2815
        %2817 = vdwg.mxu0
        %2818 = vmatpush.bf16.msra.mxu0 %v2691
        %2819 = vmatpush.bf16.msra.mxu0 %v2687
        %2820 = vmatpush.bf16.msra.mxu0 %v2683
        %2821 = vmatpush.bf16.msra.mxu0 %v2679
        %2822 = vmatpush.bf16.msra.mxu0 %v2675
        %2823 = vmatpush.bf16.msra.mxu0 %v2671
        %2824 = vmatpush.bf16.msra.mxu0 %v2667
        %2825 = vmatpush.bf16.msra.mxu0 %v2663
        %2826 = vmatmul.bf16.gmra.mxu0 %v1611
        %v2827 = vpop.f32.mrf.mxu0
        %v2828 = vadd.f32 %v2410, %v2827
        %v2829 = vpop.f32.mrf.mxu0
        %v2830 = vadd.f32 %v2412, %v2829
        %2831 = vdwg.mxu0
        %2832 = vmatpush.bf16.msra.mxu0 %v2723
        %2833 = vmatpush.bf16.msra.mxu0 %v2719
        %2834 = vmatpush.bf16.msra.mxu0 %v2715
        %2835 = vmatpush.bf16.msra.mxu0 %v2711
        %2836 = vmatpush.bf16.msra.mxu0 %v2707
        %2837 = vmatpush.bf16.msra.mxu0 %v2703
        %2838 = vmatpush.bf16.msra.mxu0 %v2699
        %2839 = vmatpush.bf16.msra.mxu0 %v2695
        %2840 = vmatmul.bf16.gmra.mxu0 %v1612
        %v2841 = vpop.f32.mrf.mxu0
        %v2842 = vadd.f32 %v2828, %v2841
        %v2843 = vpop.f32.mrf.mxu0
        %v2844 = vadd.f32 %v2830, %v2843
        %2845 = vdwg.mxu0
        %2846 = vmatpush.bf16.msra.mxu0 %v2692
        %2847 = vmatpush.bf16.msra.mxu0 %v2688
        %2848 = vmatpush.bf16.msra.mxu0 %v2684
        %2849 = vmatpush.bf16.msra.mxu0 %v2680
        %2850 = vmatpush.bf16.msra.mxu0 %v2676
        %2851 = vmatpush.bf16.msra.mxu0 %v2672
        %2852 = vmatpush.bf16.msra.mxu0 %v2668
        %2853 = vmatpush.bf16.msra.mxu0 %v2664
        %2854 = vmatmul.bf16.gmra.mxu0 %v1611
        %v2855 = vpop.f32.mrf.mxu0
        %v2856 = vadd.f32 %v2438, %v2855
        %v2857 = vpop.f32.mrf.mxu0
        %v2858 = vadd.f32 %v2440, %v2857
        %2859 = vdwg.mxu0
        %2860 = vmatpush.bf16.msra.mxu0 %v2724
        %2861 = vmatpush.bf16.msra.mxu0 %v2720
        %2862 = vmatpush.bf16.msra.mxu0 %v2716
        %2863 = vmatpush.bf16.msra.mxu0 %v2712
        %2864 = vmatpush.bf16.msra.mxu0 %v2708
        %2865 = vmatpush.bf16.msra.mxu0 %v2704
        %2866 = vmatpush.bf16.msra.mxu0 %v2700
        %2867 = vmatpush.bf16.msra.mxu0 %v2696
        %2868 = vmatmul.bf16.gmra.mxu0 %v1612
        %v2869 = vpop.f32.mrf.mxu0
        %v2870 = vadd.f32 %v2856, %v2869
        %v2871 = vpop.f32.mrf.mxu0
        %v2872 = vadd.f32 %v2858, %v2871
        %2873 = vdwg.mxu0
        %2874 = vmatpush.bf16.msra.mxu0 %v2693
        %2875 = vmatpush.bf16.msra.mxu0 %v2689
        %2876 = vmatpush.bf16.msra.mxu0 %v2685
        %2877 = vmatpush.bf16.msra.mxu0 %v2681
        %2878 = vmatpush.bf16.msra.mxu0 %v2677
        %2879 = vmatpush.bf16.msra.mxu0 %v2673
        %2880 = vmatpush.bf16.msra.mxu0 %v2669
        %2881 = vmatpush.bf16.msra.mxu0 %v2665
        %2882 = vmatmul.bf16.gmra.mxu0 %v1611
        %v2883 = vpop.f32.mrf.mxu0
        %v2884 = vadd.f32 %v2466, %v2883
        %v2885 = vpop.f32.mrf.mxu0
        %v2886 = vadd.f32 %v2468, %v2885
        %2887 = vdwg.mxu0
        %2888 = vmatpush.bf16.msra.mxu0 %v2725
        %2889 = vmatpush.bf16.msra.mxu0 %v2721
        %2890 = vmatpush.bf16.msra.mxu0 %v2717
        %2891 = vmatpush.bf16.msra.mxu0 %v2713
        %2892 = vmatpush.bf16.msra.mxu0 %v2709
        %2893 = vmatpush.bf16.msra.mxu0 %v2705
        %2894 = vmatpush.bf16.msra.mxu0 %v2701
        %2895 = vmatpush.bf16.msra.mxu0 %v2697
        %2896 = vmatmul.bf16.gmra.mxu0 %v1612
        %v2897 = vpop.f32.mrf.mxu0
        %v2898 = vadd.f32 %v2884, %v2897
        %v2899 = vpop.f32.mrf.mxu0
        %v2900 = vadd.f32 %v2886, %v2899
        %2901 = vdwg.mxu0
        %s2902 = scalar_lea.vmem %s496, 128 [#allocation2]
        %v2903 = vld [vmem:[%s2902] sm:$0xff]
        %v2904 = vld [vmem:[%s2902 + $0x8] sm:$0xff]
        %v2905 = vld [vmem:[%s2902 + $0x10] sm:$0xff]
        %v2906 = vld [vmem:[%s2902 + $0x18] sm:$0xff]
        %v2907 = vld [vmem:[%s2902 + $0x20] sm:$0xff]
        %v2908 = vld [vmem:[%s2902 + $0x28] sm:$0xff]
        %v2909 = vld [vmem:[%s2902 + $0x30] sm:$0xff]
        %v2910 = vld [vmem:[%s2902 + $0x38] sm:$0xff]
        %v2919 = vunpack.c.l.b16 %v2903
        %v2920 = vunpack.c.h.b16 %v2903
        %v2921 = vunpack.c.l.b16 %v2904
        %v2922 = vunpack.c.h.b16 %v2904
        %v2923 = vunpack.c.l.b16 %v2905
        %v2924 = vunpack.c.h.b16 %v2905
        %v2925 = vunpack.c.l.b16 %v2906
        %v2926 = vunpack.c.h.b16 %v2906
        %v2927 = vunpack.c.l.b16 %v2907
        %v2928 = vunpack.c.h.b16 %v2907
        %v2929 = vunpack.c.l.b16 %v2908
        %v2930 = vunpack.c.h.b16 %v2908
        %v2931 = vunpack.c.l.b16 %v2909
        %v2932 = vunpack.c.h.b16 %v2909
        %v2933 = vunpack.c.l.b16 %v2910
        %v2934 = vunpack.c.h.b16 %v2910
        %v2935 = vpack.c.b16 %v2927, %v2919
        %v2936 = vpack.c.b16 %v2928, %v2920
        %v2937 = vpack.c.b16 %v2929, %v2921
        %v2938 = vpack.c.b16 %v2930, %v2922
        %v2939 = vpack.c.b16 %v2931, %v2923
        %v2940 = vpack.c.b16 %v2932, %v2924
        %v2941 = vpack.c.b16 %v2933, %v2925
        %v2942 = vpack.c.b16 %v2934, %v2926
        %2951 = vmatpush.bf16.msra.mxu0 %v1125
        %2952 = vmatpush.bf16.msra.mxu0 %v1123
        %2953 = vmatpush.bf16.msra.mxu0 %v1121
        %2954 = vmatpush.bf16.msra.mxu0 %v1119
        %2955 = vmatpush.bf16.msra.mxu0 %v1117
        %2956 = vmatpush.bf16.msra.mxu0 %v1115
        %2957 = vmatpush.bf16.msra.mxu0 %v1113
        %2958 = vmatpush.bf16.msra.mxu0 %v1111
        %2959 = vmatmul.bf16.gmra.mxu0 %v2935
        %v2960 = vpop.f32.mrf.mxu0
        %v2961 = vadd.f32 %v683, %v2960
        %v2962 = vpop.f32.mrf.mxu0
        %v2963 = vadd.f32 %v683, %v2962
        %2964 = vdwg.mxu0
        %2965 = vmatpush.bf16.msra.mxu0 %v1141
        %2966 = vmatpush.bf16.msra.mxu0 %v1139
        %2967 = vmatpush.bf16.msra.mxu0 %v1137
        %2968 = vmatpush.bf16.msra.mxu0 %v1135
        %2969 = vmatpush.bf16.msra.mxu0 %v1133
        %2970 = vmatpush.bf16.msra.mxu0 %v1131
        %2971 = vmatpush.bf16.msra.mxu0 %v1129
        %2972 = vmatpush.bf16.msra.mxu0 %v1127
        %2973 = vmatmul.bf16.gmra.mxu0 %v2936
        %v2974 = vpop.f32.mrf.mxu0
        %v2975 = vadd.f32 %v2961, %v2974
        %v2976 = vpop.f32.mrf.mxu0
        %v2977 = vadd.f32 %v2963, %v2976
        %2978 = vdwg.mxu0
        %2979 = vmatpush.bf16.msra.mxu0 %v1157
        %2980 = vmatpush.bf16.msra.mxu0 %v1155
        %2981 = vmatpush.bf16.msra.mxu0 %v1153
        %2982 = vmatpush.bf16.msra.mxu0 %v1151
        %2983 = vmatpush.bf16.msra.mxu0 %v1149
        %2984 = vmatpush.bf16.msra.mxu0 %v1147
        %2985 = vmatpush.bf16.msra.mxu0 %v1145
        %2986 = vmatpush.bf16.msra.mxu0 %v1143
        %2987 = vmatmul.bf16.gmra.mxu0 %v2937
        %v2988 = vpop.f32.mrf.mxu0
        %v2989 = vadd.f32 %v2975, %v2988
        %v2990 = vpop.f32.mrf.mxu0
        %v2991 = vadd.f32 %v2977, %v2990
        %2992 = vdwg.mxu0
        %2993 = vmatpush.bf16.msra.mxu0 %v1173
        %2994 = vmatpush.bf16.msra.mxu0 %v1171
        %2995 = vmatpush.bf16.msra.mxu0 %v1169
        %2996 = vmatpush.bf16.msra.mxu0 %v1167
        %2997 = vmatpush.bf16.msra.mxu0 %v1165
        %2998 = vmatpush.bf16.msra.mxu0 %v1163
        %2999 = vmatpush.bf16.msra.mxu0 %v1161
        %3000 = vmatpush.bf16.msra.mxu0 %v1159
        %3001 = vmatmul.bf16.gmra.mxu0 %v2938
        %v3002 = vpop.f32.mrf.mxu0
        %v3003 = vadd.f32 %v2989, %v3002
        %v3004 = vpop.f32.mrf.mxu0
        %v3005 = vadd.f32 %v2991, %v3004
        %3006 = vdwg.mxu0
        %3007 = vmatpush.bf16.msra.mxu0 %v1189
        %3008 = vmatpush.bf16.msra.mxu0 %v1187
        %3009 = vmatpush.bf16.msra.mxu0 %v1185
        %3010 = vmatpush.bf16.msra.mxu0 %v1183
        %3011 = vmatpush.bf16.msra.mxu0 %v1181
        %3012 = vmatpush.bf16.msra.mxu0 %v1179
        %3013 = vmatpush.bf16.msra.mxu0 %v1177
        %3014 = vmatpush.bf16.msra.mxu0 %v1175
        %3015 = vmatmul.bf16.gmra.mxu0 %v2939
        %v3016 = vpop.f32.mrf.mxu0
        %v3017 = vadd.f32 %v3003, %v3016
        %v3018 = vpop.f32.mrf.mxu0
        %v3019 = vadd.f32 %v3005, %v3018
        %3020 = vdwg.mxu0
        %3021 = vmatpush.bf16.msra.mxu0 %v1205
        %3022 = vmatpush.bf16.msra.mxu0 %v1203
        %3023 = vmatpush.bf16.msra.mxu0 %v1201
        %3024 = vmatpush.bf16.msra.mxu0 %v1199
        %3025 = vmatpush.bf16.msra.mxu0 %v1197
        %3026 = vmatpush.bf16.msra.mxu0 %v1195
        %3027 = vmatpush.bf16.msra.mxu0 %v1193
        %3028 = vmatpush.bf16.msra.mxu0 %v1191
        %3029 = vmatmul.bf16.gmra.mxu0 %v2940
        %v3030 = vpop.f32.mrf.mxu0
        %v3031 = vadd.f32 %v3017, %v3030
        %v3032 = vpop.f32.mrf.mxu0
        %v3033 = vadd.f32 %v3019, %v3032
        %3034 = vdwg.mxu0
        %3035 = vmatpush.bf16.msra.mxu0 %v1221
        %3036 = vmatpush.bf16.msra.mxu0 %v1219
        %3037 = vmatpush.bf16.msra.mxu0 %v1217
        %3038 = vmatpush.bf16.msra.mxu0 %v1215
        %3039 = vmatpush.bf16.msra.mxu0 %v1213
        %3040 = vmatpush.bf16.msra.mxu0 %v1211
        %3041 = vmatpush.bf16.msra.mxu0 %v1209
        %3042 = vmatpush.bf16.msra.mxu0 %v1207
        %3043 = vmatmul.bf16.gmra.mxu0 %v2941
        %v3044 = vpop.f32.mrf.mxu0
        %v3045 = vadd.f32 %v3031, %v3044
        %v3046 = vpop.f32.mrf.mxu0
        %v3047 = vadd.f32 %v3033, %v3046
        %3048 = vdwg.mxu0
        %3049 = vmatpush.bf16.msra.mxu0 %v1237
        %3050 = vmatpush.bf16.msra.mxu0 %v1235
        %3051 = vmatpush.bf16.msra.mxu0 %v1233
        %3052 = vmatpush.bf16.msra.mxu0 %v1231
        %3053 = vmatpush.bf16.msra.mxu0 %v1229
        %3054 = vmatpush.bf16.msra.mxu0 %v1227
        %3055 = vmatpush.bf16.msra.mxu0 %v1225
        %3056 = vmatpush.bf16.msra.mxu0 %v1223
        %3057 = vmatmul.bf16.gmra.mxu0 %v2942
        %v3058 = vpop.f32.mrf.mxu0
        %v3059 = vadd.f32 %v3045, %v3058
        %v3060 = vpop.f32.mrf.mxu0
        %v3061 = vadd.f32 %v3047, %v3060
        %3062 = vdwg.mxu0
        %3063 = vmatpush.bf16.msra.mxu0 %v1126
        %3064 = vmatpush.bf16.msra.mxu0 %v1124
        %3065 = vmatpush.bf16.msra.mxu0 %v1122
        %3066 = vmatpush.bf16.msra.mxu0 %v1120
        %3067 = vmatpush.bf16.msra.mxu0 %v1118
        %3068 = vmatpush.bf16.msra.mxu0 %v1116
        %3069 = vmatpush.bf16.msra.mxu0 %v1114
        %3070 = vmatpush.bf16.msra.mxu0 %v1112
        %3071 = vmatmul.bf16.gmra.mxu0 %v2935
        %v3072 = vpop.f32.mrf.mxu0
        %v3073 = vadd.f32 %v684, %v3072
        %v3074 = vpop.f32.mrf.mxu0
        %v3075 = vadd.f32 %v684, %v3074
        %3076 = vdwg.mxu0
        %3077 = vmatpush.bf16.msra.mxu0 %v1142
        %3078 = vmatpush.bf16.msra.mxu0 %v1140
        %3079 = vmatpush.bf16.msra.mxu0 %v1138
        %3080 = vmatpush.bf16.msra.mxu0 %v1136
        %3081 = vmatpush.bf16.msra.mxu0 %v1134
        %3082 = vmatpush.bf16.msra.mxu0 %v1132
        %3083 = vmatpush.bf16.msra.mxu0 %v1130
        %3084 = vmatpush.bf16.msra.mxu0 %v1128
        %3085 = vmatmul.bf16.gmra.mxu0 %v2936
        %v3086 = vpop.f32.mrf.mxu0
        %v3087 = vadd.f32 %v3073, %v3086
        %v3088 = vpop.f32.mrf.mxu0
        %v3089 = vadd.f32 %v3075, %v3088
        %3090 = vdwg.mxu0
        %3091 = vmatpush.bf16.msra.mxu0 %v1158
        %3092 = vmatpush.bf16.msra.mxu0 %v1156
        %3093 = vmatpush.bf16.msra.mxu0 %v1154
        %3094 = vmatpush.bf16.msra.mxu0 %v1152
        %3095 = vmatpush.bf16.msra.mxu0 %v1150
        %3096 = vmatpush.bf16.msra.mxu0 %v1148
        %3097 = vmatpush.bf16.msra.mxu0 %v1146
        %3098 = vmatpush.bf16.msra.mxu0 %v1144
        %3099 = vmatmul.bf16.gmra.mxu0 %v2937
        %v3100 = vpop.f32.mrf.mxu0
        %v3101 = vadd.f32 %v3087, %v3100
        %v3102 = vpop.f32.mrf.mxu0
        %v3103 = vadd.f32 %v3089, %v3102
        %3104 = vdwg.mxu0
        %3105 = vmatpush.bf16.msra.mxu0 %v1174
        %3106 = vmatpush.bf16.msra.mxu0 %v1172
        %3107 = vmatpush.bf16.msra.mxu0 %v1170
        %3108 = vmatpush.bf16.msra.mxu0 %v1168
        %3109 = vmatpush.bf16.msra.mxu0 %v1166
        %3110 = vmatpush.bf16.msra.mxu0 %v1164
        %3111 = vmatpush.bf16.msra.mxu0 %v1162
        %3112 = vmatpush.bf16.msra.mxu0 %v1160
        %3113 = vmatmul.bf16.gmra.mxu0 %v2938
        %v3114 = vpop.f32.mrf.mxu0
        %v3115 = vadd.f32 %v3101, %v3114
        %v3116 = vpop.f32.mrf.mxu0
        %v3117 = vadd.f32 %v3103, %v3116
        %3118 = vdwg.mxu0
        %3119 = vmatpush.bf16.msra.mxu0 %v1190
        %3120 = vmatpush.bf16.msra.mxu0 %v1188
        %3121 = vmatpush.bf16.msra.mxu0 %v1186
        %3122 = vmatpush.bf16.msra.mxu0 %v1184
        %3123 = vmatpush.bf16.msra.mxu0 %v1182
        %3124 = vmatpush.bf16.msra.mxu0 %v1180
        %3125 = vmatpush.bf16.msra.mxu0 %v1178
        %3126 = vmatpush.bf16.msra.mxu0 %v1176
        %3127 = vmatmul.bf16.gmra.mxu0 %v2939
        %v3128 = vpop.f32.mrf.mxu0
        %v3129 = vadd.f32 %v3115, %v3128
        %v3130 = vpop.f32.mrf.mxu0
        %v3131 = vadd.f32 %v3117, %v3130
        %3132 = vdwg.mxu0
        %3133 = vmatpush.bf16.msra.mxu0 %v1206
        %3134 = vmatpush.bf16.msra.mxu0 %v1204
        %3135 = vmatpush.bf16.msra.mxu0 %v1202
        %3136 = vmatpush.bf16.msra.mxu0 %v1200
        %3137 = vmatpush.bf16.msra.mxu0 %v1198
        %3138 = vmatpush.bf16.msra.mxu0 %v1196
        %3139 = vmatpush.bf16.msra.mxu0 %v1194
        %3140 = vmatpush.bf16.msra.mxu0 %v1192
        %3141 = vmatmul.bf16.gmra.mxu0 %v2940
        %v3142 = vpop.f32.mrf.mxu0
        %v3143 = vadd.f32 %v3129, %v3142
        %v3144 = vpop.f32.mrf.mxu0
        %v3145 = vadd.f32 %v3131, %v3144
        %3146 = vdwg.mxu0
        %3147 = vmatpush.bf16.msra.mxu0 %v1222
        %3148 = vmatpush.bf16.msra.mxu0 %v1220
        %3149 = vmatpush.bf16.msra.mxu0 %v1218
        %3150 = vmatpush.bf16.msra.mxu0 %v1216
        %3151 = vmatpush.bf16.msra.mxu0 %v1214
        %3152 = vmatpush.bf16.msra.mxu0 %v1212
        %3153 = vmatpush.bf16.msra.mxu0 %v1210
        %3154 = vmatpush.bf16.msra.mxu0 %v1208
        %3155 = vmatmul.bf16.gmra.mxu0 %v2941
        %v3156 = vpop.f32.mrf.mxu0
        %v3157 = vadd.f32 %v3143, %v3156
        %v3158 = vpop.f32.mrf.mxu0
        %v3159 = vadd.f32 %v3145, %v3158
        %3160 = vdwg.mxu0
        %3161 = vmatpush.bf16.msra.mxu0 %v1238
        %3162 = vmatpush.bf16.msra.mxu0 %v1236
        %3163 = vmatpush.bf16.msra.mxu0 %v1234
        %3164 = vmatpush.bf16.msra.mxu0 %v1232
        %3165 = vmatpush.bf16.msra.mxu0 %v1230
        %3166 = vmatpush.bf16.msra.mxu0 %v1228
        %3167 = vmatpush.bf16.msra.mxu0 %v1226
        %3168 = vmatpush.bf16.msra.mxu0 %v1224
        %3169 = vmatmul.bf16.gmra.mxu0 %v2942
        %v3170 = vpop.f32.mrf.mxu0
        %v3171 = vadd.f32 %v3157, %v3170
        %v3172 = vpop.f32.mrf.mxu0
        %v3173 = vadd.f32 %v3159, %v3172
        %3174 = vdwg.mxu0
        %v3175 = vmax.f32 %v3059, 0.0
        %v3176 = vmax.f32 %v3171, 0.0
        %v3177 = vmax.f32 %v3061, 0.0
        %v3178 = vmax.f32 %v3173, 0.0
        %s3179 = scalar_lea.vmem %s503, 32 [#allocation3]
        %v3180 = vld [vmem:[%s3179] sm:$0xff]
        %v3181 = vld [vmem:[%s3179 + $0x8] sm:$0xff]
        %3183 = vset.pattern.permute.xlu0 0
        %3184 = vperm.xlu0 %3183, %v3180
        %v3185 = vpop.permute.xlu0 %3184
        %3188 = vset.pattern.permute.xlu0 0
        %3189 = vperm.xlu0 %3188, %v3181
        %v3190 = vpop.permute.xlu0 %3189
        %v3192 = vmul.f32 %v3175, %v3185
        %v3193 = vmul.f32 %v3176, %v3185
        %v3194 = vmul.f32 %v3177, %v3190
        %v3195 = vmul.f32 %v3178, %v3190
        %v3196 = vpack.c.bf16 %v3194, %v3192
        %v3197 = vpack.c.bf16 %v3195, %v3193
        %s3198 = scalar_lea.vmem %s4, 1024
        %v3199 = vld [vmem:[%s3198] sm:$0xff]
        %v3200 = vld [vmem:[%s3198 + $0x8] sm:$0xff]
        %v3201 = vld [vmem:[%s3198 + $0x10] sm:$0xff]
        %v3202 = vld [vmem:[%s3198 + $0x18] sm:$0xff]
        %v3203 = vld [vmem:[%s3198 + $0x20] sm:$0xff]
        %v3204 = vld [vmem:[%s3198 + $0x28] sm:$0xff]
        %v3205 = vld [vmem:[%s3198 + $0x30] sm:$0xff]
        %v3206 = vld [vmem:[%s3198 + $0x38] sm:$0xff]
        %v3207 = vld [vmem:[%s3198 + $0x40] sm:$0xff]
        %v3208 = vld [vmem:[%s3198 + $0x48] sm:$0xff]
        %v3209 = vld [vmem:[%s3198 + $0x50] sm:$0xff]
        %v3210 = vld [vmem:[%s3198 + $0x58] sm:$0xff]
        %v3211 = vld [vmem:[%s3198 + $0x60] sm:$0xff]
        %v3212 = vld [vmem:[%s3198 + $0x68] sm:$0xff]
        %v3213 = vld [vmem:[%s3198 + $0x70] sm:$0xff]
        %v3214 = vld [vmem:[%s3198 + $0x78] sm:$0xff]
        %v3215 = vld [vmem:[%s3198 + $0x80] sm:$0xff]
        %v3216 = vld [vmem:[%s3198 + $0x88] sm:$0xff]
        %v3217 = vld [vmem:[%s3198 + $0x90] sm:$0xff]
        %v3218 = vld [vmem:[%s3198 + $0x98] sm:$0xff]
        %v3219 = vld [vmem:[%s3198 + $0xa0] sm:$0xff]
        %v3220 = vld [vmem:[%s3198 + $0xa8] sm:$0xff]
        %v3221 = vld [vmem:[%s3198 + $0xb0] sm:$0xff]
        %v3222 = vld [vmem:[%s3198 + $0xb8] sm:$0xff]
        %v3223 = vld [vmem:[%s3198 + $0xc0] sm:$0xff]
        %v3224 = vld [vmem:[%s3198 + $0xc8] sm:$0xff]
        %v3225 = vld [vmem:[%s3198 + $0xd0] sm:$0xff]
        %v3226 = vld [vmem:[%s3198 + $0xd8] sm:$0xff]
        %v3227 = vld [vmem:[%s3198 + $0xe0] sm:$0xff]
        %v3228 = vld [vmem:[%s3198 + $0xe8] sm:$0xff]
        %v3229 = vld [vmem:[%s3198 + $0xf0] sm:$0xff]
        %v3230 = vld [vmem:[%s3198 + $0xf8] sm:$0xff]
        %v3231 = vld [vmem:[%s3198 + $0x100] sm:$0xff]
        %v3232 = vld [vmem:[%s3198 + $0x108] sm:$0xff]
        %v3233 = vld [vmem:[%s3198 + $0x110] sm:$0xff]
        %v3234 = vld [vmem:[%s3198 + $0x118] sm:$0xff]
        %v3235 = vld [vmem:[%s3198 + $0x120] sm:$0xff]
        %v3236 = vld [vmem:[%s3198 + $0x128] sm:$0xff]
        %v3237 = vld [vmem:[%s3198 + $0x130] sm:$0xff]
        %v3238 = vld [vmem:[%s3198 + $0x138] sm:$0xff]
        %v3239 = vld [vmem:[%s3198 + $0x140] sm:$0xff]
        %v3240 = vld [vmem:[%s3198 + $0x148] sm:$0xff]
        %v3241 = vld [vmem:[%s3198 + $0x150] sm:$0xff]
        %v3242 = vld [vmem:[%s3198 + $0x158] sm:$0xff]
        %v3243 = vld [vmem:[%s3198 + $0x160] sm:$0xff]
        %v3244 = vld [vmem:[%s3198 + $0x168] sm:$0xff]
        %v3245 = vld [vmem:[%s3198 + $0x170] sm:$0xff]
        %v3246 = vld [vmem:[%s3198 + $0x178] sm:$0xff]
        %v3247 = vld [vmem:[%s3198 + $0x180] sm:$0xff]
        %v3248 = vld [vmem:[%s3198 + $0x188] sm:$0xff]
        %v3249 = vld [vmem:[%s3198 + $0x190] sm:$0xff]
        %v3250 = vld [vmem:[%s3198 + $0x198] sm:$0xff]
        %v3251 = vld [vmem:[%s3198 + $0x1a0] sm:$0xff]
        %v3252 = vld [vmem:[%s3198 + $0x1a8] sm:$0xff]
        %v3253 = vld [vmem:[%s3198 + $0x1b0] sm:$0xff]
        %v3254 = vld [vmem:[%s3198 + $0x1b8] sm:$0xff]
        %v3255 = vld [vmem:[%s3198 + $0x1c0] sm:$0xff]
        %v3256 = vld [vmem:[%s3198 + $0x1c8] sm:$0xff]
        %v3257 = vld [vmem:[%s3198 + $0x1d0] sm:$0xff]
        %v3258 = vld [vmem:[%s3198 + $0x1d8] sm:$0xff]
        %v3259 = vld [vmem:[%s3198 + $0x1e0] sm:$0xff]
        %v3260 = vld [vmem:[%s3198 + $0x1e8] sm:$0xff]
        %v3261 = vld [vmem:[%s3198 + $0x1f0] sm:$0xff]
        %v3262 = vld [vmem:[%s3198 + $0x1f8] sm:$0xff]
        %v3327 = vunpack.c.l.b16 %v3199
        %v3328 = vunpack.c.h.b16 %v3199
        %v3329 = vunpack.c.l.b16 %v3200
        %v3330 = vunpack.c.h.b16 %v3200
        %v3331 = vunpack.c.l.b16 %v3201
        %v3332 = vunpack.c.h.b16 %v3201
        %v3333 = vunpack.c.l.b16 %v3202
        %v3334 = vunpack.c.h.b16 %v3202
        %v3335 = vunpack.c.l.b16 %v3203
        %v3336 = vunpack.c.h.b16 %v3203
        %v3337 = vunpack.c.l.b16 %v3204
        %v3338 = vunpack.c.h.b16 %v3204
        %v3339 = vunpack.c.l.b16 %v3205
        %v3340 = vunpack.c.h.b16 %v3205
        %v3341 = vunpack.c.l.b16 %v3206
        %v3342 = vunpack.c.h.b16 %v3206
        %v3343 = vunpack.c.l.b16 %v3207
        %v3344 = vunpack.c.h.b16 %v3207
        %v3345 = vunpack.c.l.b16 %v3208
        %v3346 = vunpack.c.h.b16 %v3208
        %v3347 = vunpack.c.l.b16 %v3209
        %v3348 = vunpack.c.h.b16 %v3209
        %v3349 = vunpack.c.l.b16 %v3210
        %v3350 = vunpack.c.h.b16 %v3210
        %v3351 = vunpack.c.l.b16 %v3211
        %v3352 = vunpack.c.h.b16 %v3211
        %v3353 = vunpack.c.l.b16 %v3212
        %v3354 = vunpack.c.h.b16 %v3212
        %v3355 = vunpack.c.l.b16 %v3213
        %v3356 = vunpack.c.h.b16 %v3213
        %v3357 = vunpack.c.l.b16 %v3214
        %v3358 = vunpack.c.h.b16 %v3214
        %v3359 = vunpack.c.l.b16 %v3215
        %v3360 = vunpack.c.h.b16 %v3215
        %v3361 = vunpack.c.l.b16 %v3216
        %v3362 = vunpack.c.h.b16 %v3216
        %v3363 = vunpack.c.l.b16 %v3217
        %v3364 = vunpack.c.h.b16 %v3217
        %v3365 = vunpack.c.l.b16 %v3218
        %v3366 = vunpack.c.h.b16 %v3218
        %v3367 = vunpack.c.l.b16 %v3219
        %v3368 = vunpack.c.h.b16 %v3219
        %v3369 = vunpack.c.l.b16 %v3220
        %v3370 = vunpack.c.h.b16 %v3220
        %v3371 = vunpack.c.l.b16 %v3221
        %v3372 = vunpack.c.h.b16 %v3221
        %v3373 = vunpack.c.l.b16 %v3222
        %v3374 = vunpack.c.h.b16 %v3222
        %v3375 = vunpack.c.l.b16 %v3223
        %v3376 = vunpack.c.h.b16 %v3223
        %v3377 = vunpack.c.l.b16 %v3224
        %v3378 = vunpack.c.h.b16 %v3224
        %v3379 = vunpack.c.l.b16 %v3225
        %v3380 = vunpack.c.h.b16 %v3225
        %v3381 = vunpack.c.l.b16 %v3226
        %v3382 = vunpack.c.h.b16 %v3226
        %v3383 = vunpack.c.l.b16 %v3227
        %v3384 = vunpack.c.h.b16 %v3227
        %v3385 = vunpack.c.l.b16 %v3228
        %v3386 = vunpack.c.h.b16 %v3228
        %v3387 = vunpack.c.l.b16 %v3229
        %v3388 = vunpack.c.h.b16 %v3229
        %v3389 = vunpack.c.l.b16 %v3230
        %v3390 = vunpack.c.h.b16 %v3230
        %v3391 = vunpack.c.l.b16 %v3231
        %v3392 = vunpack.c.h.b16 %v3231
        %v3393 = vunpack.c.l.b16 %v3232
        %v3394 = vunpack.c.h.b16 %v3232
        %v3395 = vunpack.c.l.b16 %v3233
        %v3396 = vunpack.c.h.b16 %v3233
        %v3397 = vunpack.c.l.b16 %v3234
        %v3398 = vunpack.c.h.b16 %v3234
        %v3399 = vunpack.c.l.b16 %v3235
        %v3400 = vunpack.c.h.b16 %v3235
        %v3401 = vunpack.c.l.b16 %v3236
        %v3402 = vunpack.c.h.b16 %v3236
        %v3403 = vunpack.c.l.b16 %v3237
        %v3404 = vunpack.c.h.b16 %v3237
        %v3405 = vunpack.c.l.b16 %v3238
        %v3406 = vunpack.c.h.b16 %v3238
        %v3407 = vunpack.c.l.b16 %v3239
        %v3408 = vunpack.c.h.b16 %v3239
        %v3409 = vunpack.c.l.b16 %v3240
        %v3410 = vunpack.c.h.b16 %v3240
        %v3411 = vunpack.c.l.b16 %v3241
        %v3412 = vunpack.c.h.b16 %v3241
        %v3413 = vunpack.c.l.b16 %v3242
        %v3414 = vunpack.c.h.b16 %v3242
        %v3415 = vunpack.c.l.b16 %v3243
        %v3416 = vunpack.c.h.b16 %v3243
        %v3417 = vunpack.c.l.b16 %v3244
        %v3418 = vunpack.c.h.b16 %v3244
        %v3419 = vunpack.c.l.b16 %v3245
        %v3420 = vunpack.c.h.b16 %v3245
        %v3421 = vunpack.c.l.b16 %v3246
        %v3422 = vunpack.c.h.b16 %v3246
        %v3423 = vunpack.c.l.b16 %v3247
        %v3424 = vunpack.c.h.b16 %v3247
        %v3425 = vunpack.c.l.b16 %v3248
        %v3426 = vunpack.c.h.b16 %v3248
        %v3427 = vunpack.c.l.b16 %v3249
        %v3428 = vunpack.c.h.b16 %v3249
        %v3429 = vunpack.c.l.b16 %v3250
        %v3430 = vunpack.c.h.b16 %v3250
        %v3431 = vunpack.c.l.b16 %v3251
        %v3432 = vunpack.c.h.b16 %v3251
        %v3433 = vunpack.c.l.b16 %v3252
        %v3434 = vunpack.c.h.b16 %v3252
        %v3435 = vunpack.c.l.b16 %v3253
        %v3436 = vunpack.c.h.b16 %v3253
        %v3437 = vunpack.c.l.b16 %v3254
        %v3438 = vunpack.c.h.b16 %v3254
        %v3439 = vunpack.c.l.b16 %v3255
        %v3440 = vunpack.c.h.b16 %v3255
        %v3441 = vunpack.c.l.b16 %v3256
        %v3442 = vunpack.c.h.b16 %v3256
        %v3443 = vunpack.c.l.b16 %v3257
        %v3444 = vunpack.c.h.b16 %v3257
        %v3445 = vunpack.c.l.b16 %v3258
        %v3446 = vunpack.c.h.b16 %v3258
        %v3447 = vunpack.c.l.b16 %v3259
        %v3448 = vunpack.c.h.b16 %v3259
        %v3449 = vunpack.c.l.b16 %v3260
        %v3450 = vunpack.c.h.b16 %v3260
        %v3451 = vunpack.c.l.b16 %v3261
        %v3452 = vunpack.c.h.b16 %v3261
        %v3453 = vunpack.c.l.b16 %v3262
        %v3454 = vunpack.c.h.b16 %v3262
        %v3455 = vpack.c.b16 %v3331, %v3327
        %v3456 = vpack.c.b16 %v3332, %v3328
        %v3457 = vpack.c.b16 %v3333, %v3329
        %v3458 = vpack.c.b16 %v3334, %v3330
        %v3459 = vpack.c.b16 %v3339, %v3335
        %v3460 = vpack.c.b16 %v3340, %v3336
        %v3461 = vpack.c.b16 %v3341, %v3337
        %v3462 = vpack.c.b16 %v3342, %v3338
        %v3463 = vpack.c.b16 %v3347, %v3343
        %v3464 = vpack.c.b16 %v3348, %v3344
        %v3465 = vpack.c.b16 %v3349, %v3345
        %v3466 = vpack.c.b16 %v3350, %v3346
        %v3467 = vpack.c.b16 %v3355, %v3351
        %v3468 = vpack.c.b16 %v3356, %v3352
        %v3469 = vpack.c.b16 %v3357, %v3353
        %v3470 = vpack.c.b16 %v3358, %v3354
        %v3471 = vpack.c.b16 %v3363, %v3359
        %v3472 = vpack.c.b16 %v3364, %v3360
        %v3473 = vpack.c.b16 %v3365, %v3361
        %v3474 = vpack.c.b16 %v3366, %v3362
        %v3475 = vpack.c.b16 %v3371, %v3367
        %v3476 = vpack.c.b16 %v3372, %v3368
        %v3477 = vpack.c.b16 %v3373, %v3369
        %v3478 = vpack.c.b16 %v3374, %v3370
        %v3479 = vpack.c.b16 %v3379, %v3375
        %v3480 = vpack.c.b16 %v3380, %v3376
        %v3481 = vpack.c.b16 %v3381, %v3377
        %v3482 = vpack.c.b16 %v3382, %v3378
        %v3483 = vpack.c.b16 %v3387, %v3383
        %v3484 = vpack.c.b16 %v3388, %v3384
        %v3485 = vpack.c.b16 %v3389, %v3385
        %v3486 = vpack.c.b16 %v3390, %v3386
        %v3487 = vpack.c.b16 %v3395, %v3391
        %v3488 = vpack.c.b16 %v3396, %v3392
        %v3489 = vpack.c.b16 %v3397, %v3393
        %v3490 = vpack.c.b16 %v3398, %v3394
        %v3491 = vpack.c.b16 %v3403, %v3399
        %v3492 = vpack.c.b16 %v3404, %v3400
        %v3493 = vpack.c.b16 %v3405, %v3401
        %v3494 = vpack.c.b16 %v3406, %v3402
        %v3495 = vpack.c.b16 %v3411, %v3407
        %v3496 = vpack.c.b16 %v3412, %v3408
        %v3497 = vpack.c.b16 %v3413, %v3409
        %v3498 = vpack.c.b16 %v3414, %v3410
        %v3499 = vpack.c.b16 %v3419, %v3415
        %v3500 = vpack.c.b16 %v3420, %v3416
        %v3501 = vpack.c.b16 %v3421, %v3417
        %v3502 = vpack.c.b16 %v3422, %v3418
        %v3503 = vpack.c.b16 %v3427, %v3423
        %v3504 = vpack.c.b16 %v3428, %v3424
        %v3505 = vpack.c.b16 %v3429, %v3425
        %v3506 = vpack.c.b16 %v3430, %v3426
        %v3507 = vpack.c.b16 %v3435, %v3431
        %v3508 = vpack.c.b16 %v3436, %v3432
        %v3509 = vpack.c.b16 %v3437, %v3433
        %v3510 = vpack.c.b16 %v3438, %v3434
        %v3511 = vpack.c.b16 %v3443, %v3439
        %v3512 = vpack.c.b16 %v3444, %v3440
        %v3513 = vpack.c.b16 %v3445, %v3441
        %v3514 = vpack.c.b16 %v3446, %v3442
        %v3515 = vpack.c.b16 %v3451, %v3447
        %v3516 = vpack.c.b16 %v3452, %v3448
        %v3517 = vpack.c.b16 %v3453, %v3449
        %v3518 = vpack.c.b16 %v3454, %v3450
        %3583 = vmatpush.bf16.msra.mxu0 %v3483
        %3584 = vmatpush.bf16.msra.mxu0 %v3479
        %3585 = vmatpush.bf16.msra.mxu0 %v3475
        %3586 = vmatpush.bf16.msra.mxu0 %v3471
        %3587 = vmatpush.bf16.msra.mxu0 %v3467
        %3588 = vmatpush.bf16.msra.mxu0 %v3463
        %3589 = vmatpush.bf16.msra.mxu0 %v3459
        %3590 = vmatpush.bf16.msra.mxu0 %v3455
        %3591 = vmatmul.bf16.gmra.mxu0 %v3196
        %v3592 = vpop.f32.mrf.mxu0
        %v3593 = vadd.f32 0.0, %v3592
        %v3594 = vpop.f32.mrf.mxu0
        %v3595 = vadd.f32 0.0, %v3594
        %3596 = vdwg.mxu0
        %3597 = vmatpush.bf16.msra.mxu0 %v3515
        %3598 = vmatpush.bf16.msra.mxu0 %v3511
        %3599 = vmatpush.bf16.msra.mxu0 %v3507
        %3600 = vmatpush.bf16.msra.mxu0 %v3503
        %3601 = vmatpush.bf16.msra.mxu0 %v3499
        %3602 = vmatpush.bf16.msra.mxu0 %v3495
        %3603 = vmatpush.bf16.msra.mxu0 %v3491
        %3604 = vmatpush.bf16.msra.mxu0 %v3487
        %3605 = vmatmul.bf16.gmra.mxu0 %v3197
        %v3606 = vpop.f32.mrf.mxu0
        %v3607 = vadd.f32 %v3593, %v3606
        %v3608 = vpop.f32.mrf.mxu0
        %v3609 = vadd.f32 %v3595, %v3608
        %3610 = vdwg.mxu0
        %3611 = vmatpush.bf16.msra.mxu0 %v3484
        %3612 = vmatpush.bf16.msra.mxu0 %v3480
        %3613 = vmatpush.bf16.msra.mxu0 %v3476
        %3614 = vmatpush.bf16.msra.mxu0 %v3472
        %3615 = vmatpush.bf16.msra.mxu0 %v3468
        %3616 = vmatpush.bf16.msra.mxu0 %v3464
        %3617 = vmatpush.bf16.msra.mxu0 %v3460
        %3618 = vmatpush.bf16.msra.mxu0 %v3456
        %3619 = vmatmul.bf16.gmra.mxu0 %v3196
        %v3620 = vpop.f32.mrf.mxu0
        %v3621 = vadd.f32 0.0, %v3620
        %v3622 = vpop.f32.mrf.mxu0
        %v3623 = vadd.f32 0.0, %v3622
        %3624 = vdwg.mxu0
        %3625 = vmatpush.bf16.msra.mxu0 %v3516
        %3626 = vmatpush.bf16.msra.mxu0 %v3512
        %3627 = vmatpush.bf16.msra.mxu0 %v3508
        %3628 = vmatpush.bf16.msra.mxu0 %v3504
        %3629 = vmatpush.bf16.msra.mxu0 %v3500
        %3630 = vmatpush.bf16.msra.mxu0 %v3496
        %3631 = vmatpush.bf16.msra.mxu0 %v3492
        %3632 = vmatpush.bf16.msra.mxu0 %v3488
        %3633 = vmatmul.bf16.gmra.mxu0 %v3197
        %v3634 = vpop.f32.mrf.mxu0
        %v3635 = vadd.f32 %v3621, %v3634
        %v3636 = vpop.f32.mrf.mxu0
        %v3637 = vadd.f32 %v3623, %v3636
        %3638 = vdwg.mxu0
        %3639 = vmatpush.bf16.msra.mxu0 %v3485
        %3640 = vmatpush.bf16.msra.mxu0 %v3481
        %3641 = vmatpush.bf16.msra.mxu0 %v3477
        %3642 = vmatpush.bf16.msra.mxu0 %v3473
        %3643 = vmatpush.bf16.msra.mxu0 %v3469
        %3644 = vmatpush.bf16.msra.mxu0 %v3465
        %3645 = vmatpush.bf16.msra.mxu0 %v3461
        %3646 = vmatpush.bf16.msra.mxu0 %v3457
        %3647 = vmatmul.bf16.gmra.mxu0 %v3196
        %v3648 = vpop.f32.mrf.mxu0
        %v3649 = vadd.f32 0.0, %v3648
        %v3650 = vpop.f32.mrf.mxu0
        %v3651 = vadd.f32 0.0, %v3650
        %3652 = vdwg.mxu0
        %3653 = vmatpush.bf16.msra.mxu0 %v3517
        %3654 = vmatpush.bf16.msra.mxu0 %v3513
        %3655 = vmatpush.bf16.msra.mxu0 %v3509
        %3656 = vmatpush.bf16.msra.mxu0 %v3505
        %3657 = vmatpush.bf16.msra.mxu0 %v3501
        %3658 = vmatpush.bf16.msra.mxu0 %v3497
        %3659 = vmatpush.bf16.msra.mxu0 %v3493
        %3660 = vmatpush.bf16.msra.mxu0 %v3489
        %3661 = vmatmul.bf16.gmra.mxu0 %v3197
        %v3662 = vpop.f32.mrf.mxu0
        %v3663 = vadd.f32 %v3649, %v3662
        %v3664 = vpop.f32.mrf.mxu0
        %v3665 = vadd.f32 %v3651, %v3664
        %3666 = vdwg.mxu0
        %3667 = vmatpush.bf16.msra.mxu0 %v3486
        %3668 = vmatpush.bf16.msra.mxu0 %v3482
        %3669 = vmatpush.bf16.msra.mxu0 %v3478
        %3670 = vmatpush.bf16.msra.mxu0 %v3474
        %3671 = vmatpush.bf16.msra.mxu0 %v3470
        %3672 = vmatpush.bf16.msra.mxu0 %v3466
        %3673 = vmatpush.bf16.msra.mxu0 %v3462
        %3674 = vmatpush.bf16.msra.mxu0 %v3458
        %3675 = vmatmul.bf16.gmra.mxu0 %v3196
        %v3676 = vpop.f32.mrf.mxu0
        %v3677 = vadd.f32 0.0, %v3676
        %v3678 = vpop.f32.mrf.mxu0
        %v3679 = vadd.f32 0.0, %v3678
        %3680 = vdwg.mxu0
        %3681 = vmatpush.bf16.msra.mxu0 %v3518
        %3682 = vmatpush.bf16.msra.mxu0 %v3514
        %3683 = vmatpush.bf16.msra.mxu0 %v3510
        %3684 = vmatpush.bf16.msra.mxu0 %v3506
        %3685 = vmatpush.bf16.msra.mxu0 %v3502
        %3686 = vmatpush.bf16.msra.mxu0 %v3498
        %3687 = vmatpush.bf16.msra.mxu0 %v3494
        %3688 = vmatpush.bf16.msra.mxu0 %v3490
        %3689 = vmatmul.bf16.gmra.mxu0 %v3197
        %v3690 = vpop.f32.mrf.mxu0
        %v3691 = vadd.f32 %v3677, %v3690
        %v3692 = vpop.f32.mrf.mxu0
        %v3693 = vadd.f32 %v3679, %v3692
        %3694 = vdwg.mxu0
        %v3695 = vadd.f32 %v2814, %v3607
        %v3696 = vadd.f32 %v2842, %v3635
        %v3697 = vadd.f32 %v2870, %v3663
        %v3698 = vadd.f32 %v2898, %v3691
        %v3699 = vadd.f32 %v2816, %v3609
        %v3700 = vadd.f32 %v2844, %v3637
        %v3701 = vadd.f32 %v2872, %v3665
        %v3702 = vadd.f32 %v2900, %v3693
        %s3703 = scalar_lea.vmem %s496, 192 [#allocation2]
        %v3704 = vld [vmem:[%s3703] sm:$0xff]
        %v3705 = vld [vmem:[%s3703 + $0x8] sm:$0xff]
        %v3706 = vld [vmem:[%s3703 + $0x10] sm:$0xff]
        %v3707 = vld [vmem:[%s3703 + $0x18] sm:$0xff]
        %v3708 = vld [vmem:[%s3703 + $0x20] sm:$0xff]
        %v3709 = vld [vmem:[%s3703 + $0x28] sm:$0xff]
        %v3710 = vld [vmem:[%s3703 + $0x30] sm:$0xff]
        %v3711 = vld [vmem:[%s3703 + $0x38] sm:$0xff]
        %v3720 = vunpack.c.l.b16 %v3704
        %v3721 = vunpack.c.h.b16 %v3704
        %v3722 = vunpack.c.l.b16 %v3705
        %v3723 = vunpack.c.h.b16 %v3705
        %v3724 = vunpack.c.l.b16 %v3706
        %v3725 = vunpack.c.h.b16 %v3706
        %v3726 = vunpack.c.l.b16 %v3707
        %v3727 = vunpack.c.h.b16 %v3707
        %v3728 = vunpack.c.l.b16 %v3708
        %v3729 = vunpack.c.h.b16 %v3708
        %v3730 = vunpack.c.l.b16 %v3709
        %v3731 = vunpack.c.h.b16 %v3709
        %v3732 = vunpack.c.l.b16 %v3710
        %v3733 = vunpack.c.h.b16 %v3710
        %v3734 = vunpack.c.l.b16 %v3711
        %v3735 = vunpack.c.h.b16 %v3711
        %v3736 = vpack.c.b16 %v3728, %v3720
        %v3737 = vpack.c.b16 %v3729, %v3721
        %v3738 = vpack.c.b16 %v3730, %v3722
        %v3739 = vpack.c.b16 %v3731, %v3723
        %v3740 = vpack.c.b16 %v3732, %v3724
        %v3741 = vpack.c.b16 %v3733, %v3725
        %v3742 = vpack.c.b16 %v3734, %v3726
        %v3743 = vpack.c.b16 %v3735, %v3727
        %3752 = vmatpush.bf16.msra.mxu0 %v1125
        %3753 = vmatpush.bf16.msra.mxu0 %v1123
        %3754 = vmatpush.bf16.msra.mxu0 %v1121
        %3755 = vmatpush.bf16.msra.mxu0 %v1119
        %3756 = vmatpush.bf16.msra.mxu0 %v1117
        %3757 = vmatpush.bf16.msra.mxu0 %v1115
        %3758 = vmatpush.bf16.msra.mxu0 %v1113
        %3759 = vmatpush.bf16.msra.mxu0 %v1111
        %3760 = vmatmul.bf16.gmra.mxu0 %v3736
        %v3761 = vpop.f32.mrf.mxu0
        %v3762 = vadd.f32 %v683, %v3761
        %v3763 = vpop.f32.mrf.mxu0
        %v3764 = vadd.f32 %v683, %v3763
        %3765 = vdwg.mxu0
        %3766 = vmatpush.bf16.msra.mxu0 %v1141
        %3767 = vmatpush.bf16.msra.mxu0 %v1139
        %3768 = vmatpush.bf16.msra.mxu0 %v1137
        %3769 = vmatpush.bf16.msra.mxu0 %v1135
        %3770 = vmatpush.bf16.msra.mxu0 %v1133
        %3771 = vmatpush.bf16.msra.mxu0 %v1131
        %3772 = vmatpush.bf16.msra.mxu0 %v1129
        %3773 = vmatpush.bf16.msra.mxu0 %v1127
        %3774 = vmatmul.bf16.gmra.mxu0 %v3737
        %v3775 = vpop.f32.mrf.mxu0
        %v3776 = vadd.f32 %v3762, %v3775
        %v3777 = vpop.f32.mrf.mxu0
        %v3778 = vadd.f32 %v3764, %v3777
        %3779 = vdwg.mxu0
        %3780 = vmatpush.bf16.msra.mxu0 %v1157
        %3781 = vmatpush.bf16.msra.mxu0 %v1155
        %3782 = vmatpush.bf16.msra.mxu0 %v1153
        %3783 = vmatpush.bf16.msra.mxu0 %v1151
        %3784 = vmatpush.bf16.msra.mxu0 %v1149
        %3785 = vmatpush.bf16.msra.mxu0 %v1147
        %3786 = vmatpush.bf16.msra.mxu0 %v1145
        %3787 = vmatpush.bf16.msra.mxu0 %v1143
        %3788 = vmatmul.bf16.gmra.mxu0 %v3738
        %v3789 = vpop.f32.mrf.mxu0
        %v3790 = vadd.f32 %v3776, %v3789
        %v3791 = vpop.f32.mrf.mxu0
        %v3792 = vadd.f32 %v3778, %v3791
        %3793 = vdwg.mxu0
        %3794 = vmatpush.bf16.msra.mxu0 %v1173
        %3795 = vmatpush.bf16.msra.mxu0 %v1171
        %3796 = vmatpush.bf16.msra.mxu0 %v1169
        %3797 = vmatpush.bf16.msra.mxu0 %v1167
        %3798 = vmatpush.bf16.msra.mxu0 %v1165
        %3799 = vmatpush.bf16.msra.mxu0 %v1163
        %3800 = vmatpush.bf16.msra.mxu0 %v1161
        %3801 = vmatpush.bf16.msra.mxu0 %v1159
        %3802 = vmatmul.bf16.gmra.mxu0 %v3739
        %v3803 = vpop.f32.mrf.mxu0
        %v3804 = vadd.f32 %v3790, %v3803
        %v3805 = vpop.f32.mrf.mxu0
        %v3806 = vadd.f32 %v3792, %v3805
        %3807 = vdwg.mxu0
        %3808 = vmatpush.bf16.msra.mxu0 %v1189
        %3809 = vmatpush.bf16.msra.mxu0 %v1187
        %3810 = vmatpush.bf16.msra.mxu0 %v1185
        %3811 = vmatpush.bf16.msra.mxu0 %v1183
        %3812 = vmatpush.bf16.msra.mxu0 %v1181
        %3813 = vmatpush.bf16.msra.mxu0 %v1179
        %3814 = vmatpush.bf16.msra.mxu0 %v1177
        %3815 = vmatpush.bf16.msra.mxu0 %v1175
        %3816 = vmatmul.bf16.gmra.mxu0 %v3740
        %v3817 = vpop.f32.mrf.mxu0
        %v3818 = vadd.f32 %v3804, %v3817
        %v3819 = vpop.f32.mrf.mxu0
        %v3820 = vadd.f32 %v3806, %v3819
        %3821 = vdwg.mxu0
        %3822 = vmatpush.bf16.msra.mxu0 %v1205
        %3823 = vmatpush.bf16.msra.mxu0 %v1203
        %3824 = vmatpush.bf16.msra.mxu0 %v1201
        %3825 = vmatpush.bf16.msra.mxu0 %v1199
        %3826 = vmatpush.bf16.msra.mxu0 %v1197
        %3827 = vmatpush.bf16.msra.mxu0 %v1195
        %3828 = vmatpush.bf16.msra.mxu0 %v1193
        %3829 = vmatpush.bf16.msra.mxu0 %v1191
        %3830 = vmatmul.bf16.gmra.mxu0 %v3741
        %v3831 = vpop.f32.mrf.mxu0
        %v3832 = vadd.f32 %v3818, %v3831
        %v3833 = vpop.f32.mrf.mxu0
        %v3834 = vadd.f32 %v3820, %v3833
        %3835 = vdwg.mxu0
        %3836 = vmatpush.bf16.msra.mxu0 %v1221
        %3837 = vmatpush.bf16.msra.mxu0 %v1219
        %3838 = vmatpush.bf16.msra.mxu0 %v1217
        %3839 = vmatpush.bf16.msra.mxu0 %v1215
        %3840 = vmatpush.bf16.msra.mxu0 %v1213
        %3841 = vmatpush.bf16.msra.mxu0 %v1211
        %3842 = vmatpush.bf16.msra.mxu0 %v1209
        %3843 = vmatpush.bf16.msra.mxu0 %v1207
        %3844 = vmatmul.bf16.gmra.mxu0 %v3742
        %v3845 = vpop.f32.mrf.mxu0
        %v3846 = vadd.f32 %v3832, %v3845
        %v3847 = vpop.f32.mrf.mxu0
        %v3848 = vadd.f32 %v3834, %v3847
        %3849 = vdwg.mxu0
        %3850 = vmatpush.bf16.msra.mxu0 %v1237
        %3851 = vmatpush.bf16.msra.mxu0 %v1235
        %3852 = vmatpush.bf16.msra.mxu0 %v1233
        %3853 = vmatpush.bf16.msra.mxu0 %v1231
        %3854 = vmatpush.bf16.msra.mxu0 %v1229
        %3855 = vmatpush.bf16.msra.mxu0 %v1227
        %3856 = vmatpush.bf16.msra.mxu0 %v1225
        %3857 = vmatpush.bf16.msra.mxu0 %v1223
        %3858 = vmatmul.bf16.gmra.mxu0 %v3743
        %v3859 = vpop.f32.mrf.mxu0
        %v3860 = vadd.f32 %v3846, %v3859
        %v3861 = vpop.f32.mrf.mxu0
        %v3862 = vadd.f32 %v3848, %v3861
        %3863 = vdwg.mxu0
        %3864 = vmatpush.bf16.msra.mxu0 %v1126
        %3865 = vmatpush.bf16.msra.mxu0 %v1124
        %3866 = vmatpush.bf16.msra.mxu0 %v1122
        %3867 = vmatpush.bf16.msra.mxu0 %v1120
        %3868 = vmatpush.bf16.msra.mxu0 %v1118
        %3869 = vmatpush.bf16.msra.mxu0 %v1116
        %3870 = vmatpush.bf16.msra.mxu0 %v1114
        %3871 = vmatpush.bf16.msra.mxu0 %v1112
        %3872 = vmatmul.bf16.gmra.mxu0 %v3736
        %v3873 = vpop.f32.mrf.mxu0
        %v3874 = vadd.f32 %v684, %v3873
        %v3875 = vpop.f32.mrf.mxu0
        %v3876 = vadd.f32 %v684, %v3875
        %3877 = vdwg.mxu0
        %3878 = vmatpush.bf16.msra.mxu0 %v1142
        %3879 = vmatpush.bf16.msra.mxu0 %v1140
        %3880 = vmatpush.bf16.msra.mxu0 %v1138
        %3881 = vmatpush.bf16.msra.mxu0 %v1136
        %3882 = vmatpush.bf16.msra.mxu0 %v1134
        %3883 = vmatpush.bf16.msra.mxu0 %v1132
        %3884 = vmatpush.bf16.msra.mxu0 %v1130
        %3885 = vmatpush.bf16.msra.mxu0 %v1128
        %3886 = vmatmul.bf16.gmra.mxu0 %v3737
        %v3887 = vpop.f32.mrf.mxu0
        %v3888 = vadd.f32 %v3874, %v3887
        %v3889 = vpop.f32.mrf.mxu0
        %v3890 = vadd.f32 %v3876, %v3889
        %3891 = vdwg.mxu0
        %3892 = vmatpush.bf16.msra.mxu0 %v1158
        %3893 = vmatpush.bf16.msra.mxu0 %v1156
        %3894 = vmatpush.bf16.msra.mxu0 %v1154
        %3895 = vmatpush.bf16.msra.mxu0 %v1152
        %3896 = vmatpush.bf16.msra.mxu0 %v1150
        %3897 = vmatpush.bf16.msra.mxu0 %v1148
        %3898 = vmatpush.bf16.msra.mxu0 %v1146
        %3899 = vmatpush.bf16.msra.mxu0 %v1144
        %3900 = vmatmul.bf16.gmra.mxu0 %v3738
        %v3901 = vpop.f32.mrf.mxu0
        %v3902 = vadd.f32 %v3888, %v3901
        %v3903 = vpop.f32.mrf.mxu0
        %v3904 = vadd.f32 %v3890, %v3903
        %3905 = vdwg.mxu0
        %3906 = vmatpush.bf16.msra.mxu0 %v1174
        %3907 = vmatpush.bf16.msra.mxu0 %v1172
        %3908 = vmatpush.bf16.msra.mxu0 %v1170
        %3909 = vmatpush.bf16.msra.mxu0 %v1168
        %3910 = vmatpush.bf16.msra.mxu0 %v1166
        %3911 = vmatpush.bf16.msra.mxu0 %v1164
        %3912 = vmatpush.bf16.msra.mxu0 %v1162
        %3913 = vmatpush.bf16.msra.mxu0 %v1160
        %3914 = vmatmul.bf16.gmra.mxu0 %v3739
        %v3915 = vpop.f32.mrf.mxu0
        %v3916 = vadd.f32 %v3902, %v3915
        %v3917 = vpop.f32.mrf.mxu0
        %v3918 = vadd.f32 %v3904, %v3917
        %3919 = vdwg.mxu0
        %3920 = vmatpush.bf16.msra.mxu0 %v1190
        %3921 = vmatpush.bf16.msra.mxu0 %v1188
        %3922 = vmatpush.bf16.msra.mxu0 %v1186
        %3923 = vmatpush.bf16.msra.mxu0 %v1184
        %3924 = vmatpush.bf16.msra.mxu0 %v1182
        %3925 = vmatpush.bf16.msra.mxu0 %v1180
        %3926 = vmatpush.bf16.msra.mxu0 %v1178
        %3927 = vmatpush.bf16.msra.mxu0 %v1176
        %3928 = vmatmul.bf16.gmra.mxu0 %v3740
        %v3929 = vpop.f32.mrf.mxu0
        %v3930 = vadd.f32 %v3916, %v3929
        %v3931 = vpop.f32.mrf.mxu0
        %v3932 = vadd.f32 %v3918, %v3931
        %3933 = vdwg.mxu0
        %3934 = vmatpush.bf16.msra.mxu0 %v1206
        %3935 = vmatpush.bf16.msra.mxu0 %v1204
        %3936 = vmatpush.bf16.msra.mxu0 %v1202
        %3937 = vmatpush.bf16.msra.mxu0 %v1200
        %3938 = vmatpush.bf16.msra.mxu0 %v1198
        %3939 = vmatpush.bf16.msra.mxu0 %v1196
        %3940 = vmatpush.bf16.msra.mxu0 %v1194
        %3941 = vmatpush.bf16.msra.mxu0 %v1192
        %3942 = vmatmul.bf16.gmra.mxu0 %v3741
        %v3943 = vpop.f32.mrf.mxu0
        %v3944 = vadd.f32 %v3930, %v3943
        %v3945 = vpop.f32.mrf.mxu0
        %v3946 = vadd.f32 %v3932, %v3945
        %3947 = vdwg.mxu0
        %3948 = vmatpush.bf16.msra.mxu0 %v1222
        %3949 = vmatpush.bf16.msra.mxu0 %v1220
        %3950 = vmatpush.bf16.msra.mxu0 %v1218
        %3951 = vmatpush.bf16.msra.mxu0 %v1216
        %3952 = vmatpush.bf16.msra.mxu0 %v1214
        %3953 = vmatpush.bf16.msra.mxu0 %v1212
        %3954 = vmatpush.bf16.msra.mxu0 %v1210
        %3955 = vmatpush.bf16.msra.mxu0 %v1208
        %3956 = vmatmul.bf16.gmra.mxu0 %v3742
        %v3957 = vpop.f32.mrf.mxu0
        %v3958 = vadd.f32 %v3944, %v3957
        %v3959 = vpop.f32.mrf.mxu0
        %v3960 = vadd.f32 %v3946, %v3959
        %3961 = vdwg.mxu0
        %3962 = vmatpush.bf16.msra.mxu0 %v1238
        %3963 = vmatpush.bf16.msra.mxu0 %v1236
        %3964 = vmatpush.bf16.msra.mxu0 %v1234
        %3965 = vmatpush.bf16.msra.mxu0 %v1232
        %3966 = vmatpush.bf16.msra.mxu0 %v1230
        %3967 = vmatpush.bf16.msra.mxu0 %v1228
        %3968 = vmatpush.bf16.msra.mxu0 %v1226
        %3969 = vmatpush.bf16.msra.mxu0 %v1224
        %3970 = vmatmul.bf16.gmra.mxu0 %v3743
        %v3971 = vpop.f32.mrf.mxu0
        %v3972 = vadd.f32 %v3958, %v3971
        %v3973 = vpop.f32.mrf.mxu0
        %v3974 = vadd.f32 %v3960, %v3973
        %3975 = vdwg.mxu0
        %v3976 = vmax.f32 %v3860, 0.0
        %v3977 = vmax.f32 %v3972, 0.0
        %v3978 = vmax.f32 %v3862, 0.0
        %v3979 = vmax.f32 %v3974, 0.0
        %s3980 = scalar_lea.vmem %s503, 48 [#allocation3]
        %v3981 = vld [vmem:[%s3980] sm:$0xff]
        %v3982 = vld [vmem:[%s3980 + $0x8] sm:$0xff]
        %3984 = vset.pattern.permute.xlu0 0
        %3985 = vperm.xlu0 %3984, %v3981
        %v3986 = vpop.permute.xlu0 %3985
        %3989 = vset.pattern.permute.xlu0 0
        %3990 = vperm.xlu0 %3989, %v3982
        %v3991 = vpop.permute.xlu0 %3990
        %v3993 = vmul.f32 %v3976, %v3986
        %v3994 = vmul.f32 %v3977, %v3986
        %v3995 = vmul.f32 %v3978, %v3991
        %v3996 = vmul.f32 %v3979, %v3991
        %v3997 = vpack.c.bf16 %v3995, %v3993
        %v3998 = vpack.c.bf16 %v3996, %v3994
        %s3999 = scalar_lea.vmem %s4, 1536
        %v4000 = vld [vmem:[%s3999] sm:$0xff]
        %v4001 = vld [vmem:[%s3999 + $0x8] sm:$0xff]
        %v4002 = vld [vmem:[%s3999 + $0x10] sm:$0xff]
        %v4003 = vld [vmem:[%s3999 + $0x18] sm:$0xff]
        %v4004 = vld [vmem:[%s3999 + $0x20] sm:$0xff]
        %v4005 = vld [vmem:[%s3999 + $0x28] sm:$0xff]
        %v4006 = vld [vmem:[%s3999 + $0x30] sm:$0xff]
        %v4007 = vld [vmem:[%s3999 + $0x38] sm:$0xff]
        %v4008 = vld [vmem:[%s3999 + $0x40] sm:$0xff]
        %v4009 = vld [vmem:[%s3999 + $0x48] sm:$0xff]
        %v4010 = vld [vmem:[%s3999 + $0x50] sm:$0xff]
        %v4011 = vld [vmem:[%s3999 + $0x58] sm:$0xff]
        %v4012 = vld [vmem:[%s3999 + $0x60] sm:$0xff]
        %v4013 = vld [vmem:[%s3999 + $0x68] sm:$0xff]
        %v4014 = vld [vmem:[%s3999 + $0x70] sm:$0xff]
        %v4015 = vld [vmem:[%s3999 + $0x78] sm:$0xff]
        %v4016 = vld [vmem:[%s3999 + $0x80] sm:$0xff]
        %v4017 = vld [vmem:[%s3999 + $0x88] sm:$0xff]
        %v4018 = vld [vmem:[%s3999 + $0x90] sm:$0xff]
        %v4019 = vld [vmem:[%s3999 + $0x98] sm:$0xff]
        %v4020 = vld [vmem:[%s3999 + $0xa0] sm:$0xff]
        %v4021 = vld [vmem:[%s3999 + $0xa8] sm:$0xff]
        %v4022 = vld [vmem:[%s3999 + $0xb0] sm:$0xff]
        %v4023 = vld [vmem:[%s3999 + $0xb8] sm:$0xff]
        %v4024 = vld [vmem:[%s3999 + $0xc0] sm:$0xff]
        %v4025 = vld [vmem:[%s3999 + $0xc8] sm:$0xff]
        %v4026 = vld [vmem:[%s3999 + $0xd0] sm:$0xff]
        %v4027 = vld [vmem:[%s3999 + $0xd8] sm:$0xff]
        %v4028 = vld [vmem:[%s3999 + $0xe0] sm:$0xff]
        %v4029 = vld [vmem:[%s3999 + $0xe8] sm:$0xff]
        %v4030 = vld [vmem:[%s3999 + $0xf0] sm:$0xff]
        %v4031 = vld [vmem:[%s3999 + $0xf8] sm:$0xff]
        %v4032 = vld [vmem:[%s3999 + $0x100] sm:$0xff]
        %v4033 = vld [vmem:[%s3999 + $0x108] sm:$0xff]
        %v4034 = vld [vmem:[%s3999 + $0x110] sm:$0xff]
        %v4035 = vld [vmem:[%s3999 + $0x118] sm:$0xff]
        %v4036 = vld [vmem:[%s3999 + $0x120] sm:$0xff]
        %v4037 = vld [vmem:[%s3999 + $0x128] sm:$0xff]
        %v4038 = vld [vmem:[%s3999 + $0x130] sm:$0xff]
        %v4039 = vld [vmem:[%s3999 + $0x138] sm:$0xff]
        %v4040 = vld [vmem:[%s3999 + $0x140] sm:$0xff]
        %v4041 = vld [vmem:[%s3999 + $0x148] sm:$0xff]
        %v4042 = vld [vmem:[%s3999 + $0x150] sm:$0xff]
        %v4043 = vld [vmem:[%s3999 + $0x158] sm:$0xff]
        %v4044 = vld [vmem:[%s3999 + $0x160] sm:$0xff]
        %v4045 = vld [vmem:[%s3999 + $0x168] sm:$0xff]
        %v4046 = vld [vmem:[%s3999 + $0x170] sm:$0xff]
        %v4047 = vld [vmem:[%s3999 + $0x178] sm:$0xff]
        %v4048 = vld [vmem:[%s3999 + $0x180] sm:$0xff]
        %v4049 = vld [vmem:[%s3999 + $0x188] sm:$0xff]
        %v4050 = vld [vmem:[%s3999 + $0x190] sm:$0xff]
        %v4051 = vld [vmem:[%s3999 + $0x198] sm:$0xff]
        %v4052 = vld [vmem:[%s3999 + $0x1a0] sm:$0xff]
        %v4053 = vld [vmem:[%s3999 + $0x1a8] sm:$0xff]
        %v4054 = vld [vmem:[%s3999 + $0x1b0] sm:$0xff]
        %v4055 = vld [vmem:[%s3999 + $0x1b8] sm:$0xff]
        %v4056 = vld [vmem:[%s3999 + $0x1c0] sm:$0xff]
        %v4057 = vld [vmem:[%s3999 + $0x1c8] sm:$0xff]
        %v4058 = vld [vmem:[%s3999 + $0x1d0] sm:$0xff]
        %v4059 = vld [vmem:[%s3999 + $0x1d8] sm:$0xff]
        %v4060 = vld [vmem:[%s3999 + $0x1e0] sm:$0xff]
        %v4061 = vld [vmem:[%s3999 + $0x1e8] sm:$0xff]
        %v4062 = vld [vmem:[%s3999 + $0x1f0] sm:$0xff]
        %v4063 = vld [vmem:[%s3999 + $0x1f8] sm:$0xff]
        %v4128 = vunpack.c.l.b16 %v4000
        %v4129 = vunpack.c.h.b16 %v4000
        %v4130 = vunpack.c.l.b16 %v4001
        %v4131 = vunpack.c.h.b16 %v4001
        %v4132 = vunpack.c.l.b16 %v4002
        %v4133 = vunpack.c.h.b16 %v4002
        %v4134 = vunpack.c.l.b16 %v4003
        %v4135 = vunpack.c.h.b16 %v4003
        %v4136 = vunpack.c.l.b16 %v4004
        %v4137 = vunpack.c.h.b16 %v4004
        %v4138 = vunpack.c.l.b16 %v4005
        %v4139 = vunpack.c.h.b16 %v4005
        %v4140 = vunpack.c.l.b16 %v4006
        %v4141 = vunpack.c.h.b16 %v4006
        %v4142 = vunpack.c.l.b16 %v4007
        %v4143 = vunpack.c.h.b16 %v4007
        %v4144 = vunpack.c.l.b16 %v4008
        %v4145 = vunpack.c.h.b16 %v4008
        %v4146 = vunpack.c.l.b16 %v4009
        %v4147 = vunpack.c.h.b16 %v4009
        %v4148 = vunpack.c.l.b16 %v4010
        %v4149 = vunpack.c.h.b16 %v4010
        %v4150 = vunpack.c.l.b16 %v4011
        %v4151 = vunpack.c.h.b16 %v4011
        %v4152 = vunpack.c.l.b16 %v4012
        %v4153 = vunpack.c.h.b16 %v4012
        %v4154 = vunpack.c.l.b16 %v4013
        %v4155 = vunpack.c.h.b16 %v4013
        %v4156 = vunpack.c.l.b16 %v4014
        %v4157 = vunpack.c.h.b16 %v4014
        %v4158 = vunpack.c.l.b16 %v4015
        %v4159 = vunpack.c.h.b16 %v4015
        %v4160 = vunpack.c.l.b16 %v4016
        %v4161 = vunpack.c.h.b16 %v4016
        %v4162 = vunpack.c.l.b16 %v4017
        %v4163 = vunpack.c.h.b16 %v4017
        %v4164 = vunpack.c.l.b16 %v4018
        %v4165 = vunpack.c.h.b16 %v4018
        %v4166 = vunpack.c.l.b16 %v4019
        %v4167 = vunpack.c.h.b16 %v4019
        %v4168 = vunpack.c.l.b16 %v4020
        %v4169 = vunpack.c.h.b16 %v4020
        %v4170 = vunpack.c.l.b16 %v4021
        %v4171 = vunpack.c.h.b16 %v4021
        %v4172 = vunpack.c.l.b16 %v4022
        %v4173 = vunpack.c.h.b16 %v4022
        %v4174 = vunpack.c.l.b16 %v4023
        %v4175 = vunpack.c.h.b16 %v4023
        %v4176 = vunpack.c.l.b16 %v4024
        %v4177 = vunpack.c.h.b16 %v4024
        %v4178 = vunpack.c.l.b16 %v4025
        %v4179 = vunpack.c.h.b16 %v4025
        %v4180 = vunpack.c.l.b16 %v4026
        %v4181 = vunpack.c.h.b16 %v4026
        %v4182 = vunpack.c.l.b16 %v4027
        %v4183 = vunpack.c.h.b16 %v4027
        %v4184 = vunpack.c.l.b16 %v4028
        %v4185 = vunpack.c.h.b16 %v4028
        %v4186 = vunpack.c.l.b16 %v4029
        %v4187 = vunpack.c.h.b16 %v4029
        %v4188 = vunpack.c.l.b16 %v4030
        %v4189 = vunpack.c.h.b16 %v4030
        %v4190 = vunpack.c.l.b16 %v4031
        %v4191 = vunpack.c.h.b16 %v4031
        %v4192 = vunpack.c.l.b16 %v4032
        %v4193 = vunpack.c.h.b16 %v4032
        %v4194 = vunpack.c.l.b16 %v4033
        %v4195 = vunpack.c.h.b16 %v4033
        %v4196 = vunpack.c.l.b16 %v4034
        %v4197 = vunpack.c.h.b16 %v4034
        %v4198 = vunpack.c.l.b16 %v4035
        %v4199 = vunpack.c.h.b16 %v4035
        %v4200 = vunpack.c.l.b16 %v4036
        %v4201 = vunpack.c.h.b16 %v4036
        %v4202 = vunpack.c.l.b16 %v4037
        %v4203 = vunpack.c.h.b16 %v4037
        %v4204 = vunpack.c.l.b16 %v4038
        %v4205 = vunpack.c.h.b16 %v4038
        %v4206 = vunpack.c.l.b16 %v4039
        %v4207 = vunpack.c.h.b16 %v4039
        %v4208 = vunpack.c.l.b16 %v4040
        %v4209 = vunpack.c.h.b16 %v4040
        %v4210 = vunpack.c.l.b16 %v4041
        %v4211 = vunpack.c.h.b16 %v4041
        %v4212 = vunpack.c.l.b16 %v4042
        %v4213 = vunpack.c.h.b16 %v4042
        %v4214 = vunpack.c.l.b16 %v4043
        %v4215 = vunpack.c.h.b16 %v4043
        %v4216 = vunpack.c.l.b16 %v4044
        %v4217 = vunpack.c.h.b16 %v4044
        %v4218 = vunpack.c.l.b16 %v4045
        %v4219 = vunpack.c.h.b16 %v4045
        %v4220 = vunpack.c.l.b16 %v4046
        %v4221 = vunpack.c.h.b16 %v4046
        %v4222 = vunpack.c.l.b16 %v4047
        %v4223 = vunpack.c.h.b16 %v4047
        %v4224 = vunpack.c.l.b16 %v4048
        %v4225 = vunpack.c.h.b16 %v4048
        %v4226 = vunpack.c.l.b16 %v4049
        %v4227 = vunpack.c.h.b16 %v4049
        %v4228 = vunpack.c.l.b16 %v4050
        %v4229 = vunpack.c.h.b16 %v4050
        %v4230 = vunpack.c.l.b16 %v4051
        %v4231 = vunpack.c.h.b16 %v4051
        %v4232 = vunpack.c.l.b16 %v4052
        %v4233 = vunpack.c.h.b16 %v4052
        %v4234 = vunpack.c.l.b16 %v4053
        %v4235 = vunpack.c.h.b16 %v4053
        %v4236 = vunpack.c.l.b16 %v4054
        %v4237 = vunpack.c.h.b16 %v4054
        %v4238 = vunpack.c.l.b16 %v4055
        %v4239 = vunpack.c.h.b16 %v4055
        %v4240 = vunpack.c.l.b16 %v4056
        %v4241 = vunpack.c.h.b16 %v4056
        %v4242 = vunpack.c.l.b16 %v4057
        %v4243 = vunpack.c.h.b16 %v4057
        %v4244 = vunpack.c.l.b16 %v4058
        %v4245 = vunpack.c.h.b16 %v4058
        %v4246 = vunpack.c.l.b16 %v4059
        %v4247 = vunpack.c.h.b16 %v4059
        %v4248 = vunpack.c.l.b16 %v4060
        %v4249 = vunpack.c.h.b16 %v4060
        %v4250 = vunpack.c.l.b16 %v4061
        %v4251 = vunpack.c.h.b16 %v4061
        %v4252 = vunpack.c.l.b16 %v4062
        %v4253 = vunpack.c.h.b16 %v4062
        %v4254 = vunpack.c.l.b16 %v4063
        %v4255 = vunpack.c.h.b16 %v4063
        %v4256 = vpack.c.b16 %v4132, %v4128
        %v4257 = vpack.c.b16 %v4133, %v4129
        %v4258 = vpack.c.b16 %v4134, %v4130
        %v4259 = vpack.c.b16 %v4135, %v4131
        %v4260 = vpack.c.b16 %v4140, %v4136
        %v4261 = vpack.c.b16 %v4141, %v4137
        %v4262 = vpack.c.b16 %v4142, %v4138
        %v4263 = vpack.c.b16 %v4143, %v4139
        %v4264 = vpack.c.b16 %v4148, %v4144
        %v4265 = vpack.c.b16 %v4149, %v4145
        %v4266 = vpack.c.b16 %v4150, %v4146
        %v4267 = vpack.c.b16 %v4151, %v4147
        %v4268 = vpack.c.b16 %v4156, %v4152
        %v4269 = vpack.c.b16 %v4157, %v4153
        %v4270 = vpack.c.b16 %v4158, %v4154
        %v4271 = vpack.c.b16 %v4159, %v4155
        %v4272 = vpack.c.b16 %v4164, %v4160
        %v4273 = vpack.c.b16 %v4165, %v4161
        %v4274 = vpack.c.b16 %v4166, %v4162
        %v4275 = vpack.c.b16 %v4167, %v4163
        %v4276 = vpack.c.b16 %v4172, %v4168
        %v4277 = vpack.c.b16 %v4173, %v4169
        %v4278 = vpack.c.b16 %v4174, %v4170
        %v4279 = vpack.c.b16 %v4175, %v4171
        %v4280 = vpack.c.b16 %v4180, %v4176
        %v4281 = vpack.c.b16 %v4181, %v4177
        %v4282 = vpack.c.b16 %v4182, %v4178
        %v4283 = vpack.c.b16 %v4183, %v4179
        %v4284 = vpack.c.b16 %v4188, %v4184
        %v4285 = vpack.c.b16 %v4189, %v4185
        %v4286 = vpack.c.b16 %v4190, %v4186
        %v4287 = vpack.c.b16 %v4191, %v4187
        %v4288 = vpack.c.b16 %v4196, %v4192
        %v4289 = vpack.c.b16 %v4197, %v4193
        %v4290 = vpack.c.b16 %v4198, %v4194
        %v4291 = vpack.c.b16 %v4199, %v4195
        %v4292 = vpack.c.b16 %v4204, %v4200
        %v4293 = vpack.c.b16 %v4205, %v4201
        %v4294 = vpack.c.b16 %v4206, %v4202
        %v4295 = vpack.c.b16 %v4207, %v4203
        %v4296 = vpack.c.b16 %v4212, %v4208
        %v4297 = vpack.c.b16 %v4213, %v4209
        %v4298 = vpack.c.b16 %v4214, %v4210
        %v4299 = vpack.c.b16 %v4215, %v4211
        %v4300 = vpack.c.b16 %v4220, %v4216
        %v4301 = vpack.c.b16 %v4221, %v4217
        %v4302 = vpack.c.b16 %v4222, %v4218
        %v4303 = vpack.c.b16 %v4223, %v4219
        %v4304 = vpack.c.b16 %v4228, %v4224
        %v4305 = vpack.c.b16 %v4229, %v4225
        %v4306 = vpack.c.b16 %v4230, %v4226
        %v4307 = vpack.c.b16 %v4231, %v4227
        %v4308 = vpack.c.b16 %v4236, %v4232
        %v4309 = vpack.c.b16 %v4237, %v4233
        %v4310 = vpack.c.b16 %v4238, %v4234
        %v4311 = vpack.c.b16 %v4239, %v4235
        %v4312 = vpack.c.b16 %v4244, %v4240
        %v4313 = vpack.c.b16 %v4245, %v4241
        %v4314 = vpack.c.b16 %v4246, %v4242
        %v4315 = vpack.c.b16 %v4247, %v4243
        %v4316 = vpack.c.b16 %v4252, %v4248
        %v4317 = vpack.c.b16 %v4253, %v4249
        %v4318 = vpack.c.b16 %v4254, %v4250
        %v4319 = vpack.c.b16 %v4255, %v4251
        %4384 = vmatpush.bf16.msra.mxu0 %v4284
        %4385 = vmatpush.bf16.msra.mxu0 %v4280
        %4386 = vmatpush.bf16.msra.mxu0 %v4276
        %4387 = vmatpush.bf16.msra.mxu0 %v4272
        %4388 = vmatpush.bf16.msra.mxu0 %v4268
        %4389 = vmatpush.bf16.msra.mxu0 %v4264
        %4390 = vmatpush.bf16.msra.mxu0 %v4260
        %4391 = vmatpush.bf16.msra.mxu0 %v4256
        %4392 = vmatmul.bf16.gmra.mxu0 %v3997
        %v4393 = vpop.f32.mrf.mxu0
        %v4394 = vadd.f32 0.0, %v4393
        %v4395 = vpop.f32.mrf.mxu0
        %v4396 = vadd.f32 0.0, %v4395
        %4397 = vdwg.mxu0
        %4398 = vmatpush.bf16.msra.mxu0 %v4316
        %4399 = vmatpush.bf16.msra.mxu0 %v4312
        %4400 = vmatpush.bf16.msra.mxu0 %v4308
        %4401 = vmatpush.bf16.msra.mxu0 %v4304
        %4402 = vmatpush.bf16.msra.mxu0 %v4300
        %4403 = vmatpush.bf16.msra.mxu0 %v4296
        %4404 = vmatpush.bf16.msra.mxu0 %v4292
        %4405 = vmatpush.bf16.msra.mxu0 %v4288
        %4406 = vmatmul.bf16.gmra.mxu0 %v3998
        %v4407 = vpop.f32.mrf.mxu0
        %v4408 = vadd.f32 %v4394, %v4407
        %v4409 = vpop.f32.mrf.mxu0
        %v4410 = vadd.f32 %v4396, %v4409
        %4411 = vdwg.mxu0
        %4412 = vmatpush.bf16.msra.mxu0 %v4285
        %4413 = vmatpush.bf16.msra.mxu0 %v4281
        %4414 = vmatpush.bf16.msra.mxu0 %v4277
        %4415 = vmatpush.bf16.msra.mxu0 %v4273
        %4416 = vmatpush.bf16.msra.mxu0 %v4269
        %4417 = vmatpush.bf16.msra.mxu0 %v4265
        %4418 = vmatpush.bf16.msra.mxu0 %v4261
        %4419 = vmatpush.bf16.msra.mxu0 %v4257
        %4420 = vmatmul.bf16.gmra.mxu0 %v3997
        %v4421 = vpop.f32.mrf.mxu0
        %v4422 = vadd.f32 0.0, %v4421
        %v4423 = vpop.f32.mrf.mxu0
        %v4424 = vadd.f32 0.0, %v4423
        %4425 = vdwg.mxu0
        %4426 = vmatpush.bf16.msra.mxu0 %v4317
        %4427 = vmatpush.bf16.msra.mxu0 %v4313
        %4428 = vmatpush.bf16.msra.mxu0 %v4309
        %4429 = vmatpush.bf16.msra.mxu0 %v4305
        %4430 = vmatpush.bf16.msra.mxu0 %v4301
        %4431 = vmatpush.bf16.msra.mxu0 %v4297
        %4432 = vmatpush.bf16.msra.mxu0 %v4293
        %4433 = vmatpush.bf16.msra.mxu0 %v4289
        %4434 = vmatmul.bf16.gmra.mxu0 %v3998
        %v4435 = vpop.f32.mrf.mxu0
        %v4436 = vadd.f32 %v4422, %v4435
        %v4437 = vpop.f32.mrf.mxu0
        %v4438 = vadd.f32 %v4424, %v4437
        %4439 = vdwg.mxu0
        %4440 = vmatpush.bf16.msra.mxu0 %v4286
        %4441 = vmatpush.bf16.msra.mxu0 %v4282
        %4442 = vmatpush.bf16.msra.mxu0 %v4278
        %4443 = vmatpush.bf16.msra.mxu0 %v4274
        %4444 = vmatpush.bf16.msra.mxu0 %v4270
        %4445 = vmatpush.bf16.msra.mxu0 %v4266
        %4446 = vmatpush.bf16.msra.mxu0 %v4262
        %4447 = vmatpush.bf16.msra.mxu0 %v4258
        %4448 = vmatmul.bf16.gmra.mxu0 %v3997
        %v4449 = vpop.f32.mrf.mxu0
        %v4450 = vadd.f32 0.0, %v4449
        %v4451 = vpop.f32.mrf.mxu0
        %v4452 = vadd.f32 0.0, %v4451
        %4453 = vdwg.mxu0
        %4454 = vmatpush.bf16.msra.mxu0 %v4318
        %4455 = vmatpush.bf16.msra.mxu0 %v4314
        %4456 = vmatpush.bf16.msra.mxu0 %v4310
        %4457 = vmatpush.bf16.msra.mxu0 %v4306
        %4458 = vmatpush.bf16.msra.mxu0 %v4302
        %4459 = vmatpush.bf16.msra.mxu0 %v4298
        %4460 = vmatpush.bf16.msra.mxu0 %v4294
        %4461 = vmatpush.bf16.msra.mxu0 %v4290
        %4462 = vmatmul.bf16.gmra.mxu0 %v3998
        %v4463 = vpop.f32.mrf.mxu0
        %v4464 = vadd.f32 %v4450, %v4463
        %v4465 = vpop.f32.mrf.mxu0
        %v4466 = vadd.f32 %v4452, %v4465
        %4467 = vdwg.mxu0
        %4468 = vmatpush.bf16.msra.mxu0 %v4287
        %4469 = vmatpush.bf16.msra.mxu0 %v4283
        %4470 = vmatpush.bf16.msra.mxu0 %v4279
        %4471 = vmatpush.bf16.msra.mxu0 %v4275
        %4472 = vmatpush.bf16.msra.mxu0 %v4271
        %4473 = vmatpush.bf16.msra.mxu0 %v4267
        %4474 = vmatpush.bf16.msra.mxu0 %v4263
        %4475 = vmatpush.bf16.msra.mxu0 %v4259
        %4476 = vmatmul.bf16.gmra.mxu0 %v3997
        %v4477 = vpop.f32.mrf.mxu0
        %v4478 = vadd.f32 0.0, %v4477
        %v4479 = vpop.f32.mrf.mxu0
        %v4480 = vadd.f32 0.0, %v4479
        %4481 = vdwg.mxu0
        %4482 = vmatpush.bf16.msra.mxu0 %v4319
        %4483 = vmatpush.bf16.msra.mxu0 %v4315
        %4484 = vmatpush.bf16.msra.mxu0 %v4311
        %4485 = vmatpush.bf16.msra.mxu0 %v4307
        %4486 = vmatpush.bf16.msra.mxu0 %v4303
        %4487 = vmatpush.bf16.msra.mxu0 %v4299
        %4488 = vmatpush.bf16.msra.mxu0 %v4295
        %4489 = vmatpush.bf16.msra.mxu0 %v4291
        %4490 = vmatmul.bf16.gmra.mxu0 %v3998
        %v4491 = vpop.f32.mrf.mxu0
        %v4492 = vadd.f32 %v4478, %v4491
        %v4493 = vpop.f32.mrf.mxu0
        %v4494 = vadd.f32 %v4480, %v4493
        %4495 = vdwg.mxu0
        %v4496 = vadd.f32 %v3695, %v4408
        %v4497 = vadd.f32 %v3696, %v4436
        %v4498 = vadd.f32 %v3697, %v4464
        %v4499 = vadd.f32 %v3698, %v4492
        %v4500 = vadd.f32 %v3699, %v4410
        %v4501 = vadd.f32 %v3700, %v4438
        %v4502 = vadd.f32 %v3701, %v4466
        %v4503 = vadd.f32 %v3702, %v4494
        %s4504 = scalar_lea.vmem %s496, 256 [#allocation2]
        %v4505 = vld [vmem:[%s4504] sm:$0xff]
        %v4506 = vld [vmem:[%s4504 + $0x8] sm:$0xff]
        %v4507 = vld [vmem:[%s4504 + $0x10] sm:$0xff]
        %v4508 = vld [vmem:[%s4504 + $0x18] sm:$0xff]
        %v4509 = vld [vmem:[%s4504 + $0x20] sm:$0xff]
        %v4510 = vld [vmem:[%s4504 + $0x28] sm:$0xff]
        %v4511 = vld [vmem:[%s4504 + $0x30] sm:$0xff]
        %v4512 = vld [vmem:[%s4504 + $0x38] sm:$0xff]
        %v4521 = vunpack.c.l.b16 %v4505
        %v4522 = vunpack.c.h.b16 %v4505
        %v4523 = vunpack.c.l.b16 %v4506
        %v4524 = vunpack.c.h.b16 %v4506
        %v4525 = vunpack.c.l.b16 %v4507
        %v4526 = vunpack.c.h.b16 %v4507
        %v4527 = vunpack.c.l.b16 %v4508
        %v4528 = vunpack.c.h.b16 %v4508
        %v4529 = vunpack.c.l.b16 %v4509
        %v4530 = vunpack.c.h.b16 %v4509
        %v4531 = vunpack.c.l.b16 %v4510
        %v4532 = vunpack.c.h.b16 %v4510
        %v4533 = vunpack.c.l.b16 %v4511
        %v4534 = vunpack.c.h.b16 %v4511
        %v4535 = vunpack.c.l.b16 %v4512
        %v4536 = vunpack.c.h.b16 %v4512
        %v4537 = vpack.c.b16 %v4529, %v4521
        %v4538 = vpack.c.b16 %v4530, %v4522
        %v4539 = vpack.c.b16 %v4531, %v4523
        %v4540 = vpack.c.b16 %v4532, %v4524
        %v4541 = vpack.c.b16 %v4533, %v4525
        %v4542 = vpack.c.b16 %v4534, %v4526
        %v4543 = vpack.c.b16 %v4535, %v4527
        %v4544 = vpack.c.b16 %v4536, %v4528
        %4553 = vmatpush.bf16.msra.mxu0 %v1125
        %4554 = vmatpush.bf16.msra.mxu0 %v1123
        %4555 = vmatpush.bf16.msra.mxu0 %v1121
        %4556 = vmatpush.bf16.msra.mxu0 %v1119
        %4557 = vmatpush.bf16.msra.mxu0 %v1117
        %4558 = vmatpush.bf16.msra.mxu0 %v1115
        %4559 = vmatpush.bf16.msra.mxu0 %v1113
        %4560 = vmatpush.bf16.msra.mxu0 %v1111
        %4561 = vmatmul.bf16.gmra.mxu0 %v4537
        %v4562 = vpop.f32.mrf.mxu0
        %v4563 = vadd.f32 %v683, %v4562
        %v4564 = vpop.f32.mrf.mxu0
        %v4565 = vadd.f32 %v683, %v4564
        %4566 = vdwg.mxu0
        %4567 = vmatpush.bf16.msra.mxu0 %v1141
        %4568 = vmatpush.bf16.msra.mxu0 %v1139
        %4569 = vmatpush.bf16.msra.mxu0 %v1137
        %4570 = vmatpush.bf16.msra.mxu0 %v1135
        %4571 = vmatpush.bf16.msra.mxu0 %v1133
        %4572 = vmatpush.bf16.msra.mxu0 %v1131
        %4573 = vmatpush.bf16.msra.mxu0 %v1129
        %4574 = vmatpush.bf16.msra.mxu0 %v1127
        %4575 = vmatmul.bf16.gmra.mxu0 %v4538
        %v4576 = vpop.f32.mrf.mxu0
        %v4577 = vadd.f32 %v4563, %v4576
        %v4578 = vpop.f32.mrf.mxu0
        %v4579 = vadd.f32 %v4565, %v4578
        %4580 = vdwg.mxu0
        %4581 = vmatpush.bf16.msra.mxu0 %v1157
        %4582 = vmatpush.bf16.msra.mxu0 %v1155
        %4583 = vmatpush.bf16.msra.mxu0 %v1153
        %4584 = vmatpush.bf16.msra.mxu0 %v1151
        %4585 = vmatpush.bf16.msra.mxu0 %v1149
        %4586 = vmatpush.bf16.msra.mxu0 %v1147
        %4587 = vmatpush.bf16.msra.mxu0 %v1145
        %4588 = vmatpush.bf16.msra.mxu0 %v1143
        %4589 = vmatmul.bf16.gmra.mxu0 %v4539
        %v4590 = vpop.f32.mrf.mxu0
        %v4591 = vadd.f32 %v4577, %v4590
        %v4592 = vpop.f32.mrf.mxu0
        %v4593 = vadd.f32 %v4579, %v4592
        %4594 = vdwg.mxu0
        %4595 = vmatpush.bf16.msra.mxu0 %v1173
        %4596 = vmatpush.bf16.msra.mxu0 %v1171
        %4597 = vmatpush.bf16.msra.mxu0 %v1169
        %4598 = vmatpush.bf16.msra.mxu0 %v1167
        %4599 = vmatpush.bf16.msra.mxu0 %v1165
        %4600 = vmatpush.bf16.msra.mxu0 %v1163
        %4601 = vmatpush.bf16.msra.mxu0 %v1161
        %4602 = vmatpush.bf16.msra.mxu0 %v1159
        %4603 = vmatmul.bf16.gmra.mxu0 %v4540
        %v4604 = vpop.f32.mrf.mxu0
        %v4605 = vadd.f32 %v4591, %v4604
        %v4606 = vpop.f32.mrf.mxu0
        %v4607 = vadd.f32 %v4593, %v4606
        %4608 = vdwg.mxu0
        %4609 = vmatpush.bf16.msra.mxu0 %v1189
        %4610 = vmatpush.bf16.msra.mxu0 %v1187
        %4611 = vmatpush.bf16.msra.mxu0 %v1185
        %4612 = vmatpush.bf16.msra.mxu0 %v1183
        %4613 = vmatpush.bf16.msra.mxu0 %v1181
        %4614 = vmatpush.bf16.msra.mxu0 %v1179
        %4615 = vmatpush.bf16.msra.mxu0 %v1177
        %4616 = vmatpush.bf16.msra.mxu0 %v1175
        %4617 = vmatmul.bf16.gmra.mxu0 %v4541
        %v4618 = vpop.f32.mrf.mxu0
        %v4619 = vadd.f32 %v4605, %v4618
        %v4620 = vpop.f32.mrf.mxu0
        %v4621 = vadd.f32 %v4607, %v4620
        %4622 = vdwg.mxu0
        %4623 = vmatpush.bf16.msra.mxu0 %v1205
        %4624 = vmatpush.bf16.msra.mxu0 %v1203
        %4625 = vmatpush.bf16.msra.mxu0 %v1201
        %4626 = vmatpush.bf16.msra.mxu0 %v1199
        %4627 = vmatpush.bf16.msra.mxu0 %v1197
        %4628 = vmatpush.bf16.msra.mxu0 %v1195
        %4629 = vmatpush.bf16.msra.mxu0 %v1193
        %4630 = vmatpush.bf16.msra.mxu0 %v1191
        %4631 = vmatmul.bf16.gmra.mxu0 %v4542
        %v4632 = vpop.f32.mrf.mxu0
        %v4633 = vadd.f32 %v4619, %v4632
        %v4634 = vpop.f32.mrf.mxu0
        %v4635 = vadd.f32 %v4621, %v4634
        %4636 = vdwg.mxu0
        %4637 = vmatpush.bf16.msra.mxu0 %v1221
        %4638 = vmatpush.bf16.msra.mxu0 %v1219
        %4639 = vmatpush.bf16.msra.mxu0 %v1217
        %4640 = vmatpush.bf16.msra.mxu0 %v1215
        %4641 = vmatpush.bf16.msra.mxu0 %v1213
        %4642 = vmatpush.bf16.msra.mxu0 %v1211
        %4643 = vmatpush.bf16.msra.mxu0 %v1209
        %4644 = vmatpush.bf16.msra.mxu0 %v1207
        %4645 = vmatmul.bf16.gmra.mxu0 %v4543
        %v4646 = vpop.f32.mrf.mxu0
        %v4647 = vadd.f32 %v4633, %v4646
        %v4648 = vpop.f32.mrf.mxu0
        %v4649 = vadd.f32 %v4635, %v4648
        %4650 = vdwg.mxu0
        %4651 = vmatpush.bf16.msra.mxu0 %v1237
        %4652 = vmatpush.bf16.msra.mxu0 %v1235
        %4653 = vmatpush.bf16.msra.mxu0 %v1233
        %4654 = vmatpush.bf16.msra.mxu0 %v1231
        %4655 = vmatpush.bf16.msra.mxu0 %v1229
        %4656 = vmatpush.bf16.msra.mxu0 %v1227
        %4657 = vmatpush.bf16.msra.mxu0 %v1225
        %4658 = vmatpush.bf16.msra.mxu0 %v1223
        %4659 = vmatmul.bf16.gmra.mxu0 %v4544
        %v4660 = vpop.f32.mrf.mxu0
        %v4661 = vadd.f32 %v4647, %v4660
        %v4662 = vpop.f32.mrf.mxu0
        %v4663 = vadd.f32 %v4649, %v4662
        %4664 = vdwg.mxu0
        %4665 = vmatpush.bf16.msra.mxu0 %v1126
        %4666 = vmatpush.bf16.msra.mxu0 %v1124
        %4667 = vmatpush.bf16.msra.mxu0 %v1122
        %4668 = vmatpush.bf16.msra.mxu0 %v1120
        %4669 = vmatpush.bf16.msra.mxu0 %v1118
        %4670 = vmatpush.bf16.msra.mxu0 %v1116
        %4671 = vmatpush.bf16.msra.mxu0 %v1114
        %4672 = vmatpush.bf16.msra.mxu0 %v1112
        %4673 = vmatmul.bf16.gmra.mxu0 %v4537
        %v4674 = vpop.f32.mrf.mxu0
        %v4675 = vadd.f32 %v684, %v4674
        %v4676 = vpop.f32.mrf.mxu0
        %v4677 = vadd.f32 %v684, %v4676
        %4678 = vdwg.mxu0
        %4679 = vmatpush.bf16.msra.mxu0 %v1142
        %4680 = vmatpush.bf16.msra.mxu0 %v1140
        %4681 = vmatpush.bf16.msra.mxu0 %v1138
        %4682 = vmatpush.bf16.msra.mxu0 %v1136
        %4683 = vmatpush.bf16.msra.mxu0 %v1134
        %4684 = vmatpush.bf16.msra.mxu0 %v1132
        %4685 = vmatpush.bf16.msra.mxu0 %v1130
        %4686 = vmatpush.bf16.msra.mxu0 %v1128
        %4687 = vmatmul.bf16.gmra.mxu0 %v4538
        %v4688 = vpop.f32.mrf.mxu0
        %v4689 = vadd.f32 %v4675, %v4688
        %v4690 = vpop.f32.mrf.mxu0
        %v4691 = vadd.f32 %v4677, %v4690
        %4692 = vdwg.mxu0
        %4693 = vmatpush.bf16.msra.mxu0 %v1158
        %4694 = vmatpush.bf16.msra.mxu0 %v1156
        %4695 = vmatpush.bf16.msra.mxu0 %v1154
        %4696 = vmatpush.bf16.msra.mxu0 %v1152
        %4697 = vmatpush.bf16.msra.mxu0 %v1150
        %4698 = vmatpush.bf16.msra.mxu0 %v1148
        %4699 = vmatpush.bf16.msra.mxu0 %v1146
        %4700 = vmatpush.bf16.msra.mxu0 %v1144
        %4701 = vmatmul.bf16.gmra.mxu0 %v4539
        %v4702 = vpop.f32.mrf.mxu0
        %v4703 = vadd.f32 %v4689, %v4702
        %v4704 = vpop.f32.mrf.mxu0
        %v4705 = vadd.f32 %v4691, %v4704
        %4706 = vdwg.mxu0
        %4707 = vmatpush.bf16.msra.mxu0 %v1174
        %4708 = vmatpush.bf16.msra.mxu0 %v1172
        %4709 = vmatpush.bf16.msra.mxu0 %v1170
        %4710 = vmatpush.bf16.msra.mxu0 %v1168
        %4711 = vmatpush.bf16.msra.mxu0 %v1166
        %4712 = vmatpush.bf16.msra.mxu0 %v1164
        %4713 = vmatpush.bf16.msra.mxu0 %v1162
        %4714 = vmatpush.bf16.msra.mxu0 %v1160
        %4715 = vmatmul.bf16.gmra.mxu0 %v4540
        %v4716 = vpop.f32.mrf.mxu0
        %v4717 = vadd.f32 %v4703, %v4716
        %v4718 = vpop.f32.mrf.mxu0
        %v4719 = vadd.f32 %v4705, %v4718
        %4720 = vdwg.mxu0
        %4721 = vmatpush.bf16.msra.mxu0 %v1190
        %4722 = vmatpush.bf16.msra.mxu0 %v1188
        %4723 = vmatpush.bf16.msra.mxu0 %v1186
        %4724 = vmatpush.bf16.msra.mxu0 %v1184
        %4725 = vmatpush.bf16.msra.mxu0 %v1182
        %4726 = vmatpush.bf16.msra.mxu0 %v1180
        %4727 = vmatpush.bf16.msra.mxu0 %v1178
        %4728 = vmatpush.bf16.msra.mxu0 %v1176
        %4729 = vmatmul.bf16.gmra.mxu0 %v4541
        %v4730 = vpop.f32.mrf.mxu0
        %v4731 = vadd.f32 %v4717, %v4730
        %v4732 = vpop.f32.mrf.mxu0
        %v4733 = vadd.f32 %v4719, %v4732
        %4734 = vdwg.mxu0
        %4735 = vmatpush.bf16.msra.mxu0 %v1206
        %4736 = vmatpush.bf16.msra.mxu0 %v1204
        %4737 = vmatpush.bf16.msra.mxu0 %v1202
        %4738 = vmatpush.bf16.msra.mxu0 %v1200
        %4739 = vmatpush.bf16.msra.mxu0 %v1198
        %4740 = vmatpush.bf16.msra.mxu0 %v1196
        %4741 = vmatpush.bf16.msra.mxu0 %v1194
        %4742 = vmatpush.bf16.msra.mxu0 %v1192
        %4743 = vmatmul.bf16.gmra.mxu0 %v4542
        %v4744 = vpop.f32.mrf.mxu0
        %v4745 = vadd.f32 %v4731, %v4744
        %v4746 = vpop.f32.mrf.mxu0
        %v4747 = vadd.f32 %v4733, %v4746
        %4748 = vdwg.mxu0
        %4749 = vmatpush.bf16.msra.mxu0 %v1222
        %4750 = vmatpush.bf16.msra.mxu0 %v1220
        %4751 = vmatpush.bf16.msra.mxu0 %v1218
        %4752 = vmatpush.bf16.msra.mxu0 %v1216
        %4753 = vmatpush.bf16.msra.mxu0 %v1214
        %4754 = vmatpush.bf16.msra.mxu0 %v1212
        %4755 = vmatpush.bf16.msra.mxu0 %v1210
        %4756 = vmatpush.bf16.msra.mxu0 %v1208
        %4757 = vmatmul.bf16.gmra.mxu0 %v4543
        %v4758 = vpop.f32.mrf.mxu0
        %v4759 = vadd.f32 %v4745, %v4758
        %v4760 = vpop.f32.mrf.mxu0
        %v4761 = vadd.f32 %v4747, %v4760
        %4762 = vdwg.mxu0
        %4763 = vmatpush.bf16.msra.mxu0 %v1238
        %4764 = vmatpush.bf16.msra.mxu0 %v1236
        %4765 = vmatpush.bf16.msra.mxu0 %v1234
        %4766 = vmatpush.bf16.msra.mxu0 %v1232
        %4767 = vmatpush.bf16.msra.mxu0 %v1230
        %4768 = vmatpush.bf16.msra.mxu0 %v1228
        %4769 = vmatpush.bf16.msra.mxu0 %v1226
        %4770 = vmatpush.bf16.msra.mxu0 %v1224
        %4771 = vmatmul.bf16.gmra.mxu0 %v4544
        %v4772 = vpop.f32.mrf.mxu0
        %v4773 = vadd.f32 %v4759, %v4772
        %v4774 = vpop.f32.mrf.mxu0
        %v4775 = vadd.f32 %v4761, %v4774
        %4776 = vdwg.mxu0
        %v4777 = vmax.f32 %v4661, 0.0
        %v4778 = vmax.f32 %v4773, 0.0
        %v4779 = vmax.f32 %v4663, 0.0
        %v4780 = vmax.f32 %v4775, 0.0
        %s4781 = scalar_lea.vmem %s503, 64 [#allocation3]
        %v4782 = vld [vmem:[%s4781] sm:$0xff]
        %v4783 = vld [vmem:[%s4781 + $0x8] sm:$0xff]
        %4785 = vset.pattern.permute.xlu0 0
        %4786 = vperm.xlu0 %4785, %v4782
        %v4787 = vpop.permute.xlu0 %4786
        %4790 = vset.pattern.permute.xlu0 0
        %4791 = vperm.xlu0 %4790, %v4783
        %v4792 = vpop.permute.xlu0 %4791
        %v4794 = vmul.f32 %v4777, %v4787
        %v4795 = vmul.f32 %v4778, %v4787
        %v4796 = vmul.f32 %v4779, %v4792
        %v4797 = vmul.f32 %v4780, %v4792
        %v4798 = vpack.c.bf16 %v4796, %v4794
        %v4799 = vpack.c.bf16 %v4797, %v4795
        %s4800 = scalar_lea.vmem %s4, 2048
        %v4801 = vld [vmem:[%s4800] sm:$0xff]
        %v4802 = vld [vmem:[%s4800 + $0x8] sm:$0xff]
        %v4803 = vld [vmem:[%s4800 + $0x10] sm:$0xff]
        %v4804 = vld [vmem:[%s4800 + $0x18] sm:$0xff]
        %v4805 = vld [vmem:[%s4800 + $0x20] sm:$0xff]
        %v4806 = vld [vmem:[%s4800 + $0x28] sm:$0xff]
        %v4807 = vld [vmem:[%s4800 + $0x30] sm:$0xff]
        %v4808 = vld [vmem:[%s4800 + $0x38] sm:$0xff]
        %v4809 = vld [vmem:[%s4800 + $0x40] sm:$0xff]
        %v4810 = vld [vmem:[%s4800 + $0x48] sm:$0xff]
        %v4811 = vld [vmem:[%s4800 + $0x50] sm:$0xff]
        %v4812 = vld [vmem:[%s4800 + $0x58] sm:$0xff]
        %v4813 = vld [vmem:[%s4800 + $0x60] sm:$0xff]
        %v4814 = vld [vmem:[%s4800 + $0x68] sm:$0xff]
        %v4815 = vld [vmem:[%s4800 + $0x70] sm:$0xff]
        %v4816 = vld [vmem:[%s4800 + $0x78] sm:$0xff]
        %v4817 = vld [vmem:[%s4800 + $0x80] sm:$0xff]
        %v4818 = vld [vmem:[%s4800 + $0x88] sm:$0xff]
        %v4819 = vld [vmem:[%s4800 + $0x90] sm:$0xff]
        %v4820 = vld [vmem:[%s4800 + $0x98] sm:$0xff]
        %v4821 = vld [vmem:[%s4800 + $0xa0] sm:$0xff]
        %v4822 = vld [vmem:[%s4800 + $0xa8] sm:$0xff]
        %v4823 = vld [vmem:[%s4800 + $0xb0] sm:$0xff]
        %v4824 = vld [vmem:[%s4800 + $0xb8] sm:$0xff]
        %v4825 = vld [vmem:[%s4800 + $0xc0] sm:$0xff]
        %v4826 = vld [vmem:[%s4800 + $0xc8] sm:$0xff]
        %v4827 = vld [vmem:[%s4800 + $0xd0] sm:$0xff]
        %v4828 = vld [vmem:[%s4800 + $0xd8] sm:$0xff]
        %v4829 = vld [vmem:[%s4800 + $0xe0] sm:$0xff]
        %v4830 = vld [vmem:[%s4800 + $0xe8] sm:$0xff]
        %v4831 = vld [vmem:[%s4800 + $0xf0] sm:$0xff]
        %v4832 = vld [vmem:[%s4800 + $0xf8] sm:$0xff]
        %v4833 = vld [vmem:[%s4800 + $0x100] sm:$0xff]
        %v4834 = vld [vmem:[%s4800 + $0x108] sm:$0xff]
        %v4835 = vld [vmem:[%s4800 + $0x110] sm:$0xff]
        %v4836 = vld [vmem:[%s4800 + $0x118] sm:$0xff]
        %v4837 = vld [vmem:[%s4800 + $0x120] sm:$0xff]
        %v4838 = vld [vmem:[%s4800 + $0x128] sm:$0xff]
        %v4839 = vld [vmem:[%s4800 + $0x130] sm:$0xff]
        %v4840 = vld [vmem:[%s4800 + $0x138] sm:$0xff]
        %v4841 = vld [vmem:[%s4800 + $0x140] sm:$0xff]
        %v4842 = vld [vmem:[%s4800 + $0x148] sm:$0xff]
        %v4843 = vld [vmem:[%s4800 + $0x150] sm:$0xff]
        %v4844 = vld [vmem:[%s4800 + $0x158] sm:$0xff]
        %v4845 = vld [vmem:[%s4800 + $0x160] sm:$0xff]
        %v4846 = vld [vmem:[%s4800 + $0x168] sm:$0xff]
        %v4847 = vld [vmem:[%s4800 + $0x170] sm:$0xff]
        %v4848 = vld [vmem:[%s4800 + $0x178] sm:$0xff]
        %v4849 = vld [vmem:[%s4800 + $0x180] sm:$0xff]
        %v4850 = vld [vmem:[%s4800 + $0x188] sm:$0xff]
        %v4851 = vld [vmem:[%s4800 + $0x190] sm:$0xff]
        %v4852 = vld [vmem:[%s4800 + $0x198] sm:$0xff]
        %v4853 = vld [vmem:[%s4800 + $0x1a0] sm:$0xff]
        %v4854 = vld [vmem:[%s4800 + $0x1a8] sm:$0xff]
        %v4855 = vld [vmem:[%s4800 + $0x1b0] sm:$0xff]
        %v4856 = vld [vmem:[%s4800 + $0x1b8] sm:$0xff]
        %v4857 = vld [vmem:[%s4800 + $0x1c0] sm:$0xff]
        %v4858 = vld [vmem:[%s4800 + $0x1c8] sm:$0xff]
        %v4859 = vld [vmem:[%s4800 + $0x1d0] sm:$0xff]
        %v4860 = vld [vmem:[%s4800 + $0x1d8] sm:$0xff]
        %v4861 = vld [vmem:[%s4800 + $0x1e0] sm:$0xff]
        %v4862 = vld [vmem:[%s4800 + $0x1e8] sm:$0xff]
        %v4863 = vld [vmem:[%s4800 + $0x1f0] sm:$0xff]
        %v4864 = vld [vmem:[%s4800 + $0x1f8] sm:$0xff]
        %v4929 = vunpack.c.l.b16 %v4801
        %v4930 = vunpack.c.h.b16 %v4801
        %v4931 = vunpack.c.l.b16 %v4802
        %v4932 = vunpack.c.h.b16 %v4802
        %v4933 = vunpack.c.l.b16 %v4803
        %v4934 = vunpack.c.h.b16 %v4803
        %v4935 = vunpack.c.l.b16 %v4804
        %v4936 = vunpack.c.h.b16 %v4804
        %v4937 = vunpack.c.l.b16 %v4805
        %v4938 = vunpack.c.h.b16 %v4805
        %v4939 = vunpack.c.l.b16 %v4806
        %v4940 = vunpack.c.h.b16 %v4806
        %v4941 = vunpack.c.l.b16 %v4807
        %v4942 = vunpack.c.h.b16 %v4807
        %v4943 = vunpack.c.l.b16 %v4808
        %v4944 = vunpack.c.h.b16 %v4808
        %v4945 = vunpack.c.l.b16 %v4809
        %v4946 = vunpack.c.h.b16 %v4809
        %v4947 = vunpack.c.l.b16 %v4810
        %v4948 = vunpack.c.h.b16 %v4810
        %v4949 = vunpack.c.l.b16 %v4811
        %v4950 = vunpack.c.h.b16 %v4811
        %v4951 = vunpack.c.l.b16 %v4812
        %v4952 = vunpack.c.h.b16 %v4812
        %v4953 = vunpack.c.l.b16 %v4813
        %v4954 = vunpack.c.h.b16 %v4813
        %v4955 = vunpack.c.l.b16 %v4814
        %v4956 = vunpack.c.h.b16 %v4814
        %v4957 = vunpack.c.l.b16 %v4815
        %v4958 = vunpack.c.h.b16 %v4815
        %v4959 = vunpack.c.l.b16 %v4816
        %v4960 = vunpack.c.h.b16 %v4816
        %v4961 = vunpack.c.l.b16 %v4817
        %v4962 = vunpack.c.h.b16 %v4817
        %v4963 = vunpack.c.l.b16 %v4818
        %v4964 = vunpack.c.h.b16 %v4818
        %v4965 = vunpack.c.l.b16 %v4819
        %v4966 = vunpack.c.h.b16 %v4819
        %v4967 = vunpack.c.l.b16 %v4820
        %v4968 = vunpack.c.h.b16 %v4820
        %v4969 = vunpack.c.l.b16 %v4821
        %v4970 = vunpack.c.h.b16 %v4821
        %v4971 = vunpack.c.l.b16 %v4822
        %v4972 = vunpack.c.h.b16 %v4822
        %v4973 = vunpack.c.l.b16 %v4823
        %v4974 = vunpack.c.h.b16 %v4823
        %v4975 = vunpack.c.l.b16 %v4824
        %v4976 = vunpack.c.h.b16 %v4824
        %v4977 = vunpack.c.l.b16 %v4825
        %v4978 = vunpack.c.h.b16 %v4825
        %v4979 = vunpack.c.l.b16 %v4826
        %v4980 = vunpack.c.h.b16 %v4826
        %v4981 = vunpack.c.l.b16 %v4827
        %v4982 = vunpack.c.h.b16 %v4827
        %v4983 = vunpack.c.l.b16 %v4828
        %v4984 = vunpack.c.h.b16 %v4828
        %v4985 = vunpack.c.l.b16 %v4829
        %v4986 = vunpack.c.h.b16 %v4829
        %v4987 = vunpack.c.l.b16 %v4830
        %v4988 = vunpack.c.h.b16 %v4830
        %v4989 = vunpack.c.l.b16 %v4831
        %v4990 = vunpack.c.h.b16 %v4831
        %v4991 = vunpack.c.l.b16 %v4832
        %v4992 = vunpack.c.h.b16 %v4832
        %v4993 = vunpack.c.l.b16 %v4833
        %v4994 = vunpack.c.h.b16 %v4833
        %v4995 = vunpack.c.l.b16 %v4834
        %v4996 = vunpack.c.h.b16 %v4834
        %v4997 = vunpack.c.l.b16 %v4835
        %v4998 = vunpack.c.h.b16 %v4835
        %v4999 = vunpack.c.l.b16 %v4836
        %v5000 = vunpack.c.h.b16 %v4836
        %v5001 = vunpack.c.l.b16 %v4837
        %v5002 = vunpack.c.h.b16 %v4837
        %v5003 = vunpack.c.l.b16 %v4838
        %v5004 = vunpack.c.h.b16 %v4838
        %v5005 = vunpack.c.l.b16 %v4839
        %v5006 = vunpack.c.h.b16 %v4839
        %v5007 = vunpack.c.l.b16 %v4840
        %v5008 = vunpack.c.h.b16 %v4840
        %v5009 = vunpack.c.l.b16 %v4841
        %v5010 = vunpack.c.h.b16 %v4841
        %v5011 = vunpack.c.l.b16 %v4842
        %v5012 = vunpack.c.h.b16 %v4842
        %v5013 = vunpack.c.l.b16 %v4843
        %v5014 = vunpack.c.h.b16 %v4843
        %v5015 = vunpack.c.l.b16 %v4844
        %v5016 = vunpack.c.h.b16 %v4844
        %v5017 = vunpack.c.l.b16 %v4845
        %v5018 = vunpack.c.h.b16 %v4845
        %v5019 = vunpack.c.l.b16 %v4846
        %v5020 = vunpack.c.h.b16 %v4846
        %v5021 = vunpack.c.l.b16 %v4847
        %v5022 = vunpack.c.h.b16 %v4847
        %v5023 = vunpack.c.l.b16 %v4848
        %v5024 = vunpack.c.h.b16 %v4848
        %v5025 = vunpack.c.l.b16 %v4849
        %v5026 = vunpack.c.h.b16 %v4849
        %v5027 = vunpack.c.l.b16 %v4850
        %v5028 = vunpack.c.h.b16 %v4850
        %v5029 = vunpack.c.l.b16 %v4851
        %v5030 = vunpack.c.h.b16 %v4851
        %v5031 = vunpack.c.l.b16 %v4852
        %v5032 = vunpack.c.h.b16 %v4852
        %v5033 = vunpack.c.l.b16 %v4853
        %v5034 = vunpack.c.h.b16 %v4853
        %v5035 = vunpack.c.l.b16 %v4854
        %v5036 = vunpack.c.h.b16 %v4854
        %v5037 = vunpack.c.l.b16 %v4855
        %v5038 = vunpack.c.h.b16 %v4855
        %v5039 = vunpack.c.l.b16 %v4856
        %v5040 = vunpack.c.h.b16 %v4856
        %v5041 = vunpack.c.l.b16 %v4857
        %v5042 = vunpack.c.h.b16 %v4857
        %v5043 = vunpack.c.l.b16 %v4858
        %v5044 = vunpack.c.h.b16 %v4858
        %v5045 = vunpack.c.l.b16 %v4859
        %v5046 = vunpack.c.h.b16 %v4859
        %v5047 = vunpack.c.l.b16 %v4860
        %v5048 = vunpack.c.h.b16 %v4860
        %v5049 = vunpack.c.l.b16 %v4861
        %v5050 = vunpack.c.h.b16 %v4861
        %v5051 = vunpack.c.l.b16 %v4862
        %v5052 = vunpack.c.h.b16 %v4862
        %v5053 = vunpack.c.l.b16 %v4863
        %v5054 = vunpack.c.h.b16 %v4863
        %v5055 = vunpack.c.l.b16 %v4864
        %v5056 = vunpack.c.h.b16 %v4864
        %v5057 = vpack.c.b16 %v4933, %v4929
        %v5058 = vpack.c.b16 %v4934, %v4930
        %v5059 = vpack.c.b16 %v4935, %v4931
        %v5060 = vpack.c.b16 %v4936, %v4932
        %v5061 = vpack.c.b16 %v4941, %v4937
        %v5062 = vpack.c.b16 %v4942, %v4938
        %v5063 = vpack.c.b16 %v4943, %v4939
        %v5064 = vpack.c.b16 %v4944, %v4940
        %v5065 = vpack.c.b16 %v4949, %v4945
        %v5066 = vpack.c.b16 %v4950, %v4946
        %v5067 = vpack.c.b16 %v4951, %v4947
        %v5068 = vpack.c.b16 %v4952, %v4948
        %v5069 = vpack.c.b16 %v4957, %v4953
        %v5070 = vpack.c.b16 %v4958, %v4954
        %v5071 = vpack.c.b16 %v4959, %v4955
        %v5072 = vpack.c.b16 %v4960, %v4956
        %v5073 = vpack.c.b16 %v4965, %v4961
        %v5074 = vpack.c.b16 %v4966, %v4962
        %v5075 = vpack.c.b16 %v4967, %v4963
        %v5076 = vpack.c.b16 %v4968, %v4964
        %v5077 = vpack.c.b16 %v4973, %v4969
        %v5078 = vpack.c.b16 %v4974, %v4970
        %v5079 = vpack.c.b16 %v4975, %v4971
        %v5080 = vpack.c.b16 %v4976, %v4972
        %v5081 = vpack.c.b16 %v4981, %v4977
        %v5082 = vpack.c.b16 %v4982, %v4978
        %v5083 = vpack.c.b16 %v4983, %v4979
        %v5084 = vpack.c.b16 %v4984, %v4980
        %v5085 = vpack.c.b16 %v4989, %v4985
        %v5086 = vpack.c.b16 %v4990, %v4986
        %v5087 = vpack.c.b16 %v4991, %v4987
        %v5088 = vpack.c.b16 %v4992, %v4988
        %v5089 = vpack.c.b16 %v4997, %v4993
        %v5090 = vpack.c.b16 %v4998, %v4994
        %v5091 = vpack.c.b16 %v4999, %v4995
        %v5092 = vpack.c.b16 %v5000, %v4996
        %v5093 = vpack.c.b16 %v5005, %v5001
        %v5094 = vpack.c.b16 %v5006, %v5002
        %v5095 = vpack.c.b16 %v5007, %v5003
        %v5096 = vpack.c.b16 %v5008, %v5004
        %v5097 = vpack.c.b16 %v5013, %v5009
        %v5098 = vpack.c.b16 %v5014, %v5010
        %v5099 = vpack.c.b16 %v5015, %v5011
        %v5100 = vpack.c.b16 %v5016, %v5012
        %v5101 = vpack.c.b16 %v5021, %v5017
        %v5102 = vpack.c.b16 %v5022, %v5018
        %v5103 = vpack.c.b16 %v5023, %v5019
        %v5104 = vpack.c.b16 %v5024, %v5020
        %v5105 = vpack.c.b16 %v5029, %v5025
        %v5106 = vpack.c.b16 %v5030, %v5026
        %v5107 = vpack.c.b16 %v5031, %v5027
        %v5108 = vpack.c.b16 %v5032, %v5028
        %v5109 = vpack.c.b16 %v5037, %v5033
        %v5110 = vpack.c.b16 %v5038, %v5034
        %v5111 = vpack.c.b16 %v5039, %v5035
        %v5112 = vpack.c.b16 %v5040, %v5036
        %v5113 = vpack.c.b16 %v5045, %v5041
        %v5114 = vpack.c.b16 %v5046, %v5042
        %v5115 = vpack.c.b16 %v5047, %v5043
        %v5116 = vpack.c.b16 %v5048, %v5044
        %v5117 = vpack.c.b16 %v5053, %v5049
        %v5118 = vpack.c.b16 %v5054, %v5050
        %v5119 = vpack.c.b16 %v5055, %v5051
        %v5120 = vpack.c.b16 %v5056, %v5052
        %5185 = vmatpush.bf16.msra.mxu0 %v5085
        %5186 = vmatpush.bf16.msra.mxu0 %v5081
        %5187 = vmatpush.bf16.msra.mxu0 %v5077
        %5188 = vmatpush.bf16.msra.mxu0 %v5073
        %5189 = vmatpush.bf16.msra.mxu0 %v5069
        %5190 = vmatpush.bf16.msra.mxu0 %v5065
        %5191 = vmatpush.bf16.msra.mxu0 %v5061
        %5192 = vmatpush.bf16.msra.mxu0 %v5057
        %5193 = vmatmul.bf16.gmra.mxu0 %v4798
        %v5194 = vpop.f32.mrf.mxu0
        %v5195 = vadd.f32 0.0, %v5194
        %v5196 = vpop.f32.mrf.mxu0
        %v5197 = vadd.f32 0.0, %v5196
        %5198 = vdwg.mxu0
        %5199 = vmatpush.bf16.msra.mxu0 %v5117
        %5200 = vmatpush.bf16.msra.mxu0 %v5113
        %5201 = vmatpush.bf16.msra.mxu0 %v5109
        %5202 = vmatpush.bf16.msra.mxu0 %v5105
        %5203 = vmatpush.bf16.msra.mxu0 %v5101
        %5204 = vmatpush.bf16.msra.mxu0 %v5097
        %5205 = vmatpush.bf16.msra.mxu0 %v5093
        %5206 = vmatpush.bf16.msra.mxu0 %v5089
        %5207 = vmatmul.bf16.gmra.mxu0 %v4799
        %v5208 = vpop.f32.mrf.mxu0
        %v5209 = vadd.f32 %v5195, %v5208
        %v5210 = vpop.f32.mrf.mxu0
        %v5211 = vadd.f32 %v5197, %v5210
        %5212 = vdwg.mxu0
        %5213 = vmatpush.bf16.msra.mxu0 %v5086
        %5214 = vmatpush.bf16.msra.mxu0 %v5082
        %5215 = vmatpush.bf16.msra.mxu0 %v5078
        %5216 = vmatpush.bf16.msra.mxu0 %v5074
        %5217 = vmatpush.bf16.msra.mxu0 %v5070
        %5218 = vmatpush.bf16.msra.mxu0 %v5066
        %5219 = vmatpush.bf16.msra.mxu0 %v5062
        %5220 = vmatpush.bf16.msra.mxu0 %v5058
        %5221 = vmatmul.bf16.gmra.mxu0 %v4798
        %v5222 = vpop.f32.mrf.mxu0
        %v5223 = vadd.f32 0.0, %v5222
        %v5224 = vpop.f32.mrf.mxu0
        %v5225 = vadd.f32 0.0, %v5224
        %5226 = vdwg.mxu0
        %5227 = vmatpush.bf16.msra.mxu0 %v5118
        %5228 = vmatpush.bf16.msra.mxu0 %v5114
        %5229 = vmatpush.bf16.msra.mxu0 %v5110
        %5230 = vmatpush.bf16.msra.mxu0 %v5106
        %5231 = vmatpush.bf16.msra.mxu0 %v5102
        %5232 = vmatpush.bf16.msra.mxu0 %v5098
        %5233 = vmatpush.bf16.msra.mxu0 %v5094
        %5234 = vmatpush.bf16.msra.mxu0 %v5090
        %5235 = vmatmul.bf16.gmra.mxu0 %v4799
        %v5236 = vpop.f32.mrf.mxu0
        %v5237 = vadd.f32 %v5223, %v5236
        %v5238 = vpop.f32.mrf.mxu0
        %v5239 = vadd.f32 %v5225, %v5238
        %5240 = vdwg.mxu0
        %5241 = vmatpush.bf16.msra.mxu0 %v5087
        %5242 = vmatpush.bf16.msra.mxu0 %v5083
        %5243 = vmatpush.bf16.msra.mxu0 %v5079
        %5244 = vmatpush.bf16.msra.mxu0 %v5075
        %5245 = vmatpush.bf16.msra.mxu0 %v5071
        %5246 = vmatpush.bf16.msra.mxu0 %v5067
        %5247 = vmatpush.bf16.msra.mxu0 %v5063
        %5248 = vmatpush.bf16.msra.mxu0 %v5059
        %5249 = vmatmul.bf16.gmra.mxu0 %v4798
        %v5250 = vpop.f32.mrf.mxu0
        %v5251 = vadd.f32 0.0, %v5250
        %v5252 = vpop.f32.mrf.mxu0
        %v5253 = vadd.f32 0.0, %v5252
        %5254 = vdwg.mxu0
        %5255 = vmatpush.bf16.msra.mxu0 %v5119
        %5256 = vmatpush.bf16.msra.mxu0 %v5115
        %5257 = vmatpush.bf16.msra.mxu0 %v5111
        %5258 = vmatpush.bf16.msra.mxu0 %v5107
        %5259 = vmatpush.bf16.msra.mxu0 %v5103
        %5260 = vmatpush.bf16.msra.mxu0 %v5099
        %5261 = vmatpush.bf16.msra.mxu0 %v5095
        %5262 = vmatpush.bf16.msra.mxu0 %v5091
        %5263 = vmatmul.bf16.gmra.mxu0 %v4799
        %v5264 = vpop.f32.mrf.mxu0
        %v5265 = vadd.f32 %v5251, %v5264
        %v5266 = vpop.f32.mrf.mxu0
        %v5267 = vadd.f32 %v5253, %v5266
        %5268 = vdwg.mxu0
        %5269 = vmatpush.bf16.msra.mxu0 %v5088
        %5270 = vmatpush.bf16.msra.mxu0 %v5084
        %5271 = vmatpush.bf16.msra.mxu0 %v5080
        %5272 = vmatpush.bf16.msra.mxu0 %v5076
        %5273 = vmatpush.bf16.msra.mxu0 %v5072
        %5274 = vmatpush.bf16.msra.mxu0 %v5068
        %5275 = vmatpush.bf16.msra.mxu0 %v5064
        %5276 = vmatpush.bf16.msra.mxu0 %v5060
        %5277 = vmatmul.bf16.gmra.mxu0 %v4798
        %v5278 = vpop.f32.mrf.mxu0
        %v5279 = vadd.f32 0.0, %v5278
        %v5280 = vpop.f32.mrf.mxu0
        %v5281 = vadd.f32 0.0, %v5280
        %5282 = vdwg.mxu0
        %5283 = vmatpush.bf16.msra.mxu0 %v5120
        %5284 = vmatpush.bf16.msra.mxu0 %v5116
        %5285 = vmatpush.bf16.msra.mxu0 %v5112
        %5286 = vmatpush.bf16.msra.mxu0 %v5108
        %5287 = vmatpush.bf16.msra.mxu0 %v5104
        %5288 = vmatpush.bf16.msra.mxu0 %v5100
        %5289 = vmatpush.bf16.msra.mxu0 %v5096
        %5290 = vmatpush.bf16.msra.mxu0 %v5092
        %5291 = vmatmul.bf16.gmra.mxu0 %v4799
        %v5292 = vpop.f32.mrf.mxu0
        %v5293 = vadd.f32 %v5279, %v5292
        %v5294 = vpop.f32.mrf.mxu0
        %v5295 = vadd.f32 %v5281, %v5294
        %5296 = vdwg.mxu0
        %v5297 = vadd.f32 %v4496, %v5209
        %v5298 = vadd.f32 %v4497, %v5237
        %v5299 = vadd.f32 %v4498, %v5265
        %v5300 = vadd.f32 %v4499, %v5293
        %v5301 = vadd.f32 %v4500, %v5211
        %v5302 = vadd.f32 %v4501, %v5239
        %v5303 = vadd.f32 %v4502, %v5267
        %v5304 = vadd.f32 %v4503, %v5295
        %s5305 = scalar_lea.vmem %s496, 320 [#allocation2]
        %v5306 = vld [vmem:[%s5305] sm:$0xff]
        %v5307 = vld [vmem:[%s5305 + $0x8] sm:$0xff]
        %v5308 = vld [vmem:[%s5305 + $0x10] sm:$0xff]
        %v5309 = vld [vmem:[%s5305 + $0x18] sm:$0xff]
        %v5310 = vld [vmem:[%s5305 + $0x20] sm:$0xff]
        %v5311 = vld [vmem:[%s5305 + $0x28] sm:$0xff]
        %v5312 = vld [vmem:[%s5305 + $0x30] sm:$0xff]
        %v5313 = vld [vmem:[%s5305 + $0x38] sm:$0xff]
        %v5322 = vunpack.c.l.b16 %v5306
        %v5323 = vunpack.c.h.b16 %v5306
        %v5324 = vunpack.c.l.b16 %v5307
        %v5325 = vunpack.c.h.b16 %v5307
        %v5326 = vunpack.c.l.b16 %v5308
        %v5327 = vunpack.c.h.b16 %v5308
        %v5328 = vunpack.c.l.b16 %v5309
        %v5329 = vunpack.c.h.b16 %v5309
        %v5330 = vunpack.c.l.b16 %v5310
        %v5331 = vunpack.c.h.b16 %v5310
        %v5332 = vunpack.c.l.b16 %v5311
        %v5333 = vunpack.c.h.b16 %v5311
        %v5334 = vunpack.c.l.b16 %v5312
        %v5335 = vunpack.c.h.b16 %v5312
        %v5336 = vunpack.c.l.b16 %v5313
        %v5337 = vunpack.c.h.b16 %v5313
        %v5338 = vpack.c.b16 %v5330, %v5322
        %v5339 = vpack.c.b16 %v5331, %v5323
        %v5340 = vpack.c.b16 %v5332, %v5324
        %v5341 = vpack.c.b16 %v5333, %v5325
        %v5342 = vpack.c.b16 %v5334, %v5326
        %v5343 = vpack.c.b16 %v5335, %v5327
        %v5344 = vpack.c.b16 %v5336, %v5328
        %v5345 = vpack.c.b16 %v5337, %v5329
        %5354 = vmatpush.bf16.msra.mxu0 %v1125
        %5355 = vmatpush.bf16.msra.mxu0 %v1123
        %5356 = vmatpush.bf16.msra.mxu0 %v1121
        %5357 = vmatpush.bf16.msra.mxu0 %v1119
        %5358 = vmatpush.bf16.msra.mxu0 %v1117
        %5359 = vmatpush.bf16.msra.mxu0 %v1115
        %5360 = vmatpush.bf16.msra.mxu0 %v1113
        %5361 = vmatpush.bf16.msra.mxu0 %v1111
        %5362 = vmatmul.bf16.gmra.mxu0 %v5338
        %v5363 = vpop.f32.mrf.mxu0
        %v5364 = vadd.f32 %v683, %v5363
        %v5365 = vpop.f32.mrf.mxu0
        %v5366 = vadd.f32 %v683, %v5365
        %5367 = vdwg.mxu0
        %5368 = vmatpush.bf16.msra.mxu0 %v1141
        %5369 = vmatpush.bf16.msra.mxu0 %v1139
        %5370 = vmatpush.bf16.msra.mxu0 %v1137
        %5371 = vmatpush.bf16.msra.mxu0 %v1135
        %5372 = vmatpush.bf16.msra.mxu0 %v1133
        %5373 = vmatpush.bf16.msra.mxu0 %v1131
        %5374 = vmatpush.bf16.msra.mxu0 %v1129
        %5375 = vmatpush.bf16.msra.mxu0 %v1127
        %5376 = vmatmul.bf16.gmra.mxu0 %v5339
        %v5377 = vpop.f32.mrf.mxu0
        %v5378 = vadd.f32 %v5364, %v5377
        %v5379 = vpop.f32.mrf.mxu0
        %v5380 = vadd.f32 %v5366, %v5379
        %5381 = vdwg.mxu0
        %5382 = vmatpush.bf16.msra.mxu0 %v1157
        %5383 = vmatpush.bf16.msra.mxu0 %v1155
        %5384 = vmatpush.bf16.msra.mxu0 %v1153
        %5385 = vmatpush.bf16.msra.mxu0 %v1151
        %5386 = vmatpush.bf16.msra.mxu0 %v1149
        %5387 = vmatpush.bf16.msra.mxu0 %v1147
        %5388 = vmatpush.bf16.msra.mxu0 %v1145
        %5389 = vmatpush.bf16.msra.mxu0 %v1143
        %5390 = vmatmul.bf16.gmra.mxu0 %v5340
        %v5391 = vpop.f32.mrf.mxu0
        %v5392 = vadd.f32 %v5378, %v5391
        %v5393 = vpop.f32.mrf.mxu0
        %v5394 = vadd.f32 %v5380, %v5393
        %5395 = vdwg.mxu0
        %5396 = vmatpush.bf16.msra.mxu0 %v1173
        %5397 = vmatpush.bf16.msra.mxu0 %v1171
        %5398 = vmatpush.bf16.msra.mxu0 %v1169
        %5399 = vmatpush.bf16.msra.mxu0 %v1167
        %5400 = vmatpush.bf16.msra.mxu0 %v1165
        %5401 = vmatpush.bf16.msra.mxu0 %v1163
        %5402 = vmatpush.bf16.msra.mxu0 %v1161
        %5403 = vmatpush.bf16.msra.mxu0 %v1159
        %5404 = vmatmul.bf16.gmra.mxu0 %v5341
        %v5405 = vpop.f32.mrf.mxu0
        %v5406 = vadd.f32 %v5392, %v5405
        %v5407 = vpop.f32.mrf.mxu0
        %v5408 = vadd.f32 %v5394, %v5407
        %5409 = vdwg.mxu0
        %5410 = vmatpush.bf16.msra.mxu0 %v1189
        %5411 = vmatpush.bf16.msra.mxu0 %v1187
        %5412 = vmatpush.bf16.msra.mxu0 %v1185
        %5413 = vmatpush.bf16.msra.mxu0 %v1183
        %5414 = vmatpush.bf16.msra.mxu0 %v1181
        %5415 = vmatpush.bf16.msra.mxu0 %v1179
        %5416 = vmatpush.bf16.msra.mxu0 %v1177
        %5417 = vmatpush.bf16.msra.mxu0 %v1175
        %5418 = vmatmul.bf16.gmra.mxu0 %v5342
        %v5419 = vpop.f32.mrf.mxu0
        %v5420 = vadd.f32 %v5406, %v5419
        %v5421 = vpop.f32.mrf.mxu0
        %v5422 = vadd.f32 %v5408, %v5421
        %5423 = vdwg.mxu0
        %5424 = vmatpush.bf16.msra.mxu0 %v1205
        %5425 = vmatpush.bf16.msra.mxu0 %v1203
        %5426 = vmatpush.bf16.msra.mxu0 %v1201
        %5427 = vmatpush.bf16.msra.mxu0 %v1199
        %5428 = vmatpush.bf16.msra.mxu0 %v1197
        %5429 = vmatpush.bf16.msra.mxu0 %v1195
        %5430 = vmatpush.bf16.msra.mxu0 %v1193
        %5431 = vmatpush.bf16.msra.mxu0 %v1191
        %5432 = vmatmul.bf16.gmra.mxu0 %v5343
        %v5433 = vpop.f32.mrf.mxu0
        %v5434 = vadd.f32 %v5420, %v5433
        %v5435 = vpop.f32.mrf.mxu0
        %v5436 = vadd.f32 %v5422, %v5435
        %5437 = vdwg.mxu0
        %5438 = vmatpush.bf16.msra.mxu0 %v1221
        %5439 = vmatpush.bf16.msra.mxu0 %v1219
        %5440 = vmatpush.bf16.msra.mxu0 %v1217
        %5441 = vmatpush.bf16.msra.mxu0 %v1215
        %5442 = vmatpush.bf16.msra.mxu0 %v1213
        %5443 = vmatpush.bf16.msra.mxu0 %v1211
        %5444 = vmatpush.bf16.msra.mxu0 %v1209
        %5445 = vmatpush.bf16.msra.mxu0 %v1207
        %5446 = vmatmul.bf16.gmra.mxu0 %v5344
        %v5447 = vpop.f32.mrf.mxu0
        %v5448 = vadd.f32 %v5434, %v5447
        %v5449 = vpop.f32.mrf.mxu0
        %v5450 = vadd.f32 %v5436, %v5449
        %5451 = vdwg.mxu0
        %5452 = vmatpush.bf16.msra.mxu0 %v1237
        %5453 = vmatpush.bf16.msra.mxu0 %v1235
        %5454 = vmatpush.bf16.msra.mxu0 %v1233
        %5455 = vmatpush.bf16.msra.mxu0 %v1231
        %5456 = vmatpush.bf16.msra.mxu0 %v1229
        %5457 = vmatpush.bf16.msra.mxu0 %v1227
        %5458 = vmatpush.bf16.msra.mxu0 %v1225
        %5459 = vmatpush.bf16.msra.mxu0 %v1223
        %5460 = vmatmul.bf16.gmra.mxu0 %v5345
        %v5461 = vpop.f32.mrf.mxu0
        %v5462 = vadd.f32 %v5448, %v5461
        %v5463 = vpop.f32.mrf.mxu0
        %v5464 = vadd.f32 %v5450, %v5463
        %5465 = vdwg.mxu0
        %5466 = vmatpush.bf16.msra.mxu0 %v1126
        %5467 = vmatpush.bf16.msra.mxu0 %v1124
        %5468 = vmatpush.bf16.msra.mxu0 %v1122
        %5469 = vmatpush.bf16.msra.mxu0 %v1120
        %5470 = vmatpush.bf16.msra.mxu0 %v1118
        %5471 = vmatpush.bf16.msra.mxu0 %v1116
        %5472 = vmatpush.bf16.msra.mxu0 %v1114
        %5473 = vmatpush.bf16.msra.mxu0 %v1112
        %5474 = vmatmul.bf16.gmra.mxu0 %v5338
        %v5475 = vpop.f32.mrf.mxu0
        %v5476 = vadd.f32 %v684, %v5475
        %v5477 = vpop.f32.mrf.mxu0
        %v5478 = vadd.f32 %v684, %v5477
        %5479 = vdwg.mxu0
        %5480 = vmatpush.bf16.msra.mxu0 %v1142
        %5481 = vmatpush.bf16.msra.mxu0 %v1140
        %5482 = vmatpush.bf16.msra.mxu0 %v1138
        %5483 = vmatpush.bf16.msra.mxu0 %v1136
        %5484 = vmatpush.bf16.msra.mxu0 %v1134
        %5485 = vmatpush.bf16.msra.mxu0 %v1132
        %5486 = vmatpush.bf16.msra.mxu0 %v1130
        %5487 = vmatpush.bf16.msra.mxu0 %v1128
        %5488 = vmatmul.bf16.gmra.mxu0 %v5339
        %v5489 = vpop.f32.mrf.mxu0
        %v5490 = vadd.f32 %v5476, %v5489
        %v5491 = vpop.f32.mrf.mxu0
        %v5492 = vadd.f32 %v5478, %v5491
        %5493 = vdwg.mxu0
        %5494 = vmatpush.bf16.msra.mxu0 %v1158
        %5495 = vmatpush.bf16.msra.mxu0 %v1156
        %5496 = vmatpush.bf16.msra.mxu0 %v1154
        %5497 = vmatpush.bf16.msra.mxu0 %v1152
        %5498 = vmatpush.bf16.msra.mxu0 %v1150
        %5499 = vmatpush.bf16.msra.mxu0 %v1148
        %5500 = vmatpush.bf16.msra.mxu0 %v1146
        %5501 = vmatpush.bf16.msra.mxu0 %v1144
        %5502 = vmatmul.bf16.gmra.mxu0 %v5340
        %v5503 = vpop.f32.mrf.mxu0
        %v5504 = vadd.f32 %v5490, %v5503
        %v5505 = vpop.f32.mrf.mxu0
        %v5506 = vadd.f32 %v5492, %v5505
        %5507 = vdwg.mxu0
        %5508 = vmatpush.bf16.msra.mxu0 %v1174
        %5509 = vmatpush.bf16.msra.mxu0 %v1172
        %5510 = vmatpush.bf16.msra.mxu0 %v1170
        %5511 = vmatpush.bf16.msra.mxu0 %v1168
        %5512 = vmatpush.bf16.msra.mxu0 %v1166
        %5513 = vmatpush.bf16.msra.mxu0 %v1164
        %5514 = vmatpush.bf16.msra.mxu0 %v1162
        %5515 = vmatpush.bf16.msra.mxu0 %v1160
        %5516 = vmatmul.bf16.gmra.mxu0 %v5341
        %v5517 = vpop.f32.mrf.mxu0
        %v5518 = vadd.f32 %v5504, %v5517
        %v5519 = vpop.f32.mrf.mxu0
        %v5520 = vadd.f32 %v5506, %v5519
        %5521 = vdwg.mxu0
        %5522 = vmatpush.bf16.msra.mxu0 %v1190
        %5523 = vmatpush.bf16.msra.mxu0 %v1188
        %5524 = vmatpush.bf16.msra.mxu0 %v1186
        %5525 = vmatpush.bf16.msra.mxu0 %v1184
        %5526 = vmatpush.bf16.msra.mxu0 %v1182
        %5527 = vmatpush.bf16.msra.mxu0 %v1180
        %5528 = vmatpush.bf16.msra.mxu0 %v1178
        %5529 = vmatpush.bf16.msra.mxu0 %v1176
        %5530 = vmatmul.bf16.gmra.mxu0 %v5342
        %v5531 = vpop.f32.mrf.mxu0
        %v5532 = vadd.f32 %v5518, %v5531
        %v5533 = vpop.f32.mrf.mxu0
        %v5534 = vadd.f32 %v5520, %v5533
        %5535 = vdwg.mxu0
        %5536 = vmatpush.bf16.msra.mxu0 %v1206
        %5537 = vmatpush.bf16.msra.mxu0 %v1204
        %5538 = vmatpush.bf16.msra.mxu0 %v1202
        %5539 = vmatpush.bf16.msra.mxu0 %v1200
        %5540 = vmatpush.bf16.msra.mxu0 %v1198
        %5541 = vmatpush.bf16.msra.mxu0 %v1196
        %5542 = vmatpush.bf16.msra.mxu0 %v1194
        %5543 = vmatpush.bf16.msra.mxu0 %v1192
        %5544 = vmatmul.bf16.gmra.mxu0 %v5343
        %v5545 = vpop.f32.mrf.mxu0
        %v5546 = vadd.f32 %v5532, %v5545
        %v5547 = vpop.f32.mrf.mxu0
        %v5548 = vadd.f32 %v5534, %v5547
        %5549 = vdwg.mxu0
        %5550 = vmatpush.bf16.msra.mxu0 %v1222
        %5551 = vmatpush.bf16.msra.mxu0 %v1220
        %5552 = vmatpush.bf16.msra.mxu0 %v1218
        %5553 = vmatpush.bf16.msra.mxu0 %v1216
        %5554 = vmatpush.bf16.msra.mxu0 %v1214
        %5555 = vmatpush.bf16.msra.mxu0 %v1212
        %5556 = vmatpush.bf16.msra.mxu0 %v1210
        %5557 = vmatpush.bf16.msra.mxu0 %v1208
        %5558 = vmatmul.bf16.gmra.mxu0 %v5344
        %v5559 = vpop.f32.mrf.mxu0
        %v5560 = vadd.f32 %v5546, %v5559
        %v5561 = vpop.f32.mrf.mxu0
        %v5562 = vadd.f32 %v5548, %v5561
        %5563 = vdwg.mxu0
        %5564 = vmatpush.bf16.msra.mxu0 %v1238
        %5565 = vmatpush.bf16.msra.mxu0 %v1236
        %5566 = vmatpush.bf16.msra.mxu0 %v1234
        %5567 = vmatpush.bf16.msra.mxu0 %v1232
        %5568 = vmatpush.bf16.msra.mxu0 %v1230
        %5569 = vmatpush.bf16.msra.mxu0 %v1228
        %5570 = vmatpush.bf16.msra.mxu0 %v1226
        %5571 = vmatpush.bf16.msra.mxu0 %v1224
        %5572 = vmatmul.bf16.gmra.mxu0 %v5345
        %v5573 = vpop.f32.mrf.mxu0
        %v5574 = vadd.f32 %v5560, %v5573
        %v5575 = vpop.f32.mrf.mxu0
        %v5576 = vadd.f32 %v5562, %v5575
        %5577 = vdwg.mxu0
        %v5578 = vmax.f32 %v5462, 0.0
        %v5579 = vmax.f32 %v5574, 0.0
        %v5580 = vmax.f32 %v5464, 0.0
        %v5581 = vmax.f32 %v5576, 0.0
        %s5582 = scalar_lea.vmem %s503, 80 [#allocation3]
        %v5583 = vld [vmem:[%s5582] sm:$0xff]
        %v5584 = vld [vmem:[%s5582 + $0x8] sm:$0xff]
        %5586 = vset.pattern.permute.xlu0 0
        %5587 = vperm.xlu0 %5586, %v5583
        %v5588 = vpop.permute.xlu0 %5587
        %5591 = vset.pattern.permute.xlu0 0
        %5592 = vperm.xlu0 %5591, %v5584
        %v5593 = vpop.permute.xlu0 %5592
        %v5595 = vmul.f32 %v5578, %v5588
        %v5596 = vmul.f32 %v5579, %v5588
        %v5597 = vmul.f32 %v5580, %v5593
        %v5598 = vmul.f32 %v5581, %v5593
        %v5599 = vpack.c.bf16 %v5597, %v5595
        %v5600 = vpack.c.bf16 %v5598, %v5596
        %s5601 = scalar_lea.vmem %s4, 2560
        %v5602 = vld [vmem:[%s5601] sm:$0xff]
        %v5603 = vld [vmem:[%s5601 + $0x8] sm:$0xff]
        %v5604 = vld [vmem:[%s5601 + $0x10] sm:$0xff]
        %v5605 = vld [vmem:[%s5601 + $0x18] sm:$0xff]
        %v5606 = vld [vmem:[%s5601 + $0x20] sm:$0xff]
        %v5607 = vld [vmem:[%s5601 + $0x28] sm:$0xff]
        %v5608 = vld [vmem:[%s5601 + $0x30] sm:$0xff]
        %v5609 = vld [vmem:[%s5601 + $0x38] sm:$0xff]
        %v5610 = vld [vmem:[%s5601 + $0x40] sm:$0xff]
        %v5611 = vld [vmem:[%s5601 + $0x48] sm:$0xff]
        %v5612 = vld [vmem:[%s5601 + $0x50] sm:$0xff]
        %v5613 = vld [vmem:[%s5601 + $0x58] sm:$0xff]
        %v5614 = vld [vmem:[%s5601 + $0x60] sm:$0xff]
        %v5615 = vld [vmem:[%s5601 + $0x68] sm:$0xff]
        %v5616 = vld [vmem:[%s5601 + $0x70] sm:$0xff]
        %v5617 = vld [vmem:[%s5601 + $0x78] sm:$0xff]
        %v5618 = vld [vmem:[%s5601 + $0x80] sm:$0xff]
        %v5619 = vld [vmem:[%s5601 + $0x88] sm:$0xff]
        %v5620 = vld [vmem:[%s5601 + $0x90] sm:$0xff]
        %v5621 = vld [vmem:[%s5601 + $0x98] sm:$0xff]
        %v5622 = vld [vmem:[%s5601 + $0xa0] sm:$0xff]
        %v5623 = vld [vmem:[%s5601 + $0xa8] sm:$0xff]
        %v5624 = vld [vmem:[%s5601 + $0xb0] sm:$0xff]
        %v5625 = vld [vmem:[%s5601 + $0xb8] sm:$0xff]
        %v5626 = vld [vmem:[%s5601 + $0xc0] sm:$0xff]
        %v5627 = vld [vmem:[%s5601 + $0xc8] sm:$0xff]
        %v5628 = vld [vmem:[%s5601 + $0xd0] sm:$0xff]
        %v5629 = vld [vmem:[%s5601 + $0xd8] sm:$0xff]
        %v5630 = vld [vmem:[%s5601 + $0xe0] sm:$0xff]
        %v5631 = vld [vmem:[%s5601 + $0xe8] sm:$0xff]
        %v5632 = vld [vmem:[%s5601 + $0xf0] sm:$0xff]
        %v5633 = vld [vmem:[%s5601 + $0xf8] sm:$0xff]
        %v5634 = vld [vmem:[%s5601 + $0x100] sm:$0xff]
        %v5635 = vld [vmem:[%s5601 + $0x108] sm:$0xff]
        %v5636 = vld [vmem:[%s5601 + $0x110] sm:$0xff]
        %v5637 = vld [vmem:[%s5601 + $0x118] sm:$0xff]
        %v5638 = vld [vmem:[%s5601 + $0x120] sm:$0xff]
        %v5639 = vld [vmem:[%s5601 + $0x128] sm:$0xff]
        %v5640 = vld [vmem:[%s5601 + $0x130] sm:$0xff]
        %v5641 = vld [vmem:[%s5601 + $0x138] sm:$0xff]
        %v5642 = vld [vmem:[%s5601 + $0x140] sm:$0xff]
        %v5643 = vld [vmem:[%s5601 + $0x148] sm:$0xff]
        %v5644 = vld [vmem:[%s5601 + $0x150] sm:$0xff]
        %v5645 = vld [vmem:[%s5601 + $0x158] sm:$0xff]
        %v5646 = vld [vmem:[%s5601 + $0x160] sm:$0xff]
        %v5647 = vld [vmem:[%s5601 + $0x168] sm:$0xff]
        %v5648 = vld [vmem:[%s5601 + $0x170] sm:$0xff]
        %v5649 = vld [vmem:[%s5601 + $0x178] sm:$0xff]
        %v5650 = vld [vmem:[%s5601 + $0x180] sm:$0xff]
        %v5651 = vld [vmem:[%s5601 + $0x188] sm:$0xff]
        %v5652 = vld [vmem:[%s5601 + $0x190] sm:$0xff]
        %v5653 = vld [vmem:[%s5601 + $0x198] sm:$0xff]
        %v5654 = vld [vmem:[%s5601 + $0x1a0] sm:$0xff]
        %v5655 = vld [vmem:[%s5601 + $0x1a8] sm:$0xff]
        %v5656 = vld [vmem:[%s5601 + $0x1b0] sm:$0xff]
        %v5657 = vld [vmem:[%s5601 + $0x1b8] sm:$0xff]
        %v5658 = vld [vmem:[%s5601 + $0x1c0] sm:$0xff]
        %v5659 = vld [vmem:[%s5601 + $0x1c8] sm:$0xff]
        %v5660 = vld [vmem:[%s5601 + $0x1d0] sm:$0xff]
        %v5661 = vld [vmem:[%s5601 + $0x1d8] sm:$0xff]
        %v5662 = vld [vmem:[%s5601 + $0x1e0] sm:$0xff]
        %v5663 = vld [vmem:[%s5601 + $0x1e8] sm:$0xff]
        %v5664 = vld [vmem:[%s5601 + $0x1f0] sm:$0xff]
        %v5665 = vld [vmem:[%s5601 + $0x1f8] sm:$0xff]
        %v5730 = vunpack.c.l.b16 %v5602
        %v5731 = vunpack.c.h.b16 %v5602
        %v5732 = vunpack.c.l.b16 %v5603
        %v5733 = vunpack.c.h.b16 %v5603
        %v5734 = vunpack.c.l.b16 %v5604
        %v5735 = vunpack.c.h.b16 %v5604
        %v5736 = vunpack.c.l.b16 %v5605
        %v5737 = vunpack.c.h.b16 %v5605
        %v5738 = vunpack.c.l.b16 %v5606
        %v5739 = vunpack.c.h.b16 %v5606
        %v5740 = vunpack.c.l.b16 %v5607
        %v5741 = vunpack.c.h.b16 %v5607
        %v5742 = vunpack.c.l.b16 %v5608
        %v5743 = vunpack.c.h.b16 %v5608
        %v5744 = vunpack.c.l.b16 %v5609
        %v5745 = vunpack.c.h.b16 %v5609
        %v5746 = vunpack.c.l.b16 %v5610
        %v5747 = vunpack.c.h.b16 %v5610
        %v5748 = vunpack.c.l.b16 %v5611
        %v5749 = vunpack.c.h.b16 %v5611
        %v5750 = vunpack.c.l.b16 %v5612
        %v5751 = vunpack.c.h.b16 %v5612
        %v5752 = vunpack.c.l.b16 %v5613
        %v5753 = vunpack.c.h.b16 %v5613
        %v5754 = vunpack.c.l.b16 %v5614
        %v5755 = vunpack.c.h.b16 %v5614
        %v5756 = vunpack.c.l.b16 %v5615
        %v5757 = vunpack.c.h.b16 %v5615
        %v5758 = vunpack.c.l.b16 %v5616
        %v5759 = vunpack.c.h.b16 %v5616
        %v5760 = vunpack.c.l.b16 %v5617
        %v5761 = vunpack.c.h.b16 %v5617
        %v5762 = vunpack.c.l.b16 %v5618
        %v5763 = vunpack.c.h.b16 %v5618
        %v5764 = vunpack.c.l.b16 %v5619
        %v5765 = vunpack.c.h.b16 %v5619
        %v5766 = vunpack.c.l.b16 %v5620
        %v5767 = vunpack.c.h.b16 %v5620
        %v5768 = vunpack.c.l.b16 %v5621
        %v5769 = vunpack.c.h.b16 %v5621
        %v5770 = vunpack.c.l.b16 %v5622
        %v5771 = vunpack.c.h.b16 %v5622
        %v5772 = vunpack.c.l.b16 %v5623
        %v5773 = vunpack.c.h.b16 %v5623
        %v5774 = vunpack.c.l.b16 %v5624
        %v5775 = vunpack.c.h.b16 %v5624
        %v5776 = vunpack.c.l.b16 %v5625
        %v5777 = vunpack.c.h.b16 %v5625
        %v5778 = vunpack.c.l.b16 %v5626
        %v5779 = vunpack.c.h.b16 %v5626
        %v5780 = vunpack.c.l.b16 %v5627
        %v5781 = vunpack.c.h.b16 %v5627
        %v5782 = vunpack.c.l.b16 %v5628
        %v5783 = vunpack.c.h.b16 %v5628
        %v5784 = vunpack.c.l.b16 %v5629
        %v5785 = vunpack.c.h.b16 %v5629
        %v5786 = vunpack.c.l.b16 %v5630
        %v5787 = vunpack.c.h.b16 %v5630
        %v5788 = vunpack.c.l.b16 %v5631
        %v5789 = vunpack.c.h.b16 %v5631
        %v5790 = vunpack.c.l.b16 %v5632
        %v5791 = vunpack.c.h.b16 %v5632
        %v5792 = vunpack.c.l.b16 %v5633
        %v5793 = vunpack.c.h.b16 %v5633
        %v5794 = vunpack.c.l.b16 %v5634
        %v5795 = vunpack.c.h.b16 %v5634
        %v5796 = vunpack.c.l.b16 %v5635
        %v5797 = vunpack.c.h.b16 %v5635
        %v5798 = vunpack.c.l.b16 %v5636
        %v5799 = vunpack.c.h.b16 %v5636
        %v5800 = vunpack.c.l.b16 %v5637
        %v5801 = vunpack.c.h.b16 %v5637
        %v5802 = vunpack.c.l.b16 %v5638
        %v5803 = vunpack.c.h.b16 %v5638
        %v5804 = vunpack.c.l.b16 %v5639
        %v5805 = vunpack.c.h.b16 %v5639
        %v5806 = vunpack.c.l.b16 %v5640
        %v5807 = vunpack.c.h.b16 %v5640
        %v5808 = vunpack.c.l.b16 %v5641
        %v5809 = vunpack.c.h.b16 %v5641
        %v5810 = vunpack.c.l.b16 %v5642
        %v5811 = vunpack.c.h.b16 %v5642
        %v5812 = vunpack.c.l.b16 %v5643
        %v5813 = vunpack.c.h.b16 %v5643
        %v5814 = vunpack.c.l.b16 %v5644
        %v5815 = vunpack.c.h.b16 %v5644
        %v5816 = vunpack.c.l.b16 %v5645
        %v5817 = vunpack.c.h.b16 %v5645
        %v5818 = vunpack.c.l.b16 %v5646
        %v5819 = vunpack.c.h.b16 %v5646
        %v5820 = vunpack.c.l.b16 %v5647
        %v5821 = vunpack.c.h.b16 %v5647
        %v5822 = vunpack.c.l.b16 %v5648
        %v5823 = vunpack.c.h.b16 %v5648
        %v5824 = vunpack.c.l.b16 %v5649
        %v5825 = vunpack.c.h.b16 %v5649
        %v5826 = vunpack.c.l.b16 %v5650
        %v5827 = vunpack.c.h.b16 %v5650
        %v5828 = vunpack.c.l.b16 %v5651
        %v5829 = vunpack.c.h.b16 %v5651
        %v5830 = vunpack.c.l.b16 %v5652
        %v5831 = vunpack.c.h.b16 %v5652
        %v5832 = vunpack.c.l.b16 %v5653
        %v5833 = vunpack.c.h.b16 %v5653
        %v5834 = vunpack.c.l.b16 %v5654
        %v5835 = vunpack.c.h.b16 %v5654
        %v5836 = vunpack.c.l.b16 %v5655
        %v5837 = vunpack.c.h.b16 %v5655
        %v5838 = vunpack.c.l.b16 %v5656
        %v5839 = vunpack.c.h.b16 %v5656
        %v5840 = vunpack.c.l.b16 %v5657
        %v5841 = vunpack.c.h.b16 %v5657
        %v5842 = vunpack.c.l.b16 %v5658
        %v5843 = vunpack.c.h.b16 %v5658
        %v5844 = vunpack.c.l.b16 %v5659
        %v5845 = vunpack.c.h.b16 %v5659
        %v5846 = vunpack.c.l.b16 %v5660
        %v5847 = vunpack.c.h.b16 %v5660
        %v5848 = vunpack.c.l.b16 %v5661
        %v5849 = vunpack.c.h.b16 %v5661
        %v5850 = vunpack.c.l.b16 %v5662
        %v5851 = vunpack.c.h.b16 %v5662
        %v5852 = vunpack.c.l.b16 %v5663
        %v5853 = vunpack.c.h.b16 %v5663
        %v5854 = vunpack.c.l.b16 %v5664
        %v5855 = vunpack.c.h.b16 %v5664
        %v5856 = vunpack.c.l.b16 %v5665
        %v5857 = vunpack.c.h.b16 %v5665
        %v5858 = vpack.c.b16 %v5734, %v5730
        %v5859 = vpack.c.b16 %v5735, %v5731
        %v5860 = vpack.c.b16 %v5736, %v5732
        %v5861 = vpack.c.b16 %v5737, %v5733
        %v5862 = vpack.c.b16 %v5742, %v5738
        %v5863 = vpack.c.b16 %v5743, %v5739
        %v5864 = vpack.c.b16 %v5744, %v5740
        %v5865 = vpack.c.b16 %v5745, %v5741
        %v5866 = vpack.c.b16 %v5750, %v5746
        %v5867 = vpack.c.b16 %v5751, %v5747
        %v5868 = vpack.c.b16 %v5752, %v5748
        %v5869 = vpack.c.b16 %v5753, %v5749
        %v5870 = vpack.c.b16 %v5758, %v5754
        %v5871 = vpack.c.b16 %v5759, %v5755
        %v5872 = vpack.c.b16 %v5760, %v5756
        %v5873 = vpack.c.b16 %v5761, %v5757
        %v5874 = vpack.c.b16 %v5766, %v5762
        %v5875 = vpack.c.b16 %v5767, %v5763
        %v5876 = vpack.c.b16 %v5768, %v5764
        %v5877 = vpack.c.b16 %v5769, %v5765
        %v5878 = vpack.c.b16 %v5774, %v5770
        %v5879 = vpack.c.b16 %v5775, %v5771
        %v5880 = vpack.c.b16 %v5776, %v5772
        %v5881 = vpack.c.b16 %v5777, %v5773
        %v5882 = vpack.c.b16 %v5782, %v5778
        %v5883 = vpack.c.b16 %v5783, %v5779
        %v5884 = vpack.c.b16 %v5784, %v5780
        %v5885 = vpack.c.b16 %v5785, %v5781
        %v5886 = vpack.c.b16 %v5790, %v5786
        %v5887 = vpack.c.b16 %v5791, %v5787
        %v5888 = vpack.c.b16 %v5792, %v5788
        %v5889 = vpack.c.b16 %v5793, %v5789
        %v5890 = vpack.c.b16 %v5798, %v5794
        %v5891 = vpack.c.b16 %v5799, %v5795
        %v5892 = vpack.c.b16 %v5800, %v5796
        %v5893 = vpack.c.b16 %v5801, %v5797
        %v5894 = vpack.c.b16 %v5806, %v5802
        %v5895 = vpack.c.b16 %v5807, %v5803
        %v5896 = vpack.c.b16 %v5808, %v5804
        %v5897 = vpack.c.b16 %v5809, %v5805
        %v5898 = vpack.c.b16 %v5814, %v5810
        %v5899 = vpack.c.b16 %v5815, %v5811
        %v5900 = vpack.c.b16 %v5816, %v5812
        %v5901 = vpack.c.b16 %v5817, %v5813
        %v5902 = vpack.c.b16 %v5822, %v5818
        %v5903 = vpack.c.b16 %v5823, %v5819
        %v5904 = vpack.c.b16 %v5824, %v5820
        %v5905 = vpack.c.b16 %v5825, %v5821
        %v5906 = vpack.c.b16 %v5830, %v5826
        %v5907 = vpack.c.b16 %v5831, %v5827
        %v5908 = vpack.c.b16 %v5832, %v5828
        %v5909 = vpack.c.b16 %v5833, %v5829
        %v5910 = vpack.c.b16 %v5838, %v5834
        %v5911 = vpack.c.b16 %v5839, %v5835
        %v5912 = vpack.c.b16 %v5840, %v5836
        %v5913 = vpack.c.b16 %v5841, %v5837
        %v5914 = vpack.c.b16 %v5846, %v5842
        %v5915 = vpack.c.b16 %v5847, %v5843
        %v5916 = vpack.c.b16 %v5848, %v5844
        %v5917 = vpack.c.b16 %v5849, %v5845
        %v5918 = vpack.c.b16 %v5854, %v5850
        %v5919 = vpack.c.b16 %v5855, %v5851
        %v5920 = vpack.c.b16 %v5856, %v5852
        %v5921 = vpack.c.b16 %v5857, %v5853
        %5986 = vmatpush.bf16.msra.mxu0 %v5886
        %5987 = vmatpush.bf16.msra.mxu0 %v5882
        %5988 = vmatpush.bf16.msra.mxu0 %v5878
        %5989 = vmatpush.bf16.msra.mxu0 %v5874
        %5990 = vmatpush.bf16.msra.mxu0 %v5870
        %5991 = vmatpush.bf16.msra.mxu0 %v5866
        %5992 = vmatpush.bf16.msra.mxu0 %v5862
        %5993 = vmatpush.bf16.msra.mxu0 %v5858
        %5994 = vmatmul.bf16.gmra.mxu0 %v5599
        %v5995 = vpop.f32.mrf.mxu0
        %v5996 = vadd.f32 0.0, %v5995
        %v5997 = vpop.f32.mrf.mxu0
        %v5998 = vadd.f32 0.0, %v5997
        %5999 = vdwg.mxu0
        %6000 = vmatpush.bf16.msra.mxu0 %v5918
        %6001 = vmatpush.bf16.msra.mxu0 %v5914
        %6002 = vmatpush.bf16.msra.mxu0 %v5910
        %6003 = vmatpush.bf16.msra.mxu0 %v5906
        %6004 = vmatpush.bf16.msra.mxu0 %v5902
        %6005 = vmatpush.bf16.msra.mxu0 %v5898
        %6006 = vmatpush.bf16.msra.mxu0 %v5894
        %6007 = vmatpush.bf16.msra.mxu0 %v5890
        %6008 = vmatmul.bf16.gmra.mxu0 %v5600
        %v6009 = vpop.f32.mrf.mxu0
        %v6010 = vadd.f32 %v5996, %v6009
        %v6011 = vpop.f32.mrf.mxu0
        %v6012 = vadd.f32 %v5998, %v6011
        %6013 = vdwg.mxu0
        %6014 = vmatpush.bf16.msra.mxu0 %v5887
        %6015 = vmatpush.bf16.msra.mxu0 %v5883
        %6016 = vmatpush.bf16.msra.mxu0 %v5879
        %6017 = vmatpush.bf16.msra.mxu0 %v5875
        %6018 = vmatpush.bf16.msra.mxu0 %v5871
        %6019 = vmatpush.bf16.msra.mxu0 %v5867
        %6020 = vmatpush.bf16.msra.mxu0 %v5863
        %6021 = vmatpush.bf16.msra.mxu0 %v5859
        %6022 = vmatmul.bf16.gmra.mxu0 %v5599
        %v6023 = vpop.f32.mrf.mxu0
        %v6024 = vadd.f32 0.0, %v6023
        %v6025 = vpop.f32.mrf.mxu0
        %v6026 = vadd.f32 0.0, %v6025
        %6027 = vdwg.mxu0
        %6028 = vmatpush.bf16.msra.mxu0 %v5919
        %6029 = vmatpush.bf16.msra.mxu0 %v5915
        %6030 = vmatpush.bf16.msra.mxu0 %v5911
        %6031 = vmatpush.bf16.msra.mxu0 %v5907
        %6032 = vmatpush.bf16.msra.mxu0 %v5903
        %6033 = vmatpush.bf16.msra.mxu0 %v5899
        %6034 = vmatpush.bf16.msra.mxu0 %v5895
        %6035 = vmatpush.bf16.msra.mxu0 %v5891
        %6036 = vmatmul.bf16.gmra.mxu0 %v5600
        %v6037 = vpop.f32.mrf.mxu0
        %v6038 = vadd.f32 %v6024, %v6037
        %v6039 = vpop.f32.mrf.mxu0
        %v6040 = vadd.f32 %v6026, %v6039
        %6041 = vdwg.mxu0
        %6042 = vmatpush.bf16.msra.mxu0 %v5888
        %6043 = vmatpush.bf16.msra.mxu0 %v5884
        %6044 = vmatpush.bf16.msra.mxu0 %v5880
        %6045 = vmatpush.bf16.msra.mxu0 %v5876
        %6046 = vmatpush.bf16.msra.mxu0 %v5872
        %6047 = vmatpush.bf16.msra.mxu0 %v5868
        %6048 = vmatpush.bf16.msra.mxu0 %v5864
        %6049 = vmatpush.bf16.msra.mxu0 %v5860
        %6050 = vmatmul.bf16.gmra.mxu0 %v5599
        %v6051 = vpop.f32.mrf.mxu0
        %v6052 = vadd.f32 0.0, %v6051
        %v6053 = vpop.f32.mrf.mxu0
        %v6054 = vadd.f32 0.0, %v6053
        %6055 = vdwg.mxu0
        %6056 = vmatpush.bf16.msra.mxu0 %v5920
        %6057 = vmatpush.bf16.msra.mxu0 %v5916
        %6058 = vmatpush.bf16.msra.mxu0 %v5912
        %6059 = vmatpush.bf16.msra.mxu0 %v5908
        %6060 = vmatpush.bf16.msra.mxu0 %v5904
        %6061 = vmatpush.bf16.msra.mxu0 %v5900
        %6062 = vmatpush.bf16.msra.mxu0 %v5896
        %6063 = vmatpush.bf16.msra.mxu0 %v5892
        %6064 = vmatmul.bf16.gmra.mxu0 %v5600
        %v6065 = vpop.f32.mrf.mxu0
        %v6066 = vadd.f32 %v6052, %v6065
        %v6067 = vpop.f32.mrf.mxu0
        %v6068 = vadd.f32 %v6054, %v6067
        %6069 = vdwg.mxu0
        %6070 = vmatpush.bf16.msra.mxu0 %v5889
        %6071 = vmatpush.bf16.msra.mxu0 %v5885
        %6072 = vmatpush.bf16.msra.mxu0 %v5881
        %6073 = vmatpush.bf16.msra.mxu0 %v5877
        %6074 = vmatpush.bf16.msra.mxu0 %v5873
        %6075 = vmatpush.bf16.msra.mxu0 %v5869
        %6076 = vmatpush.bf16.msra.mxu0 %v5865
        %6077 = vmatpush.bf16.msra.mxu0 %v5861
        %6078 = vmatmul.bf16.gmra.mxu0 %v5599
        %v6079 = vpop.f32.mrf.mxu0
        %v6080 = vadd.f32 0.0, %v6079
        %v6081 = vpop.f32.mrf.mxu0
        %v6082 = vadd.f32 0.0, %v6081
        %6083 = vdwg.mxu0
        %6084 = vmatpush.bf16.msra.mxu0 %v5921
        %6085 = vmatpush.bf16.msra.mxu0 %v5917
        %6086 = vmatpush.bf16.msra.mxu0 %v5913
        %6087 = vmatpush.bf16.msra.mxu0 %v5909
        %6088 = vmatpush.bf16.msra.mxu0 %v5905
        %6089 = vmatpush.bf16.msra.mxu0 %v5901
        %6090 = vmatpush.bf16.msra.mxu0 %v5897
        %6091 = vmatpush.bf16.msra.mxu0 %v5893
        %6092 = vmatmul.bf16.gmra.mxu0 %v5600
        %v6093 = vpop.f32.mrf.mxu0
        %v6094 = vadd.f32 %v6080, %v6093
        %v6095 = vpop.f32.mrf.mxu0
        %v6096 = vadd.f32 %v6082, %v6095
        %6097 = vdwg.mxu0
        %v6098 = vadd.f32 %v5297, %v6010
        %v6099 = vadd.f32 %v5298, %v6038
        %v6100 = vadd.f32 %v5299, %v6066
        %v6101 = vadd.f32 %v5300, %v6094
        %v6102 = vadd.f32 %v5301, %v6012
        %v6103 = vadd.f32 %v5302, %v6040
        %v6104 = vadd.f32 %v5303, %v6068
        %v6105 = vadd.f32 %v5304, %v6096
        %s6106 = scalar_lea.vmem %s496, 384 [#allocation2]
        %v6107 = vld [vmem:[%s6106] sm:$0xff]
        %v6108 = vld [vmem:[%s6106 + $0x8] sm:$0xff]
        %v6109 = vld [vmem:[%s6106 + $0x10] sm:$0xff]
        %v6110 = vld [vmem:[%s6106 + $0x18] sm:$0xff]
        %v6111 = vld [vmem:[%s6106 + $0x20] sm:$0xff]
        %v6112 = vld [vmem:[%s6106 + $0x28] sm:$0xff]
        %v6113 = vld [vmem:[%s6106 + $0x30] sm:$0xff]
        %v6114 = vld [vmem:[%s6106 + $0x38] sm:$0xff]
        %v6123 = vunpack.c.l.b16 %v6107
        %v6124 = vunpack.c.h.b16 %v6107
        %v6125 = vunpack.c.l.b16 %v6108
        %v6126 = vunpack.c.h.b16 %v6108
        %v6127 = vunpack.c.l.b16 %v6109
        %v6128 = vunpack.c.h.b16 %v6109
        %v6129 = vunpack.c.l.b16 %v6110
        %v6130 = vunpack.c.h.b16 %v6110
        %v6131 = vunpack.c.l.b16 %v6111
        %v6132 = vunpack.c.h.b16 %v6111
        %v6133 = vunpack.c.l.b16 %v6112
        %v6134 = vunpack.c.h.b16 %v6112
        %v6135 = vunpack.c.l.b16 %v6113
        %v6136 = vunpack.c.h.b16 %v6113
        %v6137 = vunpack.c.l.b16 %v6114
        %v6138 = vunpack.c.h.b16 %v6114
        %v6139 = vpack.c.b16 %v6131, %v6123
        %v6140 = vpack.c.b16 %v6132, %v6124
        %v6141 = vpack.c.b16 %v6133, %v6125
        %v6142 = vpack.c.b16 %v6134, %v6126
        %v6143 = vpack.c.b16 %v6135, %v6127
        %v6144 = vpack.c.b16 %v6136, %v6128
        %v6145 = vpack.c.b16 %v6137, %v6129
        %v6146 = vpack.c.b16 %v6138, %v6130
        %6155 = vmatpush.bf16.msra.mxu0 %v1125
        %6156 = vmatpush.bf16.msra.mxu0 %v1123
        %6157 = vmatpush.bf16.msra.mxu0 %v1121
        %6158 = vmatpush.bf16.msra.mxu0 %v1119
        %6159 = vmatpush.bf16.msra.mxu0 %v1117
        %6160 = vmatpush.bf16.msra.mxu0 %v1115
        %6161 = vmatpush.bf16.msra.mxu0 %v1113
        %6162 = vmatpush.bf16.msra.mxu0 %v1111
        %6163 = vmatmul.bf16.gmra.mxu0 %v6139
        %v6164 = vpop.f32.mrf.mxu0
        %v6165 = vadd.f32 %v683, %v6164
        %v6166 = vpop.f32.mrf.mxu0
        %v6167 = vadd.f32 %v683, %v6166
        %6168 = vdwg.mxu0
        %6169 = vmatpush.bf16.msra.mxu0 %v1141
        %6170 = vmatpush.bf16.msra.mxu0 %v1139
        %6171 = vmatpush.bf16.msra.mxu0 %v1137
        %6172 = vmatpush.bf16.msra.mxu0 %v1135
        %6173 = vmatpush.bf16.msra.mxu0 %v1133
        %6174 = vmatpush.bf16.msra.mxu0 %v1131
        %6175 = vmatpush.bf16.msra.mxu0 %v1129
        %6176 = vmatpush.bf16.msra.mxu0 %v1127
        %6177 = vmatmul.bf16.gmra.mxu0 %v6140
        %v6178 = vpop.f32.mrf.mxu0
        %v6179 = vadd.f32 %v6165, %v6178
        %v6180 = vpop.f32.mrf.mxu0
        %v6181 = vadd.f32 %v6167, %v6180
        %6182 = vdwg.mxu0
        %6183 = vmatpush.bf16.msra.mxu0 %v1157
        %6184 = vmatpush.bf16.msra.mxu0 %v1155
        %6185 = vmatpush.bf16.msra.mxu0 %v1153
        %6186 = vmatpush.bf16.msra.mxu0 %v1151
        %6187 = vmatpush.bf16.msra.mxu0 %v1149
        %6188 = vmatpush.bf16.msra.mxu0 %v1147
        %6189 = vmatpush.bf16.msra.mxu0 %v1145
        %6190 = vmatpush.bf16.msra.mxu0 %v1143
        %6191 = vmatmul.bf16.gmra.mxu0 %v6141
        %v6192 = vpop.f32.mrf.mxu0
        %v6193 = vadd.f32 %v6179, %v6192
        %v6194 = vpop.f32.mrf.mxu0
        %v6195 = vadd.f32 %v6181, %v6194
        %6196 = vdwg.mxu0
        %6197 = vmatpush.bf16.msra.mxu0 %v1173
        %6198 = vmatpush.bf16.msra.mxu0 %v1171
        %6199 = vmatpush.bf16.msra.mxu0 %v1169
        %6200 = vmatpush.bf16.msra.mxu0 %v1167
        %6201 = vmatpush.bf16.msra.mxu0 %v1165
        %6202 = vmatpush.bf16.msra.mxu0 %v1163
        %6203 = vmatpush.bf16.msra.mxu0 %v1161
        %6204 = vmatpush.bf16.msra.mxu0 %v1159
        %6205 = vmatmul.bf16.gmra.mxu0 %v6142
        %v6206 = vpop.f32.mrf.mxu0
        %v6207 = vadd.f32 %v6193, %v6206
        %v6208 = vpop.f32.mrf.mxu0
        %v6209 = vadd.f32 %v6195, %v6208
        %6210 = vdwg.mxu0
        %6211 = vmatpush.bf16.msra.mxu0 %v1189
        %6212 = vmatpush.bf16.msra.mxu0 %v1187
        %6213 = vmatpush.bf16.msra.mxu0 %v1185
        %6214 = vmatpush.bf16.msra.mxu0 %v1183
        %6215 = vmatpush.bf16.msra.mxu0 %v1181
        %6216 = vmatpush.bf16.msra.mxu0 %v1179
        %6217 = vmatpush.bf16.msra.mxu0 %v1177
        %6218 = vmatpush.bf16.msra.mxu0 %v1175
        %6219 = vmatmul.bf16.gmra.mxu0 %v6143
        %v6220 = vpop.f32.mrf.mxu0
        %v6221 = vadd.f32 %v6207, %v6220
        %v6222 = vpop.f32.mrf.mxu0
        %v6223 = vadd.f32 %v6209, %v6222
        %6224 = vdwg.mxu0
        %6225 = vmatpush.bf16.msra.mxu0 %v1205
        %6226 = vmatpush.bf16.msra.mxu0 %v1203
        %6227 = vmatpush.bf16.msra.mxu0 %v1201
        %6228 = vmatpush.bf16.msra.mxu0 %v1199
        %6229 = vmatpush.bf16.msra.mxu0 %v1197
        %6230 = vmatpush.bf16.msra.mxu0 %v1195
        %6231 = vmatpush.bf16.msra.mxu0 %v1193
        %6232 = vmatpush.bf16.msra.mxu0 %v1191
        %6233 = vmatmul.bf16.gmra.mxu0 %v6144
        %v6234 = vpop.f32.mrf.mxu0
        %v6235 = vadd.f32 %v6221, %v6234
        %v6236 = vpop.f32.mrf.mxu0
        %v6237 = vadd.f32 %v6223, %v6236
        %6238 = vdwg.mxu0
        %6239 = vmatpush.bf16.msra.mxu0 %v1221
        %6240 = vmatpush.bf16.msra.mxu0 %v1219
        %6241 = vmatpush.bf16.msra.mxu0 %v1217
        %6242 = vmatpush.bf16.msra.mxu0 %v1215
        %6243 = vmatpush.bf16.msra.mxu0 %v1213
        %6244 = vmatpush.bf16.msra.mxu0 %v1211
        %6245 = vmatpush.bf16.msra.mxu0 %v1209
        %6246 = vmatpush.bf16.msra.mxu0 %v1207
        %6247 = vmatmul.bf16.gmra.mxu0 %v6145
        %v6248 = vpop.f32.mrf.mxu0
        %v6249 = vadd.f32 %v6235, %v6248
        %v6250 = vpop.f32.mrf.mxu0
        %v6251 = vadd.f32 %v6237, %v6250
        %6252 = vdwg.mxu0
        %6253 = vmatpush.bf16.msra.mxu0 %v1237
        %6254 = vmatpush.bf16.msra.mxu0 %v1235
        %6255 = vmatpush.bf16.msra.mxu0 %v1233
        %6256 = vmatpush.bf16.msra.mxu0 %v1231
        %6257 = vmatpush.bf16.msra.mxu0 %v1229
        %6258 = vmatpush.bf16.msra.mxu0 %v1227
        %6259 = vmatpush.bf16.msra.mxu0 %v1225
        %6260 = vmatpush.bf16.msra.mxu0 %v1223
        %6261 = vmatmul.bf16.gmra.mxu0 %v6146
        %v6262 = vpop.f32.mrf.mxu0
        %v6263 = vadd.f32 %v6249, %v6262
        %v6264 = vpop.f32.mrf.mxu0
        %v6265 = vadd.f32 %v6251, %v6264
        %6266 = vdwg.mxu0
        %6267 = vmatpush.bf16.msra.mxu0 %v1126
        %6268 = vmatpush.bf16.msra.mxu0 %v1124
        %6269 = vmatpush.bf16.msra.mxu0 %v1122
        %6270 = vmatpush.bf16.msra.mxu0 %v1120
        %6271 = vmatpush.bf16.msra.mxu0 %v1118
        %6272 = vmatpush.bf16.msra.mxu0 %v1116
        %6273 = vmatpush.bf16.msra.mxu0 %v1114
        %6274 = vmatpush.bf16.msra.mxu0 %v1112
        %6275 = vmatmul.bf16.gmra.mxu0 %v6139
        %v6276 = vpop.f32.mrf.mxu0
        %v6277 = vadd.f32 %v684, %v6276
        %v6278 = vpop.f32.mrf.mxu0
        %v6279 = vadd.f32 %v684, %v6278
        %6280 = vdwg.mxu0
        %6281 = vmatpush.bf16.msra.mxu0 %v1142
        %6282 = vmatpush.bf16.msra.mxu0 %v1140
        %6283 = vmatpush.bf16.msra.mxu0 %v1138
        %6284 = vmatpush.bf16.msra.mxu0 %v1136
        %6285 = vmatpush.bf16.msra.mxu0 %v1134
        %6286 = vmatpush.bf16.msra.mxu0 %v1132
        %6287 = vmatpush.bf16.msra.mxu0 %v1130
        %6288 = vmatpush.bf16.msra.mxu0 %v1128
        %6289 = vmatmul.bf16.gmra.mxu0 %v6140
        %v6290 = vpop.f32.mrf.mxu0
        %v6291 = vadd.f32 %v6277, %v6290
        %v6292 = vpop.f32.mrf.mxu0
        %v6293 = vadd.f32 %v6279, %v6292
        %6294 = vdwg.mxu0
        %6295 = vmatpush.bf16.msra.mxu0 %v1158
        %6296 = vmatpush.bf16.msra.mxu0 %v1156
        %6297 = vmatpush.bf16.msra.mxu0 %v1154
        %6298 = vmatpush.bf16.msra.mxu0 %v1152
        %6299 = vmatpush.bf16.msra.mxu0 %v1150
        %6300 = vmatpush.bf16.msra.mxu0 %v1148
        %6301 = vmatpush.bf16.msra.mxu0 %v1146
        %6302 = vmatpush.bf16.msra.mxu0 %v1144
        %6303 = vmatmul.bf16.gmra.mxu0 %v6141
        %v6304 = vpop.f32.mrf.mxu0
        %v6305 = vadd.f32 %v6291, %v6304
        %v6306 = vpop.f32.mrf.mxu0
        %v6307 = vadd.f32 %v6293, %v6306
        %6308 = vdwg.mxu0
        %6309 = vmatpush.bf16.msra.mxu0 %v1174
        %6310 = vmatpush.bf16.msra.mxu0 %v1172
        %6311 = vmatpush.bf16.msra.mxu0 %v1170
        %6312 = vmatpush.bf16.msra.mxu0 %v1168
        %6313 = vmatpush.bf16.msra.mxu0 %v1166
        %6314 = vmatpush.bf16.msra.mxu0 %v1164
        %6315 = vmatpush.bf16.msra.mxu0 %v1162
        %6316 = vmatpush.bf16.msra.mxu0 %v1160
        %6317 = vmatmul.bf16.gmra.mxu0 %v6142
        %v6318 = vpop.f32.mrf.mxu0
        %v6319 = vadd.f32 %v6305, %v6318
        %v6320 = vpop.f32.mrf.mxu0
        %v6321 = vadd.f32 %v6307, %v6320
        %6322 = vdwg.mxu0
        %6323 = vmatpush.bf16.msra.mxu0 %v1190
        %6324 = vmatpush.bf16.msra.mxu0 %v1188
        %6325 = vmatpush.bf16.msra.mxu0 %v1186
        %6326 = vmatpush.bf16.msra.mxu0 %v1184
        %6327 = vmatpush.bf16.msra.mxu0 %v1182
        %6328 = vmatpush.bf16.msra.mxu0 %v1180
        %6329 = vmatpush.bf16.msra.mxu0 %v1178
        %6330 = vmatpush.bf16.msra.mxu0 %v1176
        %6331 = vmatmul.bf16.gmra.mxu0 %v6143
        %v6332 = vpop.f32.mrf.mxu0
        %v6333 = vadd.f32 %v6319, %v6332
        %v6334 = vpop.f32.mrf.mxu0
        %v6335 = vadd.f32 %v6321, %v6334
        %6336 = vdwg.mxu0
        %6337 = vmatpush.bf16.msra.mxu0 %v1206
        %6338 = vmatpush.bf16.msra.mxu0 %v1204
        %6339 = vmatpush.bf16.msra.mxu0 %v1202
        %6340 = vmatpush.bf16.msra.mxu0 %v1200
        %6341 = vmatpush.bf16.msra.mxu0 %v1198
        %6342 = vmatpush.bf16.msra.mxu0 %v1196
        %6343 = vmatpush.bf16.msra.mxu0 %v1194
        %6344 = vmatpush.bf16.msra.mxu0 %v1192
        %6345 = vmatmul.bf16.gmra.mxu0 %v6144
        %v6346 = vpop.f32.mrf.mxu0
        %v6347 = vadd.f32 %v6333, %v6346
        %v6348 = vpop.f32.mrf.mxu0
        %v6349 = vadd.f32 %v6335, %v6348
        %6350 = vdwg.mxu0
        %6351 = vmatpush.bf16.msra.mxu0 %v1222
        %6352 = vmatpush.bf16.msra.mxu0 %v1220
        %6353 = vmatpush.bf16.msra.mxu0 %v1218
        %6354 = vmatpush.bf16.msra.mxu0 %v1216
        %6355 = vmatpush.bf16.msra.mxu0 %v1214
        %6356 = vmatpush.bf16.msra.mxu0 %v1212
        %6357 = vmatpush.bf16.msra.mxu0 %v1210
        %6358 = vmatpush.bf16.msra.mxu0 %v1208
        %6359 = vmatmul.bf16.gmra.mxu0 %v6145
        %v6360 = vpop.f32.mrf.mxu0
        %v6361 = vadd.f32 %v6347, %v6360
        %v6362 = vpop.f32.mrf.mxu0
        %v6363 = vadd.f32 %v6349, %v6362
        %6364 = vdwg.mxu0
        %6365 = vmatpush.bf16.msra.mxu0 %v1238
        %6366 = vmatpush.bf16.msra.mxu0 %v1236
        %6367 = vmatpush.bf16.msra.mxu0 %v1234
        %6368 = vmatpush.bf16.msra.mxu0 %v1232
        %6369 = vmatpush.bf16.msra.mxu0 %v1230
        %6370 = vmatpush.bf16.msra.mxu0 %v1228
        %6371 = vmatpush.bf16.msra.mxu0 %v1226
        %6372 = vmatpush.bf16.msra.mxu0 %v1224
        %6373 = vmatmul.bf16.gmra.mxu0 %v6146
        %v6374 = vpop.f32.mrf.mxu0
        %v6375 = vadd.f32 %v6361, %v6374
        %v6376 = vpop.f32.mrf.mxu0
        %v6377 = vadd.f32 %v6363, %v6376
        %6378 = vdwg.mxu0
        %v6379 = vmax.f32 %v6263, 0.0
        %v6380 = vmax.f32 %v6375, 0.0
        %v6381 = vmax.f32 %v6265, 0.0
        %v6382 = vmax.f32 %v6377, 0.0
        %s6383 = scalar_lea.vmem %s503, 96 [#allocation3]
        %v6384 = vld [vmem:[%s6383] sm:$0xff]
        %v6385 = vld [vmem:[%s6383 + $0x8] sm:$0xff]
        %6387 = vset.pattern.permute.xlu0 0
        %6388 = vperm.xlu0 %6387, %v6384
        %v6389 = vpop.permute.xlu0 %6388
        %6392 = vset.pattern.permute.xlu0 0
        %6393 = vperm.xlu0 %6392, %v6385
        %v6394 = vpop.permute.xlu0 %6393
        %v6396 = vmul.f32 %v6379, %v6389
        %v6397 = vmul.f32 %v6380, %v6389
        %v6398 = vmul.f32 %v6381, %v6394
        %v6399 = vmul.f32 %v6382, %v6394
        %v6400 = vpack.c.bf16 %v6398, %v6396
        %v6401 = vpack.c.bf16 %v6399, %v6397
        %s6402 = scalar_lea.vmem %s4, 3072
        %v6403 = vld [vmem:[%s6402] sm:$0xff]
        %v6404 = vld [vmem:[%s6402 + $0x8] sm:$0xff]
        %v6405 = vld [vmem:[%s6402 + $0x10] sm:$0xff]
        %v6406 = vld [vmem:[%s6402 + $0x18] sm:$0xff]
        %v6407 = vld [vmem:[%s6402 + $0x20] sm:$0xff]
        %v6408 = vld [vmem:[%s6402 + $0x28] sm:$0xff]
        %v6409 = vld [vmem:[%s6402 + $0x30] sm:$0xff]
        %v6410 = vld [vmem:[%s6402 + $0x38] sm:$0xff]
        %v6411 = vld [vmem:[%s6402 + $0x40] sm:$0xff]
        %v6412 = vld [vmem:[%s6402 + $0x48] sm:$0xff]
        %v6413 = vld [vmem:[%s6402 + $0x50] sm:$0xff]
        %v6414 = vld [vmem:[%s6402 + $0x58] sm:$0xff]
        %v6415 = vld [vmem:[%s6402 + $0x60] sm:$0xff]
        %v6416 = vld [vmem:[%s6402 + $0x68] sm:$0xff]
        %v6417 = vld [vmem:[%s6402 + $0x70] sm:$0xff]
        %v6418 = vld [vmem:[%s6402 + $0x78] sm:$0xff]
        %v6419 = vld [vmem:[%s6402 + $0x80] sm:$0xff]
        %v6420 = vld [vmem:[%s6402 + $0x88] sm:$0xff]
        %v6421 = vld [vmem:[%s6402 + $0x90] sm:$0xff]
        %v6422 = vld [vmem:[%s6402 + $0x98] sm:$0xff]
        %v6423 = vld [vmem:[%s6402 + $0xa0] sm:$0xff]
        %v6424 = vld [vmem:[%s6402 + $0xa8] sm:$0xff]
        %v6425 = vld [vmem:[%s6402 + $0xb0] sm:$0xff]
        %v6426 = vld [vmem:[%s6402 + $0xb8] sm:$0xff]
        %v6427 = vld [vmem:[%s6402 + $0xc0] sm:$0xff]
        %v6428 = vld [vmem:[%s6402 + $0xc8] sm:$0xff]
        %v6429 = vld [vmem:[%s6402 + $0xd0] sm:$0xff]
        %v6430 = vld [vmem:[%s6402 + $0xd8] sm:$0xff]
        %v6431 = vld [vmem:[%s6402 + $0xe0] sm:$0xff]
        %v6432 = vld [vmem:[%s6402 + $0xe8] sm:$0xff]
        %v6433 = vld [vmem:[%s6402 + $0xf0] sm:$0xff]
        %v6434 = vld [vmem:[%s6402 + $0xf8] sm:$0xff]
        %v6435 = vld [vmem:[%s6402 + $0x100] sm:$0xff]
        %v6436 = vld [vmem:[%s6402 + $0x108] sm:$0xff]
        %v6437 = vld [vmem:[%s6402 + $0x110] sm:$0xff]
        %v6438 = vld [vmem:[%s6402 + $0x118] sm:$0xff]
        %v6439 = vld [vmem:[%s6402 + $0x120] sm:$0xff]
        %v6440 = vld [vmem:[%s6402 + $0x128] sm:$0xff]
        %v6441 = vld [vmem:[%s6402 + $0x130] sm:$0xff]
        %v6442 = vld [vmem:[%s6402 + $0x138] sm:$0xff]
        %v6443 = vld [vmem:[%s6402 + $0x140] sm:$0xff]
        %v6444 = vld [vmem:[%s6402 + $0x148] sm:$0xff]
        %v6445 = vld [vmem:[%s6402 + $0x150] sm:$0xff]
        %v6446 = vld [vmem:[%s6402 + $0x158] sm:$0xff]
        %v6447 = vld [vmem:[%s6402 + $0x160] sm:$0xff]
        %v6448 = vld [vmem:[%s6402 + $0x168] sm:$0xff]
        %v6449 = vld [vmem:[%s6402 + $0x170] sm:$0xff]
        %v6450 = vld [vmem:[%s6402 + $0x178] sm:$0xff]
        %v6451 = vld [vmem:[%s6402 + $0x180] sm:$0xff]
        %v6452 = vld [vmem:[%s6402 + $0x188] sm:$0xff]
        %v6453 = vld [vmem:[%s6402 + $0x190] sm:$0xff]
        %v6454 = vld [vmem:[%s6402 + $0x198] sm:$0xff]
        %v6455 = vld [vmem:[%s6402 + $0x1a0] sm:$0xff]
        %v6456 = vld [vmem:[%s6402 + $0x1a8] sm:$0xff]
        %v6457 = vld [vmem:[%s6402 + $0x1b0] sm:$0xff]
        %v6458 = vld [vmem:[%s6402 + $0x1b8] sm:$0xff]
        %v6459 = vld [vmem:[%s6402 + $0x1c0] sm:$0xff]
        %v6460 = vld [vmem:[%s6402 + $0x1c8] sm:$0xff]
        %v6461 = vld [vmem:[%s6402 + $0x1d0] sm:$0xff]
        %v6462 = vld [vmem:[%s6402 + $0x1d8] sm:$0xff]
        %v6463 = vld [vmem:[%s6402 + $0x1e0] sm:$0xff]
        %v6464 = vld [vmem:[%s6402 + $0x1e8] sm:$0xff]
        %v6465 = vld [vmem:[%s6402 + $0x1f0] sm:$0xff]
        %v6466 = vld [vmem:[%s6402 + $0x1f8] sm:$0xff]
        %v6531 = vunpack.c.l.b16 %v6403
        %v6532 = vunpack.c.h.b16 %v6403
        %v6533 = vunpack.c.l.b16 %v6404
        %v6534 = vunpack.c.h.b16 %v6404
        %v6535 = vunpack.c.l.b16 %v6405
        %v6536 = vunpack.c.h.b16 %v6405
        %v6537 = vunpack.c.l.b16 %v6406
        %v6538 = vunpack.c.h.b16 %v6406
        %v6539 = vunpack.c.l.b16 %v6407
        %v6540 = vunpack.c.h.b16 %v6407
        %v6541 = vunpack.c.l.b16 %v6408
        %v6542 = vunpack.c.h.b16 %v6408
        %v6543 = vunpack.c.l.b16 %v6409
        %v6544 = vunpack.c.h.b16 %v6409
        %v6545 = vunpack.c.l.b16 %v6410
        %v6546 = vunpack.c.h.b16 %v6410
        %v6547 = vunpack.c.l.b16 %v6411
        %v6548 = vunpack.c.h.b16 %v6411
        %v6549 = vunpack.c.l.b16 %v6412
        %v6550 = vunpack.c.h.b16 %v6412
        %v6551 = vunpack.c.l.b16 %v6413
        %v6552 = vunpack.c.h.b16 %v6413
        %v6553 = vunpack.c.l.b16 %v6414
        %v6554 = vunpack.c.h.b16 %v6414
        %v6555 = vunpack.c.l.b16 %v6415
        %v6556 = vunpack.c.h.b16 %v6415
        %v6557 = vunpack.c.l.b16 %v6416
        %v6558 = vunpack.c.h.b16 %v6416
        %v6559 = vunpack.c.l.b16 %v6417
        %v6560 = vunpack.c.h.b16 %v6417
        %v6561 = vunpack.c.l.b16 %v6418
        %v6562 = vunpack.c.h.b16 %v6418
        %v6563 = vunpack.c.l.b16 %v6419
        %v6564 = vunpack.c.h.b16 %v6419
        %v6565 = vunpack.c.l.b16 %v6420
        %v6566 = vunpack.c.h.b16 %v6420
        %v6567 = vunpack.c.l.b16 %v6421
        %v6568 = vunpack.c.h.b16 %v6421
        %v6569 = vunpack.c.l.b16 %v6422
        %v6570 = vunpack.c.h.b16 %v6422
        %v6571 = vunpack.c.l.b16 %v6423
        %v6572 = vunpack.c.h.b16 %v6423
        %v6573 = vunpack.c.l.b16 %v6424
        %v6574 = vunpack.c.h.b16 %v6424
        %v6575 = vunpack.c.l.b16 %v6425
        %v6576 = vunpack.c.h.b16 %v6425
        %v6577 = vunpack.c.l.b16 %v6426
        %v6578 = vunpack.c.h.b16 %v6426
        %v6579 = vunpack.c.l.b16 %v6427
        %v6580 = vunpack.c.h.b16 %v6427
        %v6581 = vunpack.c.l.b16 %v6428
        %v6582 = vunpack.c.h.b16 %v6428
        %v6583 = vunpack.c.l.b16 %v6429
        %v6584 = vunpack.c.h.b16 %v6429
        %v6585 = vunpack.c.l.b16 %v6430
        %v6586 = vunpack.c.h.b16 %v6430
        %v6587 = vunpack.c.l.b16 %v6431
        %v6588 = vunpack.c.h.b16 %v6431
        %v6589 = vunpack.c.l.b16 %v6432
        %v6590 = vunpack.c.h.b16 %v6432
        %v6591 = vunpack.c.l.b16 %v6433
        %v6592 = vunpack.c.h.b16 %v6433
        %v6593 = vunpack.c.l.b16 %v6434
        %v6594 = vunpack.c.h.b16 %v6434
        %v6595 = vunpack.c.l.b16 %v6435
        %v6596 = vunpack.c.h.b16 %v6435
        %v6597 = vunpack.c.l.b16 %v6436
        %v6598 = vunpack.c.h.b16 %v6436
        %v6599 = vunpack.c.l.b16 %v6437
        %v6600 = vunpack.c.h.b16 %v6437
        %v6601 = vunpack.c.l.b16 %v6438
        %v6602 = vunpack.c.h.b16 %v6438
        %v6603 = vunpack.c.l.b16 %v6439
        %v6604 = vunpack.c.h.b16 %v6439
        %v6605 = vunpack.c.l.b16 %v6440
        %v6606 = vunpack.c.h.b16 %v6440
        %v6607 = vunpack.c.l.b16 %v6441
        %v6608 = vunpack.c.h.b16 %v6441
        %v6609 = vunpack.c.l.b16 %v6442
        %v6610 = vunpack.c.h.b16 %v6442
        %v6611 = vunpack.c.l.b16 %v6443
        %v6612 = vunpack.c.h.b16 %v6443
        %v6613 = vunpack.c.l.b16 %v6444
        %v6614 = vunpack.c.h.b16 %v6444
        %v6615 = vunpack.c.l.b16 %v6445
        %v6616 = vunpack.c.h.b16 %v6445
        %v6617 = vunpack.c.l.b16 %v6446
        %v6618 = vunpack.c.h.b16 %v6446
        %v6619 = vunpack.c.l.b16 %v6447
        %v6620 = vunpack.c.h.b16 %v6447
        %v6621 = vunpack.c.l.b16 %v6448
        %v6622 = vunpack.c.h.b16 %v6448
        %v6623 = vunpack.c.l.b16 %v6449
        %v6624 = vunpack.c.h.b16 %v6449
        %v6625 = vunpack.c.l.b16 %v6450
        %v6626 = vunpack.c.h.b16 %v6450
        %v6627 = vunpack.c.l.b16 %v6451
        %v6628 = vunpack.c.h.b16 %v6451
        %v6629 = vunpack.c.l.b16 %v6452
        %v6630 = vunpack.c.h.b16 %v6452
        %v6631 = vunpack.c.l.b16 %v6453
        %v6632 = vunpack.c.h.b16 %v6453
        %v6633 = vunpack.c.l.b16 %v6454
        %v6634 = vunpack.c.h.b16 %v6454
        %v6635 = vunpack.c.l.b16 %v6455
        %v6636 = vunpack.c.h.b16 %v6455
        %v6637 = vunpack.c.l.b16 %v6456
        %v6638 = vunpack.c.h.b16 %v6456
        %v6639 = vunpack.c.l.b16 %v6457
        %v6640 = vunpack.c.h.b16 %v6457
        %v6641 = vunpack.c.l.b16 %v6458
        %v6642 = vunpack.c.h.b16 %v6458
        %v6643 = vunpack.c.l.b16 %v6459
        %v6644 = vunpack.c.h.b16 %v6459
        %v6645 = vunpack.c.l.b16 %v6460
        %v6646 = vunpack.c.h.b16 %v6460
        %v6647 = vunpack.c.l.b16 %v6461
        %v6648 = vunpack.c.h.b16 %v6461
        %v6649 = vunpack.c.l.b16 %v6462
        %v6650 = vunpack.c.h.b16 %v6462
        %v6651 = vunpack.c.l.b16 %v6463
        %v6652 = vunpack.c.h.b16 %v6463
        %v6653 = vunpack.c.l.b16 %v6464
        %v6654 = vunpack.c.h.b16 %v6464
        %v6655 = vunpack.c.l.b16 %v6465
        %v6656 = vunpack.c.h.b16 %v6465
        %v6657 = vunpack.c.l.b16 %v6466
        %v6658 = vunpack.c.h.b16 %v6466
        %v6659 = vpack.c.b16 %v6535, %v6531
        %v6660 = vpack.c.b16 %v6536, %v6532
        %v6661 = vpack.c.b16 %v6537, %v6533
        %v6662 = vpack.c.b16 %v6538, %v6534
        %v6663 = vpack.c.b16 %v6543, %v6539
        %v6664 = vpack.c.b16 %v6544, %v6540
        %v6665 = vpack.c.b16 %v6545, %v6541
        %v6666 = vpack.c.b16 %v6546, %v6542
        %v6667 = vpack.c.b16 %v6551, %v6547
        %v6668 = vpack.c.b16 %v6552, %v6548
        %v6669 = vpack.c.b16 %v6553, %v6549
        %v6670 = vpack.c.b16 %v6554, %v6550
        %v6671 = vpack.c.b16 %v6559, %v6555
        %v6672 = vpack.c.b16 %v6560, %v6556
        %v6673 = vpack.c.b16 %v6561, %v6557
        %v6674 = vpack.c.b16 %v6562, %v6558
        %v6675 = vpack.c.b16 %v6567, %v6563
        %v6676 = vpack.c.b16 %v6568, %v6564
        %v6677 = vpack.c.b16 %v6569, %v6565
        %v6678 = vpack.c.b16 %v6570, %v6566
        %v6679 = vpack.c.b16 %v6575, %v6571
        %v6680 = vpack.c.b16 %v6576, %v6572
        %v6681 = vpack.c.b16 %v6577, %v6573
        %v6682 = vpack.c.b16 %v6578, %v6574
        %v6683 = vpack.c.b16 %v6583, %v6579
        %v6684 = vpack.c.b16 %v6584, %v6580
        %v6685 = vpack.c.b16 %v6585, %v6581
        %v6686 = vpack.c.b16 %v6586, %v6582
        %v6687 = vpack.c.b16 %v6591, %v6587
        %v6688 = vpack.c.b16 %v6592, %v6588
        %v6689 = vpack.c.b16 %v6593, %v6589
        %v6690 = vpack.c.b16 %v6594, %v6590
        %v6691 = vpack.c.b16 %v6599, %v6595
        %v6692 = vpack.c.b16 %v6600, %v6596
        %v6693 = vpack.c.b16 %v6601, %v6597
        %v6694 = vpack.c.b16 %v6602, %v6598
        %v6695 = vpack.c.b16 %v6607, %v6603
        %v6696 = vpack.c.b16 %v6608, %v6604
        %v6697 = vpack.c.b16 %v6609, %v6605
        %v6698 = vpack.c.b16 %v6610, %v6606
        %v6699 = vpack.c.b16 %v6615, %v6611
        %v6700 = vpack.c.b16 %v6616, %v6612
        %v6701 = vpack.c.b16 %v6617, %v6613
        %v6702 = vpack.c.b16 %v6618, %v6614
        %v6703 = vpack.c.b16 %v6623, %v6619
        %v6704 = vpack.c.b16 %v6624, %v6620
        %v6705 = vpack.c.b16 %v6625, %v6621
        %v6706 = vpack.c.b16 %v6626, %v6622
        %v6707 = vpack.c.b16 %v6631, %v6627
        %v6708 = vpack.c.b16 %v6632, %v6628
        %v6709 = vpack.c.b16 %v6633, %v6629
        %v6710 = vpack.c.b16 %v6634, %v6630
        %v6711 = vpack.c.b16 %v6639, %v6635
        %v6712 = vpack.c.b16 %v6640, %v6636
        %v6713 = vpack.c.b16 %v6641, %v6637
        %v6714 = vpack.c.b16 %v6642, %v6638
        %v6715 = vpack.c.b16 %v6647, %v6643
        %v6716 = vpack.c.b16 %v6648, %v6644
        %v6717 = vpack.c.b16 %v6649, %v6645
        %v6718 = vpack.c.b16 %v6650, %v6646
        %v6719 = vpack.c.b16 %v6655, %v6651
        %v6720 = vpack.c.b16 %v6656, %v6652
        %v6721 = vpack.c.b16 %v6657, %v6653
        %v6722 = vpack.c.b16 %v6658, %v6654
        %6787 = vmatpush.bf16.msra.mxu0 %v6687
        %6788 = vmatpush.bf16.msra.mxu0 %v6683
        %6789 = vmatpush.bf16.msra.mxu0 %v6679
        %6790 = vmatpush.bf16.msra.mxu0 %v6675
        %6791 = vmatpush.bf16.msra.mxu0 %v6671
        %6792 = vmatpush.bf16.msra.mxu0 %v6667
        %6793 = vmatpush.bf16.msra.mxu0 %v6663
        %6794 = vmatpush.bf16.msra.mxu0 %v6659
        %6795 = vmatmul.bf16.gmra.mxu0 %v6400
        %v6796 = vpop.f32.mrf.mxu0
        %v6797 = vadd.f32 0.0, %v6796
        %v6798 = vpop.f32.mrf.mxu0
        %v6799 = vadd.f32 0.0, %v6798
        %6800 = vdwg.mxu0
        %6801 = vmatpush.bf16.msra.mxu0 %v6719
        %6802 = vmatpush.bf16.msra.mxu0 %v6715
        %6803 = vmatpush.bf16.msra.mxu0 %v6711
        %6804 = vmatpush.bf16.msra.mxu0 %v6707
        %6805 = vmatpush.bf16.msra.mxu0 %v6703
        %6806 = vmatpush.bf16.msra.mxu0 %v6699
        %6807 = vmatpush.bf16.msra.mxu0 %v6695
        %6808 = vmatpush.bf16.msra.mxu0 %v6691
        %6809 = vmatmul.bf16.gmra.mxu0 %v6401
        %v6810 = vpop.f32.mrf.mxu0
        %v6811 = vadd.f32 %v6797, %v6810
        %v6812 = vpop.f32.mrf.mxu0
        %v6813 = vadd.f32 %v6799, %v6812
        %6814 = vdwg.mxu0
        %6815 = vmatpush.bf16.msra.mxu0 %v6688
        %6816 = vmatpush.bf16.msra.mxu0 %v6684
        %6817 = vmatpush.bf16.msra.mxu0 %v6680
        %6818 = vmatpush.bf16.msra.mxu0 %v6676
        %6819 = vmatpush.bf16.msra.mxu0 %v6672
        %6820 = vmatpush.bf16.msra.mxu0 %v6668
        %6821 = vmatpush.bf16.msra.mxu0 %v6664
        %6822 = vmatpush.bf16.msra.mxu0 %v6660
        %6823 = vmatmul.bf16.gmra.mxu0 %v6400
        %v6824 = vpop.f32.mrf.mxu0
        %v6825 = vadd.f32 0.0, %v6824
        %v6826 = vpop.f32.mrf.mxu0
        %v6827 = vadd.f32 0.0, %v6826
        %6828 = vdwg.mxu0
        %6829 = vmatpush.bf16.msra.mxu0 %v6720
        %6830 = vmatpush.bf16.msra.mxu0 %v6716
        %6831 = vmatpush.bf16.msra.mxu0 %v6712
        %6832 = vmatpush.bf16.msra.mxu0 %v6708
        %6833 = vmatpush.bf16.msra.mxu0 %v6704
        %6834 = vmatpush.bf16.msra.mxu0 %v6700
        %6835 = vmatpush.bf16.msra.mxu0 %v6696
        %6836 = vmatpush.bf16.msra.mxu0 %v6692
        %6837 = vmatmul.bf16.gmra.mxu0 %v6401
        %v6838 = vpop.f32.mrf.mxu0
        %v6839 = vadd.f32 %v6825, %v6838
        %v6840 = vpop.f32.mrf.mxu0
        %v6841 = vadd.f32 %v6827, %v6840
        %6842 = vdwg.mxu0
        %6843 = vmatpush.bf16.msra.mxu0 %v6689
        %6844 = vmatpush.bf16.msra.mxu0 %v6685
        %6845 = vmatpush.bf16.msra.mxu0 %v6681
        %6846 = vmatpush.bf16.msra.mxu0 %v6677
        %6847 = vmatpush.bf16.msra.mxu0 %v6673
        %6848 = vmatpush.bf16.msra.mxu0 %v6669
        %6849 = vmatpush.bf16.msra.mxu0 %v6665
        %6850 = vmatpush.bf16.msra.mxu0 %v6661
        %6851 = vmatmul.bf16.gmra.mxu0 %v6400
        %v6852 = vpop.f32.mrf.mxu0
        %v6853 = vadd.f32 0.0, %v6852
        %v6854 = vpop.f32.mrf.mxu0
        %v6855 = vadd.f32 0.0, %v6854
        %6856 = vdwg.mxu0
        %6857 = vmatpush.bf16.msra.mxu0 %v6721
        %6858 = vmatpush.bf16.msra.mxu0 %v6717
        %6859 = vmatpush.bf16.msra.mxu0 %v6713
        %6860 = vmatpush.bf16.msra.mxu0 %v6709
        %6861 = vmatpush.bf16.msra.mxu0 %v6705
        %6862 = vmatpush.bf16.msra.mxu0 %v6701
        %6863 = vmatpush.bf16.msra.mxu0 %v6697
        %6864 = vmatpush.bf16.msra.mxu0 %v6693
        %6865 = vmatmul.bf16.gmra.mxu0 %v6401
        %v6866 = vpop.f32.mrf.mxu0
        %v6867 = vadd.f32 %v6853, %v6866
        %v6868 = vpop.f32.mrf.mxu0
        %v6869 = vadd.f32 %v6855, %v6868
        %6870 = vdwg.mxu0
        %6871 = vmatpush.bf16.msra.mxu0 %v6690
        %6872 = vmatpush.bf16.msra.mxu0 %v6686
        %6873 = vmatpush.bf16.msra.mxu0 %v6682
        %6874 = vmatpush.bf16.msra.mxu0 %v6678
        %6875 = vmatpush.bf16.msra.mxu0 %v6674
        %6876 = vmatpush.bf16.msra.mxu0 %v6670
        %6877 = vmatpush.bf16.msra.mxu0 %v6666
        %6878 = vmatpush.bf16.msra.mxu0 %v6662
        %6879 = vmatmul.bf16.gmra.mxu0 %v6400
        %v6880 = vpop.f32.mrf.mxu0
        %v6881 = vadd.f32 0.0, %v6880
        %v6882 = vpop.f32.mrf.mxu0
        %v6883 = vadd.f32 0.0, %v6882
        %6884 = vdwg.mxu0
        %6885 = vmatpush.bf16.msra.mxu0 %v6722
        %6886 = vmatpush.bf16.msra.mxu0 %v6718
        %6887 = vmatpush.bf16.msra.mxu0 %v6714
        %6888 = vmatpush.bf16.msra.mxu0 %v6710
        %6889 = vmatpush.bf16.msra.mxu0 %v6706
        %6890 = vmatpush.bf16.msra.mxu0 %v6702
        %6891 = vmatpush.bf16.msra.mxu0 %v6698
        %6892 = vmatpush.bf16.msra.mxu0 %v6694
        %6893 = vmatmul.bf16.gmra.mxu0 %v6401
        %v6894 = vpop.f32.mrf.mxu0
        %v6895 = vadd.f32 %v6881, %v6894
        %v6896 = vpop.f32.mrf.mxu0
        %v6897 = vadd.f32 %v6883, %v6896
        %6898 = vdwg.mxu0
        %v6899 = vadd.f32 %v6098, %v6811
        %v6900 = vadd.f32 %v6099, %v6839
        %v6901 = vadd.f32 %v6100, %v6867
        %v6902 = vadd.f32 %v6101, %v6895
        %v6903 = vadd.f32 %v6102, %v6813
        %v6904 = vadd.f32 %v6103, %v6841
        %v6905 = vadd.f32 %v6104, %v6869
        %v6906 = vadd.f32 %v6105, %v6897
        %s6907 = scalar_lea.vmem %s496, 448 [#allocation2]
        %v6908 = vld [vmem:[%s6907] sm:$0xff]
        %v6909 = vld [vmem:[%s6907 + $0x8] sm:$0xff]
        %v6910 = vld [vmem:[%s6907 + $0x10] sm:$0xff]
        %v6911 = vld [vmem:[%s6907 + $0x18] sm:$0xff]
        %v6912 = vld [vmem:[%s6907 + $0x20] sm:$0xff]
        %v6913 = vld [vmem:[%s6907 + $0x28] sm:$0xff]
        %v6914 = vld [vmem:[%s6907 + $0x30] sm:$0xff]
        %v6915 = vld [vmem:[%s6907 + $0x38] sm:$0xff]
        %v6924 = vunpack.c.l.b16 %v6908
        %v6925 = vunpack.c.h.b16 %v6908
        %v6926 = vunpack.c.l.b16 %v6909
        %v6927 = vunpack.c.h.b16 %v6909
        %v6928 = vunpack.c.l.b16 %v6910
        %v6929 = vunpack.c.h.b16 %v6910
        %v6930 = vunpack.c.l.b16 %v6911
        %v6931 = vunpack.c.h.b16 %v6911
        %v6932 = vunpack.c.l.b16 %v6912
        %v6933 = vunpack.c.h.b16 %v6912
        %v6934 = vunpack.c.l.b16 %v6913
        %v6935 = vunpack.c.h.b16 %v6913
        %v6936 = vunpack.c.l.b16 %v6914
        %v6937 = vunpack.c.h.b16 %v6914
        %v6938 = vunpack.c.l.b16 %v6915
        %v6939 = vunpack.c.h.b16 %v6915
        %v6940 = vpack.c.b16 %v6932, %v6924
        %v6941 = vpack.c.b16 %v6933, %v6925
        %v6942 = vpack.c.b16 %v6934, %v6926
        %v6943 = vpack.c.b16 %v6935, %v6927
        %v6944 = vpack.c.b16 %v6936, %v6928
        %v6945 = vpack.c.b16 %v6937, %v6929
        %v6946 = vpack.c.b16 %v6938, %v6930
        %v6947 = vpack.c.b16 %v6939, %v6931
        %6956 = vmatpush.bf16.msra.mxu0 %v1125
        %6957 = vmatpush.bf16.msra.mxu0 %v1123
        %6958 = vmatpush.bf16.msra.mxu0 %v1121
        %6959 = vmatpush.bf16.msra.mxu0 %v1119
        %6960 = vmatpush.bf16.msra.mxu0 %v1117
        %6961 = vmatpush.bf16.msra.mxu0 %v1115
        %6962 = vmatpush.bf16.msra.mxu0 %v1113
        %6963 = vmatpush.bf16.msra.mxu0 %v1111
        %6964 = vmatmul.bf16.gmra.mxu0 %v6940
        %v6965 = vpop.f32.mrf.mxu0
        %v6966 = vadd.f32 %v683, %v6965
        %v6967 = vpop.f32.mrf.mxu0
        %v6968 = vadd.f32 %v683, %v6967
        %6969 = vdwg.mxu0
        %6970 = vmatpush.bf16.msra.mxu0 %v1141
        %6971 = vmatpush.bf16.msra.mxu0 %v1139
        %6972 = vmatpush.bf16.msra.mxu0 %v1137
        %6973 = vmatpush.bf16.msra.mxu0 %v1135
        %6974 = vmatpush.bf16.msra.mxu0 %v1133
        %6975 = vmatpush.bf16.msra.mxu0 %v1131
        %6976 = vmatpush.bf16.msra.mxu0 %v1129
        %6977 = vmatpush.bf16.msra.mxu0 %v1127
        %6978 = vmatmul.bf16.gmra.mxu0 %v6941
        %v6979 = vpop.f32.mrf.mxu0
        %v6980 = vadd.f32 %v6966, %v6979
        %v6981 = vpop.f32.mrf.mxu0
        %v6982 = vadd.f32 %v6968, %v6981
        %6983 = vdwg.mxu0
        %6984 = vmatpush.bf16.msra.mxu0 %v1157
        %6985 = vmatpush.bf16.msra.mxu0 %v1155
        %6986 = vmatpush.bf16.msra.mxu0 %v1153
        %6987 = vmatpush.bf16.msra.mxu0 %v1151
        %6988 = vmatpush.bf16.msra.mxu0 %v1149
        %6989 = vmatpush.bf16.msra.mxu0 %v1147
        %6990 = vmatpush.bf16.msra.mxu0 %v1145
        %6991 = vmatpush.bf16.msra.mxu0 %v1143
        %6992 = vmatmul.bf16.gmra.mxu0 %v6942
        %v6993 = vpop.f32.mrf.mxu0
        %v6994 = vadd.f32 %v6980, %v6993
        %v6995 = vpop.f32.mrf.mxu0
        %v6996 = vadd.f32 %v6982, %v6995
        %6997 = vdwg.mxu0
        %6998 = vmatpush.bf16.msra.mxu0 %v1173
        %6999 = vmatpush.bf16.msra.mxu0 %v1171
        %7000 = vmatpush.bf16.msra.mxu0 %v1169
        %7001 = vmatpush.bf16.msra.mxu0 %v1167
        %7002 = vmatpush.bf16.msra.mxu0 %v1165
        %7003 = vmatpush.bf16.msra.mxu0 %v1163
        %7004 = vmatpush.bf16.msra.mxu0 %v1161
        %7005 = vmatpush.bf16.msra.mxu0 %v1159
        %7006 = vmatmul.bf16.gmra.mxu0 %v6943
        %v7007 = vpop.f32.mrf.mxu0
        %v7008 = vadd.f32 %v6994, %v7007
        %v7009 = vpop.f32.mrf.mxu0
        %v7010 = vadd.f32 %v6996, %v7009
        %7011 = vdwg.mxu0
        %7012 = vmatpush.bf16.msra.mxu0 %v1189
        %7013 = vmatpush.bf16.msra.mxu0 %v1187
        %7014 = vmatpush.bf16.msra.mxu0 %v1185
        %7015 = vmatpush.bf16.msra.mxu0 %v1183
        %7016 = vmatpush.bf16.msra.mxu0 %v1181
        %7017 = vmatpush.bf16.msra.mxu0 %v1179
        %7018 = vmatpush.bf16.msra.mxu0 %v1177
        %7019 = vmatpush.bf16.msra.mxu0 %v1175
        %7020 = vmatmul.bf16.gmra.mxu0 %v6944
        %v7021 = vpop.f32.mrf.mxu0
        %v7022 = vadd.f32 %v7008, %v7021
        %v7023 = vpop.f32.mrf.mxu0
        %v7024 = vadd.f32 %v7010, %v7023
        %7025 = vdwg.mxu0
        %7026 = vmatpush.bf16.msra.mxu0 %v1205
        %7027 = vmatpush.bf16.msra.mxu0 %v1203
        %7028 = vmatpush.bf16.msra.mxu0 %v1201
        %7029 = vmatpush.bf16.msra.mxu0 %v1199
        %7030 = vmatpush.bf16.msra.mxu0 %v1197
        %7031 = vmatpush.bf16.msra.mxu0 %v1195
        %7032 = vmatpush.bf16.msra.mxu0 %v1193
        %7033 = vmatpush.bf16.msra.mxu0 %v1191
        %7034 = vmatmul.bf16.gmra.mxu0 %v6945
        %v7035 = vpop.f32.mrf.mxu0
        %v7036 = vadd.f32 %v7022, %v7035
        %v7037 = vpop.f32.mrf.mxu0
        %v7038 = vadd.f32 %v7024, %v7037
        %7039 = vdwg.mxu0
        %7040 = vmatpush.bf16.msra.mxu0 %v1221
        %7041 = vmatpush.bf16.msra.mxu0 %v1219
        %7042 = vmatpush.bf16.msra.mxu0 %v1217
        %7043 = vmatpush.bf16.msra.mxu0 %v1215
        %7044 = vmatpush.bf16.msra.mxu0 %v1213
        %7045 = vmatpush.bf16.msra.mxu0 %v1211
        %7046 = vmatpush.bf16.msra.mxu0 %v1209
        %7047 = vmatpush.bf16.msra.mxu0 %v1207
        %7048 = vmatmul.bf16.gmra.mxu0 %v6946
        %v7049 = vpop.f32.mrf.mxu0
        %v7050 = vadd.f32 %v7036, %v7049
        %v7051 = vpop.f32.mrf.mxu0
        %v7052 = vadd.f32 %v7038, %v7051
        %7053 = vdwg.mxu0
        %7054 = vmatpush.bf16.msra.mxu0 %v1237
        %7055 = vmatpush.bf16.msra.mxu0 %v1235
        %7056 = vmatpush.bf16.msra.mxu0 %v1233
        %7057 = vmatpush.bf16.msra.mxu0 %v1231
        %7058 = vmatpush.bf16.msra.mxu0 %v1229
        %7059 = vmatpush.bf16.msra.mxu0 %v1227
        %7060 = vmatpush.bf16.msra.mxu0 %v1225
        %7061 = vmatpush.bf16.msra.mxu0 %v1223
        %7062 = vmatmul.bf16.gmra.mxu0 %v6947
        %v7063 = vpop.f32.mrf.mxu0
        %v7064 = vadd.f32 %v7050, %v7063
        %v7065 = vpop.f32.mrf.mxu0
        %v7066 = vadd.f32 %v7052, %v7065
        %7067 = vdwg.mxu0
        %7068 = vmatpush.bf16.msra.mxu0 %v1126
        %7069 = vmatpush.bf16.msra.mxu0 %v1124
        %7070 = vmatpush.bf16.msra.mxu0 %v1122
        %7071 = vmatpush.bf16.msra.mxu0 %v1120
        %7072 = vmatpush.bf16.msra.mxu0 %v1118
        %7073 = vmatpush.bf16.msra.mxu0 %v1116
        %7074 = vmatpush.bf16.msra.mxu0 %v1114
        %7075 = vmatpush.bf16.msra.mxu0 %v1112
        %7076 = vmatmul.bf16.gmra.mxu0 %v6940
        %v7077 = vpop.f32.mrf.mxu0
        %v7078 = vadd.f32 %v684, %v7077
        %v7079 = vpop.f32.mrf.mxu0
        %v7080 = vadd.f32 %v684, %v7079
        %7081 = vdwg.mxu0
        %7082 = vmatpush.bf16.msra.mxu0 %v1142
        %7083 = vmatpush.bf16.msra.mxu0 %v1140
        %7084 = vmatpush.bf16.msra.mxu0 %v1138
        %7085 = vmatpush.bf16.msra.mxu0 %v1136
        %7086 = vmatpush.bf16.msra.mxu0 %v1134
        %7087 = vmatpush.bf16.msra.mxu0 %v1132
        %7088 = vmatpush.bf16.msra.mxu0 %v1130
        %7089 = vmatpush.bf16.msra.mxu0 %v1128
        %7090 = vmatmul.bf16.gmra.mxu0 %v6941
        %v7091 = vpop.f32.mrf.mxu0
        %v7092 = vadd.f32 %v7078, %v7091
        %v7093 = vpop.f32.mrf.mxu0
        %v7094 = vadd.f32 %v7080, %v7093
        %7095 = vdwg.mxu0
        %7096 = vmatpush.bf16.msra.mxu0 %v1158
        %7097 = vmatpush.bf16.msra.mxu0 %v1156
        %7098 = vmatpush.bf16.msra.mxu0 %v1154
        %7099 = vmatpush.bf16.msra.mxu0 %v1152
        %7100 = vmatpush.bf16.msra.mxu0 %v1150
        %7101 = vmatpush.bf16.msra.mxu0 %v1148
        %7102 = vmatpush.bf16.msra.mxu0 %v1146
        %7103 = vmatpush.bf16.msra.mxu0 %v1144
        %7104 = vmatmul.bf16.gmra.mxu0 %v6942
        %v7105 = vpop.f32.mrf.mxu0
        %v7106 = vadd.f32 %v7092, %v7105
        %v7107 = vpop.f32.mrf.mxu0
        %v7108 = vadd.f32 %v7094, %v7107
        %7109 = vdwg.mxu0
        %7110 = vmatpush.bf16.msra.mxu0 %v1174
        %7111 = vmatpush.bf16.msra.mxu0 %v1172
        %7112 = vmatpush.bf16.msra.mxu0 %v1170
        %7113 = vmatpush.bf16.msra.mxu0 %v1168
        %7114 = vmatpush.bf16.msra.mxu0 %v1166
        %7115 = vmatpush.bf16.msra.mxu0 %v1164
        %7116 = vmatpush.bf16.msra.mxu0 %v1162
        %7117 = vmatpush.bf16.msra.mxu0 %v1160
        %7118 = vmatmul.bf16.gmra.mxu0 %v6943
        %v7119 = vpop.f32.mrf.mxu0
        %v7120 = vadd.f32 %v7106, %v7119
        %v7121 = vpop.f32.mrf.mxu0
        %v7122 = vadd.f32 %v7108, %v7121
        %7123 = vdwg.mxu0
        %7124 = vmatpush.bf16.msra.mxu0 %v1190
        %7125 = vmatpush.bf16.msra.mxu0 %v1188
        %7126 = vmatpush.bf16.msra.mxu0 %v1186
        %7127 = vmatpush.bf16.msra.mxu0 %v1184
        %7128 = vmatpush.bf16.msra.mxu0 %v1182
        %7129 = vmatpush.bf16.msra.mxu0 %v1180
        %7130 = vmatpush.bf16.msra.mxu0 %v1178
        %7131 = vmatpush.bf16.msra.mxu0 %v1176
        %7132 = vmatmul.bf16.gmra.mxu0 %v6944
        %v7133 = vpop.f32.mrf.mxu0
        %v7134 = vadd.f32 %v7120, %v7133
        %v7135 = vpop.f32.mrf.mxu0
        %v7136 = vadd.f32 %v7122, %v7135
        %7137 = vdwg.mxu0
        %7138 = vmatpush.bf16.msra.mxu0 %v1206
        %7139 = vmatpush.bf16.msra.mxu0 %v1204
        %7140 = vmatpush.bf16.msra.mxu0 %v1202
        %7141 = vmatpush.bf16.msra.mxu0 %v1200
        %7142 = vmatpush.bf16.msra.mxu0 %v1198
        %7143 = vmatpush.bf16.msra.mxu0 %v1196
        %7144 = vmatpush.bf16.msra.mxu0 %v1194
        %7145 = vmatpush.bf16.msra.mxu0 %v1192
        %7146 = vmatmul.bf16.gmra.mxu0 %v6945
        %v7147 = vpop.f32.mrf.mxu0
        %v7148 = vadd.f32 %v7134, %v7147
        %v7149 = vpop.f32.mrf.mxu0
        %v7150 = vadd.f32 %v7136, %v7149
        %7151 = vdwg.mxu0
        %7152 = vmatpush.bf16.msra.mxu0 %v1222
        %7153 = vmatpush.bf16.msra.mxu0 %v1220
        %7154 = vmatpush.bf16.msra.mxu0 %v1218
        %7155 = vmatpush.bf16.msra.mxu0 %v1216
        %7156 = vmatpush.bf16.msra.mxu0 %v1214
        %7157 = vmatpush.bf16.msra.mxu0 %v1212
        %7158 = vmatpush.bf16.msra.mxu0 %v1210
        %7159 = vmatpush.bf16.msra.mxu0 %v1208
        %7160 = vmatmul.bf16.gmra.mxu0 %v6946
        %v7161 = vpop.f32.mrf.mxu0
        %v7162 = vadd.f32 %v7148, %v7161
        %v7163 = vpop.f32.mrf.mxu0
        %v7164 = vadd.f32 %v7150, %v7163
        %7165 = vdwg.mxu0
        %7166 = vmatpush.bf16.msra.mxu0 %v1238
        %7167 = vmatpush.bf16.msra.mxu0 %v1236
        %7168 = vmatpush.bf16.msra.mxu0 %v1234
        %7169 = vmatpush.bf16.msra.mxu0 %v1232
        %7170 = vmatpush.bf16.msra.mxu0 %v1230
        %7171 = vmatpush.bf16.msra.mxu0 %v1228
        %7172 = vmatpush.bf16.msra.mxu0 %v1226
        %7173 = vmatpush.bf16.msra.mxu0 %v1224
        %7174 = vmatmul.bf16.gmra.mxu0 %v6947
        %v7175 = vpop.f32.mrf.mxu0
        %v7176 = vadd.f32 %v7162, %v7175
        %v7177 = vpop.f32.mrf.mxu0
        %v7178 = vadd.f32 %v7164, %v7177
        %7179 = vdwg.mxu0
        %v7180 = vmax.f32 %v7064, 0.0
        %v7181 = vmax.f32 %v7176, 0.0
        %v7182 = vmax.f32 %v7066, 0.0
        %v7183 = vmax.f32 %v7178, 0.0
        %s7184 = scalar_lea.vmem %s503, 112 [#allocation3]
        %v7185 = vld [vmem:[%s7184] sm:$0xff]
        %v7186 = vld [vmem:[%s7184 + $0x8] sm:$0xff]
        %7188 = vset.pattern.permute.xlu0 0
        %7189 = vperm.xlu0 %7188, %v7185
        %v7190 = vpop.permute.xlu0 %7189
        %7193 = vset.pattern.permute.xlu0 0
        %7194 = vperm.xlu0 %7193, %v7186
        %v7195 = vpop.permute.xlu0 %7194
        %v7197 = vmul.f32 %v7180, %v7190
        %v7198 = vmul.f32 %v7181, %v7190
        %v7199 = vmul.f32 %v7182, %v7195
        %v7200 = vmul.f32 %v7183, %v7195
        %v7201 = vpack.c.bf16 %v7199, %v7197
        %v7202 = vpack.c.bf16 %v7200, %v7198
        %s7203 = scalar_lea.vmem %s4, 3584
        %v7204 = vld [vmem:[%s7203] sm:$0xff]
        %v7205 = vld [vmem:[%s7203 + $0x8] sm:$0xff]
        %v7206 = vld [vmem:[%s7203 + $0x10] sm:$0xff]
        %v7207 = vld [vmem:[%s7203 + $0x18] sm:$0xff]
        %v7208 = vld [vmem:[%s7203 + $0x20] sm:$0xff]
        %v7209 = vld [vmem:[%s7203 + $0x28] sm:$0xff]
        %v7210 = vld [vmem:[%s7203 + $0x30] sm:$0xff]
        %v7211 = vld [vmem:[%s7203 + $0x38] sm:$0xff]
        %v7212 = vld [vmem:[%s7203 + $0x40] sm:$0xff]
        %v7213 = vld [vmem:[%s7203 + $0x48] sm:$0xff]
        %v7214 = vld [vmem:[%s7203 + $0x50] sm:$0xff]
        %v7215 = vld [vmem:[%s7203 + $0x58] sm:$0xff]
        %v7216 = vld [vmem:[%s7203 + $0x60] sm:$0xff]
        %v7217 = vld [vmem:[%s7203 + $0x68] sm:$0xff]
        %v7218 = vld [vmem:[%s7203 + $0x70] sm:$0xff]
        %v7219 = vld [vmem:[%s7203 + $0x78] sm:$0xff]
        %v7220 = vld [vmem:[%s7203 + $0x80] sm:$0xff]
        %v7221 = vld [vmem:[%s7203 + $0x88] sm:$0xff]
        %v7222 = vld [vmem:[%s7203 + $0x90] sm:$0xff]
        %v7223 = vld [vmem:[%s7203 + $0x98] sm:$0xff]
        %v7224 = vld [vmem:[%s7203 + $0xa0] sm:$0xff]
        %v7225 = vld [vmem:[%s7203 + $0xa8] sm:$0xff]
        %v7226 = vld [vmem:[%s7203 + $0xb0] sm:$0xff]
        %v7227 = vld [vmem:[%s7203 + $0xb8] sm:$0xff]
        %v7228 = vld [vmem:[%s7203 + $0xc0] sm:$0xff]
        %v7229 = vld [vmem:[%s7203 + $0xc8] sm:$0xff]
        %v7230 = vld [vmem:[%s7203 + $0xd0] sm:$0xff]
        %v7231 = vld [vmem:[%s7203 + $0xd8] sm:$0xff]
        %v7232 = vld [vmem:[%s7203 + $0xe0] sm:$0xff]
        %v7233 = vld [vmem:[%s7203 + $0xe8] sm:$0xff]
        %v7234 = vld [vmem:[%s7203 + $0xf0] sm:$0xff]
        %v7235 = vld [vmem:[%s7203 + $0xf8] sm:$0xff]
        %v7236 = vld [vmem:[%s7203 + $0x100] sm:$0xff]
        %v7237 = vld [vmem:[%s7203 + $0x108] sm:$0xff]
        %v7238 = vld [vmem:[%s7203 + $0x110] sm:$0xff]
        %v7239 = vld [vmem:[%s7203 + $0x118] sm:$0xff]
        %v7240 = vld [vmem:[%s7203 + $0x120] sm:$0xff]
        %v7241 = vld [vmem:[%s7203 + $0x128] sm:$0xff]
        %v7242 = vld [vmem:[%s7203 + $0x130] sm:$0xff]
        %v7243 = vld [vmem:[%s7203 + $0x138] sm:$0xff]
        %v7244 = vld [vmem:[%s7203 + $0x140] sm:$0xff]
        %v7245 = vld [vmem:[%s7203 + $0x148] sm:$0xff]
        %v7246 = vld [vmem:[%s7203 + $0x150] sm:$0xff]
        %v7247 = vld [vmem:[%s7203 + $0x158] sm:$0xff]
        %v7248 = vld [vmem:[%s7203 + $0x160] sm:$0xff]
        %v7249 = vld [vmem:[%s7203 + $0x168] sm:$0xff]
        %v7250 = vld [vmem:[%s7203 + $0x170] sm:$0xff]
        %v7251 = vld [vmem:[%s7203 + $0x178] sm:$0xff]
        %v7252 = vld [vmem:[%s7203 + $0x180] sm:$0xff]
        %v7253 = vld [vmem:[%s7203 + $0x188] sm:$0xff]
        %v7254 = vld [vmem:[%s7203 + $0x190] sm:$0xff]
        %v7255 = vld [vmem:[%s7203 + $0x198] sm:$0xff]
        %v7256 = vld [vmem:[%s7203 + $0x1a0] sm:$0xff]
        %v7257 = vld [vmem:[%s7203 + $0x1a8] sm:$0xff]
        %v7258 = vld [vmem:[%s7203 + $0x1b0] sm:$0xff]
        %v7259 = vld [vmem:[%s7203 + $0x1b8] sm:$0xff]
        %v7260 = vld [vmem:[%s7203 + $0x1c0] sm:$0xff]
        %v7261 = vld [vmem:[%s7203 + $0x1c8] sm:$0xff]
        %v7262 = vld [vmem:[%s7203 + $0x1d0] sm:$0xff]
        %v7263 = vld [vmem:[%s7203 + $0x1d8] sm:$0xff]
        %v7264 = vld [vmem:[%s7203 + $0x1e0] sm:$0xff]
        %v7265 = vld [vmem:[%s7203 + $0x1e8] sm:$0xff]
        %v7266 = vld [vmem:[%s7203 + $0x1f0] sm:$0xff]
        %v7267 = vld [vmem:[%s7203 + $0x1f8] sm:$0xff]
        %v7332 = vunpack.c.l.b16 %v7204
        %v7333 = vunpack.c.h.b16 %v7204
        %v7334 = vunpack.c.l.b16 %v7205
        %v7335 = vunpack.c.h.b16 %v7205
        %v7336 = vunpack.c.l.b16 %v7206
        %v7337 = vunpack.c.h.b16 %v7206
        %v7338 = vunpack.c.l.b16 %v7207
        %v7339 = vunpack.c.h.b16 %v7207
        %v7340 = vunpack.c.l.b16 %v7208
        %v7341 = vunpack.c.h.b16 %v7208
        %v7342 = vunpack.c.l.b16 %v7209
        %v7343 = vunpack.c.h.b16 %v7209
        %v7344 = vunpack.c.l.b16 %v7210
        %v7345 = vunpack.c.h.b16 %v7210
        %v7346 = vunpack.c.l.b16 %v7211
        %v7347 = vunpack.c.h.b16 %v7211
        %v7348 = vunpack.c.l.b16 %v7212
        %v7349 = vunpack.c.h.b16 %v7212
        %v7350 = vunpack.c.l.b16 %v7213
        %v7351 = vunpack.c.h.b16 %v7213
        %v7352 = vunpack.c.l.b16 %v7214
        %v7353 = vunpack.c.h.b16 %v7214
        %v7354 = vunpack.c.l.b16 %v7215
        %v7355 = vunpack.c.h.b16 %v7215
        %v7356 = vunpack.c.l.b16 %v7216
        %v7357 = vunpack.c.h.b16 %v7216
        %v7358 = vunpack.c.l.b16 %v7217
        %v7359 = vunpack.c.h.b16 %v7217
        %v7360 = vunpack.c.l.b16 %v7218
        %v7361 = vunpack.c.h.b16 %v7218
        %v7362 = vunpack.c.l.b16 %v7219
        %v7363 = vunpack.c.h.b16 %v7219
        %v7364 = vunpack.c.l.b16 %v7220
        %v7365 = vunpack.c.h.b16 %v7220
        %v7366 = vunpack.c.l.b16 %v7221
        %v7367 = vunpack.c.h.b16 %v7221
        %v7368 = vunpack.c.l.b16 %v7222
        %v7369 = vunpack.c.h.b16 %v7222
        %v7370 = vunpack.c.l.b16 %v7223
        %v7371 = vunpack.c.h.b16 %v7223
        %v7372 = vunpack.c.l.b16 %v7224
        %v7373 = vunpack.c.h.b16 %v7224
        %v7374 = vunpack.c.l.b16 %v7225
        %v7375 = vunpack.c.h.b16 %v7225
        %v7376 = vunpack.c.l.b16 %v7226
        %v7377 = vunpack.c.h.b16 %v7226
        %v7378 = vunpack.c.l.b16 %v7227
        %v7379 = vunpack.c.h.b16 %v7227
        %v7380 = vunpack.c.l.b16 %v7228
        %v7381 = vunpack.c.h.b16 %v7228
        %v7382 = vunpack.c.l.b16 %v7229
        %v7383 = vunpack.c.h.b16 %v7229
        %v7384 = vunpack.c.l.b16 %v7230
        %v7385 = vunpack.c.h.b16 %v7230
        %v7386 = vunpack.c.l.b16 %v7231
        %v7387 = vunpack.c.h.b16 %v7231
        %v7388 = vunpack.c.l.b16 %v7232
        %v7389 = vunpack.c.h.b16 %v7232
        %v7390 = vunpack.c.l.b16 %v7233
        %v7391 = vunpack.c.h.b16 %v7233
        %v7392 = vunpack.c.l.b16 %v7234
        %v7393 = vunpack.c.h.b16 %v7234
        %v7394 = vunpack.c.l.b16 %v7235
        %v7395 = vunpack.c.h.b16 %v7235
        %v7396 = vunpack.c.l.b16 %v7236
        %v7397 = vunpack.c.h.b16 %v7236
        %v7398 = vunpack.c.l.b16 %v7237
        %v7399 = vunpack.c.h.b16 %v7237
        %v7400 = vunpack.c.l.b16 %v7238
        %v7401 = vunpack.c.h.b16 %v7238
        %v7402 = vunpack.c.l.b16 %v7239
        %v7403 = vunpack.c.h.b16 %v7239
        %v7404 = vunpack.c.l.b16 %v7240
        %v7405 = vunpack.c.h.b16 %v7240
        %v7406 = vunpack.c.l.b16 %v7241
        %v7407 = vunpack.c.h.b16 %v7241
        %v7408 = vunpack.c.l.b16 %v7242
        %v7409 = vunpack.c.h.b16 %v7242
        %v7410 = vunpack.c.l.b16 %v7243
        %v7411 = vunpack.c.h.b16 %v7243
        %v7412 = vunpack.c.l.b16 %v7244
        %v7413 = vunpack.c.h.b16 %v7244
        %v7414 = vunpack.c.l.b16 %v7245
        %v7415 = vunpack.c.h.b16 %v7245
        %v7416 = vunpack.c.l.b16 %v7246
        %v7417 = vunpack.c.h.b16 %v7246
        %v7418 = vunpack.c.l.b16 %v7247
        %v7419 = vunpack.c.h.b16 %v7247
        %v7420 = vunpack.c.l.b16 %v7248
        %v7421 = vunpack.c.h.b16 %v7248
        %v7422 = vunpack.c.l.b16 %v7249
        %v7423 = vunpack.c.h.b16 %v7249
        %v7424 = vunpack.c.l.b16 %v7250
        %v7425 = vunpack.c.h.b16 %v7250
        %v7426 = vunpack.c.l.b16 %v7251
        %v7427 = vunpack.c.h.b16 %v7251
        %v7428 = vunpack.c.l.b16 %v7252
        %v7429 = vunpack.c.h.b16 %v7252
        %v7430 = vunpack.c.l.b16 %v7253
        %v7431 = vunpack.c.h.b16 %v7253
        %v7432 = vunpack.c.l.b16 %v7254
        %v7433 = vunpack.c.h.b16 %v7254
        %v7434 = vunpack.c.l.b16 %v7255
        %v7435 = vunpack.c.h.b16 %v7255
        %v7436 = vunpack.c.l.b16 %v7256
        %v7437 = vunpack.c.h.b16 %v7256
        %v7438 = vunpack.c.l.b16 %v7257
        %v7439 = vunpack.c.h.b16 %v7257
        %v7440 = vunpack.c.l.b16 %v7258
        %v7441 = vunpack.c.h.b16 %v7258
        %v7442 = vunpack.c.l.b16 %v7259
        %v7443 = vunpack.c.h.b16 %v7259
        %v7444 = vunpack.c.l.b16 %v7260
        %v7445 = vunpack.c.h.b16 %v7260
        %v7446 = vunpack.c.l.b16 %v7261
        %v7447 = vunpack.c.h.b16 %v7261
        %v7448 = vunpack.c.l.b16 %v7262
        %v7449 = vunpack.c.h.b16 %v7262
        %v7450 = vunpack.c.l.b16 %v7263
        %v7451 = vunpack.c.h.b16 %v7263
        %v7452 = vunpack.c.l.b16 %v7264
        %v7453 = vunpack.c.h.b16 %v7264
        %v7454 = vunpack.c.l.b16 %v7265
        %v7455 = vunpack.c.h.b16 %v7265
        %v7456 = vunpack.c.l.b16 %v7266
        %v7457 = vunpack.c.h.b16 %v7266
        %v7458 = vunpack.c.l.b16 %v7267
        %v7459 = vunpack.c.h.b16 %v7267
        %v7460 = vpack.c.b16 %v7336, %v7332
        %v7461 = vpack.c.b16 %v7337, %v7333
        %v7462 = vpack.c.b16 %v7338, %v7334
        %v7463 = vpack.c.b16 %v7339, %v7335
        %v7464 = vpack.c.b16 %v7344, %v7340
        %v7465 = vpack.c.b16 %v7345, %v7341
        %v7466 = vpack.c.b16 %v7346, %v7342
        %v7467 = vpack.c.b16 %v7347, %v7343
        %v7468 = vpack.c.b16 %v7352, %v7348
        %v7469 = vpack.c.b16 %v7353, %v7349
        %v7470 = vpack.c.b16 %v7354, %v7350
        %v7471 = vpack.c.b16 %v7355, %v7351
        %v7472 = vpack.c.b16 %v7360, %v7356
        %v7473 = vpack.c.b16 %v7361, %v7357
        %v7474 = vpack.c.b16 %v7362, %v7358
        %v7475 = vpack.c.b16 %v7363, %v7359
        %v7476 = vpack.c.b16 %v7368, %v7364
        %v7477 = vpack.c.b16 %v7369, %v7365
        %v7478 = vpack.c.b16 %v7370, %v7366
        %v7479 = vpack.c.b16 %v7371, %v7367
        %v7480 = vpack.c.b16 %v7376, %v7372
        %v7481 = vpack.c.b16 %v7377, %v7373
        %v7482 = vpack.c.b16 %v7378, %v7374
        %v7483 = vpack.c.b16 %v7379, %v7375
        %v7484 = vpack.c.b16 %v7384, %v7380
        %v7485 = vpack.c.b16 %v7385, %v7381
        %v7486 = vpack.c.b16 %v7386, %v7382
        %v7487 = vpack.c.b16 %v7387, %v7383
        %v7488 = vpack.c.b16 %v7392, %v7388
        %v7489 = vpack.c.b16 %v7393, %v7389
        %v7490 = vpack.c.b16 %v7394, %v7390
        %v7491 = vpack.c.b16 %v7395, %v7391
        %v7492 = vpack.c.b16 %v7400, %v7396
        %v7493 = vpack.c.b16 %v7401, %v7397
        %v7494 = vpack.c.b16 %v7402, %v7398
        %v7495 = vpack.c.b16 %v7403, %v7399
        %v7496 = vpack.c.b16 %v7408, %v7404
        %v7497 = vpack.c.b16 %v7409, %v7405
        %v7498 = vpack.c.b16 %v7410, %v7406
        %v7499 = vpack.c.b16 %v7411, %v7407
        %v7500 = vpack.c.b16 %v7416, %v7412
        %v7501 = vpack.c.b16 %v7417, %v7413
        %v7502 = vpack.c.b16 %v7418, %v7414
        %v7503 = vpack.c.b16 %v7419, %v7415
        %v7504 = vpack.c.b16 %v7424, %v7420
        %v7505 = vpack.c.b16 %v7425, %v7421
        %v7506 = vpack.c.b16 %v7426, %v7422
        %v7507 = vpack.c.b16 %v7427, %v7423
        %v7508 = vpack.c.b16 %v7432, %v7428
        %v7509 = vpack.c.b16 %v7433, %v7429
        %v7510 = vpack.c.b16 %v7434, %v7430
        %v7511 = vpack.c.b16 %v7435, %v7431
        %v7512 = vpack.c.b16 %v7440, %v7436
        %v7513 = vpack.c.b16 %v7441, %v7437
        %v7514 = vpack.c.b16 %v7442, %v7438
        %v7515 = vpack.c.b16 %v7443, %v7439
        %v7516 = vpack.c.b16 %v7448, %v7444
        %v7517 = vpack.c.b16 %v7449, %v7445
        %v7518 = vpack.c.b16 %v7450, %v7446
        %v7519 = vpack.c.b16 %v7451, %v7447
        %v7520 = vpack.c.b16 %v7456, %v7452
        %v7521 = vpack.c.b16 %v7457, %v7453
        %v7522 = vpack.c.b16 %v7458, %v7454
        %v7523 = vpack.c.b16 %v7459, %v7455
        %7588 = vmatpush.bf16.msra.mxu0 %v7488
        %7589 = vmatpush.bf16.msra.mxu0 %v7484
        %7590 = vmatpush.bf16.msra.mxu0 %v7480
        %7591 = vmatpush.bf16.msra.mxu0 %v7476
        %7592 = vmatpush.bf16.msra.mxu0 %v7472
        %7593 = vmatpush.bf16.msra.mxu0 %v7468
        %7594 = vmatpush.bf16.msra.mxu0 %v7464
        %7595 = vmatpush.bf16.msra.mxu0 %v7460
        %7596 = vmatmul.bf16.gmra.mxu0 %v7201
        %v7597 = vpop.f32.mrf.mxu0
        %v7598 = vadd.f32 0.0, %v7597
        %v7599 = vpop.f32.mrf.mxu0
        %v7600 = vadd.f32 0.0, %v7599
        %7601 = vdwg.mxu0
        %7602 = vmatpush.bf16.msra.mxu0 %v7520
        %7603 = vmatpush.bf16.msra.mxu0 %v7516
        %7604 = vmatpush.bf16.msra.mxu0 %v7512
        %7605 = vmatpush.bf16.msra.mxu0 %v7508
        %7606 = vmatpush.bf16.msra.mxu0 %v7504
        %7607 = vmatpush.bf16.msra.mxu0 %v7500
        %7608 = vmatpush.bf16.msra.mxu0 %v7496
        %7609 = vmatpush.bf16.msra.mxu0 %v7492
        %7610 = vmatmul.bf16.gmra.mxu0 %v7202
        %v7611 = vpop.f32.mrf.mxu0
        %v7612 = vadd.f32 %v7598, %v7611
        %v7613 = vpop.f32.mrf.mxu0
        %v7614 = vadd.f32 %v7600, %v7613
        %7615 = vdwg.mxu0
        %7616 = vmatpush.bf16.msra.mxu0 %v7489
        %7617 = vmatpush.bf16.msra.mxu0 %v7485
        %7618 = vmatpush.bf16.msra.mxu0 %v7481
        %7619 = vmatpush.bf16.msra.mxu0 %v7477
        %7620 = vmatpush.bf16.msra.mxu0 %v7473
        %7621 = vmatpush.bf16.msra.mxu0 %v7469
        %7622 = vmatpush.bf16.msra.mxu0 %v7465
        %7623 = vmatpush.bf16.msra.mxu0 %v7461
        %7624 = vmatmul.bf16.gmra.mxu0 %v7201
        %v7625 = vpop.f32.mrf.mxu0
        %v7626 = vadd.f32 0.0, %v7625
        %v7627 = vpop.f32.mrf.mxu0
        %v7628 = vadd.f32 0.0, %v7627
        %7629 = vdwg.mxu0
        %7630 = vmatpush.bf16.msra.mxu0 %v7521
        %7631 = vmatpush.bf16.msra.mxu0 %v7517
        %7632 = vmatpush.bf16.msra.mxu0 %v7513
        %7633 = vmatpush.bf16.msra.mxu0 %v7509
        %7634 = vmatpush.bf16.msra.mxu0 %v7505
        %7635 = vmatpush.bf16.msra.mxu0 %v7501
        %7636 = vmatpush.bf16.msra.mxu0 %v7497
        %7637 = vmatpush.bf16.msra.mxu0 %v7493
        %7638 = vmatmul.bf16.gmra.mxu0 %v7202
        %v7639 = vpop.f32.mrf.mxu0
        %v7640 = vadd.f32 %v7626, %v7639
        %v7641 = vpop.f32.mrf.mxu0
        %v7642 = vadd.f32 %v7628, %v7641
        %7643 = vdwg.mxu0
        %7644 = vmatpush.bf16.msra.mxu0 %v7490
        %7645 = vmatpush.bf16.msra.mxu0 %v7486
        %7646 = vmatpush.bf16.msra.mxu0 %v7482
        %7647 = vmatpush.bf16.msra.mxu0 %v7478
        %7648 = vmatpush.bf16.msra.mxu0 %v7474
        %7649 = vmatpush.bf16.msra.mxu0 %v7470
        %7650 = vmatpush.bf16.msra.mxu0 %v7466
        %7651 = vmatpush.bf16.msra.mxu0 %v7462
        %7652 = vmatmul.bf16.gmra.mxu0 %v7201
        %v7653 = vpop.f32.mrf.mxu0
        %v7654 = vadd.f32 0.0, %v7653
        %v7655 = vpop.f32.mrf.mxu0
        %v7656 = vadd.f32 0.0, %v7655
        %7657 = vdwg.mxu0
        %7658 = vmatpush.bf16.msra.mxu0 %v7522
        %7659 = vmatpush.bf16.msra.mxu0 %v7518
        %7660 = vmatpush.bf16.msra.mxu0 %v7514
        %7661 = vmatpush.bf16.msra.mxu0 %v7510
        %7662 = vmatpush.bf16.msra.mxu0 %v7506
        %7663 = vmatpush.bf16.msra.mxu0 %v7502
        %7664 = vmatpush.bf16.msra.mxu0 %v7498
        %7665 = vmatpush.bf16.msra.mxu0 %v7494
        %7666 = vmatmul.bf16.gmra.mxu0 %v7202
        %v7667 = vpop.f32.mrf.mxu0
        %v7668 = vadd.f32 %v7654, %v7667
        %v7669 = vpop.f32.mrf.mxu0
        %v7670 = vadd.f32 %v7656, %v7669
        %7671 = vdwg.mxu0
        %7672 = vmatpush.bf16.msra.mxu0 %v7491
        %7673 = vmatpush.bf16.msra.mxu0 %v7487
        %7674 = vmatpush.bf16.msra.mxu0 %v7483
        %7675 = vmatpush.bf16.msra.mxu0 %v7479
        %7676 = vmatpush.bf16.msra.mxu0 %v7475
        %7677 = vmatpush.bf16.msra.mxu0 %v7471
        %7678 = vmatpush.bf16.msra.mxu0 %v7467
        %7679 = vmatpush.bf16.msra.mxu0 %v7463
        %7680 = vmatmul.bf16.gmra.mxu0 %v7201
        %v7681 = vpop.f32.mrf.mxu0
        %v7682 = vadd.f32 0.0, %v7681
        %v7683 = vpop.f32.mrf.mxu0
        %v7684 = vadd.f32 0.0, %v7683
        %7685 = vdwg.mxu0
        %7686 = vmatpush.bf16.msra.mxu0 %v7523
        %7687 = vmatpush.bf16.msra.mxu0 %v7519
        %7688 = vmatpush.bf16.msra.mxu0 %v7515
        %7689 = vmatpush.bf16.msra.mxu0 %v7511
        %7690 = vmatpush.bf16.msra.mxu0 %v7507
        %7691 = vmatpush.bf16.msra.mxu0 %v7503
        %7692 = vmatpush.bf16.msra.mxu0 %v7499
        %7693 = vmatpush.bf16.msra.mxu0 %v7495
        %7694 = vmatmul.bf16.gmra.mxu0 %v7202
        %v7695 = vpop.f32.mrf.mxu0
        %v7696 = vadd.f32 %v7682, %v7695
        %v7697 = vpop.f32.mrf.mxu0
        %v7698 = vadd.f32 %v7684, %v7697
        %7699 = vdwg.mxu0
        %v7700 = vadd.f32 %v6899, %v7612
        %v7701 = vadd.f32 %v6900, %v7640
        %v7702 = vadd.f32 %v6901, %v7668
        %v7703 = vadd.f32 %v6902, %v7696
        %v7704 = vadd.f32 %v6903, %v7614
        %v7705 = vadd.f32 %v6904, %v7642
        %v7706 = vadd.f32 %v6905, %v7670
        %v7707 = vadd.f32 %v6906, %v7698
        %s7708 = scalar_lea.vmem %s496, 512 [#allocation2]
        %v7709 = vld [vmem:[%s7708] sm:$0xff]
        %v7710 = vld [vmem:[%s7708 + $0x8] sm:$0xff]
        %v7711 = vld [vmem:[%s7708 + $0x10] sm:$0xff]
        %v7712 = vld [vmem:[%s7708 + $0x18] sm:$0xff]
        %v7713 = vld [vmem:[%s7708 + $0x20] sm:$0xff]
        %v7714 = vld [vmem:[%s7708 + $0x28] sm:$0xff]
        %v7715 = vld [vmem:[%s7708 + $0x30] sm:$0xff]
        %v7716 = vld [vmem:[%s7708 + $0x38] sm:$0xff]
        %v7725 = vunpack.c.l.b16 %v7709
        %v7726 = vunpack.c.h.b16 %v7709
        %v7727 = vunpack.c.l.b16 %v7710
        %v7728 = vunpack.c.h.b16 %v7710
        %v7729 = vunpack.c.l.b16 %v7711
        %v7730 = vunpack.c.h.b16 %v7711
        %v7731 = vunpack.c.l.b16 %v7712
        %v7732 = vunpack.c.h.b16 %v7712
        %v7733 = vunpack.c.l.b16 %v7713
        %v7734 = vunpack.c.h.b16 %v7713
        %v7735 = vunpack.c.l.b16 %v7714
        %v7736 = vunpack.c.h.b16 %v7714
        %v7737 = vunpack.c.l.b16 %v7715
        %v7738 = vunpack.c.h.b16 %v7715
        %v7739 = vunpack.c.l.b16 %v7716
        %v7740 = vunpack.c.h.b16 %v7716
        %v7741 = vpack.c.b16 %v7733, %v7725
        %v7742 = vpack.c.b16 %v7734, %v7726
        %v7743 = vpack.c.b16 %v7735, %v7727
        %v7744 = vpack.c.b16 %v7736, %v7728
        %v7745 = vpack.c.b16 %v7737, %v7729
        %v7746 = vpack.c.b16 %v7738, %v7730
        %v7747 = vpack.c.b16 %v7739, %v7731
        %v7748 = vpack.c.b16 %v7740, %v7732
        %7757 = vmatpush.bf16.msra.mxu0 %v1125
        %7758 = vmatpush.bf16.msra.mxu0 %v1123
        %7759 = vmatpush.bf16.msra.mxu0 %v1121
        %7760 = vmatpush.bf16.msra.mxu0 %v1119
        %7761 = vmatpush.bf16.msra.mxu0 %v1117
        %7762 = vmatpush.bf16.msra.mxu0 %v1115
        %7763 = vmatpush.bf16.msra.mxu0 %v1113
        %7764 = vmatpush.bf16.msra.mxu0 %v1111
        %7765 = vmatmul.bf16.gmra.mxu0 %v7741
        %v7766 = vpop.f32.mrf.mxu0
        %v7767 = vadd.f32 %v683, %v7766
        %v7768 = vpop.f32.mrf.mxu0
        %v7769 = vadd.f32 %v683, %v7768
        %7770 = vdwg.mxu0
        %7771 = vmatpush.bf16.msra.mxu0 %v1141
        %7772 = vmatpush.bf16.msra.mxu0 %v1139
        %7773 = vmatpush.bf16.msra.mxu0 %v1137
        %7774 = vmatpush.bf16.msra.mxu0 %v1135
        %7775 = vmatpush.bf16.msra.mxu0 %v1133
        %7776 = vmatpush.bf16.msra.mxu0 %v1131
        %7777 = vmatpush.bf16.msra.mxu0 %v1129
        %7778 = vmatpush.bf16.msra.mxu0 %v1127
        %7779 = vmatmul.bf16.gmra.mxu0 %v7742
        %v7780 = vpop.f32.mrf.mxu0
        %v7781 = vadd.f32 %v7767, %v7780
        %v7782 = vpop.f32.mrf.mxu0
        %v7783 = vadd.f32 %v7769, %v7782
        %7784 = vdwg.mxu0
        %7785 = vmatpush.bf16.msra.mxu0 %v1157
        %7786 = vmatpush.bf16.msra.mxu0 %v1155
        %7787 = vmatpush.bf16.msra.mxu0 %v1153
        %7788 = vmatpush.bf16.msra.mxu0 %v1151
        %7789 = vmatpush.bf16.msra.mxu0 %v1149
        %7790 = vmatpush.bf16.msra.mxu0 %v1147
        %7791 = vmatpush.bf16.msra.mxu0 %v1145
        %7792 = vmatpush.bf16.msra.mxu0 %v1143
        %7793 = vmatmul.bf16.gmra.mxu0 %v7743
        %v7794 = vpop.f32.mrf.mxu0
        %v7795 = vadd.f32 %v7781, %v7794
        %v7796 = vpop.f32.mrf.mxu0
        %v7797 = vadd.f32 %v7783, %v7796
        %7798 = vdwg.mxu0
        %7799 = vmatpush.bf16.msra.mxu0 %v1173
        %7800 = vmatpush.bf16.msra.mxu0 %v1171
        %7801 = vmatpush.bf16.msra.mxu0 %v1169
        %7802 = vmatpush.bf16.msra.mxu0 %v1167
        %7803 = vmatpush.bf16.msra.mxu0 %v1165
        %7804 = vmatpush.bf16.msra.mxu0 %v1163
        %7805 = vmatpush.bf16.msra.mxu0 %v1161
        %7806 = vmatpush.bf16.msra.mxu0 %v1159
        %7807 = vmatmul.bf16.gmra.mxu0 %v7744
        %v7808 = vpop.f32.mrf.mxu0
        %v7809 = vadd.f32 %v7795, %v7808
        %v7810 = vpop.f32.mrf.mxu0
        %v7811 = vadd.f32 %v7797, %v7810
        %7812 = vdwg.mxu0
        %7813 = vmatpush.bf16.msra.mxu0 %v1189
        %7814 = vmatpush.bf16.msra.mxu0 %v1187
        %7815 = vmatpush.bf16.msra.mxu0 %v1185
        %7816 = vmatpush.bf16.msra.mxu0 %v1183
        %7817 = vmatpush.bf16.msra.mxu0 %v1181
        %7818 = vmatpush.bf16.msra.mxu0 %v1179
        %7819 = vmatpush.bf16.msra.mxu0 %v1177
        %7820 = vmatpush.bf16.msra.mxu0 %v1175
        %7821 = vmatmul.bf16.gmra.mxu0 %v7745
        %v7822 = vpop.f32.mrf.mxu0
        %v7823 = vadd.f32 %v7809, %v7822
        %v7824 = vpop.f32.mrf.mxu0
        %v7825 = vadd.f32 %v7811, %v7824
        %7826 = vdwg.mxu0
        %7827 = vmatpush.bf16.msra.mxu0 %v1205
        %7828 = vmatpush.bf16.msra.mxu0 %v1203
        %7829 = vmatpush.bf16.msra.mxu0 %v1201
        %7830 = vmatpush.bf16.msra.mxu0 %v1199
        %7831 = vmatpush.bf16.msra.mxu0 %v1197
        %7832 = vmatpush.bf16.msra.mxu0 %v1195
        %7833 = vmatpush.bf16.msra.mxu0 %v1193
        %7834 = vmatpush.bf16.msra.mxu0 %v1191
        %7835 = vmatmul.bf16.gmra.mxu0 %v7746
        %v7836 = vpop.f32.mrf.mxu0
        %v7837 = vadd.f32 %v7823, %v7836
        %v7838 = vpop.f32.mrf.mxu0
        %v7839 = vadd.f32 %v7825, %v7838
        %7840 = vdwg.mxu0
        %7841 = vmatpush.bf16.msra.mxu0 %v1221
        %7842 = vmatpush.bf16.msra.mxu0 %v1219
        %7843 = vmatpush.bf16.msra.mxu0 %v1217
        %7844 = vmatpush.bf16.msra.mxu0 %v1215
        %7845 = vmatpush.bf16.msra.mxu0 %v1213
        %7846 = vmatpush.bf16.msra.mxu0 %v1211
        %7847 = vmatpush.bf16.msra.mxu0 %v1209
        %7848 = vmatpush.bf16.msra.mxu0 %v1207
        %7849 = vmatmul.bf16.gmra.mxu0 %v7747
        %v7850 = vpop.f32.mrf.mxu0
        %v7851 = vadd.f32 %v7837, %v7850
        %v7852 = vpop.f32.mrf.mxu0
        %v7853 = vadd.f32 %v7839, %v7852
        %7854 = vdwg.mxu0
        %7855 = vmatpush.bf16.msra.mxu0 %v1237
        %7856 = vmatpush.bf16.msra.mxu0 %v1235
        %7857 = vmatpush.bf16.msra.mxu0 %v1233
        %7858 = vmatpush.bf16.msra.mxu0 %v1231
        %7859 = vmatpush.bf16.msra.mxu0 %v1229
        %7860 = vmatpush.bf16.msra.mxu0 %v1227
        %7861 = vmatpush.bf16.msra.mxu0 %v1225
        %7862 = vmatpush.bf16.msra.mxu0 %v1223
        %7863 = vmatmul.bf16.gmra.mxu0 %v7748
        %v7864 = vpop.f32.mrf.mxu0
        %v7865 = vadd.f32 %v7851, %v7864
        %v7866 = vpop.f32.mrf.mxu0
        %v7867 = vadd.f32 %v7853, %v7866
        %7868 = vdwg.mxu0
        %7869 = vmatpush.bf16.msra.mxu0 %v1126
        %7870 = vmatpush.bf16.msra.mxu0 %v1124
        %7871 = vmatpush.bf16.msra.mxu0 %v1122
        %7872 = vmatpush.bf16.msra.mxu0 %v1120
        %7873 = vmatpush.bf16.msra.mxu0 %v1118
        %7874 = vmatpush.bf16.msra.mxu0 %v1116
        %7875 = vmatpush.bf16.msra.mxu0 %v1114
        %7876 = vmatpush.bf16.msra.mxu0 %v1112
        %7877 = vmatmul.bf16.gmra.mxu0 %v7741
        %v7878 = vpop.f32.mrf.mxu0
        %v7879 = vadd.f32 %v684, %v7878
        %v7880 = vpop.f32.mrf.mxu0
        %v7881 = vadd.f32 %v684, %v7880
        %7882 = vdwg.mxu0
        %7883 = vmatpush.bf16.msra.mxu0 %v1142
        %7884 = vmatpush.bf16.msra.mxu0 %v1140
        %7885 = vmatpush.bf16.msra.mxu0 %v1138
        %7886 = vmatpush.bf16.msra.mxu0 %v1136
        %7887 = vmatpush.bf16.msra.mxu0 %v1134
        %7888 = vmatpush.bf16.msra.mxu0 %v1132
        %7889 = vmatpush.bf16.msra.mxu0 %v1130
        %7890 = vmatpush.bf16.msra.mxu0 %v1128
        %7891 = vmatmul.bf16.gmra.mxu0 %v7742
        %v7892 = vpop.f32.mrf.mxu0
        %v7893 = vadd.f32 %v7879, %v7892
        %v7894 = vpop.f32.mrf.mxu0
        %v7895 = vadd.f32 %v7881, %v7894
        %7896 = vdwg.mxu0
        %7897 = vmatpush.bf16.msra.mxu0 %v1158
        %7898 = vmatpush.bf16.msra.mxu0 %v1156
        %7899 = vmatpush.bf16.msra.mxu0 %v1154
        %7900 = vmatpush.bf16.msra.mxu0 %v1152
        %7901 = vmatpush.bf16.msra.mxu0 %v1150
        %7902 = vmatpush.bf16.msra.mxu0 %v1148
        %7903 = vmatpush.bf16.msra.mxu0 %v1146
        %7904 = vmatpush.bf16.msra.mxu0 %v1144
        %7905 = vmatmul.bf16.gmra.mxu0 %v7743
        %v7906 = vpop.f32.mrf.mxu0
        %v7907 = vadd.f32 %v7893, %v7906
        %v7908 = vpop.f32.mrf.mxu0
        %v7909 = vadd.f32 %v7895, %v7908
        %7910 = vdwg.mxu0
        %7911 = vmatpush.bf16.msra.mxu0 %v1174
        %7912 = vmatpush.bf16.msra.mxu0 %v1172
        %7913 = vmatpush.bf16.msra.mxu0 %v1170
        %7914 = vmatpush.bf16.msra.mxu0 %v1168
        %7915 = vmatpush.bf16.msra.mxu0 %v1166
        %7916 = vmatpush.bf16.msra.mxu0 %v1164
        %7917 = vmatpush.bf16.msra.mxu0 %v1162
        %7918 = vmatpush.bf16.msra.mxu0 %v1160
        %7919 = vmatmul.bf16.gmra.mxu0 %v7744
        %v7920 = vpop.f32.mrf.mxu0
        %v7921 = vadd.f32 %v7907, %v7920
        %v7922 = vpop.f32.mrf.mxu0
        %v7923 = vadd.f32 %v7909, %v7922
        %7924 = vdwg.mxu0
        %7925 = vmatpush.bf16.msra.mxu0 %v1190
        %7926 = vmatpush.bf16.msra.mxu0 %v1188
        %7927 = vmatpush.bf16.msra.mxu0 %v1186
        %7928 = vmatpush.bf16.msra.mxu0 %v1184
        %7929 = vmatpush.bf16.msra.mxu0 %v1182
        %7930 = vmatpush.bf16.msra.mxu0 %v1180
        %7931 = vmatpush.bf16.msra.mxu0 %v1178
        %7932 = vmatpush.bf16.msra.mxu0 %v1176
        %7933 = vmatmul.bf16.gmra.mxu0 %v7745
        %v7934 = vpop.f32.mrf.mxu0
        %v7935 = vadd.f32 %v7921, %v7934
        %v7936 = vpop.f32.mrf.mxu0
        %v7937 = vadd.f32 %v7923, %v7936
        %7938 = vdwg.mxu0
        %7939 = vmatpush.bf16.msra.mxu0 %v1206
        %7940 = vmatpush.bf16.msra.mxu0 %v1204
        %7941 = vmatpush.bf16.msra.mxu0 %v1202
        %7942 = vmatpush.bf16.msra.mxu0 %v1200
        %7943 = vmatpush.bf16.msra.mxu0 %v1198
        %7944 = vmatpush.bf16.msra.mxu0 %v1196
        %7945 = vmatpush.bf16.msra.mxu0 %v1194
        %7946 = vmatpush.bf16.msra.mxu0 %v1192
        %7947 = vmatmul.bf16.gmra.mxu0 %v7746
        %v7948 = vpop.f32.mrf.mxu0
        %v7949 = vadd.f32 %v7935, %v7948
        %v7950 = vpop.f32.mrf.mxu0
        %v7951 = vadd.f32 %v7937, %v7950
        %7952 = vdwg.mxu0
        %7953 = vmatpush.bf16.msra.mxu0 %v1222
        %7954 = vmatpush.bf16.msra.mxu0 %v1220
        %7955 = vmatpush.bf16.msra.mxu0 %v1218
        %7956 = vmatpush.bf16.msra.mxu0 %v1216
        %7957 = vmatpush.bf16.msra.mxu0 %v1214
        %7958 = vmatpush.bf16.msra.mxu0 %v1212
        %7959 = vmatpush.bf16.msra.mxu0 %v1210
        %7960 = vmatpush.bf16.msra.mxu0 %v1208
        %7961 = vmatmul.bf16.gmra.mxu0 %v7747
        %v7962 = vpop.f32.mrf.mxu0
        %v7963 = vadd.f32 %v7949, %v7962
        %v7964 = vpop.f32.mrf.mxu0
        %v7965 = vadd.f32 %v7951, %v7964
        %7966 = vdwg.mxu0
        %7967 = vmatpush.bf16.msra.mxu0 %v1238
        %7968 = vmatpush.bf16.msra.mxu0 %v1236
        %7969 = vmatpush.bf16.msra.mxu0 %v1234
        %7970 = vmatpush.bf16.msra.mxu0 %v1232
        %7971 = vmatpush.bf16.msra.mxu0 %v1230
        %7972 = vmatpush.bf16.msra.mxu0 %v1228
        %7973 = vmatpush.bf16.msra.mxu0 %v1226
        %7974 = vmatpush.bf16.msra.mxu0 %v1224
        %7975 = vmatmul.bf16.gmra.mxu0 %v7748
        %v7976 = vpop.f32.mrf.mxu0
        %v7977 = vadd.f32 %v7963, %v7976
        %v7978 = vpop.f32.mrf.mxu0
        %v7979 = vadd.f32 %v7965, %v7978
        %7980 = vdwg.mxu0
        %v7981 = vmax.f32 %v7865, 0.0
        %v7982 = vmax.f32 %v7977, 0.0
        %v7983 = vmax.f32 %v7867, 0.0
        %v7984 = vmax.f32 %v7979, 0.0
        %s7985 = scalar_lea.vmem %s503, 128 [#allocation3]
        %v7986 = vld [vmem:[%s7985] sm:$0xff]
        %v7987 = vld [vmem:[%s7985 + $0x8] sm:$0xff]
        %7989 = vset.pattern.permute.xlu0 0
        %7990 = vperm.xlu0 %7989, %v7986
        %v7991 = vpop.permute.xlu0 %7990
        %7994 = vset.pattern.permute.xlu0 0
        %7995 = vperm.xlu0 %7994, %v7987
        %v7996 = vpop.permute.xlu0 %7995
        %v7998 = vmul.f32 %v7981, %v7991
        %v7999 = vmul.f32 %v7982, %v7991
        %v8000 = vmul.f32 %v7983, %v7996
        %v8001 = vmul.f32 %v7984, %v7996
        %v8002 = vpack.c.bf16 %v8000, %v7998
        %v8003 = vpack.c.bf16 %v8001, %v7999
        %s8004 = scalar_lea.vmem %s4, 4096
        %v8005 = vld [vmem:[%s8004] sm:$0xff]
        %v8006 = vld [vmem:[%s8004 + $0x8] sm:$0xff]
        %v8007 = vld [vmem:[%s8004 + $0x10] sm:$0xff]
        %v8008 = vld [vmem:[%s8004 + $0x18] sm:$0xff]
        %v8009 = vld [vmem:[%s8004 + $0x20] sm:$0xff]
        %v8010 = vld [vmem:[%s8004 + $0x28] sm:$0xff]
        %v8011 = vld [vmem:[%s8004 + $0x30] sm:$0xff]
        %v8012 = vld [vmem:[%s8004 + $0x38] sm:$0xff]
        %v8013 = vld [vmem:[%s8004 + $0x40] sm:$0xff]
        %v8014 = vld [vmem:[%s8004 + $0x48] sm:$0xff]
        %v8015 = vld [vmem:[%s8004 + $0x50] sm:$0xff]
        %v8016 = vld [vmem:[%s8004 + $0x58] sm:$0xff]
        %v8017 = vld [vmem:[%s8004 + $0x60] sm:$0xff]
        %v8018 = vld [vmem:[%s8004 + $0x68] sm:$0xff]
        %v8019 = vld [vmem:[%s8004 + $0x70] sm:$0xff]
        %v8020 = vld [vmem:[%s8004 + $0x78] sm:$0xff]
        %v8021 = vld [vmem:[%s8004 + $0x80] sm:$0xff]
        %v8022 = vld [vmem:[%s8004 + $0x88] sm:$0xff]
        %v8023 = vld [vmem:[%s8004 + $0x90] sm:$0xff]
        %v8024 = vld [vmem:[%s8004 + $0x98] sm:$0xff]
        %v8025 = vld [vmem:[%s8004 + $0xa0] sm:$0xff]
        %v8026 = vld [vmem:[%s8004 + $0xa8] sm:$0xff]
        %v8027 = vld [vmem:[%s8004 + $0xb0] sm:$0xff]
        %v8028 = vld [vmem:[%s8004 + $0xb8] sm:$0xff]
        %v8029 = vld [vmem:[%s8004 + $0xc0] sm:$0xff]
        %v8030 = vld [vmem:[%s8004 + $0xc8] sm:$0xff]
        %v8031 = vld [vmem:[%s8004 + $0xd0] sm:$0xff]
        %v8032 = vld [vmem:[%s8004 + $0xd8] sm:$0xff]
        %v8033 = vld [vmem:[%s8004 + $0xe0] sm:$0xff]
        %v8034 = vld [vmem:[%s8004 + $0xe8] sm:$0xff]
        %v8035 = vld [vmem:[%s8004 + $0xf0] sm:$0xff]
        %v8036 = vld [vmem:[%s8004 + $0xf8] sm:$0xff]
        %v8037 = vld [vmem:[%s8004 + $0x100] sm:$0xff]
        %v8038 = vld [vmem:[%s8004 + $0x108] sm:$0xff]
        %v8039 = vld [vmem:[%s8004 + $0x110] sm:$0xff]
        %v8040 = vld [vmem:[%s8004 + $0x118] sm:$0xff]
        %v8041 = vld [vmem:[%s8004 + $0x120] sm:$0xff]
        %v8042 = vld [vmem:[%s8004 + $0x128] sm:$0xff]
        %v8043 = vld [vmem:[%s8004 + $0x130] sm:$0xff]
        %v8044 = vld [vmem:[%s8004 + $0x138] sm:$0xff]
        %v8045 = vld [vmem:[%s8004 + $0x140] sm:$0xff]
        %v8046 = vld [vmem:[%s8004 + $0x148] sm:$0xff]
        %v8047 = vld [vmem:[%s8004 + $0x150] sm:$0xff]
        %v8048 = vld [vmem:[%s8004 + $0x158] sm:$0xff]
        %v8049 = vld [vmem:[%s8004 + $0x160] sm:$0xff]
        %v8050 = vld [vmem:[%s8004 + $0x168] sm:$0xff]
        %v8051 = vld [vmem:[%s8004 + $0x170] sm:$0xff]
        %v8052 = vld [vmem:[%s8004 + $0x178] sm:$0xff]
        %v8053 = vld [vmem:[%s8004 + $0x180] sm:$0xff]
        %v8054 = vld [vmem:[%s8004 + $0x188] sm:$0xff]
        %v8055 = vld [vmem:[%s8004 + $0x190] sm:$0xff]
        %v8056 = vld [vmem:[%s8004 + $0x198] sm:$0xff]
        %v8057 = vld [vmem:[%s8004 + $0x1a0] sm:$0xff]
        %v8058 = vld [vmem:[%s8004 + $0x1a8] sm:$0xff]
        %v8059 = vld [vmem:[%s8004 + $0x1b0] sm:$0xff]
        %v8060 = vld [vmem:[%s8004 + $0x1b8] sm:$0xff]
        %v8061 = vld [vmem:[%s8004 + $0x1c0] sm:$0xff]
        %v8062 = vld [vmem:[%s8004 + $0x1c8] sm:$0xff]
        %v8063 = vld [vmem:[%s8004 + $0x1d0] sm:$0xff]
        %v8064 = vld [vmem:[%s8004 + $0x1d8] sm:$0xff]
        %v8065 = vld [vmem:[%s8004 + $0x1e0] sm:$0xff]
        %v8066 = vld [vmem:[%s8004 + $0x1e8] sm:$0xff]
        %v8067 = vld [vmem:[%s8004 + $0x1f0] sm:$0xff]
        %v8068 = vld [vmem:[%s8004 + $0x1f8] sm:$0xff]
        %v8133 = vunpack.c.l.b16 %v8005
        %v8134 = vunpack.c.h.b16 %v8005
        %v8135 = vunpack.c.l.b16 %v8006
        %v8136 = vunpack.c.h.b16 %v8006
        %v8137 = vunpack.c.l.b16 %v8007
        %v8138 = vunpack.c.h.b16 %v8007
        %v8139 = vunpack.c.l.b16 %v8008
        %v8140 = vunpack.c.h.b16 %v8008
        %v8141 = vunpack.c.l.b16 %v8009
        %v8142 = vunpack.c.h.b16 %v8009
        %v8143 = vunpack.c.l.b16 %v8010
        %v8144 = vunpack.c.h.b16 %v8010
        %v8145 = vunpack.c.l.b16 %v8011
        %v8146 = vunpack.c.h.b16 %v8011
        %v8147 = vunpack.c.l.b16 %v8012
        %v8148 = vunpack.c.h.b16 %v8012
        %v8149 = vunpack.c.l.b16 %v8013
        %v8150 = vunpack.c.h.b16 %v8013
        %v8151 = vunpack.c.l.b16 %v8014
        %v8152 = vunpack.c.h.b16 %v8014
        %v8153 = vunpack.c.l.b16 %v8015
        %v8154 = vunpack.c.h.b16 %v8015
        %v8155 = vunpack.c.l.b16 %v8016
        %v8156 = vunpack.c.h.b16 %v8016
        %v8157 = vunpack.c.l.b16 %v8017
        %v8158 = vunpack.c.h.b16 %v8017
        %v8159 = vunpack.c.l.b16 %v8018
        %v8160 = vunpack.c.h.b16 %v8018
        %v8161 = vunpack.c.l.b16 %v8019
        %v8162 = vunpack.c.h.b16 %v8019
        %v8163 = vunpack.c.l.b16 %v8020
        %v8164 = vunpack.c.h.b16 %v8020
        %v8165 = vunpack.c.l.b16 %v8021
        %v8166 = vunpack.c.h.b16 %v8021
        %v8167 = vunpack.c.l.b16 %v8022
        %v8168 = vunpack.c.h.b16 %v8022
        %v8169 = vunpack.c.l.b16 %v8023
        %v8170 = vunpack.c.h.b16 %v8023
        %v8171 = vunpack.c.l.b16 %v8024
        %v8172 = vunpack.c.h.b16 %v8024
        %v8173 = vunpack.c.l.b16 %v8025
        %v8174 = vunpack.c.h.b16 %v8025
        %v8175 = vunpack.c.l.b16 %v8026
        %v8176 = vunpack.c.h.b16 %v8026
        %v8177 = vunpack.c.l.b16 %v8027
        %v8178 = vunpack.c.h.b16 %v8027
        %v8179 = vunpack.c.l.b16 %v8028
        %v8180 = vunpack.c.h.b16 %v8028
        %v8181 = vunpack.c.l.b16 %v8029
        %v8182 = vunpack.c.h.b16 %v8029
        %v8183 = vunpack.c.l.b16 %v8030
        %v8184 = vunpack.c.h.b16 %v8030
        %v8185 = vunpack.c.l.b16 %v8031
        %v8186 = vunpack.c.h.b16 %v8031
        %v8187 = vunpack.c.l.b16 %v8032
        %v8188 = vunpack.c.h.b16 %v8032
        %v8189 = vunpack.c.l.b16 %v8033
        %v8190 = vunpack.c.h.b16 %v8033
        %v8191 = vunpack.c.l.b16 %v8034
        %v8192 = vunpack.c.h.b16 %v8034
        %v8193 = vunpack.c.l.b16 %v8035
        %v8194 = vunpack.c.h.b16 %v8035
        %v8195 = vunpack.c.l.b16 %v8036
        %v8196 = vunpack.c.h.b16 %v8036
        %v8197 = vunpack.c.l.b16 %v8037
        %v8198 = vunpack.c.h.b16 %v8037
        %v8199 = vunpack.c.l.b16 %v8038
        %v8200 = vunpack.c.h.b16 %v8038
        %v8201 = vunpack.c.l.b16 %v8039
        %v8202 = vunpack.c.h.b16 %v8039
        %v8203 = vunpack.c.l.b16 %v8040
        %v8204 = vunpack.c.h.b16 %v8040
        %v8205 = vunpack.c.l.b16 %v8041
        %v8206 = vunpack.c.h.b16 %v8041
        %v8207 = vunpack.c.l.b16 %v8042
        %v8208 = vunpack.c.h.b16 %v8042
        %v8209 = vunpack.c.l.b16 %v8043
        %v8210 = vunpack.c.h.b16 %v8043
        %v8211 = vunpack.c.l.b16 %v8044
        %v8212 = vunpack.c.h.b16 %v8044
        %v8213 = vunpack.c.l.b16 %v8045
        %v8214 = vunpack.c.h.b16 %v8045
        %v8215 = vunpack.c.l.b16 %v8046
        %v8216 = vunpack.c.h.b16 %v8046
        %v8217 = vunpack.c.l.b16 %v8047
        %v8218 = vunpack.c.h.b16 %v8047
        %v8219 = vunpack.c.l.b16 %v8048
        %v8220 = vunpack.c.h.b16 %v8048
        %v8221 = vunpack.c.l.b16 %v8049
        %v8222 = vunpack.c.h.b16 %v8049
        %v8223 = vunpack.c.l.b16 %v8050
        %v8224 = vunpack.c.h.b16 %v8050
        %v8225 = vunpack.c.l.b16 %v8051
        %v8226 = vunpack.c.h.b16 %v8051
        %v8227 = vunpack.c.l.b16 %v8052
        %v8228 = vunpack.c.h.b16 %v8052
        %v8229 = vunpack.c.l.b16 %v8053
        %v8230 = vunpack.c.h.b16 %v8053
        %v8231 = vunpack.c.l.b16 %v8054
        %v8232 = vunpack.c.h.b16 %v8054
        %v8233 = vunpack.c.l.b16 %v8055
        %v8234 = vunpack.c.h.b16 %v8055
        %v8235 = vunpack.c.l.b16 %v8056
        %v8236 = vunpack.c.h.b16 %v8056
        %v8237 = vunpack.c.l.b16 %v8057
        %v8238 = vunpack.c.h.b16 %v8057
        %v8239 = vunpack.c.l.b16 %v8058
        %v8240 = vunpack.c.h.b16 %v8058
        %v8241 = vunpack.c.l.b16 %v8059
        %v8242 = vunpack.c.h.b16 %v8059
        %v8243 = vunpack.c.l.b16 %v8060
        %v8244 = vunpack.c.h.b16 %v8060
        %v8245 = vunpack.c.l.b16 %v8061
        %v8246 = vunpack.c.h.b16 %v8061
        %v8247 = vunpack.c.l.b16 %v8062
        %v8248 = vunpack.c.h.b16 %v8062
        %v8249 = vunpack.c.l.b16 %v8063
        %v8250 = vunpack.c.h.b16 %v8063
        %v8251 = vunpack.c.l.b16 %v8064
        %v8252 = vunpack.c.h.b16 %v8064
        %v8253 = vunpack.c.l.b16 %v8065
        %v8254 = vunpack.c.h.b16 %v8065
        %v8255 = vunpack.c.l.b16 %v8066
        %v8256 = vunpack.c.h.b16 %v8066
        %v8257 = vunpack.c.l.b16 %v8067
        %v8258 = vunpack.c.h.b16 %v8067
        %v8259 = vunpack.c.l.b16 %v8068
        %v8260 = vunpack.c.h.b16 %v8068
        %v8261 = vpack.c.b16 %v8137, %v8133
        %v8262 = vpack.c.b16 %v8138, %v8134
        %v8263 = vpack.c.b16 %v8139, %v8135
        %v8264 = vpack.c.b16 %v8140, %v8136
        %v8265 = vpack.c.b16 %v8145, %v8141
        %v8266 = vpack.c.b16 %v8146, %v8142
        %v8267 = vpack.c.b16 %v8147, %v8143
        %v8268 = vpack.c.b16 %v8148, %v8144
        %v8269 = vpack.c.b16 %v8153, %v8149
        %v8270 = vpack.c.b16 %v8154, %v8150
        %v8271 = vpack.c.b16 %v8155, %v8151
        %v8272 = vpack.c.b16 %v8156, %v8152
        %v8273 = vpack.c.b16 %v8161, %v8157
        %v8274 = vpack.c.b16 %v8162, %v8158
        %v8275 = vpack.c.b16 %v8163, %v8159
        %v8276 = vpack.c.b16 %v8164, %v8160
        %v8277 = vpack.c.b16 %v8169, %v8165
        %v8278 = vpack.c.b16 %v8170, %v8166
        %v8279 = vpack.c.b16 %v8171, %v8167
        %v8280 = vpack.c.b16 %v8172, %v8168
        %v8281 = vpack.c.b16 %v8177, %v8173
        %v8282 = vpack.c.b16 %v8178, %v8174
        %v8283 = vpack.c.b16 %v8179, %v8175
        %v8284 = vpack.c.b16 %v8180, %v8176
        %v8285 = vpack.c.b16 %v8185, %v8181
        %v8286 = vpack.c.b16 %v8186, %v8182
        %v8287 = vpack.c.b16 %v8187, %v8183
        %v8288 = vpack.c.b16 %v8188, %v8184
        %v8289 = vpack.c.b16 %v8193, %v8189
        %v8290 = vpack.c.b16 %v8194, %v8190
        %v8291 = vpack.c.b16 %v8195, %v8191
        %v8292 = vpack.c.b16 %v8196, %v8192
        %v8293 = vpack.c.b16 %v8201, %v8197
        %v8294 = vpack.c.b16 %v8202, %v8198
        %v8295 = vpack.c.b16 %v8203, %v8199
        %v8296 = vpack.c.b16 %v8204, %v8200
        %v8297 = vpack.c.b16 %v8209, %v8205
        %v8298 = vpack.c.b16 %v8210, %v8206
        %v8299 = vpack.c.b16 %v8211, %v8207
        %v8300 = vpack.c.b16 %v8212, %v8208
        %v8301 = vpack.c.b16 %v8217, %v8213
        %v8302 = vpack.c.b16 %v8218, %v8214
        %v8303 = vpack.c.b16 %v8219, %v8215
        %v8304 = vpack.c.b16 %v8220, %v8216
        %v8305 = vpack.c.b16 %v8225, %v8221
        %v8306 = vpack.c.b16 %v8226, %v8222
        %v8307 = vpack.c.b16 %v8227, %v8223
        %v8308 = vpack.c.b16 %v8228, %v8224
        %v8309 = vpack.c.b16 %v8233, %v8229
        %v8310 = vpack.c.b16 %v8234, %v8230
        %v8311 = vpack.c.b16 %v8235, %v8231
        %v8312 = vpack.c.b16 %v8236, %v8232
        %v8313 = vpack.c.b16 %v8241, %v8237
        %v8314 = vpack.c.b16 %v8242, %v8238
        %v8315 = vpack.c.b16 %v8243, %v8239
        %v8316 = vpack.c.b16 %v8244, %v8240
        %v8317 = vpack.c.b16 %v8249, %v8245
        %v8318 = vpack.c.b16 %v8250, %v8246
        %v8319 = vpack.c.b16 %v8251, %v8247
        %v8320 = vpack.c.b16 %v8252, %v8248
        %v8321 = vpack.c.b16 %v8257, %v8253
        %v8322 = vpack.c.b16 %v8258, %v8254
        %v8323 = vpack.c.b16 %v8259, %v8255
        %v8324 = vpack.c.b16 %v8260, %v8256
        %8389 = vmatpush.bf16.msra.mxu0 %v8289
        %8390 = vmatpush.bf16.msra.mxu0 %v8285
        %8391 = vmatpush.bf16.msra.mxu0 %v8281
        %8392 = vmatpush.bf16.msra.mxu0 %v8277
        %8393 = vmatpush.bf16.msra.mxu0 %v8273
        %8394 = vmatpush.bf16.msra.mxu0 %v8269
        %8395 = vmatpush.bf16.msra.mxu0 %v8265
        %8396 = vmatpush.bf16.msra.mxu0 %v8261
        %8397 = vmatmul.bf16.gmra.mxu0 %v8002
        %v8398 = vpop.f32.mrf.mxu0
        %v8399 = vadd.f32 0.0, %v8398
        %v8400 = vpop.f32.mrf.mxu0
        %v8401 = vadd.f32 0.0, %v8400
        %8402 = vdwg.mxu0
        %8403 = vmatpush.bf16.msra.mxu0 %v8321
        %8404 = vmatpush.bf16.msra.mxu0 %v8317
        %8405 = vmatpush.bf16.msra.mxu0 %v8313
        %8406 = vmatpush.bf16.msra.mxu0 %v8309
        %8407 = vmatpush.bf16.msra.mxu0 %v8305
        %8408 = vmatpush.bf16.msra.mxu0 %v8301
        %8409 = vmatpush.bf16.msra.mxu0 %v8297
        %8410 = vmatpush.bf16.msra.mxu0 %v8293
        %8411 = vmatmul.bf16.gmra.mxu0 %v8003
        %v8412 = vpop.f32.mrf.mxu0
        %v8413 = vadd.f32 %v8399, %v8412
        %v8414 = vpop.f32.mrf.mxu0
        %v8415 = vadd.f32 %v8401, %v8414
        %8416 = vdwg.mxu0
        %8417 = vmatpush.bf16.msra.mxu0 %v8290
        %8418 = vmatpush.bf16.msra.mxu0 %v8286
        %8419 = vmatpush.bf16.msra.mxu0 %v8282
        %8420 = vmatpush.bf16.msra.mxu0 %v8278
        %8421 = vmatpush.bf16.msra.mxu0 %v8274
        %8422 = vmatpush.bf16.msra.mxu0 %v8270
        %8423 = vmatpush.bf16.msra.mxu0 %v8266
        %8424 = vmatpush.bf16.msra.mxu0 %v8262
        %8425 = vmatmul.bf16.gmra.mxu0 %v8002
        %v8426 = vpop.f32.mrf.mxu0
        %v8427 = vadd.f32 0.0, %v8426
        %v8428 = vpop.f32.mrf.mxu0
        %v8429 = vadd.f32 0.0, %v8428
        %8430 = vdwg.mxu0
        %8431 = vmatpush.bf16.msra.mxu0 %v8322
        %8432 = vmatpush.bf16.msra.mxu0 %v8318
        %8433 = vmatpush.bf16.msra.mxu0 %v8314
        %8434 = vmatpush.bf16.msra.mxu0 %v8310
        %8435 = vmatpush.bf16.msra.mxu0 %v8306
        %8436 = vmatpush.bf16.msra.mxu0 %v8302
        %8437 = vmatpush.bf16.msra.mxu0 %v8298
        %8438 = vmatpush.bf16.msra.mxu0 %v8294
        %8439 = vmatmul.bf16.gmra.mxu0 %v8003
        %v8440 = vpop.f32.mrf.mxu0
        %v8441 = vadd.f32 %v8427, %v8440
        %v8442 = vpop.f32.mrf.mxu0
        %v8443 = vadd.f32 %v8429, %v8442
        %8444 = vdwg.mxu0
        %8445 = vmatpush.bf16.msra.mxu0 %v8291
        %8446 = vmatpush.bf16.msra.mxu0 %v8287
        %8447 = vmatpush.bf16.msra.mxu0 %v8283
        %8448 = vmatpush.bf16.msra.mxu0 %v8279
        %8449 = vmatpush.bf16.msra.mxu0 %v8275
        %8450 = vmatpush.bf16.msra.mxu0 %v8271
        %8451 = vmatpush.bf16.msra.mxu0 %v8267
        %8452 = vmatpush.bf16.msra.mxu0 %v8263
        %8453 = vmatmul.bf16.gmra.mxu0 %v8002
        %v8454 = vpop.f32.mrf.mxu0
        %v8455 = vadd.f32 0.0, %v8454
        %v8456 = vpop.f32.mrf.mxu0
        %v8457 = vadd.f32 0.0, %v8456
        %8458 = vdwg.mxu0
        %8459 = vmatpush.bf16.msra.mxu0 %v8323
        %8460 = vmatpush.bf16.msra.mxu0 %v8319
        %8461 = vmatpush.bf16.msra.mxu0 %v8315
        %8462 = vmatpush.bf16.msra.mxu0 %v8311
        %8463 = vmatpush.bf16.msra.mxu0 %v8307
        %8464 = vmatpush.bf16.msra.mxu0 %v8303
        %8465 = vmatpush.bf16.msra.mxu0 %v8299
        %8466 = vmatpush.bf16.msra.mxu0 %v8295
        %8467 = vmatmul.bf16.gmra.mxu0 %v8003
        %v8468 = vpop.f32.mrf.mxu0
        %v8469 = vadd.f32 %v8455, %v8468
        %v8470 = vpop.f32.mrf.mxu0
        %v8471 = vadd.f32 %v8457, %v8470
        %8472 = vdwg.mxu0
        %8473 = vmatpush.bf16.msra.mxu0 %v8292
        %8474 = vmatpush.bf16.msra.mxu0 %v8288
        %8475 = vmatpush.bf16.msra.mxu0 %v8284
        %8476 = vmatpush.bf16.msra.mxu0 %v8280
        %8477 = vmatpush.bf16.msra.mxu0 %v8276
        %8478 = vmatpush.bf16.msra.mxu0 %v8272
        %8479 = vmatpush.bf16.msra.mxu0 %v8268
        %8480 = vmatpush.bf16.msra.mxu0 %v8264
        %8481 = vmatmul.bf16.gmra.mxu0 %v8002
        %v8482 = vpop.f32.mrf.mxu0
        %v8483 = vadd.f32 0.0, %v8482
        %v8484 = vpop.f32.mrf.mxu0
        %v8485 = vadd.f32 0.0, %v8484
        %8486 = vdwg.mxu0
        %8487 = vmatpush.bf16.msra.mxu0 %v8324
        %8488 = vmatpush.bf16.msra.mxu0 %v8320
        %8489 = vmatpush.bf16.msra.mxu0 %v8316
        %8490 = vmatpush.bf16.msra.mxu0 %v8312
        %8491 = vmatpush.bf16.msra.mxu0 %v8308
        %8492 = vmatpush.bf16.msra.mxu0 %v8304
        %8493 = vmatpush.bf16.msra.mxu0 %v8300
        %8494 = vmatpush.bf16.msra.mxu0 %v8296
        %8495 = vmatmul.bf16.gmra.mxu0 %v8003
        %v8496 = vpop.f32.mrf.mxu0
        %v8497 = vadd.f32 %v8483, %v8496
        %v8498 = vpop.f32.mrf.mxu0
        %v8499 = vadd.f32 %v8485, %v8498
        %8500 = vdwg.mxu0
        %v8501 = vadd.f32 %v7700, %v8413
        %v8502 = vadd.f32 %v7701, %v8441
        %v8503 = vadd.f32 %v7702, %v8469
        %v8504 = vadd.f32 %v7703, %v8497
        %v8505 = vadd.f32 %v7704, %v8415
        %v8506 = vadd.f32 %v7705, %v8443
        %v8507 = vadd.f32 %v7706, %v8471
        %v8508 = vadd.f32 %v7707, %v8499
        %v8510 = vperm.slane %v673, 0
        %v8511 = vperm.slane %v673, 1
        %v8512 = vperm.slane %v673, 2
        %v8513 = vperm.slane %v673, 3
        %v8518 = vadd.f32 %v8501, %v8510
        %v8519 = vadd.f32 %v8502, %v8511
        %v8520 = vadd.f32 %v8503, %v8512
        %v8521 = vadd.f32 %v8504, %v8513
        %v8522 = vadd.f32 %v8505, %v8510
        %v8523 = vadd.f32 %v8506, %v8511
        %v8524 = vadd.f32 %v8507, %v8512
        %v8525 = vadd.f32 %v8508, %v8513
        %v8526 = vmax.f32 %v8518, 0.0
        %v8527 = vmax.f32 %v8519, 0.0
        %v8528 = vmax.f32 %v8520, 0.0
        %v8529 = vmax.f32 %v8521, 0.0
        %v8530 = vmax.f32 %v8522, 0.0
        %v8531 = vmax.f32 %v8523, 0.0
        %v8532 = vmax.f32 %v8524, 0.0
        %v8533 = vmax.f32 %v8525, 0.0
        %8534 = vst [vmem:[%s542] sm:$0xff] %v8526
        %8535 = vst [vmem:[%s542 + $0x8] sm:$0xff] %v8527
        %8536 = vst [vmem:[%s542 + $0x10] sm:$0xff] %v8528
        %8537 = vst [vmem:[%s542 + $0x18] sm:$0xff] %v8529
        %8538 = vst [vmem:[%s542 + $0x20] sm:$0xff] %v8530
        %8539 = vst [vmem:[%s542 + $0x28] sm:$0xff] %v8531
        %8540 = vst [vmem:[%s542 + $0x30] sm:$0xff] %v8532
        %8541 = vst [vmem:[%s542 + $0x38] sm:$0xff] %v8533
        %s8542 = smul.u32 2, %s17
        %p8543 = scmp.lt.s32.totalorder %s8542, 3
        %s8544 = scalar_select %p8543, %s8542, 3
        %s8545 = smul.addr %s8544, 4
        %s8546 = smul.addr %s8545, 8
        %s8547 = scalar_lea.vmem %s6, %s8546
        // Predicated region
        $region106: #{extra_conv6_2_forward.1} parent=96 // pred_check
          %p8548 = pneg %p171
        $region107: #{extra_conv6_2_forward.1} parent=96 // pred_check_branch
          %8550 = sbr.rel (%p8548) target = $region109
        $region108: #{extra_conv6_2_forward.1} parent=96 // pred_region
          %s8551 = smul.u32 2, %s17
        $region109: #{extra_conv6_2_forward.1} parent=96 // pred_fallthru
          _
      $region97: #{extra_conv6_2_forward.1} parent=5 // pred_fallthru
        _
      %p8552 = scmp.le.s32.totalorder 2, %s12
      // Predicated region
      $region110: #{extra_conv6_2_forward.1} parent=5 // pred_check
        %p8553 = pneg %p8552
      $region111: #{extra_conv6_2_forward.1} parent=5 // pred_check_branch
        %8555 = sbr.rel (%p8553) target = $region113
      $region112: #{extra_conv6_2_forward.1} parent=5 // pred_region
        %s8556 = ssub.s32 %s12, 2
        // Predicated region
        $region114: #{extra_conv6_2_forward.1} parent=112 // pred_check
          %p8557 = pneg %p177
        $region115: #{extra_conv6_2_forward.1} parent=112 // pred_check_branch
          %8559 = sbr.rel (%p8557) target = $region117
        $region116: #{extra_conv6_2_forward.1} parent=112 // pred_region
          %s8560 = smul.u32 2, %s18
          %p8561 = scmp.lt.s32.totalorder %s8560, 3
          %s8562 = scalar_select %p8561, %s8560, 3
          %s8563 = smul.addr %s8562, 4
          %s8564 = smul.addr %s8563, 8
          %s8565 = scalar_lea.vmem %s6, %s8564
        $region117: #{extra_conv6_2_forward.1} parent=112 // pred_fallthru
          _
      $region113: #{extra_conv6_2_forward.1} parent=5 // pred_fallthru
        _
    $region6: #{extra_conv6_2_forward.1} parent=1 // loop_footer
      %s16 = sadd.s32 1, %s12
    $region7: #{extra_conv6_2_forward.1} parent=1 // loop_footer_branch
      %11 = sbr.rel target = $region3
    $region8: #{extra_conv6_2_forward.1} parent=1 // loop_exit
      _

</llo_original>
